<compile_context>
chip_gen: v6e
topology: v6e:2x2x1
jax: 0.10.0
libtpu: 0.0.40
codegen_flags: <defaults>
</compile_context>

<pallas_src>
import functools
import math

import jax
import jax.numpy as jnp
from jax.experimental import pallas as pl
from jax.experimental.pallas import tpu as pltpu


# ----------------------------- kernel helpers -----------------------------

def _mm(a, b):
    # f32 operands, f32 accumulation.  (bf16 operands only help once the
    # contraction dim fills MXU rows; at K=8..64 they are pure cast traffic.)
    return jnp.dot(a, b, preferred_element_type=jnp.float32)


def _layer_norm(x, g, b, eps=1e-5):
    mu = jnp.mean(x, axis=-1, keepdims=True)
    var = jnp.mean((x - mu) ** 2, axis=-1, keepdims=True)
    return (x - mu) * jax.lax.rsqrt(var + eps) * g + b


def _erf(x):
    # Abramowitz & Stegun 7.1.26, |error| < 1.5e-7 (matches exact erf-GELU);
    # the exp() lands on the EUP slot.
    a1, a2, a3, a4, a5 = 0.254829592, -0.284496736, 1.421413741, -1.453152027, 1.061405429
    p = 0.3275911
    s = jnp.where(x >= 0.0, 1.0, -1.0)
    ax = jnp.abs(x)
    t = 1.0 / (1.0 + p * ax)
    poly = ((((a5 * t + a4) * t + a3) * t + a2) * t + a1) * t
    return s * (1.0 - poly * jnp.exp(-ax * ax))


def _gelu_exact(x):
    return 0.5 * x * (1.0 + _erf(x * 0.7071067811865476))


# ------------------------------- fused kernel -------------------------------

def fused_vit_kernel(patches_ref, patch_w_ref, pos_ref,
                     wqkv_ref, bqkv_ref, wo_ref, bo_ref,
                     ln1g_ref, ln1b_ref, w1_ref, b1_ref, w2_ref, b2_ref,
                     ln2g_ref, ln2b_ref,
                     proj_w_ref, proj_b_ref,
                     out_ref, *, batch, seq, num_heads, num_layers):
    B, S, nh = batch, seq, num_heads
    BS = B * S

    # --- patch embedding (Normalize folded into patch_w on host) + pos add --
    x = _mm(patches_ref[...], patch_w_ref[...])                 # (BS, H)
    x = x + pos_ref[...]                                        # pos pre-tiled to (BS, H)
    H = x.shape[-1]
    hd = H // nh

    # --- transformer stack (encoder + "decoder", both self-attention only) ---
    for l in range(num_layers):                                 # static unroll (L=4)
        qkv = _mm(x, wqkv_ref[l]) + bqkv_ref[l]                 # (BS, 3H); Q pre-scaled

        # Stack heads on the leading (batch) axis: (nh*B, S, hd).  Only copies.
        def _stack_heads(base, _qkv=qkv):
            return jnp.concatenate(
                [_qkv[:, base + h * hd: base + (h + 1) * hd].reshape(B, S, hd)
                 for h in range(nh)], axis=0)

        qh = _stack_heads(0)
        kh = _stack_heads(H)
        vh = _stack_heads(2 * H)

        # One score einsum + one AV einsum for ALL heads (batch dim = nh*B).
        s = jnp.einsum('bqd,bkd->bqk', qh, kh,
                       preferred_element_type=jnp.float32)      # (nh*B, S, S)
        s = s - jnp.max(s, axis=-1, keepdims=True)
        e = jnp.exp(s)
        p = e / jnp.sum(e, axis=-1, keepdims=True)              # exact softmax
        ctx = jnp.einsum('bqk,bkd->bqd', p, vh,
                         preferred_element_type=jnp.float32)    # (nh*B, S, hd)

        # Merge heads back to (BS, H) and apply a single output projection.
        attn = jnp.concatenate(
            [ctx[h * B:(h + 1) * B].reshape(BS, hd) for h in range(nh)],
            axis=-1)                                            # (BS, H)
        attn = _mm(attn, wo_ref[l]) + bo_ref[l]

        x1 = _layer_norm(x + attn, ln1g_ref[l], ln1b_ref[l])

        hmid = _gelu_exact(_mm(x1, w1_ref[l]) + b1_ref[l])
        ff = _mm(hmid, w2_ref[l]) + b2_ref[l]
        x = _layer_norm(x1 + ff, ln2g_ref[l], ln2b_ref[l])

    # --- projector (final *255 folded into proj_w/proj_b); lane-dense store --
    y = _mm(x, proj_w_ref[...]) + proj_b_ref[...]               # (BS, 128)
    out_ref[...] = jnp.clip(y, 0.0, 255.0)


# ----------------------------- pallas wrapper --------------------------------

_LAYER_ORDER = ("wqkv", "bqkv", "wo", "bo", "ln1g", "ln1b",
                "w1", "b1", "w2", "b2", "ln2g", "ln2b")


def _pinned_spec(shape):
    nd = len(shape)
    return pl.BlockSpec(shape, lambda i, _nd=nd: (0,) * _nd)


def run_fused_vit(patches, patch_w, pos, layers, proj_w, proj_b, *,
                  batch, seq, num_heads, num_blocks=None):
    BS, K = patches.shape
    H = patch_w.shape[1]
    K_pad = proj_w.shape[1]
    num_layers = layers["wqkv"].shape[0]

    if num_blocks is None:
        # One block per TensorCore on v7x (2 TCs); on v5e/v6e (1 TC) the extra
        # grid step is ~neutral.  For large batches, pick num_blocks so each
        # block keeps >= 256 token rows to amortize MXU latency.
        num_blocks = 2 if (batch % 2 == 0 and batch >= 2) else 1
    assert batch % num_blocks == 0
    b_blk = batch // num_blocks
    rows = b_blk * seq                                           # token rows per block

    # Pre-broadcast positional embedding to the flat token-major block layout.
    pos_tiled = jnp.tile(pos, (b_blk, 1))                        # (rows, H)

    layer_args = [layers[name] for name in _LAYER_ORDER]
    args = [patches, patch_w, pos_tiled] + layer_args + [proj_w, proj_b]

    in_specs = (
        [pl.BlockSpec((rows, K), lambda i: (i, 0)),              # per-block activations
         _pinned_spec(patch_w.shape),                            # weights: VMEM-resident
         _pinned_spec(pos_tiled.shape)]
        + [_pinned_spec(a.shape) for a in layer_args]
        + [_pinned_spec(proj_w.shape), _pinned_spec(proj_b.shape)]
    )

    kernel = functools.partial(fused_vit_kernel, batch=b_blk, seq=seq,
                               num_heads=num_heads, num_layers=num_layers)

    return pl.pallas_call(
        kernel,
        out_shape=jax.ShapeDtypeStruct((BS, K_pad), jnp.float32),
        grid=(num_blocks,),
        in_specs=in_specs,
        out_specs=pl.BlockSpec((rows, K_pad), lambda i: (i, 0)),
        compiler_params=pltpu.CompilerParams(dimension_semantics=("parallel",)),
    )(*args)


# ----------------------------- parameter init --------------------------------

def _norm_init(key, shape, scale=0.02):
    return (scale * jax.random.normal(key, shape)).astype(jnp.float32)


def init_params(key, image_size, patch_size, num_enc, num_dec, hidden, intermediate):
    """Raw, PyTorch-equivalent parameters (already transposed to x @ W form)."""
    G = image_size // patch_size
    P = G * G
    K = 3 * patch_size * patch_size
    L = num_enc + num_dec                          # encoder + decoder stacks

    ks = jax.random.split(key, 4 + 4 * L)
    wqkv = jnp.stack([_norm_init(ks[4 + 4 * l + 0], (hidden, 3 * hidden)) for l in range(L)])
    wo = jnp.stack([_norm_init(ks[4 + 4 * l + 1], (hidden, hidden)) for l in range(L)])
    w1 = jnp.stack([_norm_init(ks[4 + 4 * l + 2], (hidden, intermediate)) for l in range(L)])
    w2 = jnp.stack([_norm_init(ks[4 + 4 * l + 3], (intermediate, hidden)) for l in range(L)])
    layers = {
        "wqkv": wqkv,                                            # in_proj_weight^T
        "bqkv": jnp.zeros((L, 1, 3 * hidden), jnp.float32),      # in_proj_bias
        "wo": wo,                                                # out_proj.weight^T
        "bo": jnp.zeros((L, 1, hidden), jnp.float32),            # out_proj.bias
        "ln1g": jnp.ones((L, 1, hidden), jnp.float32),
        "ln1b": jnp.zeros((L, 1, hidden), jnp.float32),
        "w1": w1,                                                # linear1.weight^T
        "b1": jnp.zeros((L, 1, intermediate), jnp.float32),
        "w2": w2,                                                # linear2.weight^T
        "b2": jnp.zeros((L, 1, hidden), jnp.float32),
        "ln2g": jnp.ones((L, 1, hidden), jnp.float32),
        "ln2b": jnp.zeros((L, 1, hidden), jnp.float32),
    }

    return {
        # Conv2d(3, H, k=ps, s=ps, bias=False).weight flattened (c,i,j) -> (K, H)
        "patch_w": _norm_init(ks[0], (K, hidden)),
        "pos": _norm_init(ks[1], (P, hidden)),                   # nn.Embedding(P, H)
        "layers": layers,
        "proj_w": _norm_init(ks[2], (hidden, K)),                # projector.weight^T
        "proj_b": _norm_init(ks[3], (1, K)),                     # projector.bias
    }


def fold_params(raw, num_heads):
    """Host-side, one-time, mathematically exact constant folding."""
    hidden = raw["patch_w"].shape[1]
    hd = hidden // num_heads
    q_scale = 1.0 / math.sqrt(hd)
    K = raw["proj_w"].shape[1]
    k_pad = ((K + 127) // 128) * 128               # lane-dense projector output

    layers = dict(raw["layers"])
    # Attention scale folded into the Q third of the fused QKV weight & bias.
    layers["wqkv"] = layers["wqkv"].at[:, :, :hidden].multiply(q_scale)
    layers["bqkv"] = layers["bqkv"].at[:, :, :hidden].multiply(q_scale)

    # Final *255 folded into the projector; pad output lanes to 128.
    proj_w_pad = jnp.zeros((hidden, k_pad), jnp.float32).at[:, :K].set(255.0 * raw["proj_w"])
    proj_b_pad = jnp.zeros((1, k_pad), jnp.float32).at[:, :K].set(255.0 * raw["proj_b"])

    return {
        # Normalize() (assumed x/255) folded into the patch-embedding weight.
        "patch_w": raw["patch_w"] * (1.0 / 255.0),
        "pos": raw["pos"],
        "layers": layers,
        "proj_w_pad": proj_w_pad,
        "proj_b_pad": proj_b_pad,
    }


# ------------------------------- full model ----------------------------------

def rect_vit_forward(x, params, *, image_size, patch_size, num_heads):
    B = x.shape[0]
    p = patch_size
    G = image_size // p
    P = G * G
    K = 3 * p * p

    # Patch extraction (pure permutation glue): NCHW -> (B*P, 3*p*p); per-token
    # feature ordering (c, i, j) matches Conv2d weight.reshape(H, 3*p*p).
    patches = (x.reshape(B, 3, G, p, G, p)
                .transpose(0, 2, 4, 1, 3, 5)
                .reshape(B * P, K))

    out_pad = run_fused_vit(patches, params["patch_w"], params["pos"],
                            params["layers"],
                            params["proj_w_pad"], params["proj_b_pad"],
                            batch=B, seq=P, num_heads=num_heads)

    proj = out_pad[:, :K]                      # drop lane padding (glue)

    # rect (F.fold) glue: (B*P, 3*p*p) -> (B, 3, IS, IS)
    img = (proj.reshape(B, G, G, 3, p, p)
               .transpose(0, 3, 1, 4, 2, 5)
               .reshape(B, 3, image_size, image_size))
    return img


# --------------------------------- main ---------------------------------------

if __name__ == "__main__":
    image_size = 16
    patch_size = 4
    num_encoder_layers = 2
    num_decoder_layers = 2
    num_heads = 4
    hidden_size = 32
    intermediate_size = 64
    batch = 2

    key = jax.random.PRNGKey(0)
    k_x, k_p = jax.random.split(key)

    x = (jax.random.uniform(k_x, (batch, 3, image_size, image_size)) * 255.0).astype(jnp.float32)
    raw_params = init_params(k_p, image_size, patch_size,
                             num_encoder_layers, num_decoder_layers,
                             hidden_size, intermediate_size)
    params = jax.tree_util.tree_map(jax.block_until_ready,
                                    fold_params(raw_params, num_heads))

    fwd = jax.jit(functools.partial(rect_vit_forward,
                                    image_size=image_size,
                                    patch_size=patch_size,
                                    num_heads=num_heads))
    out = fwd(x, params)
    out = jax.block_until_ready(out)

    assert out.shape == (batch, 3, image_size, image_size), out.shape
    assert out.dtype == jnp.float32
    assert bool(jnp.all(out >= 0.0)) and bool(jnp.all(out <= 255.0))
    print("KERNEL_OK")
</pallas_src>

<mosaic_0001>
module attributes {stable_mosaic.version = 11 : i64} {
  func.func @fused_vit_kernel(%arg0: i32, %arg1: memref<16x48xf32, #tpu.memory_space<vmem>>, %arg2: memref<48x32xf32, #tpu.memory_space<vmem>>, %arg3: memref<16x32xf32, #tpu.memory_space<vmem>>, %arg4: memref<4x32x96xf32, #tpu.memory_space<vmem>>, %arg5: memref<4x1x96xf32, #tpu.memory_space<vmem>>, %arg6: memref<4x32x32xf32, #tpu.memory_space<vmem>>, %arg7: memref<4x1x32xf32, #tpu.memory_space<vmem>>, %arg8: memref<4x1x32xf32, #tpu.memory_space<vmem>>, %arg9: memref<4x1x32xf32, #tpu.memory_space<vmem>>, %arg10: memref<4x32x64xf32, #tpu.memory_space<vmem>>, %arg11: memref<4x1x64xf32, #tpu.memory_space<vmem>>, %arg12: memref<4x64x32xf32, #tpu.memory_space<vmem>>, %arg13: memref<4x1x32xf32, #tpu.memory_space<vmem>>, %arg14: memref<4x1x32xf32, #tpu.memory_space<vmem>>, %arg15: memref<4x1x32xf32, #tpu.memory_space<vmem>>, %arg16: memref<32x128xf32, #tpu.memory_space<vmem>>, %arg17: memref<1x128xf32, #tpu.memory_space<vmem>>, %arg18: memref<16x128xf32, #tpu.memory_space<vmem>>) attributes {dimension_semantics = [#tpu.dimension_semantics<parallel>], iteration_bounds = array<i64: 2>, scalar_prefetch = 0 : i64, scratch_operands = 0 : i64, tpu.core_type = #tpu.core_type<tc>, window_params = [{transform_indices = @transform_0, window_bounds = array<i64: 16, 48>}, {pipeline_mode = #tpu.pipeline_mode<synchronous>, transform_indices = @transform_1, window_bounds = array<i64: 48, 32>}, {pipeline_mode = #tpu.pipeline_mode<synchronous>, transform_indices = @transform_2, window_bounds = array<i64: 16, 32>}, {pipeline_mode = #tpu.pipeline_mode<synchronous>, transform_indices = @transform_3, window_bounds = array<i64: 4, 32, 96>}, {pipeline_mode = #tpu.pipeline_mode<synchronous>, transform_indices = @transform_4, window_bounds = array<i64: 4, 1, 96>}, {pipeline_mode = #tpu.pipeline_mode<synchronous>, transform_indices = @transform_5, window_bounds = array<i64: 4, 32, 32>}, {pipeline_mode = #tpu.pipeline_mode<synchronous>, transform_indices = @transform_6, window_bounds = array<i64: 4, 1, 32>}, {pipeline_mode = #tpu.pipeline_mode<synchronous>, transform_indices = @transform_7, window_bounds = array<i64: 4, 1, 32>}, {pipeline_mode = #tpu.pipeline_mode<synchronous>, transform_indices = @transform_8, window_bounds = array<i64: 4, 1, 32>}, {pipeline_mode = #tpu.pipeline_mode<synchronous>, transform_indices = @transform_9, window_bounds = array<i64: 4, 32, 64>}, {pipeline_mode = #tpu.pipeline_mode<synchronous>, transform_indices = @transform_10, window_bounds = array<i64: 4, 1, 64>}, {pipeline_mode = #tpu.pipeline_mode<synchronous>, transform_indices = @transform_11, window_bounds = array<i64: 4, 64, 32>}, {pipeline_mode = #tpu.pipeline_mode<synchronous>, transform_indices = @transform_12, window_bounds = array<i64: 4, 1, 32>}, {pipeline_mode = #tpu.pipeline_mode<synchronous>, transform_indices = @transform_13, window_bounds = array<i64: 4, 1, 32>}, {pipeline_mode = #tpu.pipeline_mode<synchronous>, transform_indices = @transform_14, window_bounds = array<i64: 4, 1, 32>}, {pipeline_mode = #tpu.pipeline_mode<synchronous>, transform_indices = @transform_15, window_bounds = array<i64: 32, 128>}, {pipeline_mode = #tpu.pipeline_mode<synchronous>, transform_indices = @transform_16, window_bounds = array<i64: 1, 128>}, {transform_indices = @transform_17, window_bounds = array<i64: 16, 128>}]} {
    %c0 = arith.constant 0 : index
    %c0_0 = arith.constant 0 : index
    %0 = vector.load %arg1[%c0, %c0_0] : memref<16x48xf32, #tpu.memory_space<vmem>>, vector<16x48xf32>
    %c0_1 = arith.constant 0 : index
    %c0_2 = arith.constant 0 : index
    %1 = vector.load %arg2[%c0_1, %c0_2] : memref<48x32xf32, #tpu.memory_space<vmem>>, vector<48x32xf32>
    %cst = arith.constant dense<0.000000e+00> : vector<16x32xf32>
    %2 = tpu.matmul %0, %1, %cst {dimension_numbers = #tpu.dot_dimension_numbers<[1], [0], [0], [1], [0, 0, 1, 1], [], []>} : vector<16x48xf32>, vector<48x32xf32>, vector<16x32xf32> -> vector<16x32xf32>
    %c0_3 = arith.constant 0 : index
    %c0_4 = arith.constant 0 : index
    %3 = vector.load %arg3[%c0_3, %c0_4] : memref<16x32xf32, #tpu.memory_space<vmem>>, vector<16x32xf32>
    %4 = arith.addf %2, %3 : vector<16x32xf32>
    %c0_5 = arith.constant 0 : index
    %c0_6 = arith.constant 0 : index
    %c0_7 = arith.constant 0 : index
    %5 = vector.load %arg4[%c0_5, %c0_6, %c0_7] : memref<4x32x96xf32, #tpu.memory_space<vmem>>, vector<1x32x96xf32>
    %6 = vector.shape_cast %5 : vector<1x32x96xf32> to vector<32x96xf32>
    %cst_8 = arith.constant dense<0.000000e+00> : vector<16x96xf32>
    %7 = tpu.matmul %4, %6, %cst_8 {dimension_numbers = #tpu.dot_dimension_numbers<[1], [0], [0], [1], [0, 0, 1, 1], [], []>} : vector<16x32xf32>, vector<32x96xf32>, vector<16x96xf32> -> vector<16x96xf32>
    %c0_9 = arith.constant 0 : index
    %c0_10 = arith.constant 0 : index
    %c0_11 = arith.constant 0 : index
    %8 = vector.load %arg5[%c0_9, %c0_10, %c0_11] : memref<4x1x96xf32, #tpu.memory_space<vmem>>, vector<1x1x96xf32>
    %9 = vector.shape_cast %8 : vector<1x1x96xf32> to vector<1x96xf32>
    %10 = vector.broadcast %9 : vector<1x96xf32> to vector<16x96xf32>
    %11 = arith.addf %7, %10 : vector<16x96xf32>
    %12 = vector.extract_strided_slice %11 {offsets = [0, 0], sizes = [16, 8], strides = [1, 1]} : vector<16x96xf32> to vector<16x8xf32>
    %13 = vector.shape_cast %12 : vector<16x8xf32> to vector<1x16x8xf32>
    %14 = vector.extract_strided_slice %11 {offsets = [0, 8], sizes = [16, 8], strides = [1, 1]} : vector<16x96xf32> to vector<16x8xf32>
    %15 = vector.shape_cast %14 : vector<16x8xf32> to vector<1x16x8xf32>
    %16 = vector.extract_strided_slice %11 {offsets = [0, 16], sizes = [16, 8], strides = [1, 1]} : vector<16x96xf32> to vector<16x8xf32>
    %17 = vector.shape_cast %16 : vector<16x8xf32> to vector<1x16x8xf32>
    %18 = vector.extract_strided_slice %11 {offsets = [0, 24], sizes = [16, 8], strides = [1, 1]} : vector<16x96xf32> to vector<16x8xf32>
    %19 = vector.shape_cast %18 : vector<16x8xf32> to vector<1x16x8xf32>
    %20 = tpu.concatenate %13, %15, %17, %19 in 0 : vector<1x16x8xf32>, vector<1x16x8xf32>, vector<1x16x8xf32>, vector<1x16x8xf32> -> vector<4x16x8xf32>
    %21 = vector.extract_strided_slice %11 {offsets = [0, 32], sizes = [16, 8], strides = [1, 1]} : vector<16x96xf32> to vector<16x8xf32>
    %22 = vector.shape_cast %21 : vector<16x8xf32> to vector<1x16x8xf32>
    %23 = vector.extract_strided_slice %11 {offsets = [0, 40], sizes = [16, 8], strides = [1, 1]} : vector<16x96xf32> to vector<16x8xf32>
    %24 = vector.shape_cast %23 : vector<16x8xf32> to vector<1x16x8xf32>
    %25 = vector.extract_strided_slice %11 {offsets = [0, 48], sizes = [16, 8], strides = [1, 1]} : vector<16x96xf32> to vector<16x8xf32>
    %26 = vector.shape_cast %25 : vector<16x8xf32> to vector<1x16x8xf32>
    %27 = vector.extract_strided_slice %11 {offsets = [0, 56], sizes = [16, 8], strides = [1, 1]} : vector<16x96xf32> to vector<16x8xf32>
    %28 = vector.shape_cast %27 : vector<16x8xf32> to vector<1x16x8xf32>
    %29 = tpu.concatenate %22, %24, %26, %28 in 0 : vector<1x16x8xf32>, vector<1x16x8xf32>, vector<1x16x8xf32>, vector<1x16x8xf32> -> vector<4x16x8xf32>
    %30 = vector.extract_strided_slice %11 {offsets = [0, 64], sizes = [16, 8], strides = [1, 1]} : vector<16x96xf32> to vector<16x8xf32>
    %31 = vector.shape_cast %30 : vector<16x8xf32> to vector<1x16x8xf32>
    %32 = vector.extract_strided_slice %11 {offsets = [0, 72], sizes = [16, 8], strides = [1, 1]} : vector<16x96xf32> to vector<16x8xf32>
    %33 = vector.shape_cast %32 : vector<16x8xf32> to vector<1x16x8xf32>
    %34 = vector.extract_strided_slice %11 {offsets = [0, 80], sizes = [16, 8], strides = [1, 1]} : vector<16x96xf32> to vector<16x8xf32>
    %35 = vector.shape_cast %34 : vector<16x8xf32> to vector<1x16x8xf32>
    %36 = vector.extract_strided_slice %11 {offsets = [0, 88], sizes = [16, 8], strides = [1, 1]} : vector<16x96xf32> to vector<16x8xf32>
    %37 = vector.shape_cast %36 : vector<16x8xf32> to vector<1x16x8xf32>
    %38 = tpu.concatenate %31, %33, %35, %37 in 0 : vector<1x16x8xf32>, vector<1x16x8xf32>, vector<1x16x8xf32>, vector<1x16x8xf32> -> vector<4x16x8xf32>
    "tpu.trace_start"() <{level = 10 : i32, message = "bqd,bkd->bqk"}> : () -> ()
    %cst_12 = arith.constant dense<0.000000e+00> : vector<4x16x16xf32>
    %39 = tpu.matmul %20, %29, %cst_12 {dimension_numbers = #tpu.dot_dimension_numbers<[2], [2], [1], [1], [0, 0, 0, 1, 1, 1], [0], [0]>} : vector<4x16x8xf32>, vector<4x16x8xf32>, vector<4x16x16xf32> -> vector<4x16x16xf32>
    "tpu.trace_stop"() : () -> ()
    %cst_13 = arith.constant dense<0xFF800000> : vector<4x16xf32>
    %40 = vector.multi_reduction <maximumf>, %39, %cst_13 [2] : vector<4x16x16xf32> to vector<4x16xf32>
    %41 = vector.shape_cast %40 : vector<4x16xf32> to vector<4x16x1xf32>
    %42 = vector.broadcast %41 : vector<4x16x1xf32> to vector<4x16x16xf32>
    %43 = arith.subf %39, %42 : vector<4x16x16xf32>
    %44 = math.exp %43 : vector<4x16x16xf32>
    %cst_14 = arith.constant dense<0.000000e+00> : vector<4x16xf32>
    %45 = vector.multi_reduction <add>, %44, %cst_14 [2] : vector<4x16x16xf32> to vector<4x16xf32>
    %46 = vector.shape_cast %45 : vector<4x16xf32> to vector<4x16x1xf32>
    %47 = vector.broadcast %46 : vector<4x16x1xf32> to vector<4x16x16xf32>
    %48 = arith.divf %44, %47 : vector<4x16x16xf32>
    "tpu.trace_start"() <{level = 10 : i32, message = "bqk,bkd->bqd"}> : () -> ()
    %cst_15 = arith.constant dense<0.000000e+00> : vector<4x16x8xf32>
    %49 = tpu.matmul %48, %38, %cst_15 {dimension_numbers = #tpu.dot_dimension_numbers<[2], [1], [1], [2], [0, 0, 0, 1, 1, 2], [0], [0]>} : vector<4x16x16xf32>, vector<4x16x8xf32>, vector<4x16x8xf32> -> vector<4x16x8xf32>
    "tpu.trace_stop"() : () -> ()
    %50 = vector.extract_strided_slice %49 {offsets = [0, 0, 0], sizes = [1, 16, 8], strides = [1, 1, 1]} : vector<4x16x8xf32> to vector<1x16x8xf32>
    %51 = vector.shape_cast %50 : vector<1x16x8xf32> to vector<16x8xf32>
    %52 = vector.extract_strided_slice %49 {offsets = [1, 0, 0], sizes = [1, 16, 8], strides = [1, 1, 1]} : vector<4x16x8xf32> to vector<1x16x8xf32>
    %53 = vector.shape_cast %52 : vector<1x16x8xf32> to vector<16x8xf32>
    %54 = vector.extract_strided_slice %49 {offsets = [2, 0, 0], sizes = [1, 16, 8], strides = [1, 1, 1]} : vector<4x16x8xf32> to vector<1x16x8xf32>
    %55 = vector.shape_cast %54 : vector<1x16x8xf32> to vector<16x8xf32>
    %56 = vector.extract_strided_slice %49 {offsets = [3, 0, 0], sizes = [1, 16, 8], strides = [1, 1, 1]} : vector<4x16x8xf32> to vector<1x16x8xf32>
    %57 = vector.shape_cast %56 : vector<1x16x8xf32> to vector<16x8xf32>
    %58 = tpu.concatenate %51, %53, %55, %57 in 1 : vector<16x8xf32>, vector<16x8xf32>, vector<16x8xf32>, vector<16x8xf32> -> vector<16x32xf32>
    %c0_16 = arith.constant 0 : index
    %c0_17 = arith.constant 0 : index
    %c0_18 = arith.constant 0 : index
    %59 = vector.load %arg6[%c0_16, %c0_17, %c0_18] : memref<4x32x32xf32, #tpu.memory_space<vmem>>, vector<1x32x32xf32>
    %60 = vector.shape_cast %59 : vector<1x32x32xf32> to vector<32x32xf32>
    %cst_19 = arith.constant dense<0.000000e+00> : vector<16x32xf32>
    %61 = tpu.matmul %58, %60, %cst_19 {dimension_numbers = #tpu.dot_dimension_numbers<[1], [0], [0], [1], [0, 0, 1, 1], [], []>} : vector<16x32xf32>, vector<32x32xf32>, vector<16x32xf32> -> vector<16x32xf32>
    %c0_20 = arith.constant 0 : index
    %c0_21 = arith.constant 0 : index
    %c0_22 = arith.constant 0 : index
    %62 = vector.load %arg7[%c0_20, %c0_21, %c0_22] : memref<4x1x32xf32, #tpu.memory_space<vmem>>, vector<1x1x32xf32>
    %63 = vector.shape_cast %62 : vector<1x1x32xf32> to vector<1x32xf32>
    %64 = vector.broadcast %63 : vector<1x32xf32> to vector<16x32xf32>
    %65 = arith.addf %61, %64 : vector<16x32xf32>
    %66 = arith.addf %4, %65 : vector<16x32xf32>
    %c0_23 = arith.constant 0 : index
    %c0_24 = arith.constant 0 : index
    %c0_25 = arith.constant 0 : index
    %67 = vector.load %arg8[%c0_23, %c0_24, %c0_25] : memref<4x1x32xf32, #tpu.memory_space<vmem>>, vector<1x1x32xf32>
    %68 = vector.shape_cast %67 : vector<1x1x32xf32> to vector<1x32xf32>
    %c0_26 = arith.constant 0 : index
    %c0_27 = arith.constant 0 : index
    %c0_28 = arith.constant 0 : index
    %69 = vector.load %arg9[%c0_26, %c0_27, %c0_28] : memref<4x1x32xf32, #tpu.memory_space<vmem>>, vector<1x1x32xf32>
    %70 = vector.shape_cast %69 : vector<1x1x32xf32> to vector<1x32xf32>
    %cst_29 = arith.constant dense<0.000000e+00> : vector<16xf32>
    %71 = vector.multi_reduction <add>, %66, %cst_29 [1] : vector<16x32xf32> to vector<16xf32>
    %72 = vector.shape_cast %71 : vector<16xf32> to vector<16x1xf32>
    %cst_30 = arith.constant 3.200000e+01 : f32
    %73 = vector.broadcast %cst_30 : f32 to vector<16x1xf32>
    %74 = arith.divf %72, %73 : vector<16x1xf32>
    %75 = vector.broadcast %74 : vector<16x1xf32> to vector<16x32xf32>
    %76 = arith.subf %66, %75 : vector<16x32xf32>
    %77 = arith.mulf %76, %76 : vector<16x32xf32>
    %cst_31 = arith.constant dense<0.000000e+00> : vector<16xf32>
    %78 = vector.multi_reduction <add>, %77, %cst_31 [1] : vector<16x32xf32> to vector<16xf32>
    %79 = vector.shape_cast %78 : vector<16xf32> to vector<16x1xf32>
    %cst_32 = arith.constant 3.200000e+01 : f32
    %80 = vector.broadcast %cst_32 : f32 to vector<16x1xf32>
    %81 = arith.divf %79, %80 : vector<16x1xf32>
    %82 = vector.broadcast %74 : vector<16x1xf32> to vector<16x32xf32>
    %83 = arith.subf %66, %82 : vector<16x32xf32>
    %cst_33 = arith.constant 9.99999974E-6 : f32
    %84 = vector.broadcast %cst_33 : f32 to vector<16x1xf32>
    %85 = arith.addf %81, %84 : vector<16x1xf32>
    %86 = math.rsqrt %85 : vector<16x1xf32>
    %87 = vector.broadcast %86 : vector<16x1xf32> to vector<16x32xf32>
    %88 = arith.mulf %83, %87 : vector<16x32xf32>
    %89 = vector.broadcast %68 : vector<1x32xf32> to vector<16x32xf32>
    %90 = arith.mulf %88, %89 : vector<16x32xf32>
    %91 = vector.broadcast %70 : vector<1x32xf32> to vector<16x32xf32>
    %92 = arith.addf %90, %91 : vector<16x32xf32>
    %c0_34 = arith.constant 0 : index
    %c0_35 = arith.constant 0 : index
    %c0_36 = arith.constant 0 : index
    %93 = vector.load %arg10[%c0_34, %c0_35, %c0_36] : memref<4x32x64xf32, #tpu.memory_space<vmem>>, vector<1x32x64xf32>
    %94 = vector.shape_cast %93 : vector<1x32x64xf32> to vector<32x64xf32>
    %cst_37 = arith.constant dense<0.000000e+00> : vector<16x64xf32>
    %95 = tpu.matmul %92, %94, %cst_37 {dimension_numbers = #tpu.dot_dimension_numbers<[1], [0], [0], [1], [0, 0, 1, 1], [], []>} : vector<16x32xf32>, vector<32x64xf32>, vector<16x64xf32> -> vector<16x64xf32>
    %c0_38 = arith.constant 0 : index
    %c0_39 = arith.constant 0 : index
    %c0_40 = arith.constant 0 : index
    %96 = vector.load %arg11[%c0_38, %c0_39, %c0_40] : memref<4x1x64xf32, #tpu.memory_space<vmem>>, vector<1x1x64xf32>
    %97 = vector.shape_cast %96 : vector<1x1x64xf32> to vector<1x64xf32>
    %98 = vector.broadcast %97 : vector<1x64xf32> to vector<16x64xf32>
    %99 = arith.addf %95, %98 : vector<16x64xf32>
    %cst_41 = arith.constant 5.000000e-01 : f32
    %100 = vector.broadcast %cst_41 : f32 to vector<16x64xf32>
    %101 = arith.mulf %100, %99 : vector<16x64xf32>
    %cst_42 = arith.constant 0.707106769 : f32
    %102 = vector.broadcast %cst_42 : f32 to vector<16x64xf32>
    %103 = arith.mulf %99, %102 : vector<16x64xf32>
    %cst_43 = arith.constant 0.000000e+00 : f32
    %104 = vector.broadcast %cst_43 : f32 to vector<16x64xf32>
    %105 = arith.cmpf oge, %103, %104 : vector<16x64xf32>
    %cst_44 = arith.constant 1.000000e+00 : f32
    %cst_45 = arith.constant -1.000000e+00 : f32
    %106 = vector.broadcast %cst_44 : f32 to vector<16x64xf32>
    %107 = vector.broadcast %cst_45 : f32 to vector<16x64xf32>
    %108 = arith.select %105, %106, %107 : vector<16x64xi1>, vector<16x64xf32>
    %109 = math.absf %103 : vector<16x64xf32>
    %cst_46 = arith.constant 0.327591091 : f32
    %110 = vector.broadcast %cst_46 : f32 to vector<16x64xf32>
    %111 = arith.mulf %110, %109 : vector<16x64xf32>
    %cst_47 = arith.constant 1.000000e+00 : f32
    %112 = vector.broadcast %cst_47 : f32 to vector<16x64xf32>
    %113 = arith.addf %112, %111 : vector<16x64xf32>
    %cst_48 = arith.constant 1.000000e+00 : f32
    %114 = vector.broadcast %cst_48 : f32 to vector<16x64xf32>
    %115 = arith.divf %114, %113 : vector<16x64xf32>
    %cst_49 = arith.constant 1.06140542 : f32
    %116 = vector.broadcast %cst_49 : f32 to vector<16x64xf32>
    %117 = arith.mulf %116, %115 : vector<16x64xf32>
    %cst_50 = arith.constant -1.45315206 : f32
    %118 = vector.broadcast %cst_50 : f32 to vector<16x64xf32>
    %119 = arith.addf %117, %118 : vector<16x64xf32>
    %120 = arith.mulf %119, %115 : vector<16x64xf32>
    %cst_51 = arith.constant 1.42141378 : f32
    %121 = vector.broadcast %cst_51 : f32 to vector<16x64xf32>
    %122 = arith.addf %120, %121 : vector<16x64xf32>
    %123 = arith.mulf %122, %115 : vector<16x64xf32>
    %cst_52 = arith.constant -0.284496725 : f32
    %124 = vector.broadcast %cst_52 : f32 to vector<16x64xf32>
    %125 = arith.addf %123, %124 : vector<16x64xf32>
    %126 = arith.mulf %125, %115 : vector<16x64xf32>
    %cst_53 = arith.constant 0.254829586 : f32
    %127 = vector.broadcast %cst_53 : f32 to vector<16x64xf32>
    %128 = arith.addf %126, %127 : vector<16x64xf32>
    %129 = arith.mulf %128, %115 : vector<16x64xf32>
    %cst_54 = arith.constant 0.000000e+00 : f32
    %130 = vector.broadcast %cst_54 : f32 to vector<16x64xf32>
    %131 = arith.subf %130, %109 : vector<16x64xf32>
    %132 = arith.mulf %131, %109 : vector<16x64xf32>
    %133 = math.exp %132 : vector<16x64xf32>
    %134 = arith.mulf %129, %133 : vector<16x64xf32>
    %cst_55 = arith.constant 1.000000e+00 : f32
    %135 = vector.broadcast %cst_55 : f32 to vector<16x64xf32>
    %136 = arith.subf %135, %134 : vector<16x64xf32>
    %137 = arith.mulf %108, %136 : vector<16x64xf32>
    %cst_56 = arith.constant 1.000000e+00 : f32
    %138 = vector.broadcast %cst_56 : f32 to vector<16x64xf32>
    %139 = arith.addf %138, %137 : vector<16x64xf32>
    %140 = arith.mulf %101, %139 : vector<16x64xf32>
    %c0_57 = arith.constant 0 : index
    %c0_58 = arith.constant 0 : index
    %c0_59 = arith.constant 0 : index
    %141 = vector.load %arg12[%c0_57, %c0_58, %c0_59] : memref<4x64x32xf32, #tpu.memory_space<vmem>>, vector<1x64x32xf32>
    %142 = vector.shape_cast %141 : vector<1x64x32xf32> to vector<64x32xf32>
    %cst_60 = arith.constant dense<0.000000e+00> : vector<16x32xf32>
    %143 = tpu.matmul %140, %142, %cst_60 {dimension_numbers = #tpu.dot_dimension_numbers<[1], [0], [0], [1], [0, 0, 1, 1], [], []>} : vector<16x64xf32>, vector<64x32xf32>, vector<16x32xf32> -> vector<16x32xf32>
    %c0_61 = arith.constant 0 : index
    %c0_62 = arith.constant 0 : index
    %c0_63 = arith.constant 0 : index
    %144 = vector.load %arg13[%c0_61, %c0_62, %c0_63] : memref<4x1x32xf32, #tpu.memory_space<vmem>>, vector<1x1x32xf32>
    %145 = vector.shape_cast %144 : vector<1x1x32xf32> to vector<1x32xf32>
    %146 = vector.broadcast %145 : vector<1x32xf32> to vector<16x32xf32>
    %147 = arith.addf %143, %146 : vector<16x32xf32>
    %148 = arith.addf %92, %147 : vector<16x32xf32>
    %c0_64 = arith.constant 0 : index
    %c0_65 = arith.constant 0 : index
    %c0_66 = arith.constant 0 : index
    %149 = vector.load %arg14[%c0_64, %c0_65, %c0_66] : memref<4x1x32xf32, #tpu.memory_space<vmem>>, vector<1x1x32xf32>
    %150 = vector.shape_cast %149 : vector<1x1x32xf32> to vector<1x32xf32>
    %c0_67 = arith.constant 0 : index
    %c0_68 = arith.constant 0 : index
    %c0_69 = arith.constant 0 : index
    %151 = vector.load %arg15[%c0_67, %c0_68, %c0_69] : memref<4x1x32xf32, #tpu.memory_space<vmem>>, vector<1x1x32xf32>
    %152 = vector.shape_cast %151 : vector<1x1x32xf32> to vector<1x32xf32>
    %cst_70 = arith.constant dense<0.000000e+00> : vector<16xf32>
    %153 = vector.multi_reduction <add>, %148, %cst_70 [1] : vector<16x32xf32> to vector<16xf32>
    %154 = vector.shape_cast %153 : vector<16xf32> to vector<16x1xf32>
    %cst_71 = arith.constant 3.200000e+01 : f32
    %155 = vector.broadcast %cst_71 : f32 to vector<16x1xf32>
    %156 = arith.divf %154, %155 : vector<16x1xf32>
    %157 = vector.broadcast %156 : vector<16x1xf32> to vector<16x32xf32>
    %158 = arith.subf %148, %157 : vector<16x32xf32>
    %159 = arith.mulf %158, %158 : vector<16x32xf32>
    %cst_72 = arith.constant dense<0.000000e+00> : vector<16xf32>
    %160 = vector.multi_reduction <add>, %159, %cst_72 [1] : vector<16x32xf32> to vector<16xf32>
    %161 = vector.shape_cast %160 : vector<16xf32> to vector<16x1xf32>
    %cst_73 = arith.constant 3.200000e+01 : f32
    %162 = vector.broadcast %cst_73 : f32 to vector<16x1xf32>
    %163 = arith.divf %161, %162 : vector<16x1xf32>
    %164 = vector.broadcast %156 : vector<16x1xf32> to vector<16x32xf32>
    %165 = arith.subf %148, %164 : vector<16x32xf32>
    %cst_74 = arith.constant 9.99999974E-6 : f32
    %166 = vector.broadcast %cst_74 : f32 to vector<16x1xf32>
    %167 = arith.addf %163, %166 : vector<16x1xf32>
    %168 = math.rsqrt %167 : vector<16x1xf32>
    %169 = vector.broadcast %168 : vector<16x1xf32> to vector<16x32xf32>
    %170 = arith.mulf %165, %169 : vector<16x32xf32>
    %171 = vector.broadcast %150 : vector<1x32xf32> to vector<16x32xf32>
    %172 = arith.mulf %170, %171 : vector<16x32xf32>
    %173 = vector.broadcast %152 : vector<1x32xf32> to vector<16x32xf32>
    %174 = arith.addf %172, %173 : vector<16x32xf32>
    %c1 = arith.constant 1 : index
    %c0_75 = arith.constant 0 : index
    %c0_76 = arith.constant 0 : index
    %175 = vector.load %arg4[%c1, %c0_75, %c0_76] : memref<4x32x96xf32, #tpu.memory_space<vmem>>, vector<1x32x96xf32>
    %176 = vector.shape_cast %175 : vector<1x32x96xf32> to vector<32x96xf32>
    %cst_77 = arith.constant dense<0.000000e+00> : vector<16x96xf32>
    %177 = tpu.matmul %174, %176, %cst_77 {dimension_numbers = #tpu.dot_dimension_numbers<[1], [0], [0], [1], [0, 0, 1, 1], [], []>} : vector<16x32xf32>, vector<32x96xf32>, vector<16x96xf32> -> vector<16x96xf32>
    %c1_78 = arith.constant 1 : index
    %c0_79 = arith.constant 0 : index
    %c0_80 = arith.constant 0 : index
    %178 = vector.load %arg5[%c1_78, %c0_79, %c0_80] : memref<4x1x96xf32, #tpu.memory_space<vmem>>, vector<1x1x96xf32>
    %179 = vector.shape_cast %178 : vector<1x1x96xf32> to vector<1x96xf32>
    %180 = vector.broadcast %179 : vector<1x96xf32> to vector<16x96xf32>
    %181 = arith.addf %177, %180 : vector<16x96xf32>
    %182 = vector.extract_strided_slice %181 {offsets = [0, 0], sizes = [16, 8], strides = [1, 1]} : vector<16x96xf32> to vector<16x8xf32>
    %183 = vector.shape_cast %182 : vector<16x8xf32> to vector<1x16x8xf32>
    %184 = vector.extract_strided_slice %181 {offsets = [0, 8], sizes = [16, 8], strides = [1, 1]} : vector<16x96xf32> to vector<16x8xf32>
    %185 = vector.shape_cast %184 : vector<16x8xf32> to vector<1x16x8xf32>
    %186 = vector.extract_strided_slice %181 {offsets = [0, 16], sizes = [16, 8], strides = [1, 1]} : vector<16x96xf32> to vector<16x8xf32>
    %187 = vector.shape_cast %186 : vector<16x8xf32> to vector<1x16x8xf32>
    %188 = vector.extract_strided_slice %181 {offsets = [0, 24], sizes = [16, 8], strides = [1, 1]} : vector<16x96xf32> to vector<16x8xf32>
    %189 = vector.shape_cast %188 : vector<16x8xf32> to vector<1x16x8xf32>
    %190 = tpu.concatenate %183, %185, %187, %189 in 0 : vector<1x16x8xf32>, vector<1x16x8xf32>, vector<1x16x8xf32>, vector<1x16x8xf32> -> vector<4x16x8xf32>
    %191 = vector.extract_strided_slice %181 {offsets = [0, 32], sizes = [16, 8], strides = [1, 1]} : vector<16x96xf32> to vector<16x8xf32>
    %192 = vector.shape_cast %191 : vector<16x8xf32> to vector<1x16x8xf32>
    %193 = vector.extract_strided_slice %181 {offsets = [0, 40], sizes = [16, 8], strides = [1, 1]} : vector<16x96xf32> to vector<16x8xf32>
    %194 = vector.shape_cast %193 : vector<16x8xf32> to vector<1x16x8xf32>
    %195 = vector.extract_strided_slice %181 {offsets = [0, 48], sizes = [16, 8], strides = [1, 1]} : vector<16x96xf32> to vector<16x8xf32>
    %196 = vector.shape_cast %195 : vector<16x8xf32> to vector<1x16x8xf32>
    %197 = vector.extract_strided_slice %181 {offsets = [0, 56], sizes = [16, 8], strides = [1, 1]} : vector<16x96xf32> to vector<16x8xf32>
    %198 = vector.shape_cast %197 : vector<16x8xf32> to vector<1x16x8xf32>
    %199 = tpu.concatenate %192, %194, %196, %198 in 0 : vector<1x16x8xf32>, vector<1x16x8xf32>, vector<1x16x8xf32>, vector<1x16x8xf32> -> vector<4x16x8xf32>
    %200 = vector.extract_strided_slice %181 {offsets = [0, 64], sizes = [16, 8], strides = [1, 1]} : vector<16x96xf32> to vector<16x8xf32>
    %201 = vector.shape_cast %200 : vector<16x8xf32> to vector<1x16x8xf32>
    %202 = vector.extract_strided_slice %181 {offsets = [0, 72], sizes = [16, 8], strides = [1, 1]} : vector<16x96xf32> to vector<16x8xf32>
    %203 = vector.shape_cast %202 : vector<16x8xf32> to vector<1x16x8xf32>
    %204 = vector.extract_strided_slice %181 {offsets = [0, 80], sizes = [16, 8], strides = [1, 1]} : vector<16x96xf32> to vector<16x8xf32>
    %205 = vector.shape_cast %204 : vector<16x8xf32> to vector<1x16x8xf32>
    %206 = vector.extract_strided_slice %181 {offsets = [0, 88], sizes = [16, 8], strides = [1, 1]} : vector<16x96xf32> to vector<16x8xf32>
    %207 = vector.shape_cast %206 : vector<16x8xf32> to vector<1x16x8xf32>
    %208 = tpu.concatenate %201, %203, %205, %207 in 0 : vector<1x16x8xf32>, vector<1x16x8xf32>, vector<1x16x8xf32>, vector<1x16x8xf32> -> vector<4x16x8xf32>
    "tpu.trace_start"() <{level = 10 : i32, message = "bqd,bkd->bqk"}> : () -> ()
    %cst_81 = arith.constant dense<0.000000e+00> : vector<4x16x16xf32>
    %209 = tpu.matmul %190, %199, %cst_81 {dimension_numbers = #tpu.dot_dimension_numbers<[2], [2], [1], [1], [0, 0, 0, 1, 1, 1], [0], [0]>} : vector<4x16x8xf32>, vector<4x16x8xf32>, vector<4x16x16xf32> -> vector<4x16x16xf32>
    "tpu.trace_stop"() : () -> ()
    %cst_82 = arith.constant dense<0xFF800000> : vector<4x16xf32>
    %210 = vector.multi_reduction <maximumf>, %209, %cst_82 [2] : vector<4x16x16xf32> to vector<4x16xf32>
    %211 = vector.shape_cast %210 : vector<4x16xf32> to vector<4x16x1xf32>
    %212 = vector.broadcast %211 : vector<4x16x1xf32> to vector<4x16x16xf32>
    %213 = arith.subf %209, %212 : vector<4x16x16xf32>
    %214 = math.exp %213 : vector<4x16x16xf32>
    %cst_83 = arith.constant dense<0.000000e+00> : vector<4x16xf32>
    %215 = vector.multi_reduction <add>, %214, %cst_83 [2] : vector<4x16x16xf32> to vector<4x16xf32>
    %216 = vector.shape_cast %215 : vector<4x16xf32> to vector<4x16x1xf32>
    %217 = vector.broadcast %216 : vector<4x16x1xf32> to vector<4x16x16xf32>
    %218 = arith.divf %214, %217 : vector<4x16x16xf32>
    "tpu.trace_start"() <{level = 10 : i32, message = "bqk,bkd->bqd"}> : () -> ()
    %cst_84 = arith.constant dense<0.000000e+00> : vector<4x16x8xf32>
    %219 = tpu.matmul %218, %208, %cst_84 {dimension_numbers = #tpu.dot_dimension_numbers<[2], [1], [1], [2], [0, 0, 0, 1, 1, 2], [0], [0]>} : vector<4x16x16xf32>, vector<4x16x8xf32>, vector<4x16x8xf32> -> vector<4x16x8xf32>
    "tpu.trace_stop"() : () -> ()
    %220 = vector.extract_strided_slice %219 {offsets = [0, 0, 0], sizes = [1, 16, 8], strides = [1, 1, 1]} : vector<4x16x8xf32> to vector<1x16x8xf32>
    %221 = vector.shape_cast %220 : vector<1x16x8xf32> to vector<16x8xf32>
    %222 = vector.extract_strided_slice %219 {offsets = [1, 0, 0], sizes = [1, 16, 8], strides = [1, 1, 1]} : vector<4x16x8xf32> to vector<1x16x8xf32>
    %223 = vector.shape_cast %222 : vector<1x16x8xf32> to vector<16x8xf32>
    %224 = vector.extract_strided_slice %219 {offsets = [2, 0, 0], sizes = [1, 16, 8], strides = [1, 1, 1]} : vector<4x16x8xf32> to vector<1x16x8xf32>
    %225 = vector.shape_cast %224 : vector<1x16x8xf32> to vector<16x8xf32>
    %226 = vector.extract_strided_slice %219 {offsets = [3, 0, 0], sizes = [1, 16, 8], strides = [1, 1, 1]} : vector<4x16x8xf32> to vector<1x16x8xf32>
    %227 = vector.shape_cast %226 : vector<1x16x8xf32> to vector<16x8xf32>
    %228 = tpu.concatenate %221, %223, %225, %227 in 1 : vector<16x8xf32>, vector<16x8xf32>, vector<16x8xf32>, vector<16x8xf32> -> vector<16x32xf32>
    %c1_85 = arith.constant 1 : index
    %c0_86 = arith.constant 0 : index
    %c0_87 = arith.constant 0 : index
    %229 = vector.load %arg6[%c1_85, %c0_86, %c0_87] : memref<4x32x32xf32, #tpu.memory_space<vmem>>, vector<1x32x32xf32>
    %230 = vector.shape_cast %229 : vector<1x32x32xf32> to vector<32x32xf32>
    %cst_88 = arith.constant dense<0.000000e+00> : vector<16x32xf32>
    %231 = tpu.matmul %228, %230, %cst_88 {dimension_numbers = #tpu.dot_dimension_numbers<[1], [0], [0], [1], [0, 0, 1, 1], [], []>} : vector<16x32xf32>, vector<32x32xf32>, vector<16x32xf32> -> vector<16x32xf32>
    %c1_89 = arith.constant 1 : index
    %c0_90 = arith.constant 0 : index
    %c0_91 = arith.constant 0 : index
    %232 = vector.load %arg7[%c1_89, %c0_90, %c0_91] : memref<4x1x32xf32, #tpu.memory_space<vmem>>, vector<1x1x32xf32>
    %233 = vector.shape_cast %232 : vector<1x1x32xf32> to vector<1x32xf32>
    %234 = vector.broadcast %233 : vector<1x32xf32> to vector<16x32xf32>
    %235 = arith.addf %231, %234 : vector<16x32xf32>
    %236 = arith.addf %174, %235 : vector<16x32xf32>
    %c1_92 = arith.constant 1 : index
    %c0_93 = arith.constant 0 : index
    %c0_94 = arith.constant 0 : index
    %237 = vector.load %arg8[%c1_92, %c0_93, %c0_94] : memref<4x1x32xf32, #tpu.memory_space<vmem>>, vector<1x1x32xf32>
    %238 = vector.shape_cast %237 : vector<1x1x32xf32> to vector<1x32xf32>
    %c1_95 = arith.constant 1 : index
    %c0_96 = arith.constant 0 : index
    %c0_97 = arith.constant 0 : index
    %239 = vector.load %arg9[%c1_95, %c0_96, %c0_97] : memref<4x1x32xf32, #tpu.memory_space<vmem>>, vector<1x1x32xf32>
    %240 = vector.shape_cast %239 : vector<1x1x32xf32> to vector<1x32xf32>
    %cst_98 = arith.constant dense<0.000000e+00> : vector<16xf32>
    %241 = vector.multi_reduction <add>, %236, %cst_98 [1] : vector<16x32xf32> to vector<16xf32>
    %242 = vector.shape_cast %241 : vector<16xf32> to vector<16x1xf32>
    %cst_99 = arith.constant 3.200000e+01 : f32
    %243 = vector.broadcast %cst_99 : f32 to vector<16x1xf32>
    %244 = arith.divf %242, %243 : vector<16x1xf32>
    %245 = vector.broadcast %244 : vector<16x1xf32> to vector<16x32xf32>
    %246 = arith.subf %236, %245 : vector<16x32xf32>
    %247 = arith.mulf %246, %246 : vector<16x32xf32>
    %cst_100 = arith.constant dense<0.000000e+00> : vector<16xf32>
    %248 = vector.multi_reduction <add>, %247, %cst_100 [1] : vector<16x32xf32> to vector<16xf32>
    %249 = vector.shape_cast %248 : vector<16xf32> to vector<16x1xf32>
    %cst_101 = arith.constant 3.200000e+01 : f32
    %250 = vector.broadcast %cst_101 : f32 to vector<16x1xf32>
    %251 = arith.divf %249, %250 : vector<16x1xf32>
    %252 = vector.broadcast %244 : vector<16x1xf32> to vector<16x32xf32>
    %253 = arith.subf %236, %252 : vector<16x32xf32>
    %cst_102 = arith.constant 9.99999974E-6 : f32
    %254 = vector.broadcast %cst_102 : f32 to vector<16x1xf32>
    %255 = arith.addf %251, %254 : vector<16x1xf32>
    %256 = math.rsqrt %255 : vector<16x1xf32>
    %257 = vector.broadcast %256 : vector<16x1xf32> to vector<16x32xf32>
    %258 = arith.mulf %253, %257 : vector<16x32xf32>
    %259 = vector.broadcast %238 : vector<1x32xf32> to vector<16x32xf32>
    %260 = arith.mulf %258, %259 : vector<16x32xf32>
    %261 = vector.broadcast %240 : vector<1x32xf32> to vector<16x32xf32>
    %262 = arith.addf %260, %261 : vector<16x32xf32>
    %c1_103 = arith.constant 1 : index
    %c0_104 = arith.constant 0 : index
    %c0_105 = arith.constant 0 : index
    %263 = vector.load %arg10[%c1_103, %c0_104, %c0_105] : memref<4x32x64xf32, #tpu.memory_space<vmem>>, vector<1x32x64xf32>
    %264 = vector.shape_cast %263 : vector<1x32x64xf32> to vector<32x64xf32>
    %cst_106 = arith.constant dense<0.000000e+00> : vector<16x64xf32>
    %265 = tpu.matmul %262, %264, %cst_106 {dimension_numbers = #tpu.dot_dimension_numbers<[1], [0], [0], [1], [0, 0, 1, 1], [], []>} : vector<16x32xf32>, vector<32x64xf32>, vector<16x64xf32> -> vector<16x64xf32>
    %c1_107 = arith.constant 1 : index
    %c0_108 = arith.constant 0 : index
    %c0_109 = arith.constant 0 : index
    %266 = vector.load %arg11[%c1_107, %c0_108, %c0_109] : memref<4x1x64xf32, #tpu.memory_space<vmem>>, vector<1x1x64xf32>
    %267 = vector.shape_cast %266 : vector<1x1x64xf32> to vector<1x64xf32>
    %268 = vector.broadcast %267 : vector<1x64xf32> to vector<16x64xf32>
    %269 = arith.addf %265, %268 : vector<16x64xf32>
    %cst_110 = arith.constant 5.000000e-01 : f32
    %270 = vector.broadcast %cst_110 : f32 to vector<16x64xf32>
    %271 = arith.mulf %270, %269 : vector<16x64xf32>
    %cst_111 = arith.constant 0.707106769 : f32
    %272 = vector.broadcast %cst_111 : f32 to vector<16x64xf32>
    %273 = arith.mulf %269, %272 : vector<16x64xf32>
    %cst_112 = arith.constant 0.000000e+00 : f32
    %274 = vector.broadcast %cst_112 : f32 to vector<16x64xf32>
    %275 = arith.cmpf oge, %273, %274 : vector<16x64xf32>
    %cst_113 = arith.constant 1.000000e+00 : f32
    %cst_114 = arith.constant -1.000000e+00 : f32
    %276 = vector.broadcast %cst_113 : f32 to vector<16x64xf32>
    %277 = vector.broadcast %cst_114 : f32 to vector<16x64xf32>
    %278 = arith.select %275, %276, %277 : vector<16x64xi1>, vector<16x64xf32>
    %279 = math.absf %273 : vector<16x64xf32>
    %cst_115 = arith.constant 0.327591091 : f32
    %280 = vector.broadcast %cst_115 : f32 to vector<16x64xf32>
    %281 = arith.mulf %280, %279 : vector<16x64xf32>
    %cst_116 = arith.constant 1.000000e+00 : f32
    %282 = vector.broadcast %cst_116 : f32 to vector<16x64xf32>
    %283 = arith.addf %282, %281 : vector<16x64xf32>
    %cst_117 = arith.constant 1.000000e+00 : f32
    %284 = vector.broadcast %cst_117 : f32 to vector<16x64xf32>
    %285 = arith.divf %284, %283 : vector<16x64xf32>
    %cst_118 = arith.constant 1.06140542 : f32
    %286 = vector.broadcast %cst_118 : f32 to vector<16x64xf32>
    %287 = arith.mulf %286, %285 : vector<16x64xf32>
    %cst_119 = arith.constant -1.45315206 : f32
    %288 = vector.broadcast %cst_119 : f32 to vector<16x64xf32>
    %289 = arith.addf %287, %288 : vector<16x64xf32>
    %290 = arith.mulf %289, %285 : vector<16x64xf32>
    %cst_120 = arith.constant 1.42141378 : f32
    %291 = vector.broadcast %cst_120 : f32 to vector<16x64xf32>
    %292 = arith.addf %290, %291 : vector<16x64xf32>
    %293 = arith.mulf %292, %285 : vector<16x64xf32>
    %cst_121 = arith.constant -0.284496725 : f32
    %294 = vector.broadcast %cst_121 : f32 to vector<16x64xf32>
    %295 = arith.addf %293, %294 : vector<16x64xf32>
    %296 = arith.mulf %295, %285 : vector<16x64xf32>
    %cst_122 = arith.constant 0.254829586 : f32
    %297 = vector.broadcast %cst_122 : f32 to vector<16x64xf32>
    %298 = arith.addf %296, %297 : vector<16x64xf32>
    %299 = arith.mulf %298, %285 : vector<16x64xf32>
    %cst_123 = arith.constant 0.000000e+00 : f32
    %300 = vector.broadcast %cst_123 : f32 to vector<16x64xf32>
    %301 = arith.subf %300, %279 : vector<16x64xf32>
    %302 = arith.mulf %301, %279 : vector<16x64xf32>
    %303 = math.exp %302 : vector<16x64xf32>
    %304 = arith.mulf %299, %303 : vector<16x64xf32>
    %cst_124 = arith.constant 1.000000e+00 : f32
    %305 = vector.broadcast %cst_124 : f32 to vector<16x64xf32>
    %306 = arith.subf %305, %304 : vector<16x64xf32>
    %307 = arith.mulf %278, %306 : vector<16x64xf32>
    %cst_125 = arith.constant 1.000000e+00 : f32
    %308 = vector.broadcast %cst_125 : f32 to vector<16x64xf32>
    %309 = arith.addf %308, %307 : vector<16x64xf32>
    %310 = arith.mulf %271, %309 : vector<16x64xf32>
    %c1_126 = arith.constant 1 : index
    %c0_127 = arith.constant 0 : index
    %c0_128 = arith.constant 0 : index
    %311 = vector.load %arg12[%c1_126, %c0_127, %c0_128] : memref<4x64x32xf32, #tpu.memory_space<vmem>>, vector<1x64x32xf32>
    %312 = vector.shape_cast %311 : vector<1x64x32xf32> to vector<64x32xf32>
    %cst_129 = arith.constant dense<0.000000e+00> : vector<16x32xf32>
    %313 = tpu.matmul %310, %312, %cst_129 {dimension_numbers = #tpu.dot_dimension_numbers<[1], [0], [0], [1], [0, 0, 1, 1], [], []>} : vector<16x64xf32>, vector<64x32xf32>, vector<16x32xf32> -> vector<16x32xf32>
    %c1_130 = arith.constant 1 : index
    %c0_131 = arith.constant 0 : index
    %c0_132 = arith.constant 0 : index
    %314 = vector.load %arg13[%c1_130, %c0_131, %c0_132] : memref<4x1x32xf32, #tpu.memory_space<vmem>>, vector<1x1x32xf32>
    %315 = vector.shape_cast %314 : vector<1x1x32xf32> to vector<1x32xf32>
    %316 = vector.broadcast %315 : vector<1x32xf32> to vector<16x32xf32>
    %317 = arith.addf %313, %316 : vector<16x32xf32>
    %318 = arith.addf %262, %317 : vector<16x32xf32>
    %c1_133 = arith.constant 1 : index
    %c0_134 = arith.constant 0 : index
    %c0_135 = arith.constant 0 : index
    %319 = vector.load %arg14[%c1_133, %c0_134, %c0_135] : memref<4x1x32xf32, #tpu.memory_space<vmem>>, vector<1x1x32xf32>
    %320 = vector.shape_cast %319 : vector<1x1x32xf32> to vector<1x32xf32>
    %c1_136 = arith.constant 1 : index
    %c0_137 = arith.constant 0 : index
    %c0_138 = arith.constant 0 : index
    %321 = vector.load %arg15[%c1_136, %c0_137, %c0_138] : memref<4x1x32xf32, #tpu.memory_space<vmem>>, vector<1x1x32xf32>
    %322 = vector.shape_cast %321 : vector<1x1x32xf32> to vector<1x32xf32>
    %cst_139 = arith.constant dense<0.000000e+00> : vector<16xf32>
    %323 = vector.multi_reduction <add>, %318, %cst_139 [1] : vector<16x32xf32> to vector<16xf32>
    %324 = vector.shape_cast %323 : vector<16xf32> to vector<16x1xf32>
    %cst_140 = arith.constant 3.200000e+01 : f32
    %325 = vector.broadcast %cst_140 : f32 to vector<16x1xf32>
    %326 = arith.divf %324, %325 : vector<16x1xf32>
    %327 = vector.broadcast %326 : vector<16x1xf32> to vector<16x32xf32>
    %328 = arith.subf %318, %327 : vector<16x32xf32>
    %329 = arith.mulf %328, %328 : vector<16x32xf32>
    %cst_141 = arith.constant dense<0.000000e+00> : vector<16xf32>
    %330 = vector.multi_reduction <add>, %329, %cst_141 [1] : vector<16x32xf32> to vector<16xf32>
    %331 = vector.shape_cast %330 : vector<16xf32> to vector<16x1xf32>
    %cst_142 = arith.constant 3.200000e+01 : f32
    %332 = vector.broadcast %cst_142 : f32 to vector<16x1xf32>
    %333 = arith.divf %331, %332 : vector<16x1xf32>
    %334 = vector.broadcast %326 : vector<16x1xf32> to vector<16x32xf32>
    %335 = arith.subf %318, %334 : vector<16x32xf32>
    %cst_143 = arith.constant 9.99999974E-6 : f32
    %336 = vector.broadcast %cst_143 : f32 to vector<16x1xf32>
    %337 = arith.addf %333, %336 : vector<16x1xf32>
    %338 = math.rsqrt %337 : vector<16x1xf32>
    %339 = vector.broadcast %338 : vector<16x1xf32> to vector<16x32xf32>
    %340 = arith.mulf %335, %339 : vector<16x32xf32>
    %341 = vector.broadcast %320 : vector<1x32xf32> to vector<16x32xf32>
    %342 = arith.mulf %340, %341 : vector<16x32xf32>
    %343 = vector.broadcast %322 : vector<1x32xf32> to vector<16x32xf32>
    %344 = arith.addf %342, %343 : vector<16x32xf32>
    %c2 = arith.constant 2 : index
    %c0_144 = arith.constant 0 : index
    %c0_145 = arith.constant 0 : index
    %345 = vector.load %arg4[%c2, %c0_144, %c0_145] : memref<4x32x96xf32, #tpu.memory_space<vmem>>, vector<1x32x96xf32>
    %346 = vector.shape_cast %345 : vector<1x32x96xf32> to vector<32x96xf32>
    %cst_146 = arith.constant dense<0.000000e+00> : vector<16x96xf32>
    %347 = tpu.matmul %344, %346, %cst_146 {dimension_numbers = #tpu.dot_dimension_numbers<[1], [0], [0], [1], [0, 0, 1, 1], [], []>} : vector<16x32xf32>, vector<32x96xf32>, vector<16x96xf32> -> vector<16x96xf32>
    %c2_147 = arith.constant 2 : index
    %c0_148 = arith.constant 0 : index
    %c0_149 = arith.constant 0 : index
    %348 = vector.load %arg5[%c2_147, %c0_148, %c0_149] : memref<4x1x96xf32, #tpu.memory_space<vmem>>, vector<1x1x96xf32>
    %349 = vector.shape_cast %348 : vector<1x1x96xf32> to vector<1x96xf32>
    %350 = vector.broadcast %349 : vector<1x96xf32> to vector<16x96xf32>
    %351 = arith.addf %347, %350 : vector<16x96xf32>
    %352 = vector.extract_strided_slice %351 {offsets = [0, 0], sizes = [16, 8], strides = [1, 1]} : vector<16x96xf32> to vector<16x8xf32>
    %353 = vector.shape_cast %352 : vector<16x8xf32> to vector<1x16x8xf32>
    %354 = vector.extract_strided_slice %351 {offsets = [0, 8], sizes = [16, 8], strides = [1, 1]} : vector<16x96xf32> to vector<16x8xf32>
    %355 = vector.shape_cast %354 : vector<16x8xf32> to vector<1x16x8xf32>
    %356 = vector.extract_strided_slice %351 {offsets = [0, 16], sizes = [16, 8], strides = [1, 1]} : vector<16x96xf32> to vector<16x8xf32>
    %357 = vector.shape_cast %356 : vector<16x8xf32> to vector<1x16x8xf32>
    %358 = vector.extract_strided_slice %351 {offsets = [0, 24], sizes = [16, 8], strides = [1, 1]} : vector<16x96xf32> to vector<16x8xf32>
    %359 = vector.shape_cast %358 : vector<16x8xf32> to vector<1x16x8xf32>
    %360 = tpu.concatenate %353, %355, %357, %359 in 0 : vector<1x16x8xf32>, vector<1x16x8xf32>, vector<1x16x8xf32>, vector<1x16x8xf32> -> vector<4x16x8xf32>
    %361 = vector.extract_strided_slice %351 {offsets = [0, 32], sizes = [16, 8], strides = [1, 1]} : vector<16x96xf32> to vector<16x8xf32>
    %362 = vector.shape_cast %361 : vector<16x8xf32> to vector<1x16x8xf32>
    %363 = vector.extract_strided_slice %351 {offsets = [0, 40], sizes = [16, 8], strides = [1, 1]} : vector<16x96xf32> to vector<16x8xf32>
    %364 = vector.shape_cast %363 : vector<16x8xf32> to vector<1x16x8xf32>
    %365 = vector.extract_strided_slice %351 {offsets = [0, 48], sizes = [16, 8], strides = [1, 1]} : vector<16x96xf32> to vector<16x8xf32>
    %366 = vector.shape_cast %365 : vector<16x8xf32> to vector<1x16x8xf32>
    %367 = vector.extract_strided_slice %351 {offsets = [0, 56], sizes = [16, 8], strides = [1, 1]} : vector<16x96xf32> to vector<16x8xf32>
    %368 = vector.shape_cast %367 : vector<16x8xf32> to vector<1x16x8xf32>
    %369 = tpu.concatenate %362, %364, %366, %368 in 0 : vector<1x16x8xf32>, vector<1x16x8xf32>, vector<1x16x8xf32>, vector<1x16x8xf32> -> vector<4x16x8xf32>
    %370 = vector.extract_strided_slice %351 {offsets = [0, 64], sizes = [16, 8], strides = [1, 1]} : vector<16x96xf32> to vector<16x8xf32>
    %371 = vector.shape_cast %370 : vector<16x8xf32> to vector<1x16x8xf32>
    %372 = vector.extract_strided_slice %351 {offsets = [0, 72], sizes = [16, 8], strides = [1, 1]} : vector<16x96xf32> to vector<16x8xf32>
    %373 = vector.shape_cast %372 : vector<16x8xf32> to vector<1x16x8xf32>
    %374 = vector.extract_strided_slice %351 {offsets = [0, 80], sizes = [16, 8], strides = [1, 1]} : vector<16x96xf32> to vector<16x8xf32>
    %375 = vector.shape_cast %374 : vector<16x8xf32> to vector<1x16x8xf32>
    %376 = vector.extract_strided_slice %351 {offsets = [0, 88], sizes = [16, 8], strides = [1, 1]} : vector<16x96xf32> to vector<16x8xf32>
    %377 = vector.shape_cast %376 : vector<16x8xf32> to vector<1x16x8xf32>
    %378 = tpu.concatenate %371, %373, %375, %377 in 0 : vector<1x16x8xf32>, vector<1x16x8xf32>, vector<1x16x8xf32>, vector<1x16x8xf32> -> vector<4x16x8xf32>
    "tpu.trace_start"() <{level = 10 : i32, message = "bqd,bkd->bqk"}> : () -> ()
    %cst_150 = arith.constant dense<0.000000e+00> : vector<4x16x16xf32>
    %379 = tpu.matmul %360, %369, %cst_150 {dimension_numbers = #tpu.dot_dimension_numbers<[2], [2], [1], [1], [0, 0, 0, 1, 1, 1], [0], [0]>} : vector<4x16x8xf32>, vector<4x16x8xf32>, vector<4x16x16xf32> -> vector<4x16x16xf32>
    "tpu.trace_stop"() : () -> ()
    %cst_151 = arith.constant dense<0xFF800000> : vector<4x16xf32>
    %380 = vector.multi_reduction <maximumf>, %379, %cst_151 [2] : vector<4x16x16xf32> to vector<4x16xf32>
    %381 = vector.shape_cast %380 : vector<4x16xf32> to vector<4x16x1xf32>
    %382 = vector.broadcast %381 : vector<4x16x1xf32> to vector<4x16x16xf32>
    %383 = arith.subf %379, %382 : vector<4x16x16xf32>
    %384 = math.exp %383 : vector<4x16x16xf32>
    %cst_152 = arith.constant dense<0.000000e+00> : vector<4x16xf32>
    %385 = vector.multi_reduction <add>, %384, %cst_152 [2] : vector<4x16x16xf32> to vector<4x16xf32>
    %386 = vector.shape_cast %385 : vector<4x16xf32> to vector<4x16x1xf32>
    %387 = vector.broadcast %386 : vector<4x16x1xf32> to vector<4x16x16xf32>
    %388 = arith.divf %384, %387 : vector<4x16x16xf32>
    "tpu.trace_start"() <{level = 10 : i32, message = "bqk,bkd->bqd"}> : () -> ()
    %cst_153 = arith.constant dense<0.000000e+00> : vector<4x16x8xf32>
    %389 = tpu.matmul %388, %378, %cst_153 {dimension_numbers = #tpu.dot_dimension_numbers<[2], [1], [1], [2], [0, 0, 0, 1, 1, 2], [0], [0]>} : vector<4x16x16xf32>, vector<4x16x8xf32>, vector<4x16x8xf32> -> vector<4x16x8xf32>
    "tpu.trace_stop"() : () -> ()
    %390 = vector.extract_strided_slice %389 {offsets = [0, 0, 0], sizes = [1, 16, 8], strides = [1, 1, 1]} : vector<4x16x8xf32> to vector<1x16x8xf32>
    %391 = vector.shape_cast %390 : vector<1x16x8xf32> to vector<16x8xf32>
    %392 = vector.extract_strided_slice %389 {offsets = [1, 0, 0], sizes = [1, 16, 8], strides = [1, 1, 1]} : vector<4x16x8xf32> to vector<1x16x8xf32>
    %393 = vector.shape_cast %392 : vector<1x16x8xf32> to vector<16x8xf32>
    %394 = vector.extract_strided_slice %389 {offsets = [2, 0, 0], sizes = [1, 16, 8], strides = [1, 1, 1]} : vector<4x16x8xf32> to vector<1x16x8xf32>
    %395 = vector.shape_cast %394 : vector<1x16x8xf32> to vector<16x8xf32>
    %396 = vector.extract_strided_slice %389 {offsets = [3, 0, 0], sizes = [1, 16, 8], strides = [1, 1, 1]} : vector<4x16x8xf32> to vector<1x16x8xf32>
    %397 = vector.shape_cast %396 : vector<1x16x8xf32> to vector<16x8xf32>
    %398 = tpu.concatenate %391, %393, %395, %397 in 1 : vector<16x8xf32>, vector<16x8xf32>, vector<16x8xf32>, vector<16x8xf32> -> vector<16x32xf32>
    %c2_154 = arith.constant 2 : index
    %c0_155 = arith.constant 0 : index
    %c0_156 = arith.constant 0 : index
    %399 = vector.load %arg6[%c2_154, %c0_155, %c0_156] : memref<4x32x32xf32, #tpu.memory_space<vmem>>, vector<1x32x32xf32>
    %400 = vector.shape_cast %399 : vector<1x32x32xf32> to vector<32x32xf32>
    %cst_157 = arith.constant dense<0.000000e+00> : vector<16x32xf32>
    %401 = tpu.matmul %398, %400, %cst_157 {dimension_numbers = #tpu.dot_dimension_numbers<[1], [0], [0], [1], [0, 0, 1, 1], [], []>} : vector<16x32xf32>, vector<32x32xf32>, vector<16x32xf32> -> vector<16x32xf32>
    %c2_158 = arith.constant 2 : index
    %c0_159 = arith.constant 0 : index
    %c0_160 = arith.constant 0 : index
    %402 = vector.load %arg7[%c2_158, %c0_159, %c0_160] : memref<4x1x32xf32, #tpu.memory_space<vmem>>, vector<1x1x32xf32>
    %403 = vector.shape_cast %402 : vector<1x1x32xf32> to vector<1x32xf32>
    %404 = vector.broadcast %403 : vector<1x32xf32> to vector<16x32xf32>
    %405 = arith.addf %401, %404 : vector<16x32xf32>
    %406 = arith.addf %344, %405 : vector<16x32xf32>
    %c2_161 = arith.constant 2 : index
    %c0_162 = arith.constant 0 : index
    %c0_163 = arith.constant 0 : index
    %407 = vector.load %arg8[%c2_161, %c0_162, %c0_163] : memref<4x1x32xf32, #tpu.memory_space<vmem>>, vector<1x1x32xf32>
    %408 = vector.shape_cast %407 : vector<1x1x32xf32> to vector<1x32xf32>
    %c2_164 = arith.constant 2 : index
    %c0_165 = arith.constant 0 : index
    %c0_166 = arith.constant 0 : index
    %409 = vector.load %arg9[%c2_164, %c0_165, %c0_166] : memref<4x1x32xf32, #tpu.memory_space<vmem>>, vector<1x1x32xf32>
    %410 = vector.shape_cast %409 : vector<1x1x32xf32> to vector<1x32xf32>
    %cst_167 = arith.constant dense<0.000000e+00> : vector<16xf32>
    %411 = vector.multi_reduction <add>, %406, %cst_167 [1] : vector<16x32xf32> to vector<16xf32>
    %412 = vector.shape_cast %411 : vector<16xf32> to vector<16x1xf32>
    %cst_168 = arith.constant 3.200000e+01 : f32
    %413 = vector.broadcast %cst_168 : f32 to vector<16x1xf32>
    %414 = arith.divf %412, %413 : vector<16x1xf32>
    %415 = vector.broadcast %414 : vector<16x1xf32> to vector<16x32xf32>
    %416 = arith.subf %406, %415 : vector<16x32xf32>
    %417 = arith.mulf %416, %416 : vector<16x32xf32>
    %cst_169 = arith.constant dense<0.000000e+00> : vector<16xf32>
    %418 = vector.multi_reduction <add>, %417, %cst_169 [1] : vector<16x32xf32> to vector<16xf32>
    %419 = vector.shape_cast %418 : vector<16xf32> to vector<16x1xf32>
    %cst_170 = arith.constant 3.200000e+01 : f32
    %420 = vector.broadcast %cst_170 : f32 to vector<16x1xf32>
    %421 = arith.divf %419, %420 : vector<16x1xf32>
    %422 = vector.broadcast %414 : vector<16x1xf32> to vector<16x32xf32>
    %423 = arith.subf %406, %422 : vector<16x32xf32>
    %cst_171 = arith.constant 9.99999974E-6 : f32
    %424 = vector.broadcast %cst_171 : f32 to vector<16x1xf32>
    %425 = arith.addf %421, %424 : vector<16x1xf32>
    %426 = math.rsqrt %425 : vector<16x1xf32>
    %427 = vector.broadcast %426 : vector<16x1xf32> to vector<16x32xf32>
    %428 = arith.mulf %423, %427 : vector<16x32xf32>
    %429 = vector.broadcast %408 : vector<1x32xf32> to vector<16x32xf32>
    %430 = arith.mulf %428, %429 : vector<16x32xf32>
    %431 = vector.broadcast %410 : vector<1x32xf32> to vector<16x32xf32>
    %432 = arith.addf %430, %431 : vector<16x32xf32>
    %c2_172 = arith.constant 2 : index
    %c0_173 = arith.constant 0 : index
    %c0_174 = arith.constant 0 : index
    %433 = vector.load %arg10[%c2_172, %c0_173, %c0_174] : memref<4x32x64xf32, #tpu.memory_space<vmem>>, vector<1x32x64xf32>
    %434 = vector.shape_cast %433 : vector<1x32x64xf32> to vector<32x64xf32>
    %cst_175 = arith.constant dense<0.000000e+00> : vector<16x64xf32>
    %435 = tpu.matmul %432, %434, %cst_175 {dimension_numbers = #tpu.dot_dimension_numbers<[1], [0], [0], [1], [0, 0, 1, 1], [], []>} : vector<16x32xf32>, vector<32x64xf32>, vector<16x64xf32> -> vector<16x64xf32>
    %c2_176 = arith.constant 2 : index
    %c0_177 = arith.constant 0 : index
    %c0_178 = arith.constant 0 : index
    %436 = vector.load %arg11[%c2_176, %c0_177, %c0_178] : memref<4x1x64xf32, #tpu.memory_space<vmem>>, vector<1x1x64xf32>
    %437 = vector.shape_cast %436 : vector<1x1x64xf32> to vector<1x64xf32>
    %438 = vector.broadcast %437 : vector<1x64xf32> to vector<16x64xf32>
    %439 = arith.addf %435, %438 : vector<16x64xf32>
    %cst_179 = arith.constant 5.000000e-01 : f32
    %440 = vector.broadcast %cst_179 : f32 to vector<16x64xf32>
    %441 = arith.mulf %440, %439 : vector<16x64xf32>
    %cst_180 = arith.constant 0.707106769 : f32
    %442 = vector.broadcast %cst_180 : f32 to vector<16x64xf32>
    %443 = arith.mulf %439, %442 : vector<16x64xf32>
    %cst_181 = arith.constant 0.000000e+00 : f32
    %444 = vector.broadcast %cst_181 : f32 to vector<16x64xf32>
    %445 = arith.cmpf oge, %443, %444 : vector<16x64xf32>
    %cst_182 = arith.constant 1.000000e+00 : f32
    %cst_183 = arith.constant -1.000000e+00 : f32
    %446 = vector.broadcast %cst_182 : f32 to vector<16x64xf32>
    %447 = vector.broadcast %cst_183 : f32 to vector<16x64xf32>
    %448 = arith.select %445, %446, %447 : vector<16x64xi1>, vector<16x64xf32>
    %449 = math.absf %443 : vector<16x64xf32>
    %cst_184 = arith.constant 0.327591091 : f32
    %450 = vector.broadcast %cst_184 : f32 to vector<16x64xf32>
    %451 = arith.mulf %450, %449 : vector<16x64xf32>
    %cst_185 = arith.constant 1.000000e+00 : f32
    %452 = vector.broadcast %cst_185 : f32 to vector<16x64xf32>
    %453 = arith.addf %452, %451 : vector<16x64xf32>
    %cst_186 = arith.constant 1.000000e+00 : f32
    %454 = vector.broadcast %cst_186 : f32 to vector<16x64xf32>
    %455 = arith.divf %454, %453 : vector<16x64xf32>
    %cst_187 = arith.constant 1.06140542 : f32
    %456 = vector.broadcast %cst_187 : f32 to vector<16x64xf32>
    %457 = arith.mulf %456, %455 : vector<16x64xf32>
    %cst_188 = arith.constant -1.45315206 : f32
    %458 = vector.broadcast %cst_188 : f32 to vector<16x64xf32>
    %459 = arith.addf %457, %458 : vector<16x64xf32>
    %460 = arith.mulf %459, %455 : vector<16x64xf32>
    %cst_189 = arith.constant 1.42141378 : f32
    %461 = vector.broadcast %cst_189 : f32 to vector<16x64xf32>
    %462 = arith.addf %460, %461 : vector<16x64xf32>
    %463 = arith.mulf %462, %455 : vector<16x64xf32>
    %cst_190 = arith.constant -0.284496725 : f32
    %464 = vector.broadcast %cst_190 : f32 to vector<16x64xf32>
    %465 = arith.addf %463, %464 : vector<16x64xf32>
    %466 = arith.mulf %465, %455 : vector<16x64xf32>
    %cst_191 = arith.constant 0.254829586 : f32
    %467 = vector.broadcast %cst_191 : f32 to vector<16x64xf32>
    %468 = arith.addf %466, %467 : vector<16x64xf32>
    %469 = arith.mulf %468, %455 : vector<16x64xf32>
    %cst_192 = arith.constant 0.000000e+00 : f32
    %470 = vector.broadcast %cst_192 : f32 to vector<16x64xf32>
    %471 = arith.subf %470, %449 : vector<16x64xf32>
    %472 = arith.mulf %471, %449 : vector<16x64xf32>
    %473 = math.exp %472 : vector<16x64xf32>
    %474 = arith.mulf %469, %473 : vector<16x64xf32>
    %cst_193 = arith.constant 1.000000e+00 : f32
    %475 = vector.broadcast %cst_193 : f32 to vector<16x64xf32>
    %476 = arith.subf %475, %474 : vector<16x64xf32>
    %477 = arith.mulf %448, %476 : vector<16x64xf32>
    %cst_194 = arith.constant 1.000000e+00 : f32
    %478 = vector.broadcast %cst_194 : f32 to vector<16x64xf32>
    %479 = arith.addf %478, %477 : vector<16x64xf32>
    %480 = arith.mulf %441, %479 : vector<16x64xf32>
    %c2_195 = arith.constant 2 : index
    %c0_196 = arith.constant 0 : index
    %c0_197 = arith.constant 0 : index
    %481 = vector.load %arg12[%c2_195, %c0_196, %c0_197] : memref<4x64x32xf32, #tpu.memory_space<vmem>>, vector<1x64x32xf32>
    %482 = vector.shape_cast %481 : vector<1x64x32xf32> to vector<64x32xf32>
    %cst_198 = arith.constant dense<0.000000e+00> : vector<16x32xf32>
    %483 = tpu.matmul %480, %482, %cst_198 {dimension_numbers = #tpu.dot_dimension_numbers<[1], [0], [0], [1], [0, 0, 1, 1], [], []>} : vector<16x64xf32>, vector<64x32xf32>, vector<16x32xf32> -> vector<16x32xf32>
    %c2_199 = arith.constant 2 : index
    %c0_200 = arith.constant 0 : index
    %c0_201 = arith.constant 0 : index
    %484 = vector.load %arg13[%c2_199, %c0_200, %c0_201] : memref<4x1x32xf32, #tpu.memory_space<vmem>>, vector<1x1x32xf32>
    %485 = vector.shape_cast %484 : vector<1x1x32xf32> to vector<1x32xf32>
    %486 = vector.broadcast %485 : vector<1x32xf32> to vector<16x32xf32>
    %487 = arith.addf %483, %486 : vector<16x32xf32>
    %488 = arith.addf %432, %487 : vector<16x32xf32>
    %c2_202 = arith.constant 2 : index
    %c0_203 = arith.constant 0 : index
    %c0_204 = arith.constant 0 : index
    %489 = vector.load %arg14[%c2_202, %c0_203, %c0_204] : memref<4x1x32xf32, #tpu.memory_space<vmem>>, vector<1x1x32xf32>
    %490 = vector.shape_cast %489 : vector<1x1x32xf32> to vector<1x32xf32>
    %c2_205 = arith.constant 2 : index
    %c0_206 = arith.constant 0 : index
    %c0_207 = arith.constant 0 : index
    %491 = vector.load %arg15[%c2_205, %c0_206, %c0_207] : memref<4x1x32xf32, #tpu.memory_space<vmem>>, vector<1x1x32xf32>
    %492 = vector.shape_cast %491 : vector<1x1x32xf32> to vector<1x32xf32>
    %cst_208 = arith.constant dense<0.000000e+00> : vector<16xf32>
    %493 = vector.multi_reduction <add>, %488, %cst_208 [1] : vector<16x32xf32> to vector<16xf32>
    %494 = vector.shape_cast %493 : vector<16xf32> to vector<16x1xf32>
    %cst_209 = arith.constant 3.200000e+01 : f32
    %495 = vector.broadcast %cst_209 : f32 to vector<16x1xf32>
    %496 = arith.divf %494, %495 : vector<16x1xf32>
    %497 = vector.broadcast %496 : vector<16x1xf32> to vector<16x32xf32>
    %498 = arith.subf %488, %497 : vector<16x32xf32>
    %499 = arith.mulf %498, %498 : vector<16x32xf32>
    %cst_210 = arith.constant dense<0.000000e+00> : vector<16xf32>
    %500 = vector.multi_reduction <add>, %499, %cst_210 [1] : vector<16x32xf32> to vector<16xf32>
    %501 = vector.shape_cast %500 : vector<16xf32> to vector<16x1xf32>
    %cst_211 = arith.constant 3.200000e+01 : f32
    %502 = vector.broadcast %cst_211 : f32 to vector<16x1xf32>
    %503 = arith.divf %501, %502 : vector<16x1xf32>
    %504 = vector.broadcast %496 : vector<16x1xf32> to vector<16x32xf32>
    %505 = arith.subf %488, %504 : vector<16x32xf32>
    %cst_212 = arith.constant 9.99999974E-6 : f32
    %506 = vector.broadcast %cst_212 : f32 to vector<16x1xf32>
    %507 = arith.addf %503, %506 : vector<16x1xf32>
    %508 = math.rsqrt %507 : vector<16x1xf32>
    %509 = vector.broadcast %508 : vector<16x1xf32> to vector<16x32xf32>
    %510 = arith.mulf %505, %509 : vector<16x32xf32>
    %511 = vector.broadcast %490 : vector<1x32xf32> to vector<16x32xf32>
    %512 = arith.mulf %510, %511 : vector<16x32xf32>
    %513 = vector.broadcast %492 : vector<1x32xf32> to vector<16x32xf32>
    %514 = arith.addf %512, %513 : vector<16x32xf32>
    %c3 = arith.constant 3 : index
    %c0_213 = arith.constant 0 : index
    %c0_214 = arith.constant 0 : index
    %515 = vector.load %arg4[%c3, %c0_213, %c0_214] : memref<4x32x96xf32, #tpu.memory_space<vmem>>, vector<1x32x96xf32>
    %516 = vector.shape_cast %515 : vector<1x32x96xf32> to vector<32x96xf32>
    %cst_215 = arith.constant dense<0.000000e+00> : vector<16x96xf32>
    %517 = tpu.matmul %514, %516, %cst_215 {dimension_numbers = #tpu.dot_dimension_numbers<[1], [0], [0], [1], [0, 0, 1, 1], [], []>} : vector<16x32xf32>, vector<32x96xf32>, vector<16x96xf32> -> vector<16x96xf32>
    %c3_216 = arith.constant 3 : index
    %c0_217 = arith.constant 0 : index
    %c0_218 = arith.constant 0 : index
    %518 = vector.load %arg5[%c3_216, %c0_217, %c0_218] : memref<4x1x96xf32, #tpu.memory_space<vmem>>, vector<1x1x96xf32>
    %519 = vector.shape_cast %518 : vector<1x1x96xf32> to vector<1x96xf32>
    %520 = vector.broadcast %519 : vector<1x96xf32> to vector<16x96xf32>
    %521 = arith.addf %517, %520 : vector<16x96xf32>
    %522 = vector.extract_strided_slice %521 {offsets = [0, 0], sizes = [16, 8], strides = [1, 1]} : vector<16x96xf32> to vector<16x8xf32>
    %523 = vector.shape_cast %522 : vector<16x8xf32> to vector<1x16x8xf32>
    %524 = vector.extract_strided_slice %521 {offsets = [0, 8], sizes = [16, 8], strides = [1, 1]} : vector<16x96xf32> to vector<16x8xf32>
    %525 = vector.shape_cast %524 : vector<16x8xf32> to vector<1x16x8xf32>
    %526 = vector.extract_strided_slice %521 {offsets = [0, 16], sizes = [16, 8], strides = [1, 1]} : vector<16x96xf32> to vector<16x8xf32>
    %527 = vector.shape_cast %526 : vector<16x8xf32> to vector<1x16x8xf32>
    %528 = vector.extract_strided_slice %521 {offsets = [0, 24], sizes = [16, 8], strides = [1, 1]} : vector<16x96xf32> to vector<16x8xf32>
    %529 = vector.shape_cast %528 : vector<16x8xf32> to vector<1x16x8xf32>
    %530 = tpu.concatenate %523, %525, %527, %529 in 0 : vector<1x16x8xf32>, vector<1x16x8xf32>, vector<1x16x8xf32>, vector<1x16x8xf32> -> vector<4x16x8xf32>
    %531 = vector.extract_strided_slice %521 {offsets = [0, 32], sizes = [16, 8], strides = [1, 1]} : vector<16x96xf32> to vector<16x8xf32>
    %532 = vector.shape_cast %531 : vector<16x8xf32> to vector<1x16x8xf32>
    %533 = vector.extract_strided_slice %521 {offsets = [0, 40], sizes = [16, 8], strides = [1, 1]} : vector<16x96xf32> to vector<16x8xf32>
    %534 = vector.shape_cast %533 : vector<16x8xf32> to vector<1x16x8xf32>
    %535 = vector.extract_strided_slice %521 {offsets = [0, 48], sizes = [16, 8], strides = [1, 1]} : vector<16x96xf32> to vector<16x8xf32>
    %536 = vector.shape_cast %535 : vector<16x8xf32> to vector<1x16x8xf32>
    %537 = vector.extract_strided_slice %521 {offsets = [0, 56], sizes = [16, 8], strides = [1, 1]} : vector<16x96xf32> to vector<16x8xf32>
    %538 = vector.shape_cast %537 : vector<16x8xf32> to vector<1x16x8xf32>
    %539 = tpu.concatenate %532, %534, %536, %538 in 0 : vector<1x16x8xf32>, vector<1x16x8xf32>, vector<1x16x8xf32>, vector<1x16x8xf32> -> vector<4x16x8xf32>
    %540 = vector.extract_strided_slice %521 {offsets = [0, 64], sizes = [16, 8], strides = [1, 1]} : vector<16x96xf32> to vector<16x8xf32>
    %541 = vector.shape_cast %540 : vector<16x8xf32> to vector<1x16x8xf32>
    %542 = vector.extract_strided_slice %521 {offsets = [0, 72], sizes = [16, 8], strides = [1, 1]} : vector<16x96xf32> to vector<16x8xf32>
    %543 = vector.shape_cast %542 : vector<16x8xf32> to vector<1x16x8xf32>
    %544 = vector.extract_strided_slice %521 {offsets = [0, 80], sizes = [16, 8], strides = [1, 1]} : vector<16x96xf32> to vector<16x8xf32>
    %545 = vector.shape_cast %544 : vector<16x8xf32> to vector<1x16x8xf32>
    %546 = vector.extract_strided_slice %521 {offsets = [0, 88], sizes = [16, 8], strides = [1, 1]} : vector<16x96xf32> to vector<16x8xf32>
    %547 = vector.shape_cast %546 : vector<16x8xf32> to vector<1x16x8xf32>
    %548 = tpu.concatenate %541, %543, %545, %547 in 0 : vector<1x16x8xf32>, vector<1x16x8xf32>, vector<1x16x8xf32>, vector<1x16x8xf32> -> vector<4x16x8xf32>
    "tpu.trace_start"() <{level = 10 : i32, message = "bqd,bkd->bqk"}> : () -> ()
    %cst_219 = arith.constant dense<0.000000e+00> : vector<4x16x16xf32>
    %549 = tpu.matmul %530, %539, %cst_219 {dimension_numbers = #tpu.dot_dimension_numbers<[2], [2], [1], [1], [0, 0, 0, 1, 1, 1], [0], [0]>} : vector<4x16x8xf32>, vector<4x16x8xf32>, vector<4x16x16xf32> -> vector<4x16x16xf32>
    "tpu.trace_stop"() : () -> ()
    %cst_220 = arith.constant dense<0xFF800000> : vector<4x16xf32>
    %550 = vector.multi_reduction <maximumf>, %549, %cst_220 [2] : vector<4x16x16xf32> to vector<4x16xf32>
    %551 = vector.shape_cast %550 : vector<4x16xf32> to vector<4x16x1xf32>
    %552 = vector.broadcast %551 : vector<4x16x1xf32> to vector<4x16x16xf32>
    %553 = arith.subf %549, %552 : vector<4x16x16xf32>
    %554 = math.exp %553 : vector<4x16x16xf32>
    %cst_221 = arith.constant dense<0.000000e+00> : vector<4x16xf32>
    %555 = vector.multi_reduction <add>, %554, %cst_221 [2] : vector<4x16x16xf32> to vector<4x16xf32>
    %556 = vector.shape_cast %555 : vector<4x16xf32> to vector<4x16x1xf32>
    %557 = vector.broadcast %556 : vector<4x16x1xf32> to vector<4x16x16xf32>
    %558 = arith.divf %554, %557 : vector<4x16x16xf32>
    "tpu.trace_start"() <{level = 10 : i32, message = "bqk,bkd->bqd"}> : () -> ()
    %cst_222 = arith.constant dense<0.000000e+00> : vector<4x16x8xf32>
    %559 = tpu.matmul %558, %548, %cst_222 {dimension_numbers = #tpu.dot_dimension_numbers<[2], [1], [1], [2], [0, 0, 0, 1, 1, 2], [0], [0]>} : vector<4x16x16xf32>, vector<4x16x8xf32>, vector<4x16x8xf32> -> vector<4x16x8xf32>
    "tpu.trace_stop"() : () -> ()
    %560 = vector.extract_strided_slice %559 {offsets = [0, 0, 0], sizes = [1, 16, 8], strides = [1, 1, 1]} : vector<4x16x8xf32> to vector<1x16x8xf32>
    %561 = vector.shape_cast %560 : vector<1x16x8xf32> to vector<16x8xf32>
    %562 = vector.extract_strided_slice %559 {offsets = [1, 0, 0], sizes = [1, 16, 8], strides = [1, 1, 1]} : vector<4x16x8xf32> to vector<1x16x8xf32>
    %563 = vector.shape_cast %562 : vector<1x16x8xf32> to vector<16x8xf32>
    %564 = vector.extract_strided_slice %559 {offsets = [2, 0, 0], sizes = [1, 16, 8], strides = [1, 1, 1]} : vector<4x16x8xf32> to vector<1x16x8xf32>
    %565 = vector.shape_cast %564 : vector<1x16x8xf32> to vector<16x8xf32>
    %566 = vector.extract_strided_slice %559 {offsets = [3, 0, 0], sizes = [1, 16, 8], strides = [1, 1, 1]} : vector<4x16x8xf32> to vector<1x16x8xf32>
    %567 = vector.shape_cast %566 : vector<1x16x8xf32> to vector<16x8xf32>
    %568 = tpu.concatenate %561, %563, %565, %567 in 1 : vector<16x8xf32>, vector<16x8xf32>, vector<16x8xf32>, vector<16x8xf32> -> vector<16x32xf32>
    %c3_223 = arith.constant 3 : index
    %c0_224 = arith.constant 0 : index
    %c0_225 = arith.constant 0 : index
    %569 = vector.load %arg6[%c3_223, %c0_224, %c0_225] : memref<4x32x32xf32, #tpu.memory_space<vmem>>, vector<1x32x32xf32>
    %570 = vector.shape_cast %569 : vector<1x32x32xf32> to vector<32x32xf32>
    %cst_226 = arith.constant dense<0.000000e+00> : vector<16x32xf32>
    %571 = tpu.matmul %568, %570, %cst_226 {dimension_numbers = #tpu.dot_dimension_numbers<[1], [0], [0], [1], [0, 0, 1, 1], [], []>} : vector<16x32xf32>, vector<32x32xf32>, vector<16x32xf32> -> vector<16x32xf32>
    %c3_227 = arith.constant 3 : index
    %c0_228 = arith.constant 0 : index
    %c0_229 = arith.constant 0 : index
    %572 = vector.load %arg7[%c3_227, %c0_228, %c0_229] : memref<4x1x32xf32, #tpu.memory_space<vmem>>, vector<1x1x32xf32>
    %573 = vector.shape_cast %572 : vector<1x1x32xf32> to vector<1x32xf32>
    %574 = vector.broadcast %573 : vector<1x32xf32> to vector<16x32xf32>
    %575 = arith.addf %571, %574 : vector<16x32xf32>
    %576 = arith.addf %514, %575 : vector<16x32xf32>
    %c3_230 = arith.constant 3 : index
    %c0_231 = arith.constant 0 : index
    %c0_232 = arith.constant 0 : index
    %577 = vector.load %arg8[%c3_230, %c0_231, %c0_232] : memref<4x1x32xf32, #tpu.memory_space<vmem>>, vector<1x1x32xf32>
    %578 = vector.shape_cast %577 : vector<1x1x32xf32> to vector<1x32xf32>
    %c3_233 = arith.constant 3 : index
    %c0_234 = arith.constant 0 : index
    %c0_235 = arith.constant 0 : index
    %579 = vector.load %arg9[%c3_233, %c0_234, %c0_235] : memref<4x1x32xf32, #tpu.memory_space<vmem>>, vector<1x1x32xf32>
    %580 = vector.shape_cast %579 : vector<1x1x32xf32> to vector<1x32xf32>
    %cst_236 = arith.constant dense<0.000000e+00> : vector<16xf32>
    %581 = vector.multi_reduction <add>, %576, %cst_236 [1] : vector<16x32xf32> to vector<16xf32>
    %582 = vector.shape_cast %581 : vector<16xf32> to vector<16x1xf32>
    %cst_237 = arith.constant 3.200000e+01 : f32
    %583 = vector.broadcast %cst_237 : f32 to vector<16x1xf32>
    %584 = arith.divf %582, %583 : vector<16x1xf32>
    %585 = vector.broadcast %584 : vector<16x1xf32> to vector<16x32xf32>
    %586 = arith.subf %576, %585 : vector<16x32xf32>
    %587 = arith.mulf %586, %586 : vector<16x32xf32>
    %cst_238 = arith.constant dense<0.000000e+00> : vector<16xf32>
    %588 = vector.multi_reduction <add>, %587, %cst_238 [1] : vector<16x32xf32> to vector<16xf32>
    %589 = vector.shape_cast %588 : vector<16xf32> to vector<16x1xf32>
    %cst_239 = arith.constant 3.200000e+01 : f32
    %590 = vector.broadcast %cst_239 : f32 to vector<16x1xf32>
    %591 = arith.divf %589, %590 : vector<16x1xf32>
    %592 = vector.broadcast %584 : vector<16x1xf32> to vector<16x32xf32>
    %593 = arith.subf %576, %592 : vector<16x32xf32>
    %cst_240 = arith.constant 9.99999974E-6 : f32
    %594 = vector.broadcast %cst_240 : f32 to vector<16x1xf32>
    %595 = arith.addf %591, %594 : vector<16x1xf32>
    %596 = math.rsqrt %595 : vector<16x1xf32>
    %597 = vector.broadcast %596 : vector<16x1xf32> to vector<16x32xf32>
    %598 = arith.mulf %593, %597 : vector<16x32xf32>
    %599 = vector.broadcast %578 : vector<1x32xf32> to vector<16x32xf32>
    %600 = arith.mulf %598, %599 : vector<16x32xf32>
    %601 = vector.broadcast %580 : vector<1x32xf32> to vector<16x32xf32>
    %602 = arith.addf %600, %601 : vector<16x32xf32>
    %c3_241 = arith.constant 3 : index
    %c0_242 = arith.constant 0 : index
    %c0_243 = arith.constant 0 : index
    %603 = vector.load %arg10[%c3_241, %c0_242, %c0_243] : memref<4x32x64xf32, #tpu.memory_space<vmem>>, vector<1x32x64xf32>
    %604 = vector.shape_cast %603 : vector<1x32x64xf32> to vector<32x64xf32>
    %cst_244 = arith.constant dense<0.000000e+00> : vector<16x64xf32>
    %605 = tpu.matmul %602, %604, %cst_244 {dimension_numbers = #tpu.dot_dimension_numbers<[1], [0], [0], [1], [0, 0, 1, 1], [], []>} : vector<16x32xf32>, vector<32x64xf32>, vector<16x64xf32> -> vector<16x64xf32>
    %c3_245 = arith.constant 3 : index
    %c0_246 = arith.constant 0 : index
    %c0_247 = arith.constant 0 : index
    %606 = vector.load %arg11[%c3_245, %c0_246, %c0_247] : memref<4x1x64xf32, #tpu.memory_space<vmem>>, vector<1x1x64xf32>
    %607 = vector.shape_cast %606 : vector<1x1x64xf32> to vector<1x64xf32>
    %608 = vector.broadcast %607 : vector<1x64xf32> to vector<16x64xf32>
    %609 = arith.addf %605, %608 : vector<16x64xf32>
    %cst_248 = arith.constant 5.000000e-01 : f32
    %610 = vector.broadcast %cst_248 : f32 to vector<16x64xf32>
    %611 = arith.mulf %610, %609 : vector<16x64xf32>
    %cst_249 = arith.constant 0.707106769 : f32
    %612 = vector.broadcast %cst_249 : f32 to vector<16x64xf32>
    %613 = arith.mulf %609, %612 : vector<16x64xf32>
    %cst_250 = arith.constant 0.000000e+00 : f32
    %614 = vector.broadcast %cst_250 : f32 to vector<16x64xf32>
    %615 = arith.cmpf oge, %613, %614 : vector<16x64xf32>
    %cst_251 = arith.constant 1.000000e+00 : f32
    %cst_252 = arith.constant -1.000000e+00 : f32
    %616 = vector.broadcast %cst_251 : f32 to vector<16x64xf32>
    %617 = vector.broadcast %cst_252 : f32 to vector<16x64xf32>
    %618 = arith.select %615, %616, %617 : vector<16x64xi1>, vector<16x64xf32>
    %619 = math.absf %613 : vector<16x64xf32>
    %cst_253 = arith.constant 0.327591091 : f32
    %620 = vector.broadcast %cst_253 : f32 to vector<16x64xf32>
    %621 = arith.mulf %620, %619 : vector<16x64xf32>
    %cst_254 = arith.constant 1.000000e+00 : f32
    %622 = vector.broadcast %cst_254 : f32 to vector<16x64xf32>
    %623 = arith.addf %622, %621 : vector<16x64xf32>
    %cst_255 = arith.constant 1.000000e+00 : f32
    %624 = vector.broadcast %cst_255 : f32 to vector<16x64xf32>
    %625 = arith.divf %624, %623 : vector<16x64xf32>
    %cst_256 = arith.constant 1.06140542 : f32
    %626 = vector.broadcast %cst_256 : f32 to vector<16x64xf32>
    %627 = arith.mulf %626, %625 : vector<16x64xf32>
    %cst_257 = arith.constant -1.45315206 : f32
    %628 = vector.broadcast %cst_257 : f32 to vector<16x64xf32>
    %629 = arith.addf %627, %628 : vector<16x64xf32>
    %630 = arith.mulf %629, %625 : vector<16x64xf32>
    %cst_258 = arith.constant 1.42141378 : f32
    %631 = vector.broadcast %cst_258 : f32 to vector<16x64xf32>
    %632 = arith.addf %630, %631 : vector<16x64xf32>
    %633 = arith.mulf %632, %625 : vector<16x64xf32>
    %cst_259 = arith.constant -0.284496725 : f32
    %634 = vector.broadcast %cst_259 : f32 to vector<16x64xf32>
    %635 = arith.addf %633, %634 : vector<16x64xf32>
    %636 = arith.mulf %635, %625 : vector<16x64xf32>
    %cst_260 = arith.constant 0.254829586 : f32
    %637 = vector.broadcast %cst_260 : f32 to vector<16x64xf32>
    %638 = arith.addf %636, %637 : vector<16x64xf32>
    %639 = arith.mulf %638, %625 : vector<16x64xf32>
    %cst_261 = arith.constant 0.000000e+00 : f32
    %640 = vector.broadcast %cst_261 : f32 to vector<16x64xf32>
    %641 = arith.subf %640, %619 : vector<16x64xf32>
    %642 = arith.mulf %641, %619 : vector<16x64xf32>
    %643 = math.exp %642 : vector<16x64xf32>
    %644 = arith.mulf %639, %643 : vector<16x64xf32>
    %cst_262 = arith.constant 1.000000e+00 : f32
    %645 = vector.broadcast %cst_262 : f32 to vector<16x64xf32>
    %646 = arith.subf %645, %644 : vector<16x64xf32>
    %647 = arith.mulf %618, %646 : vector<16x64xf32>
    %cst_263 = arith.constant 1.000000e+00 : f32
    %648 = vector.broadcast %cst_263 : f32 to vector<16x64xf32>
    %649 = arith.addf %648, %647 : vector<16x64xf32>
    %650 = arith.mulf %611, %649 : vector<16x64xf32>
    %c3_264 = arith.constant 3 : index
    %c0_265 = arith.constant 0 : index
    %c0_266 = arith.constant 0 : index
    %651 = vector.load %arg12[%c3_264, %c0_265, %c0_266] : memref<4x64x32xf32, #tpu.memory_space<vmem>>, vector<1x64x32xf32>
    %652 = vector.shape_cast %651 : vector<1x64x32xf32> to vector<64x32xf32>
    %cst_267 = arith.constant dense<0.000000e+00> : vector<16x32xf32>
    %653 = tpu.matmul %650, %652, %cst_267 {dimension_numbers = #tpu.dot_dimension_numbers<[1], [0], [0], [1], [0, 0, 1, 1], [], []>} : vector<16x64xf32>, vector<64x32xf32>, vector<16x32xf32> -> vector<16x32xf32>
    %c3_268 = arith.constant 3 : index
    %c0_269 = arith.constant 0 : index
    %c0_270 = arith.constant 0 : index
    %654 = vector.load %arg13[%c3_268, %c0_269, %c0_270] : memref<4x1x32xf32, #tpu.memory_space<vmem>>, vector<1x1x32xf32>
    %655 = vector.shape_cast %654 : vector<1x1x32xf32> to vector<1x32xf32>
    %656 = vector.broadcast %655 : vector<1x32xf32> to vector<16x32xf32>
    %657 = arith.addf %653, %656 : vector<16x32xf32>
    %658 = arith.addf %602, %657 : vector<16x32xf32>
    %c3_271 = arith.constant 3 : index
    %c0_272 = arith.constant 0 : index
    %c0_273 = arith.constant 0 : index
    %659 = vector.load %arg14[%c3_271, %c0_272, %c0_273] : memref<4x1x32xf32, #tpu.memory_space<vmem>>, vector<1x1x32xf32>
    %660 = vector.shape_cast %659 : vector<1x1x32xf32> to vector<1x32xf32>
    %c3_274 = arith.constant 3 : index
    %c0_275 = arith.constant 0 : index
    %c0_276 = arith.constant 0 : index
    %661 = vector.load %arg15[%c3_274, %c0_275, %c0_276] : memref<4x1x32xf32, #tpu.memory_space<vmem>>, vector<1x1x32xf32>
    %662 = vector.shape_cast %661 : vector<1x1x32xf32> to vector<1x32xf32>
    %cst_277 = arith.constant dense<0.000000e+00> : vector<16xf32>
    %663 = vector.multi_reduction <add>, %658, %cst_277 [1] : vector<16x32xf32> to vector<16xf32>
    %664 = vector.shape_cast %663 : vector<16xf32> to vector<16x1xf32>
    %cst_278 = arith.constant 3.200000e+01 : f32
    %665 = vector.broadcast %cst_278 : f32 to vector<16x1xf32>
    %666 = arith.divf %664, %665 : vector<16x1xf32>
    %667 = vector.broadcast %666 : vector<16x1xf32> to vector<16x32xf32>
    %668 = arith.subf %658, %667 : vector<16x32xf32>
    %669 = arith.mulf %668, %668 : vector<16x32xf32>
    %cst_279 = arith.constant dense<0.000000e+00> : vector<16xf32>
    %670 = vector.multi_reduction <add>, %669, %cst_279 [1] : vector<16x32xf32> to vector<16xf32>
    %671 = vector.shape_cast %670 : vector<16xf32> to vector<16x1xf32>
    %cst_280 = arith.constant 3.200000e+01 : f32
    %672 = vector.broadcast %cst_280 : f32 to vector<16x1xf32>
    %673 = arith.divf %671, %672 : vector<16x1xf32>
    %674 = vector.broadcast %666 : vector<16x1xf32> to vector<16x32xf32>
    %675 = arith.subf %658, %674 : vector<16x32xf32>
    %cst_281 = arith.constant 9.99999974E-6 : f32
    %676 = vector.broadcast %cst_281 : f32 to vector<16x1xf32>
    %677 = arith.addf %673, %676 : vector<16x1xf32>
    %678 = math.rsqrt %677 : vector<16x1xf32>
    %679 = vector.broadcast %678 : vector<16x1xf32> to vector<16x32xf32>
    %680 = arith.mulf %675, %679 : vector<16x32xf32>
    %681 = vector.broadcast %660 : vector<1x32xf32> to vector<16x32xf32>
    %682 = arith.mulf %680, %681 : vector<16x32xf32>
    %683 = vector.broadcast %662 : vector<1x32xf32> to vector<16x32xf32>
    %684 = arith.addf %682, %683 : vector<16x32xf32>
    %c0_282 = arith.constant 0 : index
    %c0_283 = arith.constant 0 : index
    %685 = vector.load %arg16[%c0_282, %c0_283] : memref<32x128xf32, #tpu.memory_space<vmem>>, vector<32x128xf32>
    %cst_284 = arith.constant dense<0.000000e+00> : vector<16x128xf32>
    %686 = tpu.matmul %684, %685, %cst_284 {dimension_numbers = #tpu.dot_dimension_numbers<[1], [0], [0], [1], [0, 0, 1, 1], [], []>} : vector<16x32xf32>, vector<32x128xf32>, vector<16x128xf32> -> vector<16x128xf32>
    %c0_285 = arith.constant 0 : index
    %c0_286 = arith.constant 0 : index
    %687 = vector.load %arg17[%c0_285, %c0_286] : memref<1x128xf32, #tpu.memory_space<vmem>>, vector<1x128xf32>
    %688 = vector.broadcast %687 : vector<1x128xf32> to vector<16x128xf32>
    %689 = arith.addf %686, %688 : vector<16x128xf32>
    %cst_287 = arith.constant 0.000000e+00 : f32
    %cst_288 = arith.constant 2.550000e+02 : f32
    %690 = vector.broadcast %cst_287 : f32 to vector<16x128xf32>
    %691 = arith.maximumf %690, %689 : vector<16x128xf32>
    %692 = vector.broadcast %cst_288 : f32 to vector<16x128xf32>
    %693 = arith.minimumf %692, %691 : vector<16x128xf32>
    %c0_289 = arith.constant 0 : index
    %c0_290 = arith.constant 0 : index
    %694 = vector.load %arg18[%c0_289, %c0_290] : memref<16x128xf32, #tpu.memory_space<vmem>>, vector<16x128xf32>
    tpu.vector_store %arg18[%c0_289, %c0_290], %693 {strides = array<i32>} : memref<16x128xf32, #tpu.memory_space<vmem>>, vector<16x128xf32>,
    return
  }
  func.func @transform_0(%arg0: i32) -> (i32, i32) {
    %c0_i32 = arith.constant 0 : i32
    %c0_i32_0 = arith.constant 0 : i32
    return %arg0, %c0_i32 : i32, i32
  }
  func.func @transform_1(%arg0: i32) -> (i32, i32) {
    %c0_i32 = arith.constant 0 : i32
    %c0_i32_0 = arith.constant 0 : i32
    %c0_i32_1 = arith.constant 0 : i32
    return %c0_i32, %c0_i32_0 : i32, i32
  }
  func.func @transform_2(%arg0: i32) -> (i32, i32) {
    %c0_i32 = arith.constant 0 : i32
    %c0_i32_0 = arith.constant 0 : i32
    %c0_i32_1 = arith.constant 0 : i32
    return %c0_i32, %c0_i32_0 : i32, i32
  }
  func.func @transform_3(%arg0: i32) -> (i32, i32, i32) {
    %c0_i32 = arith.constant 0 : i32
    %c0_i32_0 = arith.constant 0 : i32
    %c0_i32_1 = arith.constant 0 : i32
    %c0_i32_2 = arith.constant 0 : i32
    return %c0_i32, %c0_i32_0, %c0_i32_1 : i32, i32, i32
  }
  func.func @transform_4(%arg0: i32) -> (i32, i32, i32) {
    %c0_i32 = arith.constant 0 : i32
    %c0_i32_0 = arith.constant 0 : i32
    %c0_i32_1 = arith.constant 0 : i32
    %c0_i32_2 = arith.constant 0 : i32
    return %c0_i32, %c0_i32_0, %c0_i32_1 : i32, i32, i32
  }
  func.func @transform_5(%arg0: i32) -> (i32, i32, i32) {
    %c0_i32 = arith.constant 0 : i32
    %c0_i32_0 = arith.constant 0 : i32
    %c0_i32_1 = arith.constant 0 : i32
    %c0_i32_2 = arith.constant 0 : i32
    return %c0_i32, %c0_i32_0, %c0_i32_1 : i32, i32, i32
  }
  func.func @transform_6(%arg0: i32) -> (i32, i32, i32) {
    %c0_i32 = arith.constant 0 : i32
    %c0_i32_0 = arith.constant 0 : i32
    %c0_i32_1 = arith.constant 0 : i32
    %c0_i32_2 = arith.constant 0 : i32
    return %c0_i32, %c0_i32_0, %c0_i32_1 : i32, i32, i32
  }
  func.func @transform_7(%arg0: i32) -> (i32, i32, i32) {
    %c0_i32 = arith.constant 0 : i32
    %c0_i32_0 = arith.constant 0 : i32
    %c0_i32_1 = arith.constant 0 : i32
    %c0_i32_2 = arith.constant 0 : i32
    return %c0_i32, %c0_i32_0, %c0_i32_1 : i32, i32, i32
  }
  func.func @transform_8(%arg0: i32) -> (i32, i32, i32) {
    %c0_i32 = arith.constant 0 : i32
    %c0_i32_0 = arith.constant 0 : i32
    %c0_i32_1 = arith.constant 0 : i32
    %c0_i32_2 = arith.constant 0 : i32
    return %c0_i32, %c0_i32_0, %c0_i32_1 : i32, i32, i32
  }
  func.func @transform_9(%arg0: i32) -> (i32, i32, i32) {
    %c0_i32 = arith.constant 0 : i32
    %c0_i32_0 = arith.constant 0 : i32
    %c0_i32_1 = arith.constant 0 : i32
    %c0_i32_2 = arith.constant 0 : i32
    return %c0_i32, %c0_i32_0, %c0_i32_1 : i32, i32, i32
  }
  func.func @transform_10(%arg0: i32) -> (i32, i32, i32) {
    %c0_i32 = arith.constant 0 : i32
    %c0_i32_0 = arith.constant 0 : i32
    %c0_i32_1 = arith.constant 0 : i32
    %c0_i32_2 = arith.constant 0 : i32
    return %c0_i32, %c0_i32_0, %c0_i32_1 : i32, i32, i32
  }
  func.func @transform_11(%arg0: i32) -> (i32, i32, i32) {
    %c0_i32 = arith.constant 0 : i32
    %c0_i32_0 = arith.constant 0 : i32
    %c0_i32_1 = arith.constant 0 : i32
    %c0_i32_2 = arith.constant 0 : i32
    return %c0_i32, %c0_i32_0, %c0_i32_1 : i32, i32, i32
  }
  func.func @transform_12(%arg0: i32) -> (i32, i32, i32) {
    %c0_i32 = arith.constant 0 : i32
    %c0_i32_0 = arith.constant 0 : i32
    %c0_i32_1 = arith.constant 0 : i32
    %c0_i32_2 = arith.constant 0 : i32
    return %c0_i32, %c0_i32_0, %c0_i32_1 : i32, i32, i32
  }
  func.func @transform_13(%arg0: i32) -> (i32, i32, i32) {
    %c0_i32 = arith.constant 0 : i32
    %c0_i32_0 = arith.constant 0 : i32
    %c0_i32_1 = arith.constant 0 : i32
    %c0_i32_2 = arith.constant 0 : i32
    return %c0_i32, %c0_i32_0, %c0_i32_1 : i32, i32, i32
  }
  func.func @transform_14(%arg0: i32) -> (i32, i32, i32) {
    %c0_i32 = arith.constant 0 : i32
    %c0_i32_0 = arith.constant 0 : i32
    %c0_i32_1 = arith.constant 0 : i32
    %c0_i32_2 = arith.constant 0 : i32
    return %c0_i32, %c0_i32_0, %c0_i32_1 : i32, i32, i32
  }
  func.func @transform_15(%arg0: i32) -> (i32, i32) {
    %c0_i32 = arith.constant 0 : i32
    %c0_i32_0 = arith.constant 0 : i32
    %c0_i32_1 = arith.constant 0 : i32
    return %c0_i32, %c0_i32_0 : i32, i32
  }
  func.func @transform_16(%arg0: i32) -> (i32, i32) {
    %c0_i32 = arith.constant 0 : i32
    %c0_i32_0 = arith.constant 0 : i32
    %c0_i32_1 = arith.constant 0 : i32
    return %c0_i32, %c0_i32_0 : i32, i32
  }
  func.func @transform_17(%arg0: i32) -> (i32, i32) {
    %c0_i32 = arith.constant 0 : i32
    %c0_i32_0 = arith.constant 0 : i32
    return %arg0, %c0_i32 : i32, i32
  }
}

</mosaic_0001>

<llo_original>
// kernel: rect_vit_forward.1
$region0: #{rect_vit_forward.1}
  #allocation0 [shape = 'u32[]', space=smem, size = 0x4, offset = 0x4, fixed_abs, tag = 'smem constant byte address 0x4 - core index']
  #allocation1 [shape = 'u32[144,128]{1,0:T(1,128)}', space=vmem, size = 0x12000, scoped, tag = 'internal scratch']
  %s0 = inlined_call_operand.vmem [shape: f32[32,48], index: 0, kind: input, shape index: {}]
  %s1 = inlined_call_operand.vmem [shape: f32[48,32], index: 1, kind: input, shape index: {}]
  %s2 = inlined_call_operand.vmem [shape: f32[16,32], index: 2, kind: input, shape index: {}]
  %s3 = inlined_call_operand.vmem [shape: f32[4,32,96], index: 3, kind: input, shape index: {}]
  %s4 = inlined_call_operand.vmem [shape: f32[4,1,96], index: 4, kind: input, shape index: {}]
  %s5 = inlined_call_operand.vmem [shape: f32[4,32,32], index: 5, kind: input, shape index: {}]
  %s6 = inlined_call_operand.vmem [shape: f32[4,1,32], index: 6, kind: input, shape index: {}]
  %s7 = inlined_call_operand.vmem [shape: f32[4,1,32], index: 7, kind: input, shape index: {}]
  %s8 = inlined_call_operand.vmem [shape: f32[4,1,32], index: 8, kind: input, shape index: {}]
  %s9 = inlined_call_operand.vmem [shape: f32[4,32,64], index: 9, kind: input, shape index: {}]
  %s10 = inlined_call_operand.vmem [shape: f32[4,1,64], index: 10, kind: input, shape index: {}]
  %s11 = inlined_call_operand.vmem [shape: f32[4,64,32], index: 11, kind: input, shape index: {}]
  %s12 = inlined_call_operand.vmem [shape: f32[4,1,32], index: 12, kind: input, shape index: {}]
  %s13 = inlined_call_operand.vmem [shape: f32[4,1,32], index: 13, kind: input, shape index: {}]
  %s14 = inlined_call_operand.vmem [shape: f32[4,1,32], index: 14, kind: input, shape index: {}]
  %s15 = inlined_call_operand.vmem [shape: f32[32,128], index: 15, kind: input, shape index: {}]
  %s16 = inlined_call_operand.vmem [shape: f32[1,128], index: 16, kind: input, shape index: {}]
  %s17 = inlined_call_operand.vmem [shape: f32[32,128], index: 17, kind: output, shape index: {}]
  %s18 = sld [smem:[#allocation0]]
  $region101: #{rect_vit_forward.1} parent=0
    _
  %s20 = ssub.s32 1, %s18
  %s21 = scalar_select 0, %s20, %s18
  loop: start=0, step=1, limit=4
  $region2: #{rect_vit_forward.1} parent=0 // loop_pre_header
    _
  $region3: #{rect_vit_forward.1} parent=0 // loop_header
    %s23 = sphi 0, %s27
    %p24 = scmp.ge.s32.totalorder %s23, 4
    %s33 = sphi 0, %s35
    %s36 = sphi 0, %s33
    %s37 = sphi 0, %s36
    %s53 = sphi 0, %s37
    %s57 = sphi 0, %s57
    %s59 = sphi 0, %s57
    %s60 = sphi 0, %s59
    %s74 = sphi 0, %s60
    %s78 = sphi 0, %s78
    %s80 = sphi 0, %s78
    %s81 = sphi 0, %s80
    %s95 = sphi 0, %s81
    %s99 = sphi 0, %s99
    %s101 = sphi 0, %s99
    %s102 = sphi 0, %s101
    %s116 = sphi 0, %s102
    %s120 = sphi 0, %s120
    %s122 = sphi 0, %s120
    %s123 = sphi 0, %s122
    %s137 = sphi 0, %s123
    %s141 = sphi 0, %s141
    %s143 = sphi 0, %s141
    %s144 = sphi 0, %s143
    %s158 = sphi 0, %s144
    %s162 = sphi 0, %s162
    %s164 = sphi 0, %s162
    %s165 = sphi 0, %s164
    %s179 = sphi 0, %s165
    %s183 = sphi 0, %s183
    %s185 = sphi 0, %s183
    %s186 = sphi 0, %s185
    %s200 = sphi 0, %s186
    %s204 = sphi 0, %s204
    %s206 = sphi 0, %s204
    %s207 = sphi 0, %s206
    %s221 = sphi 0, %s207
    %s225 = sphi 0, %s225
    %s227 = sphi 0, %s225
    %s228 = sphi 0, %s227
    %s242 = sphi 0, %s228
    %s246 = sphi 0, %s246
    %s248 = sphi 0, %s246
    %s249 = sphi 0, %s248
    %s263 = sphi 0, %s249
    %s267 = sphi 0, %s267
    %s269 = sphi 0, %s267
    %s270 = sphi 0, %s269
    %s284 = sphi 0, %s270
    %s288 = sphi 0, %s288
    %s290 = sphi 0, %s288
    %s291 = sphi 0, %s290
    %s305 = sphi 0, %s291
    %s309 = sphi 0, %s309
    %s311 = sphi 0, %s309
    %s312 = sphi 0, %s311
    %s326 = sphi 0, %s312
    %s330 = sphi 0, %s330
    %s332 = sphi 0, %s330
    %s333 = sphi 0, %s332
    %s347 = sphi 0, %s333
    %s351 = sphi 0, %s351
    %s353 = sphi 0, %s351
    %s354 = sphi 0, %s353
    %s368 = sphi 0, %s354
    %s372 = sphi 0, %s372
    %s374 = sphi 0, %s372
    %s375 = sphi 0, %s374
    %s389 = sphi 0, %s375
    %s395 = sphi 0, %s397
    %s398 = sphi 0, %s395
    %s399 = sphi 0, %s398
    %s415 = sphi 0, %s399
  $region4: #{rect_vit_forward.1} parent=0 // loop_header_branch
    %26 = sbr.rel (%p24) target = $region8
  $region5: #{rect_vit_forward.1} parent=0 // loop_body
    %s28 = ssub.s32 %s23, 1
    %s29 = ssub.s32 %s23, 2
    %s30 = sadd.s32 %s23, 1
    %s31 = ssub.s32 %s23, %s30
    %p32 = scmp.eq.s32.totalorder %s31, 0
    %s34 = sadd.s32 %s33, 1
    %s35 = scalar_select %p32, %s33, %s34
    %p38 = pneg %p32
    %p39 = scmp.eq.s32.totalorder %s23, 1
    %p40 = por %p38, %p39
    %p41 = scmp.ne.s32.totalorder %s33, %s36
    %p42 = scmp.eq.s32.totalorder %s23, 0
    %p43 = por %p41, %p42
    %p44 = scmp.ne.s32.totalorder %s33, %s36
    %p45 = scmp.eq.s32.totalorder %s28, 1
    %p46 = por %p44, %p45
    %p47 = scmp.ne.s32.totalorder %s36, %s37
    %p48 = scmp.eq.s32.totalorder %s28, 0
    %p49 = por %p47, %p48
    %p50 = scmp.ne.s32.totalorder %s36, %s37
    %p51 = scmp.eq.s32.totalorder %s29, 1
    %p52 = por %p50, %p51
    %p54 = scmp.ne.s32.totalorder %s37, %s53
    %p55 = scmp.eq.s32.totalorder %s29, 0
    %p56 = por %p54, %p55
    %s58 = sadd.s32 %s57, 1
    %p61 = scmp.eq.s32.totalorder %s23, 1
    %p62 = scmp.ne.s32.totalorder %s57, %s59
    %p63 = scmp.eq.s32.totalorder %s23, 0
    %p64 = por %p62, %p63
    %p65 = scmp.ne.s32.totalorder %s57, %s59
    %p66 = scmp.eq.s32.totalorder %s28, 1
    %p67 = por %p65, %p66
    %p68 = scmp.ne.s32.totalorder %s59, %s60
    %p69 = scmp.eq.s32.totalorder %s28, 0
    %p70 = por %p68, %p69
    %p71 = scmp.ne.s32.totalorder %s59, %s60
    %p72 = scmp.eq.s32.totalorder %s29, 1
    %p73 = por %p71, %p72
    %p75 = scmp.ne.s32.totalorder %s60, %s74
    %p76 = scmp.eq.s32.totalorder %s29, 0
    %p77 = por %p75, %p76
    %s79 = sadd.s32 %s78, 1
    %p82 = scmp.eq.s32.totalorder %s23, 1
    %p83 = scmp.ne.s32.totalorder %s78, %s80
    %p84 = scmp.eq.s32.totalorder %s23, 0
    %p85 = por %p83, %p84
    %p86 = scmp.ne.s32.totalorder %s78, %s80
    %p87 = scmp.eq.s32.totalorder %s28, 1
    %p88 = por %p86, %p87
    %p89 = scmp.ne.s32.totalorder %s80, %s81
    %p90 = scmp.eq.s32.totalorder %s28, 0
    %p91 = por %p89, %p90
    %p92 = scmp.ne.s32.totalorder %s80, %s81
    %p93 = scmp.eq.s32.totalorder %s29, 1
    %p94 = por %p92, %p93
    %p96 = scmp.ne.s32.totalorder %s81, %s95
    %p97 = scmp.eq.s32.totalorder %s29, 0
    %p98 = por %p96, %p97
    %s100 = sadd.s32 %s99, 1
    %p103 = scmp.eq.s32.totalorder %s23, 1
    %p104 = scmp.ne.s32.totalorder %s99, %s101
    %p105 = scmp.eq.s32.totalorder %s23, 0
    %p106 = por %p104, %p105
    %p107 = scmp.ne.s32.totalorder %s99, %s101
    %p108 = scmp.eq.s32.totalorder %s28, 1
    %p109 = por %p107, %p108
    %p110 = scmp.ne.s32.totalorder %s101, %s102
    %p111 = scmp.eq.s32.totalorder %s28, 0
    %p112 = por %p110, %p111
    %p113 = scmp.ne.s32.totalorder %s101, %s102
    %p114 = scmp.eq.s32.totalorder %s29, 1
    %p115 = por %p113, %p114
    %p117 = scmp.ne.s32.totalorder %s102, %s116
    %p118 = scmp.eq.s32.totalorder %s29, 0
    %p119 = por %p117, %p118
    %s121 = sadd.s32 %s120, 1
    %p124 = scmp.eq.s32.totalorder %s23, 1
    %p125 = scmp.ne.s32.totalorder %s120, %s122
    %p126 = scmp.eq.s32.totalorder %s23, 0
    %p127 = por %p125, %p126
    %p128 = scmp.ne.s32.totalorder %s120, %s122
    %p129 = scmp.eq.s32.totalorder %s28, 1
    %p130 = por %p128, %p129
    %p131 = scmp.ne.s32.totalorder %s122, %s123
    %p132 = scmp.eq.s32.totalorder %s28, 0
    %p133 = por %p131, %p132
    %p134 = scmp.ne.s32.totalorder %s122, %s123
    %p135 = scmp.eq.s32.totalorder %s29, 1
    %p136 = por %p134, %p135
    %p138 = scmp.ne.s32.totalorder %s123, %s137
    %p139 = scmp.eq.s32.totalorder %s29, 0
    %p140 = por %p138, %p139
    %s142 = sadd.s32 %s141, 1
    %p145 = scmp.eq.s32.totalorder %s23, 1
    %p146 = scmp.ne.s32.totalorder %s141, %s143
    %p147 = scmp.eq.s32.totalorder %s23, 0
    %p148 = por %p146, %p147
    %p149 = scmp.ne.s32.totalorder %s141, %s143
    %p150 = scmp.eq.s32.totalorder %s28, 1
    %p151 = por %p149, %p150
    %p152 = scmp.ne.s32.totalorder %s143, %s144
    %p153 = scmp.eq.s32.totalorder %s28, 0
    %p154 = por %p152, %p153
    %p155 = scmp.ne.s32.totalorder %s143, %s144
    %p156 = scmp.eq.s32.totalorder %s29, 1
    %p157 = por %p155, %p156
    %p159 = scmp.ne.s32.totalorder %s144, %s158
    %p160 = scmp.eq.s32.totalorder %s29, 0
    %p161 = por %p159, %p160
    %s163 = sadd.s32 %s162, 1
    %p166 = scmp.eq.s32.totalorder %s23, 1
    %p167 = scmp.ne.s32.totalorder %s162, %s164
    %p168 = scmp.eq.s32.totalorder %s23, 0
    %p169 = por %p167, %p168
    %p170 = scmp.ne.s32.totalorder %s162, %s164
    %p171 = scmp.eq.s32.totalorder %s28, 1
    %p172 = por %p170, %p171
    %p173 = scmp.ne.s32.totalorder %s164, %s165
    %p174 = scmp.eq.s32.totalorder %s28, 0
    %p175 = por %p173, %p174
    %p176 = scmp.ne.s32.totalorder %s164, %s165
    %p177 = scmp.eq.s32.totalorder %s29, 1
    %p178 = por %p176, %p177
    %p180 = scmp.ne.s32.totalorder %s165, %s179
    %p181 = scmp.eq.s32.totalorder %s29, 0
    %p182 = por %p180, %p181
    %s184 = sadd.s32 %s183, 1
    %p187 = scmp.eq.s32.totalorder %s23, 1
    %p188 = scmp.ne.s32.totalorder %s183, %s185
    %p189 = scmp.eq.s32.totalorder %s23, 0
    %p190 = por %p188, %p189
    %p191 = scmp.ne.s32.totalorder %s183, %s185
    %p192 = scmp.eq.s32.totalorder %s28, 1
    %p193 = por %p191, %p192
    %p194 = scmp.ne.s32.totalorder %s185, %s186
    %p195 = scmp.eq.s32.totalorder %s28, 0
    %p196 = por %p194, %p195
    %p197 = scmp.ne.s32.totalorder %s185, %s186
    %p198 = scmp.eq.s32.totalorder %s29, 1
    %p199 = por %p197, %p198
    %p201 = scmp.ne.s32.totalorder %s186, %s200
    %p202 = scmp.eq.s32.totalorder %s29, 0
    %p203 = por %p201, %p202
    %s205 = sadd.s32 %s204, 1
    %p208 = scmp.eq.s32.totalorder %s23, 1
    %p209 = scmp.ne.s32.totalorder %s204, %s206
    %p210 = scmp.eq.s32.totalorder %s23, 0
    %p211 = por %p209, %p210
    %p212 = scmp.ne.s32.totalorder %s204, %s206
    %p213 = scmp.eq.s32.totalorder %s28, 1
    %p214 = por %p212, %p213
    %p215 = scmp.ne.s32.totalorder %s206, %s207
    %p216 = scmp.eq.s32.totalorder %s28, 0
    %p217 = por %p215, %p216
    %p218 = scmp.ne.s32.totalorder %s206, %s207
    %p219 = scmp.eq.s32.totalorder %s29, 1
    %p220 = por %p218, %p219
    %p222 = scmp.ne.s32.totalorder %s207, %s221
    %p223 = scmp.eq.s32.totalorder %s29, 0
    %p224 = por %p222, %p223
    %s226 = sadd.s32 %s225, 1
    %p229 = scmp.eq.s32.totalorder %s23, 1
    %p230 = scmp.ne.s32.totalorder %s225, %s227
    %p231 = scmp.eq.s32.totalorder %s23, 0
    %p232 = por %p230, %p231
    %p233 = scmp.ne.s32.totalorder %s225, %s227
    %p234 = scmp.eq.s32.totalorder %s28, 1
    %p235 = por %p233, %p234
    %p236 = scmp.ne.s32.totalorder %s227, %s228
    %p237 = scmp.eq.s32.totalorder %s28, 0
    %p238 = por %p236, %p237
    %p239 = scmp.ne.s32.totalorder %s227, %s228
    %p240 = scmp.eq.s32.totalorder %s29, 1
    %p241 = por %p239, %p240
    %p243 = scmp.ne.s32.totalorder %s228, %s242
    %p244 = scmp.eq.s32.totalorder %s29, 0
    %p245 = por %p243, %p244
    %s247 = sadd.s32 %s246, 1
    %p250 = scmp.eq.s32.totalorder %s23, 1
    %p251 = scmp.ne.s32.totalorder %s246, %s248
    %p252 = scmp.eq.s32.totalorder %s23, 0
    %p253 = por %p251, %p252
    %p254 = scmp.ne.s32.totalorder %s246, %s248
    %p255 = scmp.eq.s32.totalorder %s28, 1
    %p256 = por %p254, %p255
    %p257 = scmp.ne.s32.totalorder %s248, %s249
    %p258 = scmp.eq.s32.totalorder %s28, 0
    %p259 = por %p257, %p258
    %p260 = scmp.ne.s32.totalorder %s248, %s249
    %p261 = scmp.eq.s32.totalorder %s29, 1
    %p262 = por %p260, %p261
    %p264 = scmp.ne.s32.totalorder %s249, %s263
    %p265 = scmp.eq.s32.totalorder %s29, 0
    %p266 = por %p264, %p265
    %s268 = sadd.s32 %s267, 1
    %p271 = scmp.eq.s32.totalorder %s23, 1
    %p272 = scmp.ne.s32.totalorder %s267, %s269
    %p273 = scmp.eq.s32.totalorder %s23, 0
    %p274 = por %p272, %p273
    %p275 = scmp.ne.s32.totalorder %s267, %s269
    %p276 = scmp.eq.s32.totalorder %s28, 1
    %p277 = por %p275, %p276
    %p278 = scmp.ne.s32.totalorder %s269, %s270
    %p279 = scmp.eq.s32.totalorder %s28, 0
    %p280 = por %p278, %p279
    %p281 = scmp.ne.s32.totalorder %s269, %s270
    %p282 = scmp.eq.s32.totalorder %s29, 1
    %p283 = por %p281, %p282
    %p285 = scmp.ne.s32.totalorder %s270, %s284
    %p286 = scmp.eq.s32.totalorder %s29, 0
    %p287 = por %p285, %p286
    %s289 = sadd.s32 %s288, 1
    %p292 = scmp.eq.s32.totalorder %s23, 1
    %p293 = scmp.ne.s32.totalorder %s288, %s290
    %p294 = scmp.eq.s32.totalorder %s23, 0
    %p295 = por %p293, %p294
    %p296 = scmp.ne.s32.totalorder %s288, %s290
    %p297 = scmp.eq.s32.totalorder %s28, 1
    %p298 = por %p296, %p297
    %p299 = scmp.ne.s32.totalorder %s290, %s291
    %p300 = scmp.eq.s32.totalorder %s28, 0
    %p301 = por %p299, %p300
    %p302 = scmp.ne.s32.totalorder %s290, %s291
    %p303 = scmp.eq.s32.totalorder %s29, 1
    %p304 = por %p302, %p303
    %p306 = scmp.ne.s32.totalorder %s291, %s305
    %p307 = scmp.eq.s32.totalorder %s29, 0
    %p308 = por %p306, %p307
    %s310 = sadd.s32 %s309, 1
    %p313 = scmp.eq.s32.totalorder %s23, 1
    %p314 = scmp.ne.s32.totalorder %s309, %s311
    %p315 = scmp.eq.s32.totalorder %s23, 0
    %p316 = por %p314, %p315
    %p317 = scmp.ne.s32.totalorder %s309, %s311
    %p318 = scmp.eq.s32.totalorder %s28, 1
    %p319 = por %p317, %p318
    %p320 = scmp.ne.s32.totalorder %s311, %s312
    %p321 = scmp.eq.s32.totalorder %s28, 0
    %p322 = por %p320, %p321
    %p323 = scmp.ne.s32.totalorder %s311, %s312
    %p324 = scmp.eq.s32.totalorder %s29, 1
    %p325 = por %p323, %p324
    %p327 = scmp.ne.s32.totalorder %s312, %s326
    %p328 = scmp.eq.s32.totalorder %s29, 0
    %p329 = por %p327, %p328
    %s331 = sadd.s32 %s330, 1
    %p334 = scmp.eq.s32.totalorder %s23, 1
    %p335 = scmp.ne.s32.totalorder %s330, %s332
    %p336 = scmp.eq.s32.totalorder %s23, 0
    %p337 = por %p335, %p336
    %p338 = scmp.ne.s32.totalorder %s330, %s332
    %p339 = scmp.eq.s32.totalorder %s28, 1
    %p340 = por %p338, %p339
    %p341 = scmp.ne.s32.totalorder %s332, %s333
    %p342 = scmp.eq.s32.totalorder %s28, 0
    %p343 = por %p341, %p342
    %p344 = scmp.ne.s32.totalorder %s332, %s333
    %p345 = scmp.eq.s32.totalorder %s29, 1
    %p346 = por %p344, %p345
    %p348 = scmp.ne.s32.totalorder %s333, %s347
    %p349 = scmp.eq.s32.totalorder %s29, 0
    %p350 = por %p348, %p349
    %s352 = sadd.s32 %s351, 1
    %p355 = scmp.eq.s32.totalorder %s23, 1
    %p356 = scmp.ne.s32.totalorder %s351, %s353
    %p357 = scmp.eq.s32.totalorder %s23, 0
    %p358 = por %p356, %p357
    %p359 = scmp.ne.s32.totalorder %s351, %s353
    %p360 = scmp.eq.s32.totalorder %s28, 1
    %p361 = por %p359, %p360
    %p362 = scmp.ne.s32.totalorder %s353, %s354
    %p363 = scmp.eq.s32.totalorder %s28, 0
    %p364 = por %p362, %p363
    %p365 = scmp.ne.s32.totalorder %s353, %s354
    %p366 = scmp.eq.s32.totalorder %s29, 1
    %p367 = por %p365, %p366
    %p369 = scmp.ne.s32.totalorder %s354, %s368
    %p370 = scmp.eq.s32.totalorder %s29, 0
    %p371 = por %p369, %p370
    %s373 = sadd.s32 %s372, 1
    %p376 = scmp.eq.s32.totalorder %s23, 1
    %p377 = scmp.ne.s32.totalorder %s372, %s374
    %p378 = scmp.eq.s32.totalorder %s23, 0
    %p379 = por %p377, %p378
    %p380 = scmp.ne.s32.totalorder %s372, %s374
    %p381 = scmp.eq.s32.totalorder %s28, 1
    %p382 = por %p380, %p381
    %p383 = scmp.ne.s32.totalorder %s374, %s375
    %p384 = scmp.eq.s32.totalorder %s28, 0
    %p385 = por %p383, %p384
    %p386 = scmp.ne.s32.totalorder %s374, %s375
    %p387 = scmp.eq.s32.totalorder %s29, 1
    %p388 = por %p386, %p387
    %p390 = scmp.ne.s32.totalorder %s375, %s389
    %p391 = scmp.eq.s32.totalorder %s29, 0
    %p392 = por %p390, %p391
    %s393 = ssub.s32 %s23, %s30
    %p394 = scmp.eq.s32.totalorder %s393, 0
    %s396 = sadd.s32 %s395, 1
    %s397 = scalar_select %p394, %s395, %s396
    %p400 = pneg %p394
    %p401 = scmp.eq.s32.totalorder %s23, 1
    %p402 = por %p400, %p401
    %p403 = scmp.ne.s32.totalorder %s395, %s398
    %p404 = scmp.eq.s32.totalorder %s23, 0
    %p405 = por %p403, %p404
    %p406 = scmp.ne.s32.totalorder %s395, %s398
    %p407 = scmp.eq.s32.totalorder %s28, 1
    %p408 = por %p406, %p407
    %p409 = scmp.ne.s32.totalorder %s398, %s399
    %p410 = scmp.eq.s32.totalorder %s28, 0
    %p411 = por %p409, %p410
    %p412 = scmp.ne.s32.totalorder %s398, %s399
    %p413 = scmp.eq.s32.totalorder %s29, 1
    %p414 = por %p412, %p413
    %p416 = scmp.ne.s32.totalorder %s399, %s415
    %p417 = scmp.eq.s32.totalorder %s29, 0
    %p418 = por %p416, %p417
    %p419 = scmp.le.s32.totalorder 1, %s23
    %p420 = scmp.lt.s32.totalorder %s23, 3
    %p421 = pnand %p419, %p420
    %p422 = pneg %p421
    // Predicated region
    $region9: #{rect_vit_forward.1} parent=5 // pred_check
      _
    $region10: #{rect_vit_forward.1} parent=5 // pred_check_branch
      %424 = sbr.rel (%p421) target = $region12
    $region11: #{rect_vit_forward.1} parent=5 // pred_region
      %s425 = ssub.s32 %s23, 1
      // Predicated region
      $region13: #{rect_vit_forward.1} parent=11 // pred_check
        %p426 = pneg %p70
      $region14: #{rect_vit_forward.1} parent=11 // pred_check_branch
        %428 = sbr.rel (%p426) target = $region16
      $region15: #{rect_vit_forward.1} parent=11 // pred_region
        _
      $region16: #{rect_vit_forward.1} parent=11 // pred_fallthru
        _
      // Predicated region
      $region17: #{rect_vit_forward.1} parent=11 // pred_check
        %p429 = pneg %p91
      $region18: #{rect_vit_forward.1} parent=11 // pred_check_branch
        %431 = sbr.rel (%p429) target = $region20
      $region19: #{rect_vit_forward.1} parent=11 // pred_region
        _
      $region20: #{rect_vit_forward.1} parent=11 // pred_fallthru
        _
      // Predicated region
      $region21: #{rect_vit_forward.1} parent=11 // pred_check
        %p432 = pneg %p112
      $region22: #{rect_vit_forward.1} parent=11 // pred_check_branch
        %434 = sbr.rel (%p432) target = $region24
      $region23: #{rect_vit_forward.1} parent=11 // pred_region
        _
      $region24: #{rect_vit_forward.1} parent=11 // pred_fallthru
        _
      // Predicated region
      $region25: #{rect_vit_forward.1} parent=11 // pred_check
        %p435 = pneg %p133
      $region26: #{rect_vit_forward.1} parent=11 // pred_check_branch
        %437 = sbr.rel (%p435) target = $region28
      $region27: #{rect_vit_forward.1} parent=11 // pred_region
        _
      $region28: #{rect_vit_forward.1} parent=11 // pred_fallthru
        _
      // Predicated region
      $region29: #{rect_vit_forward.1} parent=11 // pred_check
        %p438 = pneg %p154
      $region30: #{rect_vit_forward.1} parent=11 // pred_check_branch
        %440 = sbr.rel (%p438) target = $region32
      $region31: #{rect_vit_forward.1} parent=11 // pred_region
        _
      $region32: #{rect_vit_forward.1} parent=11 // pred_fallthru
        _
      // Predicated region
      $region33: #{rect_vit_forward.1} parent=11 // pred_check
        %p441 = pneg %p175
      $region34: #{rect_vit_forward.1} parent=11 // pred_check_branch
        %443 = sbr.rel (%p441) target = $region36
      $region35: #{rect_vit_forward.1} parent=11 // pred_region
        _
      $region36: #{rect_vit_forward.1} parent=11 // pred_fallthru
        _
      // Predicated region
      $region37: #{rect_vit_forward.1} parent=11 // pred_check
        %p444 = pneg %p196
      $region38: #{rect_vit_forward.1} parent=11 // pred_check_branch
        %446 = sbr.rel (%p444) target = $region40
      $region39: #{rect_vit_forward.1} parent=11 // pred_region
        _
      $region40: #{rect_vit_forward.1} parent=11 // pred_fallthru
        _
      // Predicated region
      $region41: #{rect_vit_forward.1} parent=11 // pred_check
        %p447 = pneg %p217
      $region42: #{rect_vit_forward.1} parent=11 // pred_check_branch
        %449 = sbr.rel (%p447) target = $region44
      $region43: #{rect_vit_forward.1} parent=11 // pred_region
        _
      $region44: #{rect_vit_forward.1} parent=11 // pred_fallthru
        _
      // Predicated region
      $region45: #{rect_vit_forward.1} parent=11 // pred_check
        %p450 = pneg %p238
      $region46: #{rect_vit_forward.1} parent=11 // pred_check_branch
        %452 = sbr.rel (%p450) target = $region48
      $region47: #{rect_vit_forward.1} parent=11 // pred_region
        _
      $region48: #{rect_vit_forward.1} parent=11 // pred_fallthru
        _
      // Predicated region
      $region49: #{rect_vit_forward.1} parent=11 // pred_check
        %p453 = pneg %p259
      $region50: #{rect_vit_forward.1} parent=11 // pred_check_branch
        %455 = sbr.rel (%p453) target = $region52
      $region51: #{rect_vit_forward.1} parent=11 // pred_region
        _
      $region52: #{rect_vit_forward.1} parent=11 // pred_fallthru
        _
      // Predicated region
      $region53: #{rect_vit_forward.1} parent=11 // pred_check
        %p456 = pneg %p280
      $region54: #{rect_vit_forward.1} parent=11 // pred_check_branch
        %458 = sbr.rel (%p456) target = $region56
      $region55: #{rect_vit_forward.1} parent=11 // pred_region
        _
      $region56: #{rect_vit_forward.1} parent=11 // pred_fallthru
        _
      // Predicated region
      $region57: #{rect_vit_forward.1} parent=11 // pred_check
        %p459 = pneg %p301
      $region58: #{rect_vit_forward.1} parent=11 // pred_check_branch
        %461 = sbr.rel (%p459) target = $region60
      $region59: #{rect_vit_forward.1} parent=11 // pred_region
        _
      $region60: #{rect_vit_forward.1} parent=11 // pred_fallthru
        _
      // Predicated region
      $region61: #{rect_vit_forward.1} parent=11 // pred_check
        %p462 = pneg %p322
      $region62: #{rect_vit_forward.1} parent=11 // pred_check_branch
        %464 = sbr.rel (%p462) target = $region64
      $region63: #{rect_vit_forward.1} parent=11 // pred_region
        _
      $region64: #{rect_vit_forward.1} parent=11 // pred_fallthru
        _
      // Predicated region
      $region65: #{rect_vit_forward.1} parent=11 // pred_check
        %p465 = pneg %p343
      $region66: #{rect_vit_forward.1} parent=11 // pred_check_branch
        %467 = sbr.rel (%p465) target = $region68
      $region67: #{rect_vit_forward.1} parent=11 // pred_region
        _
      $region68: #{rect_vit_forward.1} parent=11 // pred_fallthru
        _
      // Predicated region
      $region69: #{rect_vit_forward.1} parent=11 // pred_check
        %p468 = pneg %p364
      $region70: #{rect_vit_forward.1} parent=11 // pred_check_branch
        %470 = sbr.rel (%p468) target = $region72
      $region71: #{rect_vit_forward.1} parent=11 // pred_region
        _
      $region72: #{rect_vit_forward.1} parent=11 // pred_fallthru
        _
      // Predicated region
      $region73: #{rect_vit_forward.1} parent=11 // pred_check
        %p471 = pneg %p385
      $region74: #{rect_vit_forward.1} parent=11 // pred_check_branch
        %473 = sbr.rel (%p471) target = $region76
      $region75: #{rect_vit_forward.1} parent=11 // pred_region
        _
      $region76: #{rect_vit_forward.1} parent=11 // pred_fallthru
        _
    $region12: #{rect_vit_forward.1} parent=5 // pred_fallthru
      _
    %p474 = scmp.lt.s32.totalorder %s23, 2
    // Predicated region
    $region77: #{rect_vit_forward.1} parent=5 // pred_check
      %p475 = pneg %p474
    $region78: #{rect_vit_forward.1} parent=5 // pred_check_branch
      %477 = sbr.rel (%p475) target = $region80
    $region79: #{rect_vit_forward.1} parent=5 // pred_region
      // Predicated region
      $region81: #{rect_vit_forward.1} parent=79 // pred_check
        %p478 = pneg %p43
      $region82: #{rect_vit_forward.1} parent=79 // pred_check_branch
        %480 = sbr.rel (%p478) target = $region84
      $region83: #{rect_vit_forward.1} parent=79 // pred_region
        %s481 = smul.u32 2, %s23
        %p482 = scmp.lt.s32.totalorder %s481, 3
        %s483 = scalar_select %p482, %s481, 3
        %s484 = smul.addr %s483, 8
        %s485 = scalar_lea.vmem %s0, %s484
        %s486 = smul.u32 2, %s23
      $region84: #{rect_vit_forward.1} parent=79 // pred_fallthru
        _
    $region80: #{rect_vit_forward.1} parent=5 // pred_fallthru
      _
    %p487 = scmp.le.s32.totalorder 1, %s23
    %p488 = scmp.lt.s32.totalorder %s23, 3
    %p489 = pnand %p487, %p488
    %p490 = pneg %p489
    // Predicated region
    $region85: #{rect_vit_forward.1} parent=5 // pred_check
      _
    $region86: #{rect_vit_forward.1} parent=5 // pred_check_branch
      %492 = sbr.rel (%p489) target = $region88
    $region87: #{rect_vit_forward.1} parent=5 // pred_region
      %s493 = ssub.s32 %s23, 1
      %s494 = smul.u32 2, %s28
      %p495 = scmp.lt.s32.totalorder %s494, 3
      %s496 = scalar_select %p495, %s494, 3
      %s497 = smul.addr %s496, 8
      %s498 = scalar_lea.vmem %s0, %s497
      %p499 = pneg %p49
      %p500 = pneg %p46
      %p501 = pneg %p70
      %p502 = pneg %p67
      %p503 = pneg %p91
      %p504 = pneg %p88
      %p505 = pneg %p112
      %p506 = pneg %p109
      %p507 = pneg %p133
      %p508 = pneg %p130
      %p509 = pneg %p154
      %p510 = pneg %p151
      %p511 = pneg %p175
      %p512 = pneg %p172
      %p513 = pneg %p196
      %p514 = pneg %p193
      %p515 = pneg %p217
      %p516 = pneg %p214
      %p517 = pneg %p238
      %p518 = pneg %p235
      %p519 = pneg %p259
      %p520 = pneg %p256
      %p521 = pneg %p280
      %p522 = pneg %p277
      %p523 = pneg %p301
      %p524 = pneg %p298
      %p525 = pneg %p322
      %p526 = pneg %p319
      %p527 = pneg %p343
      %p528 = pneg %p340
      %p529 = pneg %p364
      %p530 = pneg %p361
      %p531 = pneg %p385
      %p532 = pneg %p382
      %p533 = pneg %p411
      %p534 = pneg %p408
      %s535 = smul.u32 2, %s28
      %p536 = scmp.lt.s32.totalorder %s535, 3
      %s537 = scalar_select %p536, %s535, 3
      %s538 = smul.addr %s537, 8
      %s539 = scalar_lea.vmem %s17, %s538
      %s540 = smul.u32 2, %s28
      %p541 = scmp.lt.s32.totalorder %s540, 3
      %s542 = scalar_select %p541, %s540, 3
      %s543 = smul.addr %s542, 8
      %s544 = scalar_lea.vmem %s0, %s543
      %s545 = smul.u32 2, %s28
      %s546 = smul.u32 2, %s28
      %p547 = scmp.lt.s32.totalorder %s546, 3
      %s548 = scalar_select %p547, %s546, 3
      %s549 = smul.addr %s548, 8
      %s550 = scalar_lea.vmem %s17, %s549
      %s551 = smul.u32 2, %s28
      %v552 = vld [vmem:[%s544] sm:$0xff]
      %v553 = vld [vmem:[%s544 + $0x8] sm:$0xff]
      %v554 = vld [vmem:[%s1] sm:$0xff]
      %v555 = vld [vmem:[%s1 + $0x8] sm:$0xff]
      %v556 = vld [vmem:[%s1 + $0x10] sm:$0xff]
      %v557 = vld [vmem:[%s1 + $0x18] sm:$0xff]
      %v558 = vld [vmem:[%s1 + $0x20] sm:$0xff]
      %v559 = vld [vmem:[%s1 + $0x28] sm:$0xff]
      %v560 = vld [vmem:[%s2] sm:$0xff]
      %v561 = vld [vmem:[%s2 + $0x8] sm:$0xff]
      %vm562 = vcmask 392192
      %v564 = vsel %vm562, %v552, 0
      %v567 = vsel %vm562, %v553, 0
      %569 = vmatprep.subr.mxu0 0.0
      %570 = vmatpush1.msra.mxu0 0.0
      %571 = vmatprep.subr.mxu0 0.0
      %572 = vmatpush1.msra.mxu0 0.0
      %573 = vmatprep.subr.mxu0 0.0
      %574 = vmatpush1.msra.mxu0 0.0
      %575 = vmatprep.subr.mxu0 0.0
      %576 = vmatpush1.msra.mxu0 0.0
      %577 = vmatprep.subr.mxu0 0.0
      %578 = vmatpush1.msra.mxu0 0.0
      %579 = vmatprep.subr.mxu0 0.0
      %580 = vmatpush1.msra.mxu0 0.0
      %581 = vmatprep.subr.mxu0 0.0
      %582 = vmatpush1.msra.mxu0 0.0
      %583 = vmatprep.subr.mxu0 0.0
      %584 = vmatpush1.msra.mxu0 0.0
      %585 = vmatprep.subr.mxu0 0.0
      %586 = vmatpush1.msra.mxu0 0.0
      %587 = vmatprep.subr.mxu0 0.0
      %588 = vmatpush1.msra.mxu0 0.0
      %589 = vmatprep.subr.mxu0 0.0
      %590 = vmatpush1.msra.mxu0 %v559
      %591 = vmatprep.subr.mxu0 0.0
      %592 = vmatpush1.msra.mxu0 %v558
      %593 = vmatprep.subr.mxu0 0.0
      %594 = vmatpush1.msra.mxu0 %v557
      %595 = vmatprep.subr.mxu0 0.0
      %596 = vmatpush1.msra.mxu0 %v556
      %597 = vmatprep.subr.mxu0 0.0
      %598 = vmatpush1.msra.mxu0 %v555
      %599 = vmatprep.subr.mxu0 0.0
      %600 = vmatpush1.msra.mxu0 %v554
      %601 = vmatprep.subr.mxu0 0.0
      %602 = vmatpush2.msra.mxu0 0.0
      %603 = vmatprep.subr.mxu0 0.0
      %604 = vmatpush2.msra.mxu0 0.0
      %605 = vmatprep.subr.mxu0 0.0
      %606 = vmatpush2.msra.mxu0 0.0
      %607 = vmatprep.subr.mxu0 0.0
      %608 = vmatpush2.msra.mxu0 0.0
      %609 = vmatprep.subr.mxu0 0.0
      %610 = vmatpush2.msra.mxu0 0.0
      %611 = vmatprep.subr.mxu0 0.0
      %612 = vmatpush2.msra.mxu0 0.0
      %613 = vmatprep.subr.mxu0 0.0
      %614 = vmatpush2.msra.mxu0 0.0
      %615 = vmatprep.subr.mxu0 0.0
      %616 = vmatpush2.msra.mxu0 0.0
      %617 = vmatprep.subr.mxu0 0.0
      %618 = vmatpush2.msra.mxu0 0.0
      %619 = vmatprep.subr.mxu0 0.0
      %620 = vmatpush2.msra.mxu0 0.0
      %621 = vmatprep.subr.mxu0 0.0
      %622 = vmatpush2.msra.mxu0 0.0
      %623 = vmatprep.subr.mxu0 0.0
      %624 = vmatpush2.msra.mxu0 0.0
      %625 = vmatprep.subr.mxu0 0.0
      %626 = vmatpush2.msra.mxu0 0.0
      %627 = vmatprep.subr.mxu0 0.0
      %628 = vmatpush2.msra.mxu0 0.0
      %629 = vmatprep.subr.mxu0 0.0
      %630 = vmatpush2.msra.mxu0 0.0
      %631 = vmatprep.subr.mxu0 0.0
      %632 = vmatpush2.msra.mxu0 0.0
      %633 = vmatprep.mubr.f32.mxu0 0.0
      %634 = vmatmul.mubr.f32.gmra.mxu0 %v564
      %v635 = vpop.f32.mrf.mxu0
      %v636 = vadd.f32 %v560, %v635
      %v637 = vpop.f32.mrf.mxu0
      %638 = vmatprep.mubr.f32.mxu0 0.0
      %639 = vmatmul.mubr.f32.gmra.mxu0 %v567
      %v640 = vpop.f32.mrf.mxu0
      %v641 = vadd.f32 %v561, %v640
      %v642 = vpop.f32.mrf.mxu0
      %643 = vdwg.mxu0
      %v644 = vld [vmem:[%s3] sm:$0xff]
      %v645 = vld [vmem:[%s3 + $0x8] sm:$0xff]
      %v646 = vld [vmem:[%s3 + $0x10] sm:$0xff]
      %v647 = vld [vmem:[%s3 + $0x18] sm:$0xff]
      %v648 = vld [vmem:[%s4] sm:$0x1]
      %v650 = vlaneseq
      %v651 = vshrl.u32 %v650, 7
      %v652 = vsub.s32 0, %v651
      %v653 = vrot.slane %v648, %v652
      %vm655 = vcmask 261120
      %v657 = vsel %vm655, %v636, 0
      %v660 = vsel %vm655, %v641, 0
      %662 = vmatprep.subr.mxu0 0.0
      %663 = vmatpush1.msra.mxu0 0.0
      %664 = vmatprep.subr.mxu0 0.0
      %665 = vmatpush1.msra.mxu0 0.0
      %666 = vmatprep.subr.mxu0 0.0
      %667 = vmatpush1.msra.mxu0 0.0
      %668 = vmatprep.subr.mxu0 0.0
      %669 = vmatpush1.msra.mxu0 0.0
      %670 = vmatprep.subr.mxu0 0.0
      %671 = vmatpush1.msra.mxu0 0.0
      %672 = vmatprep.subr.mxu0 0.0
      %673 = vmatpush1.msra.mxu0 0.0
      %674 = vmatprep.subr.mxu0 0.0
      %675 = vmatpush1.msra.mxu0 0.0
      %676 = vmatprep.subr.mxu0 0.0
      %677 = vmatpush1.msra.mxu0 0.0
      %678 = vmatprep.subr.mxu0 0.0
      %679 = vmatpush1.msra.mxu0 0.0
      %680 = vmatprep.subr.mxu0 0.0
      %681 = vmatpush1.msra.mxu0 0.0
      %682 = vmatprep.subr.mxu0 0.0
      %683 = vmatpush1.msra.mxu0 0.0
      %684 = vmatprep.subr.mxu0 0.0
      %685 = vmatpush1.msra.mxu0 0.0
      %686 = vmatprep.subr.mxu0 0.0
      %687 = vmatpush1.msra.mxu0 %v647
      %688 = vmatprep.subr.mxu0 0.0
      %689 = vmatpush1.msra.mxu0 %v646
      %690 = vmatprep.subr.mxu0 0.0
      %691 = vmatpush1.msra.mxu0 %v645
      %692 = vmatprep.subr.mxu0 0.0
      %693 = vmatpush1.msra.mxu0 %v644
      %694 = vmatprep.subr.mxu0 0.0
      %695 = vmatpush2.msra.mxu0 0.0
      %696 = vmatprep.subr.mxu0 0.0
      %697 = vmatpush2.msra.mxu0 0.0
      %698 = vmatprep.subr.mxu0 0.0
      %699 = vmatpush2.msra.mxu0 0.0
      %700 = vmatprep.subr.mxu0 0.0
      %701 = vmatpush2.msra.mxu0 0.0
      %702 = vmatprep.subr.mxu0 0.0
      %703 = vmatpush2.msra.mxu0 0.0
      %704 = vmatprep.subr.mxu0 0.0
      %705 = vmatpush2.msra.mxu0 0.0
      %706 = vmatprep.subr.mxu0 0.0
      %707 = vmatpush2.msra.mxu0 0.0
      %708 = vmatprep.subr.mxu0 0.0
      %709 = vmatpush2.msra.mxu0 0.0
      %710 = vmatprep.subr.mxu0 0.0
      %711 = vmatpush2.msra.mxu0 0.0
      %712 = vmatprep.subr.mxu0 0.0
      %713 = vmatpush2.msra.mxu0 0.0
      %714 = vmatprep.subr.mxu0 0.0
      %715 = vmatpush2.msra.mxu0 0.0
      %716 = vmatprep.subr.mxu0 0.0
      %717 = vmatpush2.msra.mxu0 0.0
      %718 = vmatprep.subr.mxu0 0.0
      %719 = vmatpush2.msra.mxu0 0.0
      %720 = vmatprep.subr.mxu0 0.0
      %721 = vmatpush2.msra.mxu0 0.0
      %722 = vmatprep.subr.mxu0 0.0
      %723 = vmatpush2.msra.mxu0 0.0
      %724 = vmatprep.subr.mxu0 0.0
      %725 = vmatpush2.msra.mxu0 0.0
      %726 = vmatprep.mubr.f32.mxu0 0.0
      %727 = vmatmul.mubr.f32.gmra.mxu0 %v657
      %v728 = vpop.f32.mrf.mxu0
      %v729 = vadd.f32 %v653, %v728
      %v730 = vpop.f32.mrf.mxu0
      %731 = vmatprep.mubr.f32.mxu0 0.0
      %732 = vmatmul.mubr.f32.gmra.mxu0 %v660
      %v733 = vpop.f32.mrf.mxu0
      %v734 = vadd.f32 %v653, %v733
      %v735 = vpop.f32.mrf.mxu0
      %736 = vdwg.mxu0
      %739 = vrot.lane.b32.xlu0 %v729, 120
      %v740 = vpop.permute.xlu0 %739
      %741 = vrot.lane.b32.xlu0 %v734, 120
      %v742 = vpop.permute.xlu0 %741
      %743 = vrot.lane.b32.xlu0 %v729, 112
      %v744 = vpop.permute.xlu0 %743
      %745 = vrot.lane.b32.xlu0 %v734, 112
      %v746 = vpop.permute.xlu0 %745
      %747 = vrot.lane.b32.xlu0 %v729, 104
      %v748 = vpop.permute.xlu0 %747
      %749 = vrot.lane.b32.xlu0 %v734, 104
      %v750 = vpop.permute.xlu0 %749
      %751 = vrot.lane.b32.xlu0 %v729, 96
      %v752 = vpop.permute.xlu0 %751
      %753 = vrot.lane.b32.xlu0 %v734, 96
      %v754 = vpop.permute.xlu0 %753
      %vm755 = vcmask 64512
      %v756 = vsel %vm755, %v729, 0
      %v758 = vsel %vm755, %v734, 0
      %v760 = vsel %vm755, %v752, 0
      %v762 = vsel %vm755, %v754, 0
      %764 = vmatprep.subr.mxu0 0.0
      %765 = vmatpush1.xpose.msra.mxu0 0.0
      %766 = vmatprep.subr.mxu0 0.0
      %767 = vmatpush1.xpose.msra.mxu0 0.0
      %768 = vmatprep.subr.mxu0 0.0
      %769 = vmatpush1.xpose.msra.mxu0 0.0
      %770 = vmatprep.subr.mxu0 0.0
      %771 = vmatpush1.xpose.msra.mxu0 0.0
      %772 = vmatprep.subr.mxu0 0.0
      %773 = vmatpush1.xpose.msra.mxu0 0.0
      %774 = vmatprep.subr.mxu0 0.0
      %775 = vmatpush1.xpose.msra.mxu0 0.0
      %776 = vmatprep.subr.mxu0 0.0
      %777 = vmatpush1.xpose.msra.mxu0 0.0
      %778 = vmatprep.subr.mxu0 0.0
      %779 = vmatpush1.xpose.msra.mxu0 0.0
      %780 = vmatprep.subr.mxu0 0.0
      %781 = vmatpush1.xpose.msra.mxu0 0.0
      %782 = vmatprep.subr.mxu0 0.0
      %783 = vmatpush1.xpose.msra.mxu0 0.0
      %784 = vmatprep.subr.mxu0 0.0
      %785 = vmatpush1.xpose.msra.mxu0 0.0
      %786 = vmatprep.subr.mxu0 0.0
      %787 = vmatpush1.xpose.msra.mxu0 0.0
      %788 = vmatprep.subr.mxu0 0.0
      %789 = vmatpush1.xpose.msra.mxu0 0.0
      %790 = vmatprep.subr.mxu0 0.0
      %791 = vmatpush1.xpose.msra.mxu0 0.0
      %792 = vmatprep.subr.mxu0 0.0
      %793 = vmatpush1.xpose.msra.mxu0 %v762
      %794 = vmatprep.subr.mxu0 0.0
      %795 = vmatpush1.xpose.msra.mxu0 %v760
      %796 = vmatprep.subr.mxu0 0.0
      %797 = vmatpush2.xpose.msra.mxu0 0.0
      %798 = vmatprep.subr.mxu0 0.0
      %799 = vmatpush2.xpose.msra.mxu0 0.0
      %800 = vmatprep.subr.mxu0 0.0
      %801 = vmatpush2.xpose.msra.mxu0 0.0
      %802 = vmatprep.subr.mxu0 0.0
      %803 = vmatpush2.xpose.msra.mxu0 0.0
      %804 = vmatprep.subr.mxu0 0.0
      %805 = vmatpush2.xpose.msra.mxu0 0.0
      %806 = vmatprep.subr.mxu0 0.0
      %807 = vmatpush2.xpose.msra.mxu0 0.0
      %808 = vmatprep.subr.mxu0 0.0
      %809 = vmatpush2.xpose.msra.mxu0 0.0
      %810 = vmatprep.subr.mxu0 0.0
      %811 = vmatpush2.xpose.msra.mxu0 0.0
      %812 = vmatprep.subr.mxu0 0.0
      %813 = vmatpush2.xpose.msra.mxu0 0.0
      %814 = vmatprep.subr.mxu0 0.0
      %815 = vmatpush2.xpose.msra.mxu0 0.0
      %816 = vmatprep.subr.mxu0 0.0
      %817 = vmatpush2.xpose.msra.mxu0 0.0
      %818 = vmatprep.subr.mxu0 0.0
      %819 = vmatpush2.xpose.msra.mxu0 0.0
      %820 = vmatprep.subr.mxu0 0.0
      %821 = vmatpush2.xpose.msra.mxu0 0.0
      %822 = vmatprep.subr.mxu0 0.0
      %823 = vmatpush2.xpose.msra.mxu0 0.0
      %824 = vmatprep.subr.mxu0 0.0
      %825 = vmatpush2.xpose.msra.mxu0 0.0
      %826 = vmatprep.subr.mxu0 0.0
      %827 = vmatpush2.xpose.msra.mxu0 0.0
      %828 = vmatprep.mubr.f32.mxu0 0.0
      %829 = vmatmul.mubr.f32.gmra.mxu0 %v756
      %v830 = vpop.f32.mrf.mxu0
      %v831 = vadd.f32 0.0, %v830
      %v832 = vpop.f32.mrf.mxu0
      %833 = vmatprep.mubr.f32.mxu0 0.0
      %834 = vmatmul.mubr.f32.gmra.mxu0 %v758
      %v835 = vpop.f32.mrf.mxu0
      %v836 = vadd.f32 0.0, %v835
      %v837 = vpop.f32.mrf.mxu0
      %838 = vdwg.mxu0
      %839 = vrot.lane.b32.xlu0 %v740, 96
      %v840 = vpop.permute.xlu0 %839
      %841 = vrot.lane.b32.xlu0 %v742, 96
      %v842 = vpop.permute.xlu0 %841
      %v843 = vsel %vm755, %v740, 0
      %v845 = vsel %vm755, %v742, 0
      %v847 = vsel %vm755, %v840, 0
      %v849 = vsel %vm755, %v842, 0
      %851 = vmatprep.subr.mxu0 0.0
      %852 = vmatpush1.xpose.msra.mxu0 0.0
      %853 = vmatprep.subr.mxu0 0.0
      %854 = vmatpush1.xpose.msra.mxu0 0.0
      %855 = vmatprep.subr.mxu0 0.0
      %856 = vmatpush1.xpose.msra.mxu0 0.0
      %857 = vmatprep.subr.mxu0 0.0
      %858 = vmatpush1.xpose.msra.mxu0 0.0
      %859 = vmatprep.subr.mxu0 0.0
      %860 = vmatpush1.xpose.msra.mxu0 0.0
      %861 = vmatprep.subr.mxu0 0.0
      %862 = vmatpush1.xpose.msra.mxu0 0.0
      %863 = vmatprep.subr.mxu0 0.0
      %864 = vmatpush1.xpose.msra.mxu0 0.0
      %865 = vmatprep.subr.mxu0 0.0
      %866 = vmatpush1.xpose.msra.mxu0 0.0
      %867 = vmatprep.subr.mxu0 0.0
      %868 = vmatpush1.xpose.msra.mxu0 0.0
      %869 = vmatprep.subr.mxu0 0.0
      %870 = vmatpush1.xpose.msra.mxu0 0.0
      %871 = vmatprep.subr.mxu0 0.0
      %872 = vmatpush1.xpose.msra.mxu0 0.0
      %873 = vmatprep.subr.mxu0 0.0
      %874 = vmatpush1.xpose.msra.mxu0 0.0
      %875 = vmatprep.subr.mxu0 0.0
      %876 = vmatpush1.xpose.msra.mxu0 0.0
      %877 = vmatprep.subr.mxu0 0.0
      %878 = vmatpush1.xpose.msra.mxu0 0.0
      %879 = vmatprep.subr.mxu0 0.0
      %880 = vmatpush1.xpose.msra.mxu0 %v849
      %881 = vmatprep.subr.mxu0 0.0
      %882 = vmatpush1.xpose.msra.mxu0 %v847
      %883 = vmatprep.subr.mxu0 0.0
      %884 = vmatpush2.xpose.msra.mxu0 0.0
      %885 = vmatprep.subr.mxu0 0.0
      %886 = vmatpush2.xpose.msra.mxu0 0.0
      %887 = vmatprep.subr.mxu0 0.0
      %888 = vmatpush2.xpose.msra.mxu0 0.0
      %889 = vmatprep.subr.mxu0 0.0
      %890 = vmatpush2.xpose.msra.mxu0 0.0
      %891 = vmatprep.subr.mxu0 0.0
      %892 = vmatpush2.xpose.msra.mxu0 0.0
      %893 = vmatprep.subr.mxu0 0.0
      %894 = vmatpush2.xpose.msra.mxu0 0.0
      %895 = vmatprep.subr.mxu0 0.0
      %896 = vmatpush2.xpose.msra.mxu0 0.0
      %897 = vmatprep.subr.mxu0 0.0
      %898 = vmatpush2.xpose.msra.mxu0 0.0
      %899 = vmatprep.subr.mxu0 0.0
      %900 = vmatpush2.xpose.msra.mxu0 0.0
      %901 = vmatprep.subr.mxu0 0.0
      %902 = vmatpush2.xpose.msra.mxu0 0.0
      %903 = vmatprep.subr.mxu0 0.0
      %904 = vmatpush2.xpose.msra.mxu0 0.0
      %905 = vmatprep.subr.mxu0 0.0
      %906 = vmatpush2.xpose.msra.mxu0 0.0
      %907 = vmatprep.subr.mxu0 0.0
      %908 = vmatpush2.xpose.msra.mxu0 0.0
      %909 = vmatprep.subr.mxu0 0.0
      %910 = vmatpush2.xpose.msra.mxu0 0.0
      %911 = vmatprep.subr.mxu0 0.0
      %912 = vmatpush2.xpose.msra.mxu0 0.0
      %913 = vmatprep.subr.mxu0 0.0
      %914 = vmatpush2.xpose.msra.mxu0 0.0
      %915 = vmatprep.mubr.f32.mxu0 0.0
      %916 = vmatmul.mubr.f32.gmra.mxu0 %v843
      %v917 = vpop.f32.mrf.mxu0
      %v918 = vadd.f32 0.0, %v917
      %v919 = vpop.f32.mrf.mxu0
      %920 = vmatprep.mubr.f32.mxu0 0.0
      %921 = vmatmul.mubr.f32.gmra.mxu0 %v845
      %v922 = vpop.f32.mrf.mxu0
      %v923 = vadd.f32 0.0, %v922
      %v924 = vpop.f32.mrf.mxu0
      %925 = vdwg.mxu0
      %926 = vrot.lane.b32.xlu0 %v744, 96
      %v927 = vpop.permute.xlu0 %926
      %928 = vrot.lane.b32.xlu0 %v746, 96
      %v929 = vpop.permute.xlu0 %928
      %v930 = vsel %vm755, %v744, 0
      %v932 = vsel %vm755, %v746, 0
      %v934 = vsel %vm755, %v927, 0
      %v936 = vsel %vm755, %v929, 0
      %938 = vmatprep.subr.mxu0 0.0
      %939 = vmatpush1.xpose.msra.mxu0 0.0
      %940 = vmatprep.subr.mxu0 0.0
      %941 = vmatpush1.xpose.msra.mxu0 0.0
      %942 = vmatprep.subr.mxu0 0.0
      %943 = vmatpush1.xpose.msra.mxu0 0.0
      %944 = vmatprep.subr.mxu0 0.0
      %945 = vmatpush1.xpose.msra.mxu0 0.0
      %946 = vmatprep.subr.mxu0 0.0
      %947 = vmatpush1.xpose.msra.mxu0 0.0
      %948 = vmatprep.subr.mxu0 0.0
      %949 = vmatpush1.xpose.msra.mxu0 0.0
      %950 = vmatprep.subr.mxu0 0.0
      %951 = vmatpush1.xpose.msra.mxu0 0.0
      %952 = vmatprep.subr.mxu0 0.0
      %953 = vmatpush1.xpose.msra.mxu0 0.0
      %954 = vmatprep.subr.mxu0 0.0
      %955 = vmatpush1.xpose.msra.mxu0 0.0
      %956 = vmatprep.subr.mxu0 0.0
      %957 = vmatpush1.xpose.msra.mxu0 0.0
      %958 = vmatprep.subr.mxu0 0.0
      %959 = vmatpush1.xpose.msra.mxu0 0.0
      %960 = vmatprep.subr.mxu0 0.0
      %961 = vmatpush1.xpose.msra.mxu0 0.0
      %962 = vmatprep.subr.mxu0 0.0
      %963 = vmatpush1.xpose.msra.mxu0 0.0
      %964 = vmatprep.subr.mxu0 0.0
      %965 = vmatpush1.xpose.msra.mxu0 0.0
      %966 = vmatprep.subr.mxu0 0.0
      %967 = vmatpush1.xpose.msra.mxu0 %v936
      %968 = vmatprep.subr.mxu0 0.0
      %969 = vmatpush1.xpose.msra.mxu0 %v934
      %970 = vmatprep.subr.mxu0 0.0
      %971 = vmatpush2.xpose.msra.mxu0 0.0
      %972 = vmatprep.subr.mxu0 0.0
      %973 = vmatpush2.xpose.msra.mxu0 0.0
      %974 = vmatprep.subr.mxu0 0.0
      %975 = vmatpush2.xpose.msra.mxu0 0.0
      %976 = vmatprep.subr.mxu0 0.0
      %977 = vmatpush2.xpose.msra.mxu0 0.0
      %978 = vmatprep.subr.mxu0 0.0
      %979 = vmatpush2.xpose.msra.mxu0 0.0
      %980 = vmatprep.subr.mxu0 0.0
      %981 = vmatpush2.xpose.msra.mxu0 0.0
      %982 = vmatprep.subr.mxu0 0.0
      %983 = vmatpush2.xpose.msra.mxu0 0.0
      %984 = vmatprep.subr.mxu0 0.0
      %985 = vmatpush2.xpose.msra.mxu0 0.0
      %986 = vmatprep.subr.mxu0 0.0
      %987 = vmatpush2.xpose.msra.mxu0 0.0
      %988 = vmatprep.subr.mxu0 0.0
      %989 = vmatpush2.xpose.msra.mxu0 0.0
      %990 = vmatprep.subr.mxu0 0.0
      %991 = vmatpush2.xpose.msra.mxu0 0.0
      %992 = vmatprep.subr.mxu0 0.0
      %993 = vmatpush2.xpose.msra.mxu0 0.0
      %994 = vmatprep.subr.mxu0 0.0
      %995 = vmatpush2.xpose.msra.mxu0 0.0
      %996 = vmatprep.subr.mxu0 0.0
      %997 = vmatpush2.xpose.msra.mxu0 0.0
      %998 = vmatprep.subr.mxu0 0.0
      %999 = vmatpush2.xpose.msra.mxu0 0.0
      %1000 = vmatprep.subr.mxu0 0.0
      %1001 = vmatpush2.xpose.msra.mxu0 0.0
      %1002 = vmatprep.mubr.f32.mxu0 0.0
      %1003 = vmatmul.mubr.f32.gmra.mxu0 %v930
      %v1004 = vpop.f32.mrf.mxu0
      %v1005 = vadd.f32 0.0, %v1004
      %v1006 = vpop.f32.mrf.mxu0
      %1007 = vmatprep.mubr.f32.mxu0 0.0
      %1008 = vmatmul.mubr.f32.gmra.mxu0 %v932
      %v1009 = vpop.f32.mrf.mxu0
      %v1010 = vadd.f32 0.0, %v1009
      %v1011 = vpop.f32.mrf.mxu0
      %1012 = vdwg.mxu0
      %1013 = vrot.lane.b32.xlu0 %v748, 96
      %v1014 = vpop.permute.xlu0 %1013
      %1015 = vrot.lane.b32.xlu0 %v750, 96
      %v1016 = vpop.permute.xlu0 %1015
      %v1017 = vsel %vm755, %v748, 0
      %v1019 = vsel %vm755, %v750, 0
      %v1021 = vsel %vm755, %v1014, 0
      %v1023 = vsel %vm755, %v1016, 0
      %1025 = vmatprep.subr.mxu0 0.0
      %1026 = vmatpush1.xpose.msra.mxu0 0.0
      %1027 = vmatprep.subr.mxu0 0.0
      %1028 = vmatpush1.xpose.msra.mxu0 0.0
      %1029 = vmatprep.subr.mxu0 0.0
      %1030 = vmatpush1.xpose.msra.mxu0 0.0
      %1031 = vmatprep.subr.mxu0 0.0
      %1032 = vmatpush1.xpose.msra.mxu0 0.0
      %1033 = vmatprep.subr.mxu0 0.0
      %1034 = vmatpush1.xpose.msra.mxu0 0.0
      %1035 = vmatprep.subr.mxu0 0.0
      %1036 = vmatpush1.xpose.msra.mxu0 0.0
      %1037 = vmatprep.subr.mxu0 0.0
      %1038 = vmatpush1.xpose.msra.mxu0 0.0
      %1039 = vmatprep.subr.mxu0 0.0
      %1040 = vmatpush1.xpose.msra.mxu0 0.0
      %1041 = vmatprep.subr.mxu0 0.0
      %1042 = vmatpush1.xpose.msra.mxu0 0.0
      %1043 = vmatprep.subr.mxu0 0.0
      %1044 = vmatpush1.xpose.msra.mxu0 0.0
      %1045 = vmatprep.subr.mxu0 0.0
      %1046 = vmatpush1.xpose.msra.mxu0 0.0
      %1047 = vmatprep.subr.mxu0 0.0
      %1048 = vmatpush1.xpose.msra.mxu0 0.0
      %1049 = vmatprep.subr.mxu0 0.0
      %1050 = vmatpush1.xpose.msra.mxu0 0.0
      %1051 = vmatprep.subr.mxu0 0.0
      %1052 = vmatpush1.xpose.msra.mxu0 0.0
      %1053 = vmatprep.subr.mxu0 0.0
      %1054 = vmatpush1.xpose.msra.mxu0 %v1023
      %1055 = vmatprep.subr.mxu0 0.0
      %1056 = vmatpush1.xpose.msra.mxu0 %v1021
      %1057 = vmatprep.subr.mxu0 0.0
      %1058 = vmatpush2.xpose.msra.mxu0 0.0
      %1059 = vmatprep.subr.mxu0 0.0
      %1060 = vmatpush2.xpose.msra.mxu0 0.0
      %1061 = vmatprep.subr.mxu0 0.0
      %1062 = vmatpush2.xpose.msra.mxu0 0.0
      %1063 = vmatprep.subr.mxu0 0.0
      %1064 = vmatpush2.xpose.msra.mxu0 0.0
      %1065 = vmatprep.subr.mxu0 0.0
      %1066 = vmatpush2.xpose.msra.mxu0 0.0
      %1067 = vmatprep.subr.mxu0 0.0
      %1068 = vmatpush2.xpose.msra.mxu0 0.0
      %1069 = vmatprep.subr.mxu0 0.0
      %1070 = vmatpush2.xpose.msra.mxu0 0.0
      %1071 = vmatprep.subr.mxu0 0.0
      %1072 = vmatpush2.xpose.msra.mxu0 0.0
      %1073 = vmatprep.subr.mxu0 0.0
      %1074 = vmatpush2.xpose.msra.mxu0 0.0
      %1075 = vmatprep.subr.mxu0 0.0
      %1076 = vmatpush2.xpose.msra.mxu0 0.0
      %1077 = vmatprep.subr.mxu0 0.0
      %1078 = vmatpush2.xpose.msra.mxu0 0.0
      %1079 = vmatprep.subr.mxu0 0.0
      %1080 = vmatpush2.xpose.msra.mxu0 0.0
      %1081 = vmatprep.subr.mxu0 0.0
      %1082 = vmatpush2.xpose.msra.mxu0 0.0
      %1083 = vmatprep.subr.mxu0 0.0
      %1084 = vmatpush2.xpose.msra.mxu0 0.0
      %1085 = vmatprep.subr.mxu0 0.0
      %1086 = vmatpush2.xpose.msra.mxu0 0.0
      %1087 = vmatprep.subr.mxu0 0.0
      %1088 = vmatpush2.xpose.msra.mxu0 0.0
      %1089 = vmatprep.mubr.f32.mxu0 0.0
      %1090 = vmatmul.mubr.f32.gmra.mxu0 %v1017
      %v1091 = vpop.f32.mrf.mxu0
      %v1092 = vadd.f32 0.0, %v1091
      %v1093 = vpop.f32.mrf.mxu0
      %1094 = vmatprep.mubr.f32.mxu0 0.0
      %1095 = vmatmul.mubr.f32.gmra.mxu0 %v1019
      %v1096 = vpop.f32.mrf.mxu0
      %v1097 = vadd.f32 0.0, %v1096
      %v1098 = vpop.f32.mrf.mxu0
      %1099 = vdwg.mxu0
      %vm1100 = vcmask 130048
      %v1101 = vsel %vm1100, %v831, -inf
      %1102 = vmax.xlane.f32.xlu0 %v1101
      %v1103 = vpop.xlane.xlu0 %1102
      %v1104 = vsel %vm1100, %v836, -inf
      %1105 = vmax.xlane.f32.xlu0 %v1104
      %v1106 = vpop.xlane.xlu0 %1105
      %v1107 = vsel %vm1100, %v918, -inf
      %1108 = vmax.xlane.f32.xlu0 %v1107
      %v1109 = vpop.xlane.xlu0 %1108
      %v1110 = vsel %vm1100, %v923, -inf
      %1111 = vmax.xlane.f32.xlu0 %v1110
      %v1112 = vpop.xlane.xlu0 %1111
      %v1113 = vsel %vm1100, %v1005, -inf
      %1114 = vmax.xlane.f32.xlu0 %v1113
      %v1115 = vpop.xlane.xlu0 %1114
      %v1116 = vsel %vm1100, %v1010, -inf
      %1117 = vmax.xlane.f32.xlu0 %v1116
      %v1118 = vpop.xlane.xlu0 %1117
      %v1119 = vsel %vm1100, %v1092, -inf
      %1120 = vmax.xlane.f32.xlu0 %v1119
      %v1121 = vpop.xlane.xlu0 %1120
      %v1122 = vsel %vm1100, %v1097, -inf
      %1123 = vmax.xlane.f32.xlu0 %v1122
      %v1124 = vpop.xlane.xlu0 %1123
      %v1125 = vsub.f32 %v831, %v1103
      %v1126 = vsub.f32 %v836, %v1106
      %v1127 = vsub.f32 %v918, %v1109
      %v1128 = vsub.f32 %v923, %v1112
      %v1129 = vsub.f32 %v1005, %v1115
      %v1130 = vsub.f32 %v1010, %v1118
      %v1131 = vsub.f32 %v1092, %v1121
      %v1132 = vsub.f32 %v1097, %v1124
      %v1133 = vmul.f32 %v1125, 1.442695
      %v1134 = vpow.pop %v1133
      %v1135 = vmul.f32 %v1126, 1.442695
      %v1136 = vpow.pop %v1135
      %v1137 = vmul.f32 %v1127, 1.442695
      %v1138 = vpow.pop %v1137
      %v1139 = vmul.f32 %v1128, 1.442695
      %v1140 = vpow.pop %v1139
      %v1141 = vmul.f32 %v1129, 1.442695
      %v1142 = vpow.pop %v1141
      %v1143 = vmul.f32 %v1130, 1.442695
      %v1144 = vpow.pop %v1143
      %v1145 = vmul.f32 %v1131, 1.442695
      %v1146 = vpow.pop %v1145
      %v1147 = vmul.f32 %v1132, 1.442695
      %v1148 = vpow.pop %v1147
      %v1149 = vsel %vm1100, %v1134, 0.0
      %1150 = vadd.xlane.f32.xlu0 %v1149
      %v1151 = vpop.xlane.xlu0 %1150
      %v1152 = vsel %vm1100, %v1136, 0.0
      %1153 = vadd.xlane.f32.xlu0 %v1152
      %v1154 = vpop.xlane.xlu0 %1153
      %v1155 = vsel %vm1100, %v1138, 0.0
      %1156 = vadd.xlane.f32.xlu0 %v1155
      %v1157 = vpop.xlane.xlu0 %1156
      %v1158 = vsel %vm1100, %v1140, 0.0
      %1159 = vadd.xlane.f32.xlu0 %v1158
      %v1160 = vpop.xlane.xlu0 %1159
      %v1161 = vsel %vm1100, %v1142, 0.0
      %1162 = vadd.xlane.f32.xlu0 %v1161
      %v1163 = vpop.xlane.xlu0 %1162
      %v1164 = vsel %vm1100, %v1144, 0.0
      %1165 = vadd.xlane.f32.xlu0 %v1164
      %v1166 = vpop.xlane.xlu0 %1165
      %v1167 = vsel %vm1100, %v1146, 0.0
      %1168 = vadd.xlane.f32.xlu0 %v1167
      %v1169 = vpop.xlane.xlu0 %1168
      %v1170 = vsel %vm1100, %v1148, 0.0
      %1171 = vadd.xlane.f32.xlu0 %v1170
      %v1172 = vpop.xlane.xlu0 %1171
      %v1173 = vrcp.pop %v1151
      %v1174 = vmul.f32 %v1134, %v1173
      %v1175 = vrcp.pop %v1154
      %v1176 = vmul.f32 %v1136, %v1175
      %v1177 = vrcp.pop %v1157
      %v1178 = vmul.f32 %v1138, %v1177
      %v1179 = vrcp.pop %v1160
      %v1180 = vmul.f32 %v1140, %v1179
      %v1181 = vrcp.pop %v1163
      %v1182 = vmul.f32 %v1142, %v1181
      %v1183 = vrcp.pop %v1166
      %v1184 = vmul.f32 %v1144, %v1183
      %v1185 = vrcp.pop %v1169
      %v1186 = vmul.f32 %v1146, %v1185
      %v1187 = vrcp.pop %v1172
      %v1188 = vmul.f32 %v1148, %v1187
      %1189 = vrot.lane.b32.xlu0 %v729, 64
      %v1190 = vpop.permute.xlu0 %1189
      %1191 = vrot.lane.b32.xlu0 %v734, 64
      %v1192 = vpop.permute.xlu0 %1191
      %v1196 = vsel %vm1100, %v1174, 0
      %v1199 = vsel %vm1100, %v1176, 0
      %1201 = vmatprep.subr.mxu0 0.0
      %1202 = vmatpush1.msra.mxu0 0.0
      %1203 = vmatprep.subr.mxu0 0.0
      %1204 = vmatpush1.msra.mxu0 0.0
      %1205 = vmatprep.subr.mxu0 0.0
      %1206 = vmatpush1.msra.mxu0 0.0
      %1207 = vmatprep.subr.mxu0 0.0
      %1208 = vmatpush1.msra.mxu0 0.0
      %1209 = vmatprep.subr.mxu0 0.0
      %1210 = vmatpush1.msra.mxu0 0.0
      %1211 = vmatprep.subr.mxu0 0.0
      %1212 = vmatpush1.msra.mxu0 0.0
      %1213 = vmatprep.subr.mxu0 0.0
      %1214 = vmatpush1.msra.mxu0 0.0
      %1215 = vmatprep.subr.mxu0 0.0
      %1216 = vmatpush1.msra.mxu0 0.0
      %1217 = vmatprep.subr.mxu0 0.0
      %1218 = vmatpush1.msra.mxu0 0.0
      %1219 = vmatprep.subr.mxu0 0.0
      %1220 = vmatpush1.msra.mxu0 0.0
      %1221 = vmatprep.subr.mxu0 0.0
      %1222 = vmatpush1.msra.mxu0 0.0
      %1223 = vmatprep.subr.mxu0 0.0
      %1224 = vmatpush1.msra.mxu0 0.0
      %1225 = vmatprep.subr.mxu0 0.0
      %1226 = vmatpush1.msra.mxu0 0.0
      %1227 = vmatprep.subr.mxu0 0.0
      %1228 = vmatpush1.msra.mxu0 0.0
      %1229 = vmatprep.subr.mxu0 0.0
      %1230 = vmatpush1.msra.mxu0 %v1192
      %1231 = vmatprep.subr.mxu0 0.0
      %1232 = vmatpush1.msra.mxu0 %v1190
      %1233 = vmatprep.subr.mxu0 0.0
      %1234 = vmatpush2.msra.mxu0 0.0
      %1235 = vmatprep.subr.mxu0 0.0
      %1236 = vmatpush2.msra.mxu0 0.0
      %1237 = vmatprep.subr.mxu0 0.0
      %1238 = vmatpush2.msra.mxu0 0.0
      %1239 = vmatprep.subr.mxu0 0.0
      %1240 = vmatpush2.msra.mxu0 0.0
      %1241 = vmatprep.subr.mxu0 0.0
      %1242 = vmatpush2.msra.mxu0 0.0
      %1243 = vmatprep.subr.mxu0 0.0
      %1244 = vmatpush2.msra.mxu0 0.0
      %1245 = vmatprep.subr.mxu0 0.0
      %1246 = vmatpush2.msra.mxu0 0.0
      %1247 = vmatprep.subr.mxu0 0.0
      %1248 = vmatpush2.msra.mxu0 0.0
      %1249 = vmatprep.subr.mxu0 0.0
      %1250 = vmatpush2.msra.mxu0 0.0
      %1251 = vmatprep.subr.mxu0 0.0
      %1252 = vmatpush2.msra.mxu0 0.0
      %1253 = vmatprep.subr.mxu0 0.0
      %1254 = vmatpush2.msra.mxu0 0.0
      %1255 = vmatprep.subr.mxu0 0.0
      %1256 = vmatpush2.msra.mxu0 0.0
      %1257 = vmatprep.subr.mxu0 0.0
      %1258 = vmatpush2.msra.mxu0 0.0
      %1259 = vmatprep.subr.mxu0 0.0
      %1260 = vmatpush2.msra.mxu0 0.0
      %1261 = vmatprep.subr.mxu0 0.0
      %1262 = vmatpush2.msra.mxu0 0.0
      %1263 = vmatprep.subr.mxu0 0.0
      %1264 = vmatpush2.msra.mxu0 0.0
      %1265 = vmatprep.mubr.f32.mxu0 0.0
      %1266 = vmatmul.mubr.f32.gmra.mxu0 %v1196
      %v1267 = vpop.f32.mrf.mxu0
      %v1268 = vadd.f32 0.0, %v1267
      %v1269 = vpop.f32.mrf.mxu0
      %1270 = vmatprep.mubr.f32.mxu0 0.0
      %1271 = vmatmul.mubr.f32.gmra.mxu0 %v1199
      %v1272 = vpop.f32.mrf.mxu0
      %v1273 = vadd.f32 0.0, %v1272
      %v1274 = vpop.f32.mrf.mxu0
      %1275 = vdwg.mxu0
      %1276 = vrot.lane.b32.xlu0 %v740, 64
      %v1277 = vpop.permute.xlu0 %1276
      %1278 = vrot.lane.b32.xlu0 %v742, 64
      %v1279 = vpop.permute.xlu0 %1278
      %v1283 = vsel %vm1100, %v1178, 0
      %v1286 = vsel %vm1100, %v1180, 0
      %1288 = vmatprep.subr.mxu0 0.0
      %1289 = vmatpush1.msra.mxu0 0.0
      %1290 = vmatprep.subr.mxu0 0.0
      %1291 = vmatpush1.msra.mxu0 0.0
      %1292 = vmatprep.subr.mxu0 0.0
      %1293 = vmatpush1.msra.mxu0 0.0
      %1294 = vmatprep.subr.mxu0 0.0
      %1295 = vmatpush1.msra.mxu0 0.0
      %1296 = vmatprep.subr.mxu0 0.0
      %1297 = vmatpush1.msra.mxu0 0.0
      %1298 = vmatprep.subr.mxu0 0.0
      %1299 = vmatpush1.msra.mxu0 0.0
      %1300 = vmatprep.subr.mxu0 0.0
      %1301 = vmatpush1.msra.mxu0 0.0
      %1302 = vmatprep.subr.mxu0 0.0
      %1303 = vmatpush1.msra.mxu0 0.0
      %1304 = vmatprep.subr.mxu0 0.0
      %1305 = vmatpush1.msra.mxu0 0.0
      %1306 = vmatprep.subr.mxu0 0.0
      %1307 = vmatpush1.msra.mxu0 0.0
      %1308 = vmatprep.subr.mxu0 0.0
      %1309 = vmatpush1.msra.mxu0 0.0
      %1310 = vmatprep.subr.mxu0 0.0
      %1311 = vmatpush1.msra.mxu0 0.0
      %1312 = vmatprep.subr.mxu0 0.0
      %1313 = vmatpush1.msra.mxu0 0.0
      %1314 = vmatprep.subr.mxu0 0.0
      %1315 = vmatpush1.msra.mxu0 0.0
      %1316 = vmatprep.subr.mxu0 0.0
      %1317 = vmatpush1.msra.mxu0 %v1279
      %1318 = vmatprep.subr.mxu0 0.0
      %1319 = vmatpush1.msra.mxu0 %v1277
      %1320 = vmatprep.subr.mxu0 0.0
      %1321 = vmatpush2.msra.mxu0 0.0
      %1322 = vmatprep.subr.mxu0 0.0
      %1323 = vmatpush2.msra.mxu0 0.0
      %1324 = vmatprep.subr.mxu0 0.0
      %1325 = vmatpush2.msra.mxu0 0.0
      %1326 = vmatprep.subr.mxu0 0.0
      %1327 = vmatpush2.msra.mxu0 0.0
      %1328 = vmatprep.subr.mxu0 0.0
      %1329 = vmatpush2.msra.mxu0 0.0
      %1330 = vmatprep.subr.mxu0 0.0
      %1331 = vmatpush2.msra.mxu0 0.0
      %1332 = vmatprep.subr.mxu0 0.0
      %1333 = vmatpush2.msra.mxu0 0.0
      %1334 = vmatprep.subr.mxu0 0.0
      %1335 = vmatpush2.msra.mxu0 0.0
      %1336 = vmatprep.subr.mxu0 0.0
      %1337 = vmatpush2.msra.mxu0 0.0
      %1338 = vmatprep.subr.mxu0 0.0
      %1339 = vmatpush2.msra.mxu0 0.0
      %1340 = vmatprep.subr.mxu0 0.0
      %1341 = vmatpush2.msra.mxu0 0.0
      %1342 = vmatprep.subr.mxu0 0.0
      %1343 = vmatpush2.msra.mxu0 0.0
      %1344 = vmatprep.subr.mxu0 0.0
      %1345 = vmatpush2.msra.mxu0 0.0
      %1346 = vmatprep.subr.mxu0 0.0
      %1347 = vmatpush2.msra.mxu0 0.0
      %1348 = vmatprep.subr.mxu0 0.0
      %1349 = vmatpush2.msra.mxu0 0.0
      %1350 = vmatprep.subr.mxu0 0.0
      %1351 = vmatpush2.msra.mxu0 0.0
      %1352 = vmatprep.mubr.f32.mxu0 0.0
      %1353 = vmatmul.mubr.f32.gmra.mxu0 %v1283
      %v1354 = vpop.f32.mrf.mxu0
      %v1355 = vadd.f32 0.0, %v1354
      %v1356 = vpop.f32.mrf.mxu0
      %1357 = vmatprep.mubr.f32.mxu0 0.0
      %1358 = vmatmul.mubr.f32.gmra.mxu0 %v1286
      %v1359 = vpop.f32.mrf.mxu0
      %v1360 = vadd.f32 0.0, %v1359
      %v1361 = vpop.f32.mrf.mxu0
      %1362 = vdwg.mxu0
      %1363 = vrot.lane.b32.xlu0 %v744, 64
      %v1364 = vpop.permute.xlu0 %1363
      %1365 = vrot.lane.b32.xlu0 %v746, 64
      %v1366 = vpop.permute.xlu0 %1365
      %v1370 = vsel %vm1100, %v1182, 0
      %v1373 = vsel %vm1100, %v1184, 0
      %1375 = vmatprep.subr.mxu0 0.0
      %1376 = vmatpush1.msra.mxu0 0.0
      %1377 = vmatprep.subr.mxu0 0.0
      %1378 = vmatpush1.msra.mxu0 0.0
      %1379 = vmatprep.subr.mxu0 0.0
      %1380 = vmatpush1.msra.mxu0 0.0
      %1381 = vmatprep.subr.mxu0 0.0
      %1382 = vmatpush1.msra.mxu0 0.0
      %1383 = vmatprep.subr.mxu0 0.0
      %1384 = vmatpush1.msra.mxu0 0.0
      %1385 = vmatprep.subr.mxu0 0.0
      %1386 = vmatpush1.msra.mxu0 0.0
      %1387 = vmatprep.subr.mxu0 0.0
      %1388 = vmatpush1.msra.mxu0 0.0
      %1389 = vmatprep.subr.mxu0 0.0
      %1390 = vmatpush1.msra.mxu0 0.0
      %1391 = vmatprep.subr.mxu0 0.0
      %1392 = vmatpush1.msra.mxu0 0.0
      %1393 = vmatprep.subr.mxu0 0.0
      %1394 = vmatpush1.msra.mxu0 0.0
      %1395 = vmatprep.subr.mxu0 0.0
      %1396 = vmatpush1.msra.mxu0 0.0
      %1397 = vmatprep.subr.mxu0 0.0
      %1398 = vmatpush1.msra.mxu0 0.0
      %1399 = vmatprep.subr.mxu0 0.0
      %1400 = vmatpush1.msra.mxu0 0.0
      %1401 = vmatprep.subr.mxu0 0.0
      %1402 = vmatpush1.msra.mxu0 0.0
      %1403 = vmatprep.subr.mxu0 0.0
      %1404 = vmatpush1.msra.mxu0 %v1366
      %1405 = vmatprep.subr.mxu0 0.0
      %1406 = vmatpush1.msra.mxu0 %v1364
      %1407 = vmatprep.subr.mxu0 0.0
      %1408 = vmatpush2.msra.mxu0 0.0
      %1409 = vmatprep.subr.mxu0 0.0
      %1410 = vmatpush2.msra.mxu0 0.0
      %1411 = vmatprep.subr.mxu0 0.0
      %1412 = vmatpush2.msra.mxu0 0.0
      %1413 = vmatprep.subr.mxu0 0.0
      %1414 = vmatpush2.msra.mxu0 0.0
      %1415 = vmatprep.subr.mxu0 0.0
      %1416 = vmatpush2.msra.mxu0 0.0
      %1417 = vmatprep.subr.mxu0 0.0
      %1418 = vmatpush2.msra.mxu0 0.0
      %1419 = vmatprep.subr.mxu0 0.0
      %1420 = vmatpush2.msra.mxu0 0.0
      %1421 = vmatprep.subr.mxu0 0.0
      %1422 = vmatpush2.msra.mxu0 0.0
      %1423 = vmatprep.subr.mxu0 0.0
      %1424 = vmatpush2.msra.mxu0 0.0
      %1425 = vmatprep.subr.mxu0 0.0
      %1426 = vmatpush2.msra.mxu0 0.0
      %1427 = vmatprep.subr.mxu0 0.0
      %1428 = vmatpush2.msra.mxu0 0.0
      %1429 = vmatprep.subr.mxu0 0.0
      %1430 = vmatpush2.msra.mxu0 0.0
      %1431 = vmatprep.subr.mxu0 0.0
      %1432 = vmatpush2.msra.mxu0 0.0
      %1433 = vmatprep.subr.mxu0 0.0
      %1434 = vmatpush2.msra.mxu0 0.0
      %1435 = vmatprep.subr.mxu0 0.0
      %1436 = vmatpush2.msra.mxu0 0.0
      %1437 = vmatprep.subr.mxu0 0.0
      %1438 = vmatpush2.msra.mxu0 0.0
      %1439 = vmatprep.mubr.f32.mxu0 0.0
      %1440 = vmatmul.mubr.f32.gmra.mxu0 %v1370
      %v1441 = vpop.f32.mrf.mxu0
      %v1442 = vadd.f32 0.0, %v1441
      %v1443 = vpop.f32.mrf.mxu0
      %1444 = vmatprep.mubr.f32.mxu0 0.0
      %1445 = vmatmul.mubr.f32.gmra.mxu0 %v1373
      %v1446 = vpop.f32.mrf.mxu0
      %v1447 = vadd.f32 0.0, %v1446
      %v1448 = vpop.f32.mrf.mxu0
      %1449 = vdwg.mxu0
      %1450 = vrot.lane.b32.xlu0 %v748, 64
      %v1451 = vpop.permute.xlu0 %1450
      %1452 = vrot.lane.b32.xlu0 %v750, 64
      %v1453 = vpop.permute.xlu0 %1452
      %v1457 = vsel %vm1100, %v1186, 0
      %v1460 = vsel %vm1100, %v1188, 0
      %1462 = vmatprep.subr.mxu0 0.0
      %1463 = vmatpush1.msra.mxu0 0.0
      %1464 = vmatprep.subr.mxu0 0.0
      %1465 = vmatpush1.msra.mxu0 0.0
      %1466 = vmatprep.subr.mxu0 0.0
      %1467 = vmatpush1.msra.mxu0 0.0
      %1468 = vmatprep.subr.mxu0 0.0
      %1469 = vmatpush1.msra.mxu0 0.0
      %1470 = vmatprep.subr.mxu0 0.0
      %1471 = vmatpush1.msra.mxu0 0.0
      %1472 = vmatprep.subr.mxu0 0.0
      %1473 = vmatpush1.msra.mxu0 0.0
      %1474 = vmatprep.subr.mxu0 0.0
      %1475 = vmatpush1.msra.mxu0 0.0
      %1476 = vmatprep.subr.mxu0 0.0
      %1477 = vmatpush1.msra.mxu0 0.0
      %1478 = vmatprep.subr.mxu0 0.0
      %1479 = vmatpush1.msra.mxu0 0.0
      %1480 = vmatprep.subr.mxu0 0.0
      %1481 = vmatpush1.msra.mxu0 0.0
      %1482 = vmatprep.subr.mxu0 0.0
      %1483 = vmatpush1.msra.mxu0 0.0
      %1484 = vmatprep.subr.mxu0 0.0
      %1485 = vmatpush1.msra.mxu0 0.0
      %1486 = vmatprep.subr.mxu0 0.0
      %1487 = vmatpush1.msra.mxu0 0.0
      %1488 = vmatprep.subr.mxu0 0.0
      %1489 = vmatpush1.msra.mxu0 0.0
      %1490 = vmatprep.subr.mxu0 0.0
      %1491 = vmatpush1.msra.mxu0 %v1453
      %1492 = vmatprep.subr.mxu0 0.0
      %1493 = vmatpush1.msra.mxu0 %v1451
      %1494 = vmatprep.subr.mxu0 0.0
      %1495 = vmatpush2.msra.mxu0 0.0
      %1496 = vmatprep.subr.mxu0 0.0
      %1497 = vmatpush2.msra.mxu0 0.0
      %1498 = vmatprep.subr.mxu0 0.0
      %1499 = vmatpush2.msra.mxu0 0.0
      %1500 = vmatprep.subr.mxu0 0.0
      %1501 = vmatpush2.msra.mxu0 0.0
      %1502 = vmatprep.subr.mxu0 0.0
      %1503 = vmatpush2.msra.mxu0 0.0
      %1504 = vmatprep.subr.mxu0 0.0
      %1505 = vmatpush2.msra.mxu0 0.0
      %1506 = vmatprep.subr.mxu0 0.0
      %1507 = vmatpush2.msra.mxu0 0.0
      %1508 = vmatprep.subr.mxu0 0.0
      %1509 = vmatpush2.msra.mxu0 0.0
      %1510 = vmatprep.subr.mxu0 0.0
      %1511 = vmatpush2.msra.mxu0 0.0
      %1512 = vmatprep.subr.mxu0 0.0
      %1513 = vmatpush2.msra.mxu0 0.0
      %1514 = vmatprep.subr.mxu0 0.0
      %1515 = vmatpush2.msra.mxu0 0.0
      %1516 = vmatprep.subr.mxu0 0.0
      %1517 = vmatpush2.msra.mxu0 0.0
      %1518 = vmatprep.subr.mxu0 0.0
      %1519 = vmatpush2.msra.mxu0 0.0
      %1520 = vmatprep.subr.mxu0 0.0
      %1521 = vmatpush2.msra.mxu0 0.0
      %1522 = vmatprep.subr.mxu0 0.0
      %1523 = vmatpush2.msra.mxu0 0.0
      %1524 = vmatprep.subr.mxu0 0.0
      %1525 = vmatpush2.msra.mxu0 0.0
      %1526 = vmatprep.mubr.f32.mxu0 0.0
      %1527 = vmatmul.mubr.f32.gmra.mxu0 %v1457
      %v1528 = vpop.f32.mrf.mxu0
      %v1529 = vadd.f32 0.0, %v1528
      %v1530 = vpop.f32.mrf.mxu0
      %1531 = vmatprep.mubr.f32.mxu0 0.0
      %1532 = vmatmul.mubr.f32.gmra.mxu0 %v1460
      %v1533 = vpop.f32.mrf.mxu0
      %v1534 = vadd.f32 0.0, %v1533
      %v1535 = vpop.f32.mrf.mxu0
      %1536 = vdwg.mxu0
      %1539 = vrot.lane.b32.xlu0 %v1355, 8
      %v1540 = vpop.permute.xlu0 %1539
      %1541 = vrot.lane.b32.xlu0 %v1360, 8
      %v1542 = vpop.permute.xlu0 %1541
      %1547 = vrot.lane.b32.xlu0 %v1442, 16
      %v1548 = vpop.permute.xlu0 %1547
      %1549 = vrot.lane.b32.xlu0 %v1447, 16
      %v1550 = vpop.permute.xlu0 %1549
      %1555 = vrot.lane.b32.xlu0 %v1529, 24
      %v1556 = vpop.permute.xlu0 %1555
      %1557 = vrot.lane.b32.xlu0 %v1534, 24
      %v1558 = vpop.permute.xlu0 %1557
      %v1561 = vsel %vm755, %v1268, %v1540
      %v1562 = vsel %vm755, %v1273, %v1542
      %v1563 = vsel %vm1100, %v1561, %v1548
      %v1564 = vsel %vm1100, %v1562, %v1550
      %vm1565 = vcmask 195584
      %v1566 = vsel %vm1565, %v1563, %v1556
      %v1567 = vsel %vm1565, %v1564, %v1558
      %v1568 = vld [vmem:[%s5] sm:$0xff]
      %v1569 = vld [vmem:[%s5 + $0x8] sm:$0xff]
      %v1570 = vld [vmem:[%s5 + $0x10] sm:$0xff]
      %v1571 = vld [vmem:[%s5 + $0x18] sm:$0xff]
      %v1572 = vld [vmem:[%s6] sm:$0x1]
      %v1574 = vlaneseq
      %v1575 = vshrl.u32 %v1574, 7
      %v1576 = vsub.s32 0, %v1575
      %v1577 = vrot.slane %v1572, %v1576
      %v1580 = vsel %vm655, %v1566, 0
      %v1583 = vsel %vm655, %v1567, 0
      %1585 = vmatprep.subr.mxu0 0.0
      %1586 = vmatpush1.msra.mxu0 0.0
      %1587 = vmatprep.subr.mxu0 0.0
      %1588 = vmatpush1.msra.mxu0 0.0
      %1589 = vmatprep.subr.mxu0 0.0
      %1590 = vmatpush1.msra.mxu0 0.0
      %1591 = vmatprep.subr.mxu0 0.0
      %1592 = vmatpush1.msra.mxu0 0.0
      %1593 = vmatprep.subr.mxu0 0.0
      %1594 = vmatpush1.msra.mxu0 0.0
      %1595 = vmatprep.subr.mxu0 0.0
      %1596 = vmatpush1.msra.mxu0 0.0
      %1597 = vmatprep.subr.mxu0 0.0
      %1598 = vmatpush1.msra.mxu0 0.0
      %1599 = vmatprep.subr.mxu0 0.0
      %1600 = vmatpush1.msra.mxu0 0.0
      %1601 = vmatprep.subr.mxu0 0.0
      %1602 = vmatpush1.msra.mxu0 0.0
      %1603 = vmatprep.subr.mxu0 0.0
      %1604 = vmatpush1.msra.mxu0 0.0
      %1605 = vmatprep.subr.mxu0 0.0
      %1606 = vmatpush1.msra.mxu0 0.0
      %1607 = vmatprep.subr.mxu0 0.0
      %1608 = vmatpush1.msra.mxu0 0.0
      %1609 = vmatprep.subr.mxu0 0.0
      %1610 = vmatpush1.msra.mxu0 %v1571
      %1611 = vmatprep.subr.mxu0 0.0
      %1612 = vmatpush1.msra.mxu0 %v1570
      %1613 = vmatprep.subr.mxu0 0.0
      %1614 = vmatpush1.msra.mxu0 %v1569
      %1615 = vmatprep.subr.mxu0 0.0
      %1616 = vmatpush1.msra.mxu0 %v1568
      %1617 = vmatprep.subr.mxu0 0.0
      %1618 = vmatpush2.msra.mxu0 0.0
      %1619 = vmatprep.subr.mxu0 0.0
      %1620 = vmatpush2.msra.mxu0 0.0
      %1621 = vmatprep.subr.mxu0 0.0
      %1622 = vmatpush2.msra.mxu0 0.0
      %1623 = vmatprep.subr.mxu0 0.0
      %1624 = vmatpush2.msra.mxu0 0.0
      %1625 = vmatprep.subr.mxu0 0.0
      %1626 = vmatpush2.msra.mxu0 0.0
      %1627 = vmatprep.subr.mxu0 0.0
      %1628 = vmatpush2.msra.mxu0 0.0
      %1629 = vmatprep.subr.mxu0 0.0
      %1630 = vmatpush2.msra.mxu0 0.0
      %1631 = vmatprep.subr.mxu0 0.0
      %1632 = vmatpush2.msra.mxu0 0.0
      %1633 = vmatprep.subr.mxu0 0.0
      %1634 = vmatpush2.msra.mxu0 0.0
      %1635 = vmatprep.subr.mxu0 0.0
      %1636 = vmatpush2.msra.mxu0 0.0
      %1637 = vmatprep.subr.mxu0 0.0
      %1638 = vmatpush2.msra.mxu0 0.0
      %1639 = vmatprep.subr.mxu0 0.0
      %1640 = vmatpush2.msra.mxu0 0.0
      %1641 = vmatprep.subr.mxu0 0.0
      %1642 = vmatpush2.msra.mxu0 0.0
      %1643 = vmatprep.subr.mxu0 0.0
      %1644 = vmatpush2.msra.mxu0 0.0
      %1645 = vmatprep.subr.mxu0 0.0
      %1646 = vmatpush2.msra.mxu0 0.0
      %1647 = vmatprep.subr.mxu0 0.0
      %1648 = vmatpush2.msra.mxu0 0.0
      %1649 = vmatprep.mubr.f32.mxu0 0.0
      %1650 = vmatmul.mubr.f32.gmra.mxu0 %v1580
      %v1651 = vpop.f32.mrf.mxu0
      %v1652 = vadd.f32 %v1577, %v1651
      %v1653 = vpop.f32.mrf.mxu0
      %1654 = vmatprep.mubr.f32.mxu0 0.0
      %1655 = vmatmul.mubr.f32.gmra.mxu0 %v1583
      %v1656 = vpop.f32.mrf.mxu0
      %v1657 = vadd.f32 %v1577, %v1656
      %v1658 = vpop.f32.mrf.mxu0
      %1659 = vdwg.mxu0
      %v1660 = vadd.f32 %v636, %v1652
      %v1661 = vadd.f32 %v641, %v1657
      %v1662 = vld [vmem:[%s7] sm:$0x1]
      %v1663 = vld [vmem:[%s8] sm:$0x1]
      %v1664 = vsel %vm655, %v1660, 0.0
      %1665 = vadd.xlane.f32.xlu0 %v1664
      %v1666 = vpop.xlane.xlu0 %1665
      %v1667 = vsel %vm655, %v1661, 0.0
      %1668 = vadd.xlane.f32.xlu0 %v1667
      %v1669 = vpop.xlane.xlu0 %1668
      %v1670 = vrcp.pop 32.0
      %v1671 = vmul.f32 %v1666, %v1670
      %v1672 = vmul.f32 %v1669, %v1670
      %v1673 = vsub.f32 %v1660, %v1671
      %v1674 = vsub.f32 %v1661, %v1672
      %v1675 = vmul.f32 %v1673, %v1673
      %v1676 = vmul.f32 %v1674, %v1674
      %v1677 = vsel %vm655, %v1675, 0.0
      %1678 = vadd.xlane.f32.xlu0 %v1677
      %v1679 = vpop.xlane.xlu0 %1678
      %v1680 = vsel %vm655, %v1676, 0.0
      %1681 = vadd.xlane.f32.xlu0 %v1680
      %v1682 = vpop.xlane.xlu0 %1681
      %v1683 = vmul.f32 %v1679, %v1670
      %v1684 = vmul.f32 %v1682, %v1670
      %v1685 = vadd.f32 %v1683, 1e-05
      %v1686 = vadd.f32 %v1684, 1e-05
      %v1687 = vrsqrt.pop %v1685
      %v1688 = vrsqrt.pop %v1686
      %v1689 = vmul.f32 %v1673, %v1687
      %v1690 = vmul.f32 %v1674, %v1688
      %v1692 = vlaneseq
      %v1693 = vshrl.u32 %v1692, 7
      %v1694 = vsub.s32 0, %v1693
      %v1695 = vrot.slane %v1662, %v1694
      %v1697 = vmul.f32 %v1689, %v1695
      %v1698 = vmul.f32 %v1690, %v1695
      %v1700 = vlaneseq
      %v1701 = vshrl.u32 %v1700, 7
      %v1702 = vsub.s32 0, %v1701
      %v1703 = vrot.slane %v1663, %v1702
      %v1705 = vadd.f32 %v1697, %v1703
      %v1706 = vadd.f32 %v1698, %v1703
      %v1707 = vld [vmem:[%s9] sm:$0xff]
      %v1708 = vld [vmem:[%s9 + $0x8] sm:$0xff]
      %v1709 = vld [vmem:[%s9 + $0x10] sm:$0xff]
      %v1710 = vld [vmem:[%s9 + $0x18] sm:$0xff]
      %v1711 = vld [vmem:[%s10] sm:$0x1]
      %v1713 = vlaneseq
      %v1714 = vshrl.u32 %v1713, 7
      %v1715 = vsub.s32 0, %v1714
      %v1716 = vrot.slane %v1711, %v1715
      %v1719 = vsel %vm655, %v1705, 0
      %v1722 = vsel %vm655, %v1706, 0
      %1724 = vmatprep.subr.mxu0 0.0
      %1725 = vmatpush1.msra.mxu0 0.0
      %1726 = vmatprep.subr.mxu0 0.0
      %1727 = vmatpush1.msra.mxu0 0.0
      %1728 = vmatprep.subr.mxu0 0.0
      %1729 = vmatpush1.msra.mxu0 0.0
      %1730 = vmatprep.subr.mxu0 0.0
      %1731 = vmatpush1.msra.mxu0 0.0
      %1732 = vmatprep.subr.mxu0 0.0
      %1733 = vmatpush1.msra.mxu0 0.0
      %1734 = vmatprep.subr.mxu0 0.0
      %1735 = vmatpush1.msra.mxu0 0.0
      %1736 = vmatprep.subr.mxu0 0.0
      %1737 = vmatpush1.msra.mxu0 0.0
      %1738 = vmatprep.subr.mxu0 0.0
      %1739 = vmatpush1.msra.mxu0 0.0
      %1740 = vmatprep.subr.mxu0 0.0
      %1741 = vmatpush1.msra.mxu0 0.0
      %1742 = vmatprep.subr.mxu0 0.0
      %1743 = vmatpush1.msra.mxu0 0.0
      %1744 = vmatprep.subr.mxu0 0.0
      %1745 = vmatpush1.msra.mxu0 0.0
      %1746 = vmatprep.subr.mxu0 0.0
      %1747 = vmatpush1.msra.mxu0 0.0
      %1748 = vmatprep.subr.mxu0 0.0
      %1749 = vmatpush1.msra.mxu0 %v1710
      %1750 = vmatprep.subr.mxu0 0.0
      %1751 = vmatpush1.msra.mxu0 %v1709
      %1752 = vmatprep.subr.mxu0 0.0
      %1753 = vmatpush1.msra.mxu0 %v1708
      %1754 = vmatprep.subr.mxu0 0.0
      %1755 = vmatpush1.msra.mxu0 %v1707
      %1756 = vmatprep.subr.mxu0 0.0
      %1757 = vmatpush2.msra.mxu0 0.0
      %1758 = vmatprep.subr.mxu0 0.0
      %1759 = vmatpush2.msra.mxu0 0.0
      %1760 = vmatprep.subr.mxu0 0.0
      %1761 = vmatpush2.msra.mxu0 0.0
      %1762 = vmatprep.subr.mxu0 0.0
      %1763 = vmatpush2.msra.mxu0 0.0
      %1764 = vmatprep.subr.mxu0 0.0
      %1765 = vmatpush2.msra.mxu0 0.0
      %1766 = vmatprep.subr.mxu0 0.0
      %1767 = vmatpush2.msra.mxu0 0.0
      %1768 = vmatprep.subr.mxu0 0.0
      %1769 = vmatpush2.msra.mxu0 0.0
      %1770 = vmatprep.subr.mxu0 0.0
      %1771 = vmatpush2.msra.mxu0 0.0
      %1772 = vmatprep.subr.mxu0 0.0
      %1773 = vmatpush2.msra.mxu0 0.0
      %1774 = vmatprep.subr.mxu0 0.0
      %1775 = vmatpush2.msra.mxu0 0.0
      %1776 = vmatprep.subr.mxu0 0.0
      %1777 = vmatpush2.msra.mxu0 0.0
      %1778 = vmatprep.subr.mxu0 0.0
      %1779 = vmatpush2.msra.mxu0 0.0
      %1780 = vmatprep.subr.mxu0 0.0
      %1781 = vmatpush2.msra.mxu0 0.0
      %1782 = vmatprep.subr.mxu0 0.0
      %1783 = vmatpush2.msra.mxu0 0.0
      %1784 = vmatprep.subr.mxu0 0.0
      %1785 = vmatpush2.msra.mxu0 0.0
      %1786 = vmatprep.subr.mxu0 0.0
      %1787 = vmatpush2.msra.mxu0 0.0
      %1788 = vmatprep.mubr.f32.mxu0 0.0
      %1789 = vmatmul.mubr.f32.gmra.mxu0 %v1719
      %v1790 = vpop.f32.mrf.mxu0
      %v1791 = vadd.f32 %v1716, %v1790
      %v1792 = vpop.f32.mrf.mxu0
      %1793 = vmatprep.mubr.f32.mxu0 0.0
      %1794 = vmatmul.mubr.f32.gmra.mxu0 %v1722
      %v1795 = vpop.f32.mrf.mxu0
      %v1796 = vadd.f32 %v1716, %v1795
      %v1797 = vpop.f32.mrf.mxu0
      %1798 = vdwg.mxu0
      %v1799 = vmul.f32 %v1791, 0.5
      %v1800 = vmul.f32 %v1796, 0.5
      %v1801 = vmul.f32 %v1791, 0.70710677
      %v1802 = vmul.f32 %v1796, 0.70710677
      %vm1803 = vcmp.ge.f32.partialorder %v1801, 0.0
      %vm1804 = vcmp.ge.f32.partialorder %v1802, 0.0
      %v1805 = vsel %vm1803, 1.0, -1.0
      %v1806 = vsel %vm1804, 1.0, -1.0
      %v1807 = vand.u32 2147483647, %v1801
      %v1808 = vand.u32 2147483647, %v1802
      %v1809 = vmul.f32 %v1807, 0.3275911
      %v1810 = vmul.f32 %v1808, 0.3275911
      %v1811 = vadd.f32 %v1809, 1.0
      %v1812 = vadd.f32 %v1810, 1.0
      %v1813 = vrcp.pop %v1811
      %v1814 = vmul.f32 1.0, %v1813
      %v1815 = vrcp.pop %v1812
      %v1816 = vmul.f32 1.0, %v1815
      %v1817 = vmul.f32 %v1814, 1.0614054
      %v1818 = vmul.f32 %v1816, 1.0614054
      %v1819 = vadd.f32 %v1817, -1.4531521
      %v1820 = vadd.f32 %v1818, -1.4531521
      %v1821 = vmul.f32 %v1819, %v1814
      %v1822 = vmul.f32 %v1820, %v1816
      %v1823 = vadd.f32 %v1821, 1.4214138
      %v1824 = vadd.f32 %v1822, 1.4214138
      %v1825 = vmul.f32 %v1823, %v1814
      %v1826 = vmul.f32 %v1824, %v1816
      %v1827 = vadd.f32 %v1825, -0.28449672
      %v1828 = vadd.f32 %v1826, -0.28449672
      %v1829 = vmul.f32 %v1827, %v1814
      %v1830 = vmul.f32 %v1828, %v1816
      %v1831 = vadd.f32 %v1829, 0.2548296
      %v1832 = vadd.f32 %v1830, 0.2548296
      %v1833 = vmul.f32 %v1831, %v1814
      %v1834 = vmul.f32 %v1832, %v1816
      %v1835 = vsub.f32 0.0, %v1807
      %v1836 = vsub.f32 0.0, %v1808
      %v1837 = vmul.f32 %v1835, %v1807
      %v1838 = vmul.f32 %v1836, %v1808
      %v1839 = vmul.f32 %v1837, 1.442695
      %v1840 = vpow.pop %v1839
      %v1841 = vmul.f32 %v1838, 1.442695
      %v1842 = vpow.pop %v1841
      %v1843 = vmul.f32 %v1833, %v1840
      %v1844 = vmul.f32 %v1834, %v1842
      %v1845 = vsub.f32 1.0, %v1843
      %v1846 = vsub.f32 1.0, %v1844
      %v1847 = vmul.f32 %v1805, %v1845
      %v1848 = vmul.f32 %v1806, %v1846
      %v1849 = vadd.f32 %v1847, 1.0
      %v1850 = vadd.f32 %v1848, 1.0
      %v1851 = vmul.f32 %v1799, %v1849
      %v1852 = vmul.f32 %v1800, %v1850
      %v1853 = vld [vmem:[%s11] sm:$0xff]
      %v1854 = vld [vmem:[%s11 + $0x8] sm:$0xff]
      %v1855 = vld [vmem:[%s11 + $0x10] sm:$0xff]
      %v1856 = vld [vmem:[%s11 + $0x18] sm:$0xff]
      %v1857 = vld [vmem:[%s11 + $0x20] sm:$0xff]
      %v1858 = vld [vmem:[%s11 + $0x28] sm:$0xff]
      %v1859 = vld [vmem:[%s11 + $0x30] sm:$0xff]
      %v1860 = vld [vmem:[%s11 + $0x38] sm:$0xff]
      %v1861 = vld [vmem:[%s12] sm:$0x1]
      %v1863 = vlaneseq
      %v1864 = vshrl.u32 %v1863, 7
      %v1865 = vsub.s32 0, %v1864
      %v1866 = vrot.slane %v1861, %v1865
      %vm1868 = vcmask 523264
      %v1870 = vsel %vm1868, %v1851, 0
      %v1873 = vsel %vm1868, %v1852, 0
      %1875 = vmatprep.subr.mxu0 0.0
      %1876 = vmatpush1.msra.mxu0 0.0
      %1877 = vmatprep.subr.mxu0 0.0
      %1878 = vmatpush1.msra.mxu0 0.0
      %1879 = vmatprep.subr.mxu0 0.0
      %1880 = vmatpush1.msra.mxu0 0.0
      %1881 = vmatprep.subr.mxu0 0.0
      %1882 = vmatpush1.msra.mxu0 0.0
      %1883 = vmatprep.subr.mxu0 0.0
      %1884 = vmatpush1.msra.mxu0 0.0
      %1885 = vmatprep.subr.mxu0 0.0
      %1886 = vmatpush1.msra.mxu0 0.0
      %1887 = vmatprep.subr.mxu0 0.0
      %1888 = vmatpush1.msra.mxu0 0.0
      %1889 = vmatprep.subr.mxu0 0.0
      %1890 = vmatpush1.msra.mxu0 0.0
      %1891 = vmatprep.subr.mxu0 0.0
      %1892 = vmatpush1.msra.mxu0 %v1860
      %1893 = vmatprep.subr.mxu0 0.0
      %1894 = vmatpush1.msra.mxu0 %v1859
      %1895 = vmatprep.subr.mxu0 0.0
      %1896 = vmatpush1.msra.mxu0 %v1858
      %1897 = vmatprep.subr.mxu0 0.0
      %1898 = vmatpush1.msra.mxu0 %v1857
      %1899 = vmatprep.subr.mxu0 0.0
      %1900 = vmatpush1.msra.mxu0 %v1856
      %1901 = vmatprep.subr.mxu0 0.0
      %1902 = vmatpush1.msra.mxu0 %v1855
      %1903 = vmatprep.subr.mxu0 0.0
      %1904 = vmatpush1.msra.mxu0 %v1854
      %1905 = vmatprep.subr.mxu0 0.0
      %1906 = vmatpush1.msra.mxu0 %v1853
      %1907 = vmatprep.subr.mxu0 0.0
      %1908 = vmatpush2.msra.mxu0 0.0
      %1909 = vmatprep.subr.mxu0 0.0
      %1910 = vmatpush2.msra.mxu0 0.0
      %1911 = vmatprep.subr.mxu0 0.0
      %1912 = vmatpush2.msra.mxu0 0.0
      %1913 = vmatprep.subr.mxu0 0.0
      %1914 = vmatpush2.msra.mxu0 0.0
      %1915 = vmatprep.subr.mxu0 0.0
      %1916 = vmatpush2.msra.mxu0 0.0
      %1917 = vmatprep.subr.mxu0 0.0
      %1918 = vmatpush2.msra.mxu0 0.0
      %1919 = vmatprep.subr.mxu0 0.0
      %1920 = vmatpush2.msra.mxu0 0.0
      %1921 = vmatprep.subr.mxu0 0.0
      %1922 = vmatpush2.msra.mxu0 0.0
      %1923 = vmatprep.subr.mxu0 0.0
      %1924 = vmatpush2.msra.mxu0 0.0
      %1925 = vmatprep.subr.mxu0 0.0
      %1926 = vmatpush2.msra.mxu0 0.0
      %1927 = vmatprep.subr.mxu0 0.0
      %1928 = vmatpush2.msra.mxu0 0.0
      %1929 = vmatprep.subr.mxu0 0.0
      %1930 = vmatpush2.msra.mxu0 0.0
      %1931 = vmatprep.subr.mxu0 0.0
      %1932 = vmatpush2.msra.mxu0 0.0
      %1933 = vmatprep.subr.mxu0 0.0
      %1934 = vmatpush2.msra.mxu0 0.0
      %1935 = vmatprep.subr.mxu0 0.0
      %1936 = vmatpush2.msra.mxu0 0.0
      %1937 = vmatprep.subr.mxu0 0.0
      %1938 = vmatpush2.msra.mxu0 0.0
      %1939 = vmatprep.mubr.f32.mxu0 0.0
      %1940 = vmatmul.mubr.f32.gmra.mxu0 %v1870
      %v1941 = vpop.f32.mrf.mxu0
      %v1942 = vadd.f32 %v1866, %v1941
      %v1943 = vpop.f32.mrf.mxu0
      %1944 = vmatprep.mubr.f32.mxu0 0.0
      %1945 = vmatmul.mubr.f32.gmra.mxu0 %v1873
      %v1946 = vpop.f32.mrf.mxu0
      %v1947 = vadd.f32 %v1866, %v1946
      %v1948 = vpop.f32.mrf.mxu0
      %1949 = vdwg.mxu0
      %v1950 = vadd.f32 %v1705, %v1942
      %v1951 = vadd.f32 %v1706, %v1947
      %v1952 = vld [vmem:[%s13] sm:$0x1]
      %v1953 = vld [vmem:[%s14] sm:$0x1]
      %v1954 = vsel %vm655, %v1950, 0.0
      %1955 = vadd.xlane.f32.xlu0 %v1954
      %v1956 = vpop.xlane.xlu0 %1955
      %v1957 = vsel %vm655, %v1951, 0.0
      %1958 = vadd.xlane.f32.xlu0 %v1957
      %v1959 = vpop.xlane.xlu0 %1958
      %v1960 = vmul.f32 %v1956, %v1670
      %v1961 = vmul.f32 %v1959, %v1670
      %v1962 = vsub.f32 %v1950, %v1960
      %v1963 = vsub.f32 %v1951, %v1961
      %v1964 = vmul.f32 %v1962, %v1962
      %v1965 = vmul.f32 %v1963, %v1963
      %v1966 = vsel %vm655, %v1964, 0.0
      %1967 = vadd.xlane.f32.xlu0 %v1966
      %v1968 = vpop.xlane.xlu0 %1967
      %v1969 = vsel %vm655, %v1965, 0.0
      %1970 = vadd.xlane.f32.xlu0 %v1969
      %v1971 = vpop.xlane.xlu0 %1970
      %v1972 = vmul.f32 %v1968, %v1670
      %v1973 = vmul.f32 %v1971, %v1670
      %v1974 = vadd.f32 %v1972, 1e-05
      %v1975 = vadd.f32 %v1973, 1e-05
      %v1976 = vrsqrt.pop %v1974
      %v1977 = vrsqrt.pop %v1975
      %v1978 = vmul.f32 %v1962, %v1976
      %v1979 = vmul.f32 %v1963, %v1977
      %v1981 = vlaneseq
      %v1982 = vshrl.u32 %v1981, 7
      %v1983 = vsub.s32 0, %v1982
      %v1984 = vrot.slane %v1952, %v1983
      %v1986 = vmul.f32 %v1978, %v1984
      %v1987 = vmul.f32 %v1979, %v1984
      %v1989 = vlaneseq
      %v1990 = vshrl.u32 %v1989, 7
      %v1991 = vsub.s32 0, %v1990
      %v1992 = vrot.slane %v1953, %v1991
      %v1994 = vadd.f32 %v1986, %v1992
      %v1995 = vadd.f32 %v1987, %v1992
      %s1996 = scalar_lea.vmem %s3, 32
      %v1997 = vld [vmem:[%s1996] sm:$0xff]
      %v1998 = vld [vmem:[%s1996 + $0x8] sm:$0xff]
      %v1999 = vld [vmem:[%s1996 + $0x10] sm:$0xff]
      %v2000 = vld [vmem:[%s1996 + $0x18] sm:$0xff]
      %s2001 = scalar_lea.vmem %s4, 1
      %v2002 = vld [vmem:[%s2001] sm:$0x1]
      %v2004 = vlaneseq
      %v2005 = vshrl.u32 %v2004, 7
      %v2006 = vsub.s32 0, %v2005
      %v2007 = vrot.slane %v2002, %v2006
      %v2010 = vsel %vm655, %v1994, 0
      %v2013 = vsel %vm655, %v1995, 0
      %2015 = vmatprep.subr.mxu0 0.0
      %2016 = vmatpush1.msra.mxu0 0.0
      %2017 = vmatprep.subr.mxu0 0.0
      %2018 = vmatpush1.msra.mxu0 0.0
      %2019 = vmatprep.subr.mxu0 0.0
      %2020 = vmatpush1.msra.mxu0 0.0
      %2021 = vmatprep.subr.mxu0 0.0
      %2022 = vmatpush1.msra.mxu0 0.0
      %2023 = vmatprep.subr.mxu0 0.0
      %2024 = vmatpush1.msra.mxu0 0.0
      %2025 = vmatprep.subr.mxu0 0.0
      %2026 = vmatpush1.msra.mxu0 0.0
      %2027 = vmatprep.subr.mxu0 0.0
      %2028 = vmatpush1.msra.mxu0 0.0
      %2029 = vmatprep.subr.mxu0 0.0
      %2030 = vmatpush1.msra.mxu0 0.0
      %2031 = vmatprep.subr.mxu0 0.0
      %2032 = vmatpush1.msra.mxu0 0.0
      %2033 = vmatprep.subr.mxu0 0.0
      %2034 = vmatpush1.msra.mxu0 0.0
      %2035 = vmatprep.subr.mxu0 0.0
      %2036 = vmatpush1.msra.mxu0 0.0
      %2037 = vmatprep.subr.mxu0 0.0
      %2038 = vmatpush1.msra.mxu0 0.0
      %2039 = vmatprep.subr.mxu0 0.0
      %2040 = vmatpush1.msra.mxu0 %v2000
      %2041 = vmatprep.subr.mxu0 0.0
      %2042 = vmatpush1.msra.mxu0 %v1999
      %2043 = vmatprep.subr.mxu0 0.0
      %2044 = vmatpush1.msra.mxu0 %v1998
      %2045 = vmatprep.subr.mxu0 0.0
      %2046 = vmatpush1.msra.mxu0 %v1997
      %2047 = vmatprep.subr.mxu0 0.0
      %2048 = vmatpush2.msra.mxu0 0.0
      %2049 = vmatprep.subr.mxu0 0.0
      %2050 = vmatpush2.msra.mxu0 0.0
      %2051 = vmatprep.subr.mxu0 0.0
      %2052 = vmatpush2.msra.mxu0 0.0
      %2053 = vmatprep.subr.mxu0 0.0
      %2054 = vmatpush2.msra.mxu0 0.0
      %2055 = vmatprep.subr.mxu0 0.0
      %2056 = vmatpush2.msra.mxu0 0.0
      %2057 = vmatprep.subr.mxu0 0.0
      %2058 = vmatpush2.msra.mxu0 0.0
      %2059 = vmatprep.subr.mxu0 0.0
      %2060 = vmatpush2.msra.mxu0 0.0
      %2061 = vmatprep.subr.mxu0 0.0
      %2062 = vmatpush2.msra.mxu0 0.0
      %2063 = vmatprep.subr.mxu0 0.0
      %2064 = vmatpush2.msra.mxu0 0.0
      %2065 = vmatprep.subr.mxu0 0.0
      %2066 = vmatpush2.msra.mxu0 0.0
      %2067 = vmatprep.subr.mxu0 0.0
      %2068 = vmatpush2.msra.mxu0 0.0
      %2069 = vmatprep.subr.mxu0 0.0
      %2070 = vmatpush2.msra.mxu0 0.0
      %2071 = vmatprep.subr.mxu0 0.0
      %2072 = vmatpush2.msra.mxu0 0.0
      %2073 = vmatprep.subr.mxu0 0.0
      %2074 = vmatpush2.msra.mxu0 0.0
      %2075 = vmatprep.subr.mxu0 0.0
      %2076 = vmatpush2.msra.mxu0 0.0
      %2077 = vmatprep.subr.mxu0 0.0
      %2078 = vmatpush2.msra.mxu0 0.0
      %2079 = vmatprep.mubr.f32.mxu0 0.0
      %2080 = vmatmul.mubr.f32.gmra.mxu0 %v2010
      %v2081 = vpop.f32.mrf.mxu0
      %v2082 = vadd.f32 %v2007, %v2081
      %v2083 = vpop.f32.mrf.mxu0
      %2084 = vmatprep.mubr.f32.mxu0 0.0
      %2085 = vmatmul.mubr.f32.gmra.mxu0 %v2013
      %v2086 = vpop.f32.mrf.mxu0
      %v2087 = vadd.f32 %v2007, %v2086
      %v2088 = vpop.f32.mrf.mxu0
      %2089 = vdwg.mxu0
      %2092 = vrot.lane.b32.xlu0 %v2082, 120
      %v2093 = vpop.permute.xlu0 %2092
      %2094 = vrot.lane.b32.xlu0 %v2087, 120
      %v2095 = vpop.permute.xlu0 %2094
      %2096 = vrot.lane.b32.xlu0 %v2082, 112
      %v2097 = vpop.permute.xlu0 %2096
      %2098 = vrot.lane.b32.xlu0 %v2087, 112
      %v2099 = vpop.permute.xlu0 %2098
      %2100 = vrot.lane.b32.xlu0 %v2082, 104
      %v2101 = vpop.permute.xlu0 %2100
      %2102 = vrot.lane.b32.xlu0 %v2087, 104
      %v2103 = vpop.permute.xlu0 %2102
      %2104 = vrot.lane.b32.xlu0 %v2082, 96
      %v2105 = vpop.permute.xlu0 %2104
      %2106 = vrot.lane.b32.xlu0 %v2087, 96
      %v2107 = vpop.permute.xlu0 %2106
      %v2108 = vsel %vm755, %v2082, 0
      %v2110 = vsel %vm755, %v2087, 0
      %v2112 = vsel %vm755, %v2105, 0
      %v2114 = vsel %vm755, %v2107, 0
      %2116 = vmatprep.subr.mxu0 0.0
      %2117 = vmatpush1.xpose.msra.mxu0 0.0
      %2118 = vmatprep.subr.mxu0 0.0
      %2119 = vmatpush1.xpose.msra.mxu0 0.0
      %2120 = vmatprep.subr.mxu0 0.0
      %2121 = vmatpush1.xpose.msra.mxu0 0.0
      %2122 = vmatprep.subr.mxu0 0.0
      %2123 = vmatpush1.xpose.msra.mxu0 0.0
      %2124 = vmatprep.subr.mxu0 0.0
      %2125 = vmatpush1.xpose.msra.mxu0 0.0
      %2126 = vmatprep.subr.mxu0 0.0
      %2127 = vmatpush1.xpose.msra.mxu0 0.0
      %2128 = vmatprep.subr.mxu0 0.0
      %2129 = vmatpush1.xpose.msra.mxu0 0.0
      %2130 = vmatprep.subr.mxu0 0.0
      %2131 = vmatpush1.xpose.msra.mxu0 0.0
      %2132 = vmatprep.subr.mxu0 0.0
      %2133 = vmatpush1.xpose.msra.mxu0 0.0
      %2134 = vmatprep.subr.mxu0 0.0
      %2135 = vmatpush1.xpose.msra.mxu0 0.0
      %2136 = vmatprep.subr.mxu0 0.0
      %2137 = vmatpush1.xpose.msra.mxu0 0.0
      %2138 = vmatprep.subr.mxu0 0.0
      %2139 = vmatpush1.xpose.msra.mxu0 0.0
      %2140 = vmatprep.subr.mxu0 0.0
      %2141 = vmatpush1.xpose.msra.mxu0 0.0
      %2142 = vmatprep.subr.mxu0 0.0
      %2143 = vmatpush1.xpose.msra.mxu0 0.0
      %2144 = vmatprep.subr.mxu0 0.0
      %2145 = vmatpush1.xpose.msra.mxu0 %v2114
      %2146 = vmatprep.subr.mxu0 0.0
      %2147 = vmatpush1.xpose.msra.mxu0 %v2112
      %2148 = vmatprep.subr.mxu0 0.0
      %2149 = vmatpush2.xpose.msra.mxu0 0.0
      %2150 = vmatprep.subr.mxu0 0.0
      %2151 = vmatpush2.xpose.msra.mxu0 0.0
      %2152 = vmatprep.subr.mxu0 0.0
      %2153 = vmatpush2.xpose.msra.mxu0 0.0
      %2154 = vmatprep.subr.mxu0 0.0
      %2155 = vmatpush2.xpose.msra.mxu0 0.0
      %2156 = vmatprep.subr.mxu0 0.0
      %2157 = vmatpush2.xpose.msra.mxu0 0.0
      %2158 = vmatprep.subr.mxu0 0.0
      %2159 = vmatpush2.xpose.msra.mxu0 0.0
      %2160 = vmatprep.subr.mxu0 0.0
      %2161 = vmatpush2.xpose.msra.mxu0 0.0
      %2162 = vmatprep.subr.mxu0 0.0
      %2163 = vmatpush2.xpose.msra.mxu0 0.0
      %2164 = vmatprep.subr.mxu0 0.0
      %2165 = vmatpush2.xpose.msra.mxu0 0.0
      %2166 = vmatprep.subr.mxu0 0.0
      %2167 = vmatpush2.xpose.msra.mxu0 0.0
      %2168 = vmatprep.subr.mxu0 0.0
      %2169 = vmatpush2.xpose.msra.mxu0 0.0
      %2170 = vmatprep.subr.mxu0 0.0
      %2171 = vmatpush2.xpose.msra.mxu0 0.0
      %2172 = vmatprep.subr.mxu0 0.0
      %2173 = vmatpush2.xpose.msra.mxu0 0.0
      %2174 = vmatprep.subr.mxu0 0.0
      %2175 = vmatpush2.xpose.msra.mxu0 0.0
      %2176 = vmatprep.subr.mxu0 0.0
      %2177 = vmatpush2.xpose.msra.mxu0 0.0
      %2178 = vmatprep.subr.mxu0 0.0
      %2179 = vmatpush2.xpose.msra.mxu0 0.0
      %2180 = vmatprep.mubr.f32.mxu0 0.0
      %2181 = vmatmul.mubr.f32.gmra.mxu0 %v2108
      %v2182 = vpop.f32.mrf.mxu0
      %v2183 = vadd.f32 0.0, %v2182
      %v2184 = vpop.f32.mrf.mxu0
      %2185 = vmatprep.mubr.f32.mxu0 0.0
      %2186 = vmatmul.mubr.f32.gmra.mxu0 %v2110
      %v2187 = vpop.f32.mrf.mxu0
      %v2188 = vadd.f32 0.0, %v2187
      %v2189 = vpop.f32.mrf.mxu0
      %2190 = vdwg.mxu0
      %2191 = vrot.lane.b32.xlu0 %v2093, 96
      %v2192 = vpop.permute.xlu0 %2191
      %2193 = vrot.lane.b32.xlu0 %v2095, 96
      %v2194 = vpop.permute.xlu0 %2193
      %v2195 = vsel %vm755, %v2093, 0
      %v2197 = vsel %vm755, %v2095, 0
      %v2199 = vsel %vm755, %v2192, 0
      %v2201 = vsel %vm755, %v2194, 0
      %2203 = vmatprep.subr.mxu0 0.0
      %2204 = vmatpush1.xpose.msra.mxu0 0.0
      %2205 = vmatprep.subr.mxu0 0.0
      %2206 = vmatpush1.xpose.msra.mxu0 0.0
      %2207 = vmatprep.subr.mxu0 0.0
      %2208 = vmatpush1.xpose.msra.mxu0 0.0
      %2209 = vmatprep.subr.mxu0 0.0
      %2210 = vmatpush1.xpose.msra.mxu0 0.0
      %2211 = vmatprep.subr.mxu0 0.0
      %2212 = vmatpush1.xpose.msra.mxu0 0.0
      %2213 = vmatprep.subr.mxu0 0.0
      %2214 = vmatpush1.xpose.msra.mxu0 0.0
      %2215 = vmatprep.subr.mxu0 0.0
      %2216 = vmatpush1.xpose.msra.mxu0 0.0
      %2217 = vmatprep.subr.mxu0 0.0
      %2218 = vmatpush1.xpose.msra.mxu0 0.0
      %2219 = vmatprep.subr.mxu0 0.0
      %2220 = vmatpush1.xpose.msra.mxu0 0.0
      %2221 = vmatprep.subr.mxu0 0.0
      %2222 = vmatpush1.xpose.msra.mxu0 0.0
      %2223 = vmatprep.subr.mxu0 0.0
      %2224 = vmatpush1.xpose.msra.mxu0 0.0
      %2225 = vmatprep.subr.mxu0 0.0
      %2226 = vmatpush1.xpose.msra.mxu0 0.0
      %2227 = vmatprep.subr.mxu0 0.0
      %2228 = vmatpush1.xpose.msra.mxu0 0.0
      %2229 = vmatprep.subr.mxu0 0.0
      %2230 = vmatpush1.xpose.msra.mxu0 0.0
      %2231 = vmatprep.subr.mxu0 0.0
      %2232 = vmatpush1.xpose.msra.mxu0 %v2201
      %2233 = vmatprep.subr.mxu0 0.0
      %2234 = vmatpush1.xpose.msra.mxu0 %v2199
      %2235 = vmatprep.subr.mxu0 0.0
      %2236 = vmatpush2.xpose.msra.mxu0 0.0
      %2237 = vmatprep.subr.mxu0 0.0
      %2238 = vmatpush2.xpose.msra.mxu0 0.0
      %2239 = vmatprep.subr.mxu0 0.0
      %2240 = vmatpush2.xpose.msra.mxu0 0.0
      %2241 = vmatprep.subr.mxu0 0.0
      %2242 = vmatpush2.xpose.msra.mxu0 0.0
      %2243 = vmatprep.subr.mxu0 0.0
      %2244 = vmatpush2.xpose.msra.mxu0 0.0
      %2245 = vmatprep.subr.mxu0 0.0
      %2246 = vmatpush2.xpose.msra.mxu0 0.0
      %2247 = vmatprep.subr.mxu0 0.0
      %2248 = vmatpush2.xpose.msra.mxu0 0.0
      %2249 = vmatprep.subr.mxu0 0.0
      %2250 = vmatpush2.xpose.msra.mxu0 0.0
      %2251 = vmatprep.subr.mxu0 0.0
      %2252 = vmatpush2.xpose.msra.mxu0 0.0
      %2253 = vmatprep.subr.mxu0 0.0
      %2254 = vmatpush2.xpose.msra.mxu0 0.0
      %2255 = vmatprep.subr.mxu0 0.0
      %2256 = vmatpush2.xpose.msra.mxu0 0.0
      %2257 = vmatprep.subr.mxu0 0.0
      %2258 = vmatpush2.xpose.msra.mxu0 0.0
      %2259 = vmatprep.subr.mxu0 0.0
      %2260 = vmatpush2.xpose.msra.mxu0 0.0
      %2261 = vmatprep.subr.mxu0 0.0
      %2262 = vmatpush2.xpose.msra.mxu0 0.0
      %2263 = vmatprep.subr.mxu0 0.0
      %2264 = vmatpush2.xpose.msra.mxu0 0.0
      %2265 = vmatprep.subr.mxu0 0.0
      %2266 = vmatpush2.xpose.msra.mxu0 0.0
      %2267 = vmatprep.mubr.f32.mxu0 0.0
      %2268 = vmatmul.mubr.f32.gmra.mxu0 %v2195
      %v2269 = vpop.f32.mrf.mxu0
      %v2270 = vadd.f32 0.0, %v2269
      %v2271 = vpop.f32.mrf.mxu0
      %2272 = vmatprep.mubr.f32.mxu0 0.0
      %2273 = vmatmul.mubr.f32.gmra.mxu0 %v2197
      %v2274 = vpop.f32.mrf.mxu0
      %v2275 = vadd.f32 0.0, %v2274
      %v2276 = vpop.f32.mrf.mxu0
      %2277 = vdwg.mxu0
      %2278 = vrot.lane.b32.xlu0 %v2097, 96
      %v2279 = vpop.permute.xlu0 %2278
      %2280 = vrot.lane.b32.xlu0 %v2099, 96
      %v2281 = vpop.permute.xlu0 %2280
      %v2282 = vsel %vm755, %v2097, 0
      %v2284 = vsel %vm755, %v2099, 0
      %v2286 = vsel %vm755, %v2279, 0
      %v2288 = vsel %vm755, %v2281, 0
      %2290 = vmatprep.subr.mxu0 0.0
      %2291 = vmatpush1.xpose.msra.mxu0 0.0
      %2292 = vmatprep.subr.mxu0 0.0
      %2293 = vmatpush1.xpose.msra.mxu0 0.0
      %2294 = vmatprep.subr.mxu0 0.0
      %2295 = vmatpush1.xpose.msra.mxu0 0.0
      %2296 = vmatprep.subr.mxu0 0.0
      %2297 = vmatpush1.xpose.msra.mxu0 0.0
      %2298 = vmatprep.subr.mxu0 0.0
      %2299 = vmatpush1.xpose.msra.mxu0 0.0
      %2300 = vmatprep.subr.mxu0 0.0
      %2301 = vmatpush1.xpose.msra.mxu0 0.0
      %2302 = vmatprep.subr.mxu0 0.0
      %2303 = vmatpush1.xpose.msra.mxu0 0.0
      %2304 = vmatprep.subr.mxu0 0.0
      %2305 = vmatpush1.xpose.msra.mxu0 0.0
      %2306 = vmatprep.subr.mxu0 0.0
      %2307 = vmatpush1.xpose.msra.mxu0 0.0
      %2308 = vmatprep.subr.mxu0 0.0
      %2309 = vmatpush1.xpose.msra.mxu0 0.0
      %2310 = vmatprep.subr.mxu0 0.0
      %2311 = vmatpush1.xpose.msra.mxu0 0.0
      %2312 = vmatprep.subr.mxu0 0.0
      %2313 = vmatpush1.xpose.msra.mxu0 0.0
      %2314 = vmatprep.subr.mxu0 0.0
      %2315 = vmatpush1.xpose.msra.mxu0 0.0
      %2316 = vmatprep.subr.mxu0 0.0
      %2317 = vmatpush1.xpose.msra.mxu0 0.0
      %2318 = vmatprep.subr.mxu0 0.0
      %2319 = vmatpush1.xpose.msra.mxu0 %v2288
      %2320 = vmatprep.subr.mxu0 0.0
      %2321 = vmatpush1.xpose.msra.mxu0 %v2286
      %2322 = vmatprep.subr.mxu0 0.0
      %2323 = vmatpush2.xpose.msra.mxu0 0.0
      %2324 = vmatprep.subr.mxu0 0.0
      %2325 = vmatpush2.xpose.msra.mxu0 0.0
      %2326 = vmatprep.subr.mxu0 0.0
      %2327 = vmatpush2.xpose.msra.mxu0 0.0
      %2328 = vmatprep.subr.mxu0 0.0
      %2329 = vmatpush2.xpose.msra.mxu0 0.0
      %2330 = vmatprep.subr.mxu0 0.0
      %2331 = vmatpush2.xpose.msra.mxu0 0.0
      %2332 = vmatprep.subr.mxu0 0.0
      %2333 = vmatpush2.xpose.msra.mxu0 0.0
      %2334 = vmatprep.subr.mxu0 0.0
      %2335 = vmatpush2.xpose.msra.mxu0 0.0
      %2336 = vmatprep.subr.mxu0 0.0
      %2337 = vmatpush2.xpose.msra.mxu0 0.0
      %2338 = vmatprep.subr.mxu0 0.0
      %2339 = vmatpush2.xpose.msra.mxu0 0.0
      %2340 = vmatprep.subr.mxu0 0.0
      %2341 = vmatpush2.xpose.msra.mxu0 0.0
      %2342 = vmatprep.subr.mxu0 0.0
      %2343 = vmatpush2.xpose.msra.mxu0 0.0
      %2344 = vmatprep.subr.mxu0 0.0
      %2345 = vmatpush2.xpose.msra.mxu0 0.0
      %2346 = vmatprep.subr.mxu0 0.0
      %2347 = vmatpush2.xpose.msra.mxu0 0.0
      %2348 = vmatprep.subr.mxu0 0.0
      %2349 = vmatpush2.xpose.msra.mxu0 0.0
      %2350 = vmatprep.subr.mxu0 0.0
      %2351 = vmatpush2.xpose.msra.mxu0 0.0
      %2352 = vmatprep.subr.mxu0 0.0
      %2353 = vmatpush2.xpose.msra.mxu0 0.0
      %2354 = vmatprep.mubr.f32.mxu0 0.0
      %2355 = vmatmul.mubr.f32.gmra.mxu0 %v2282
      %v2356 = vpop.f32.mrf.mxu0
      %v2357 = vadd.f32 0.0, %v2356
      %v2358 = vpop.f32.mrf.mxu0
      %2359 = vmatprep.mubr.f32.mxu0 0.0
      %2360 = vmatmul.mubr.f32.gmra.mxu0 %v2284
      %v2361 = vpop.f32.mrf.mxu0
      %v2362 = vadd.f32 0.0, %v2361
      %v2363 = vpop.f32.mrf.mxu0
      %2364 = vdwg.mxu0
      %2365 = vrot.lane.b32.xlu0 %v2101, 96
      %v2366 = vpop.permute.xlu0 %2365
      %2367 = vrot.lane.b32.xlu0 %v2103, 96
      %v2368 = vpop.permute.xlu0 %2367
      %v2369 = vsel %vm755, %v2101, 0
      %v2371 = vsel %vm755, %v2103, 0
      %v2373 = vsel %vm755, %v2366, 0
      %v2375 = vsel %vm755, %v2368, 0
      %2377 = vmatprep.subr.mxu0 0.0
      %2378 = vmatpush1.xpose.msra.mxu0 0.0
      %2379 = vmatprep.subr.mxu0 0.0
      %2380 = vmatpush1.xpose.msra.mxu0 0.0
      %2381 = vmatprep.subr.mxu0 0.0
      %2382 = vmatpush1.xpose.msra.mxu0 0.0
      %2383 = vmatprep.subr.mxu0 0.0
      %2384 = vmatpush1.xpose.msra.mxu0 0.0
      %2385 = vmatprep.subr.mxu0 0.0
      %2386 = vmatpush1.xpose.msra.mxu0 0.0
      %2387 = vmatprep.subr.mxu0 0.0
      %2388 = vmatpush1.xpose.msra.mxu0 0.0
      %2389 = vmatprep.subr.mxu0 0.0
      %2390 = vmatpush1.xpose.msra.mxu0 0.0
      %2391 = vmatprep.subr.mxu0 0.0
      %2392 = vmatpush1.xpose.msra.mxu0 0.0
      %2393 = vmatprep.subr.mxu0 0.0
      %2394 = vmatpush1.xpose.msra.mxu0 0.0
      %2395 = vmatprep.subr.mxu0 0.0
      %2396 = vmatpush1.xpose.msra.mxu0 0.0
      %2397 = vmatprep.subr.mxu0 0.0
      %2398 = vmatpush1.xpose.msra.mxu0 0.0
      %2399 = vmatprep.subr.mxu0 0.0
      %2400 = vmatpush1.xpose.msra.mxu0 0.0
      %2401 = vmatprep.subr.mxu0 0.0
      %2402 = vmatpush1.xpose.msra.mxu0 0.0
      %2403 = vmatprep.subr.mxu0 0.0
      %2404 = vmatpush1.xpose.msra.mxu0 0.0
      %2405 = vmatprep.subr.mxu0 0.0
      %2406 = vmatpush1.xpose.msra.mxu0 %v2375
      %2407 = vmatprep.subr.mxu0 0.0
      %2408 = vmatpush1.xpose.msra.mxu0 %v2373
      %2409 = vmatprep.subr.mxu0 0.0
      %2410 = vmatpush2.xpose.msra.mxu0 0.0
      %2411 = vmatprep.subr.mxu0 0.0
      %2412 = vmatpush2.xpose.msra.mxu0 0.0
      %2413 = vmatprep.subr.mxu0 0.0
      %2414 = vmatpush2.xpose.msra.mxu0 0.0
      %2415 = vmatprep.subr.mxu0 0.0
      %2416 = vmatpush2.xpose.msra.mxu0 0.0
      %2417 = vmatprep.subr.mxu0 0.0
      %2418 = vmatpush2.xpose.msra.mxu0 0.0
      %2419 = vmatprep.subr.mxu0 0.0
      %2420 = vmatpush2.xpose.msra.mxu0 0.0
      %2421 = vmatprep.subr.mxu0 0.0
      %2422 = vmatpush2.xpose.msra.mxu0 0.0
      %2423 = vmatprep.subr.mxu0 0.0
      %2424 = vmatpush2.xpose.msra.mxu0 0.0
      %2425 = vmatprep.subr.mxu0 0.0
      %2426 = vmatpush2.xpose.msra.mxu0 0.0
      %2427 = vmatprep.subr.mxu0 0.0
      %2428 = vmatpush2.xpose.msra.mxu0 0.0
      %2429 = vmatprep.subr.mxu0 0.0
      %2430 = vmatpush2.xpose.msra.mxu0 0.0
      %2431 = vmatprep.subr.mxu0 0.0
      %2432 = vmatpush2.xpose.msra.mxu0 0.0
      %2433 = vmatprep.subr.mxu0 0.0
      %2434 = vmatpush2.xpose.msra.mxu0 0.0
      %2435 = vmatprep.subr.mxu0 0.0
      %2436 = vmatpush2.xpose.msra.mxu0 0.0
      %2437 = vmatprep.subr.mxu0 0.0
      %2438 = vmatpush2.xpose.msra.mxu0 0.0
      %2439 = vmatprep.subr.mxu0 0.0
      %2440 = vmatpush2.xpose.msra.mxu0 0.0
      %2441 = vmatprep.mubr.f32.mxu0 0.0
      %2442 = vmatmul.mubr.f32.gmra.mxu0 %v2369
      %v2443 = vpop.f32.mrf.mxu0
      %v2444 = vadd.f32 0.0, %v2443
      %v2445 = vpop.f32.mrf.mxu0
      %2446 = vmatprep.mubr.f32.mxu0 0.0
      %2447 = vmatmul.mubr.f32.gmra.mxu0 %v2371
      %v2448 = vpop.f32.mrf.mxu0
      %v2449 = vadd.f32 0.0, %v2448
      %v2450 = vpop.f32.mrf.mxu0
      %2451 = vdwg.mxu0
      %v2452 = vsel %vm1100, %v2183, -inf
      %2453 = vmax.xlane.f32.xlu0 %v2452
      %v2454 = vpop.xlane.xlu0 %2453
      %v2455 = vsel %vm1100, %v2188, -inf
      %2456 = vmax.xlane.f32.xlu0 %v2455
      %v2457 = vpop.xlane.xlu0 %2456
      %v2458 = vsel %vm1100, %v2270, -inf
      %2459 = vmax.xlane.f32.xlu0 %v2458
      %v2460 = vpop.xlane.xlu0 %2459
      %v2461 = vsel %vm1100, %v2275, -inf
      %2462 = vmax.xlane.f32.xlu0 %v2461
      %v2463 = vpop.xlane.xlu0 %2462
      %v2464 = vsel %vm1100, %v2357, -inf
      %2465 = vmax.xlane.f32.xlu0 %v2464
      %v2466 = vpop.xlane.xlu0 %2465
      %v2467 = vsel %vm1100, %v2362, -inf
      %2468 = vmax.xlane.f32.xlu0 %v2467
      %v2469 = vpop.xlane.xlu0 %2468
      %v2470 = vsel %vm1100, %v2444, -inf
      %2471 = vmax.xlane.f32.xlu0 %v2470
      %v2472 = vpop.xlane.xlu0 %2471
      %v2473 = vsel %vm1100, %v2449, -inf
      %2474 = vmax.xlane.f32.xlu0 %v2473
      %v2475 = vpop.xlane.xlu0 %2474
      %v2476 = vsub.f32 %v2183, %v2454
      %v2477 = vsub.f32 %v2188, %v2457
      %v2478 = vsub.f32 %v2270, %v2460
      %v2479 = vsub.f32 %v2275, %v2463
      %v2480 = vsub.f32 %v2357, %v2466
      %v2481 = vsub.f32 %v2362, %v2469
      %v2482 = vsub.f32 %v2444, %v2472
      %v2483 = vsub.f32 %v2449, %v2475
      %v2484 = vmul.f32 %v2476, 1.442695
      %v2485 = vpow.pop %v2484
      %v2486 = vmul.f32 %v2477, 1.442695
      %v2487 = vpow.pop %v2486
      %v2488 = vmul.f32 %v2478, 1.442695
      %v2489 = vpow.pop %v2488
      %v2490 = vmul.f32 %v2479, 1.442695
      %v2491 = vpow.pop %v2490
      %v2492 = vmul.f32 %v2480, 1.442695
      %v2493 = vpow.pop %v2492
      %v2494 = vmul.f32 %v2481, 1.442695
      %v2495 = vpow.pop %v2494
      %v2496 = vmul.f32 %v2482, 1.442695
      %v2497 = vpow.pop %v2496
      %v2498 = vmul.f32 %v2483, 1.442695
      %v2499 = vpow.pop %v2498
      %v2500 = vsel %vm1100, %v2485, 0.0
      %2501 = vadd.xlane.f32.xlu0 %v2500
      %v2502 = vpop.xlane.xlu0 %2501
      %v2503 = vsel %vm1100, %v2487, 0.0
      %2504 = vadd.xlane.f32.xlu0 %v2503
      %v2505 = vpop.xlane.xlu0 %2504
      %v2506 = vsel %vm1100, %v2489, 0.0
      %2507 = vadd.xlane.f32.xlu0 %v2506
      %v2508 = vpop.xlane.xlu0 %2507
      %v2509 = vsel %vm1100, %v2491, 0.0
      %2510 = vadd.xlane.f32.xlu0 %v2509
      %v2511 = vpop.xlane.xlu0 %2510
      %v2512 = vsel %vm1100, %v2493, 0.0
      %2513 = vadd.xlane.f32.xlu0 %v2512
      %v2514 = vpop.xlane.xlu0 %2513
      %v2515 = vsel %vm1100, %v2495, 0.0
      %2516 = vadd.xlane.f32.xlu0 %v2515
      %v2517 = vpop.xlane.xlu0 %2516
      %v2518 = vsel %vm1100, %v2497, 0.0
      %2519 = vadd.xlane.f32.xlu0 %v2518
      %v2520 = vpop.xlane.xlu0 %2519
      %v2521 = vsel %vm1100, %v2499, 0.0
      %2522 = vadd.xlane.f32.xlu0 %v2521
      %v2523 = vpop.xlane.xlu0 %2522
      %v2524 = vrcp.pop %v2502
      %v2525 = vmul.f32 %v2485, %v2524
      %v2526 = vrcp.pop %v2505
      %v2527 = vmul.f32 %v2487, %v2526
      %v2528 = vrcp.pop %v2508
      %v2529 = vmul.f32 %v2489, %v2528
      %v2530 = vrcp.pop %v2511
      %v2531 = vmul.f32 %v2491, %v2530
      %v2532 = vrcp.pop %v2514
      %v2533 = vmul.f32 %v2493, %v2532
      %v2534 = vrcp.pop %v2517
      %v2535 = vmul.f32 %v2495, %v2534
      %v2536 = vrcp.pop %v2520
      %v2537 = vmul.f32 %v2497, %v2536
      %v2538 = vrcp.pop %v2523
      %v2539 = vmul.f32 %v2499, %v2538
      %2540 = vrot.lane.b32.xlu0 %v2082, 64
      %v2541 = vpop.permute.xlu0 %2540
      %2542 = vrot.lane.b32.xlu0 %v2087, 64
      %v2543 = vpop.permute.xlu0 %2542
      %v2547 = vsel %vm1100, %v2525, 0
      %v2550 = vsel %vm1100, %v2527, 0
      %2552 = vmatprep.subr.mxu0 0.0
      %2553 = vmatpush1.msra.mxu0 0.0
      %2554 = vmatprep.subr.mxu0 0.0
      %2555 = vmatpush1.msra.mxu0 0.0
      %2556 = vmatprep.subr.mxu0 0.0
      %2557 = vmatpush1.msra.mxu0 0.0
      %2558 = vmatprep.subr.mxu0 0.0
      %2559 = vmatpush1.msra.mxu0 0.0
      %2560 = vmatprep.subr.mxu0 0.0
      %2561 = vmatpush1.msra.mxu0 0.0
      %2562 = vmatprep.subr.mxu0 0.0
      %2563 = vmatpush1.msra.mxu0 0.0
      %2564 = vmatprep.subr.mxu0 0.0
      %2565 = vmatpush1.msra.mxu0 0.0
      %2566 = vmatprep.subr.mxu0 0.0
      %2567 = vmatpush1.msra.mxu0 0.0
      %2568 = vmatprep.subr.mxu0 0.0
      %2569 = vmatpush1.msra.mxu0 0.0
      %2570 = vmatprep.subr.mxu0 0.0
      %2571 = vmatpush1.msra.mxu0 0.0
      %2572 = vmatprep.subr.mxu0 0.0
      %2573 = vmatpush1.msra.mxu0 0.0
      %2574 = vmatprep.subr.mxu0 0.0
      %2575 = vmatpush1.msra.mxu0 0.0
      %2576 = vmatprep.subr.mxu0 0.0
      %2577 = vmatpush1.msra.mxu0 0.0
      %2578 = vmatprep.subr.mxu0 0.0
      %2579 = vmatpush1.msra.mxu0 0.0
      %2580 = vmatprep.subr.mxu0 0.0
      %2581 = vmatpush1.msra.mxu0 %v2543
      %2582 = vmatprep.subr.mxu0 0.0
      %2583 = vmatpush1.msra.mxu0 %v2541
      %2584 = vmatprep.subr.mxu0 0.0
      %2585 = vmatpush2.msra.mxu0 0.0
      %2586 = vmatprep.subr.mxu0 0.0
      %2587 = vmatpush2.msra.mxu0 0.0
      %2588 = vmatprep.subr.mxu0 0.0
      %2589 = vmatpush2.msra.mxu0 0.0
      %2590 = vmatprep.subr.mxu0 0.0
      %2591 = vmatpush2.msra.mxu0 0.0
      %2592 = vmatprep.subr.mxu0 0.0
      %2593 = vmatpush2.msra.mxu0 0.0
      %2594 = vmatprep.subr.mxu0 0.0
      %2595 = vmatpush2.msra.mxu0 0.0
      %2596 = vmatprep.subr.mxu0 0.0
      %2597 = vmatpush2.msra.mxu0 0.0
      %2598 = vmatprep.subr.mxu0 0.0
      %2599 = vmatpush2.msra.mxu0 0.0
      %2600 = vmatprep.subr.mxu0 0.0
      %2601 = vmatpush2.msra.mxu0 0.0
      %2602 = vmatprep.subr.mxu0 0.0
      %2603 = vmatpush2.msra.mxu0 0.0
      %2604 = vmatprep.subr.mxu0 0.0
      %2605 = vmatpush2.msra.mxu0 0.0
      %2606 = vmatprep.subr.mxu0 0.0
      %2607 = vmatpush2.msra.mxu0 0.0
      %2608 = vmatprep.subr.mxu0 0.0
      %2609 = vmatpush2.msra.mxu0 0.0
      %2610 = vmatprep.subr.mxu0 0.0
      %2611 = vmatpush2.msra.mxu0 0.0
      %2612 = vmatprep.subr.mxu0 0.0
      %2613 = vmatpush2.msra.mxu0 0.0
      %2614 = vmatprep.subr.mxu0 0.0
      %2615 = vmatpush2.msra.mxu0 0.0
      %2616 = vmatprep.mubr.f32.mxu0 0.0
      %2617 = vmatmul.mubr.f32.gmra.mxu0 %v2547
      %v2618 = vpop.f32.mrf.mxu0
      %v2619 = vadd.f32 0.0, %v2618
      %v2620 = vpop.f32.mrf.mxu0
      %2621 = vmatprep.mubr.f32.mxu0 0.0
      %2622 = vmatmul.mubr.f32.gmra.mxu0 %v2550
      %v2623 = vpop.f32.mrf.mxu0
      %v2624 = vadd.f32 0.0, %v2623
      %v2625 = vpop.f32.mrf.mxu0
      %2626 = vdwg.mxu0
      %2627 = vrot.lane.b32.xlu0 %v2093, 64
      %v2628 = vpop.permute.xlu0 %2627
      %2629 = vrot.lane.b32.xlu0 %v2095, 64
      %v2630 = vpop.permute.xlu0 %2629
      %v2634 = vsel %vm1100, %v2529, 0
      %v2637 = vsel %vm1100, %v2531, 0
      %2639 = vmatprep.subr.mxu0 0.0
      %2640 = vmatpush1.msra.mxu0 0.0
      %2641 = vmatprep.subr.mxu0 0.0
      %2642 = vmatpush1.msra.mxu0 0.0
      %2643 = vmatprep.subr.mxu0 0.0
      %2644 = vmatpush1.msra.mxu0 0.0
      %2645 = vmatprep.subr.mxu0 0.0
      %2646 = vmatpush1.msra.mxu0 0.0
      %2647 = vmatprep.subr.mxu0 0.0
      %2648 = vmatpush1.msra.mxu0 0.0
      %2649 = vmatprep.subr.mxu0 0.0
      %2650 = vmatpush1.msra.mxu0 0.0
      %2651 = vmatprep.subr.mxu0 0.0
      %2652 = vmatpush1.msra.mxu0 0.0
      %2653 = vmatprep.subr.mxu0 0.0
      %2654 = vmatpush1.msra.mxu0 0.0
      %2655 = vmatprep.subr.mxu0 0.0
      %2656 = vmatpush1.msra.mxu0 0.0
      %2657 = vmatprep.subr.mxu0 0.0
      %2658 = vmatpush1.msra.mxu0 0.0
      %2659 = vmatprep.subr.mxu0 0.0
      %2660 = vmatpush1.msra.mxu0 0.0
      %2661 = vmatprep.subr.mxu0 0.0
      %2662 = vmatpush1.msra.mxu0 0.0
      %2663 = vmatprep.subr.mxu0 0.0
      %2664 = vmatpush1.msra.mxu0 0.0
      %2665 = vmatprep.subr.mxu0 0.0
      %2666 = vmatpush1.msra.mxu0 0.0
      %2667 = vmatprep.subr.mxu0 0.0
      %2668 = vmatpush1.msra.mxu0 %v2630
      %2669 = vmatprep.subr.mxu0 0.0
      %2670 = vmatpush1.msra.mxu0 %v2628
      %2671 = vmatprep.subr.mxu0 0.0
      %2672 = vmatpush2.msra.mxu0 0.0
      %2673 = vmatprep.subr.mxu0 0.0
      %2674 = vmatpush2.msra.mxu0 0.0
      %2675 = vmatprep.subr.mxu0 0.0
      %2676 = vmatpush2.msra.mxu0 0.0
      %2677 = vmatprep.subr.mxu0 0.0
      %2678 = vmatpush2.msra.mxu0 0.0
      %2679 = vmatprep.subr.mxu0 0.0
      %2680 = vmatpush2.msra.mxu0 0.0
      %2681 = vmatprep.subr.mxu0 0.0
      %2682 = vmatpush2.msra.mxu0 0.0
      %2683 = vmatprep.subr.mxu0 0.0
      %2684 = vmatpush2.msra.mxu0 0.0
      %2685 = vmatprep.subr.mxu0 0.0
      %2686 = vmatpush2.msra.mxu0 0.0
      %2687 = vmatprep.subr.mxu0 0.0
      %2688 = vmatpush2.msra.mxu0 0.0
      %2689 = vmatprep.subr.mxu0 0.0
      %2690 = vmatpush2.msra.mxu0 0.0
      %2691 = vmatprep.subr.mxu0 0.0
      %2692 = vmatpush2.msra.mxu0 0.0
      %2693 = vmatprep.subr.mxu0 0.0
      %2694 = vmatpush2.msra.mxu0 0.0
      %2695 = vmatprep.subr.mxu0 0.0
      %2696 = vmatpush2.msra.mxu0 0.0
      %2697 = vmatprep.subr.mxu0 0.0
      %2698 = vmatpush2.msra.mxu0 0.0
      %2699 = vmatprep.subr.mxu0 0.0
      %2700 = vmatpush2.msra.mxu0 0.0
      %2701 = vmatprep.subr.mxu0 0.0
      %2702 = vmatpush2.msra.mxu0 0.0
      %2703 = vmatprep.mubr.f32.mxu0 0.0
      %2704 = vmatmul.mubr.f32.gmra.mxu0 %v2634
      %v2705 = vpop.f32.mrf.mxu0
      %v2706 = vadd.f32 0.0, %v2705
      %v2707 = vpop.f32.mrf.mxu0
      %2708 = vmatprep.mubr.f32.mxu0 0.0
      %2709 = vmatmul.mubr.f32.gmra.mxu0 %v2637
      %v2710 = vpop.f32.mrf.mxu0
      %v2711 = vadd.f32 0.0, %v2710
      %v2712 = vpop.f32.mrf.mxu0
      %2713 = vdwg.mxu0
      %2714 = vrot.lane.b32.xlu0 %v2097, 64
      %v2715 = vpop.permute.xlu0 %2714
      %2716 = vrot.lane.b32.xlu0 %v2099, 64
      %v2717 = vpop.permute.xlu0 %2716
      %v2721 = vsel %vm1100, %v2533, 0
      %v2724 = vsel %vm1100, %v2535, 0
      %2726 = vmatprep.subr.mxu0 0.0
      %2727 = vmatpush1.msra.mxu0 0.0
      %2728 = vmatprep.subr.mxu0 0.0
      %2729 = vmatpush1.msra.mxu0 0.0
      %2730 = vmatprep.subr.mxu0 0.0
      %2731 = vmatpush1.msra.mxu0 0.0
      %2732 = vmatprep.subr.mxu0 0.0
      %2733 = vmatpush1.msra.mxu0 0.0
      %2734 = vmatprep.subr.mxu0 0.0
      %2735 = vmatpush1.msra.mxu0 0.0
      %2736 = vmatprep.subr.mxu0 0.0
      %2737 = vmatpush1.msra.mxu0 0.0
      %2738 = vmatprep.subr.mxu0 0.0
      %2739 = vmatpush1.msra.mxu0 0.0
      %2740 = vmatprep.subr.mxu0 0.0
      %2741 = vmatpush1.msra.mxu0 0.0
      %2742 = vmatprep.subr.mxu0 0.0
      %2743 = vmatpush1.msra.mxu0 0.0
      %2744 = vmatprep.subr.mxu0 0.0
      %2745 = vmatpush1.msra.mxu0 0.0
      %2746 = vmatprep.subr.mxu0 0.0
      %2747 = vmatpush1.msra.mxu0 0.0
      %2748 = vmatprep.subr.mxu0 0.0
      %2749 = vmatpush1.msra.mxu0 0.0
      %2750 = vmatprep.subr.mxu0 0.0
      %2751 = vmatpush1.msra.mxu0 0.0
      %2752 = vmatprep.subr.mxu0 0.0
      %2753 = vmatpush1.msra.mxu0 0.0
      %2754 = vmatprep.subr.mxu0 0.0
      %2755 = vmatpush1.msra.mxu0 %v2717
      %2756 = vmatprep.subr.mxu0 0.0
      %2757 = vmatpush1.msra.mxu0 %v2715
      %2758 = vmatprep.subr.mxu0 0.0
      %2759 = vmatpush2.msra.mxu0 0.0
      %2760 = vmatprep.subr.mxu0 0.0
      %2761 = vmatpush2.msra.mxu0 0.0
      %2762 = vmatprep.subr.mxu0 0.0
      %2763 = vmatpush2.msra.mxu0 0.0
      %2764 = vmatprep.subr.mxu0 0.0
      %2765 = vmatpush2.msra.mxu0 0.0
      %2766 = vmatprep.subr.mxu0 0.0
      %2767 = vmatpush2.msra.mxu0 0.0
      %2768 = vmatprep.subr.mxu0 0.0
      %2769 = vmatpush2.msra.mxu0 0.0
      %2770 = vmatprep.subr.mxu0 0.0
      %2771 = vmatpush2.msra.mxu0 0.0
      %2772 = vmatprep.subr.mxu0 0.0
      %2773 = vmatpush2.msra.mxu0 0.0
      %2774 = vmatprep.subr.mxu0 0.0
      %2775 = vmatpush2.msra.mxu0 0.0
      %2776 = vmatprep.subr.mxu0 0.0
      %2777 = vmatpush2.msra.mxu0 0.0
      %2778 = vmatprep.subr.mxu0 0.0
      %2779 = vmatpush2.msra.mxu0 0.0
      %2780 = vmatprep.subr.mxu0 0.0
      %2781 = vmatpush2.msra.mxu0 0.0
      %2782 = vmatprep.subr.mxu0 0.0
      %2783 = vmatpush2.msra.mxu0 0.0
      %2784 = vmatprep.subr.mxu0 0.0
      %2785 = vmatpush2.msra.mxu0 0.0
      %2786 = vmatprep.subr.mxu0 0.0
      %2787 = vmatpush2.msra.mxu0 0.0
      %2788 = vmatprep.subr.mxu0 0.0
      %2789 = vmatpush2.msra.mxu0 0.0
      %2790 = vmatprep.mubr.f32.mxu0 0.0
      %2791 = vmatmul.mubr.f32.gmra.mxu0 %v2721
      %v2792 = vpop.f32.mrf.mxu0
      %v2793 = vadd.f32 0.0, %v2792
      %v2794 = vpop.f32.mrf.mxu0
      %2795 = vmatprep.mubr.f32.mxu0 0.0
      %2796 = vmatmul.mubr.f32.gmra.mxu0 %v2724
      %v2797 = vpop.f32.mrf.mxu0
      %v2798 = vadd.f32 0.0, %v2797
      %v2799 = vpop.f32.mrf.mxu0
      %2800 = vdwg.mxu0
      %2801 = vrot.lane.b32.xlu0 %v2101, 64
      %v2802 = vpop.permute.xlu0 %2801
      %2803 = vrot.lane.b32.xlu0 %v2103, 64
      %v2804 = vpop.permute.xlu0 %2803
      %v2808 = vsel %vm1100, %v2537, 0
      %v2811 = vsel %vm1100, %v2539, 0
      %2813 = vmatprep.subr.mxu0 0.0
      %2814 = vmatpush1.msra.mxu0 0.0
      %2815 = vmatprep.subr.mxu0 0.0
      %2816 = vmatpush1.msra.mxu0 0.0
      %2817 = vmatprep.subr.mxu0 0.0
      %2818 = vmatpush1.msra.mxu0 0.0
      %2819 = vmatprep.subr.mxu0 0.0
      %2820 = vmatpush1.msra.mxu0 0.0
      %2821 = vmatprep.subr.mxu0 0.0
      %2822 = vmatpush1.msra.mxu0 0.0
      %2823 = vmatprep.subr.mxu0 0.0
      %2824 = vmatpush1.msra.mxu0 0.0
      %2825 = vmatprep.subr.mxu0 0.0
      %2826 = vmatpush1.msra.mxu0 0.0
      %2827 = vmatprep.subr.mxu0 0.0
      %2828 = vmatpush1.msra.mxu0 0.0
      %2829 = vmatprep.subr.mxu0 0.0
      %2830 = vmatpush1.msra.mxu0 0.0
      %2831 = vmatprep.subr.mxu0 0.0
      %2832 = vmatpush1.msra.mxu0 0.0
      %2833 = vmatprep.subr.mxu0 0.0
      %2834 = vmatpush1.msra.mxu0 0.0
      %2835 = vmatprep.subr.mxu0 0.0
      %2836 = vmatpush1.msra.mxu0 0.0
      %2837 = vmatprep.subr.mxu0 0.0
      %2838 = vmatpush1.msra.mxu0 0.0
      %2839 = vmatprep.subr.mxu0 0.0
      %2840 = vmatpush1.msra.mxu0 0.0
      %2841 = vmatprep.subr.mxu0 0.0
      %2842 = vmatpush1.msra.mxu0 %v2804
      %2843 = vmatprep.subr.mxu0 0.0
      %2844 = vmatpush1.msra.mxu0 %v2802
      %2845 = vmatprep.subr.mxu0 0.0
      %2846 = vmatpush2.msra.mxu0 0.0
      %2847 = vmatprep.subr.mxu0 0.0
      %2848 = vmatpush2.msra.mxu0 0.0
      %2849 = vmatprep.subr.mxu0 0.0
      %2850 = vmatpush2.msra.mxu0 0.0
      %2851 = vmatprep.subr.mxu0 0.0
      %2852 = vmatpush2.msra.mxu0 0.0
      %2853 = vmatprep.subr.mxu0 0.0
      %2854 = vmatpush2.msra.mxu0 0.0
      %2855 = vmatprep.subr.mxu0 0.0
      %2856 = vmatpush2.msra.mxu0 0.0
      %2857 = vmatprep.subr.mxu0 0.0
      %2858 = vmatpush2.msra.mxu0 0.0
      %2859 = vmatprep.subr.mxu0 0.0
      %2860 = vmatpush2.msra.mxu0 0.0
      %2861 = vmatprep.subr.mxu0 0.0
      %2862 = vmatpush2.msra.mxu0 0.0
      %2863 = vmatprep.subr.mxu0 0.0
      %2864 = vmatpush2.msra.mxu0 0.0
      %2865 = vmatprep.subr.mxu0 0.0
      %2866 = vmatpush2.msra.mxu0 0.0
      %2867 = vmatprep.subr.mxu0 0.0
      %2868 = vmatpush2.msra.mxu0 0.0
      %2869 = vmatprep.subr.mxu0 0.0
      %2870 = vmatpush2.msra.mxu0 0.0
      %2871 = vmatprep.subr.mxu0 0.0
      %2872 = vmatpush2.msra.mxu0 0.0
      %2873 = vmatprep.subr.mxu0 0.0
      %2874 = vmatpush2.msra.mxu0 0.0
      %2875 = vmatprep.subr.mxu0 0.0
      %2876 = vmatpush2.msra.mxu0 0.0
      %2877 = vmatprep.mubr.f32.mxu0 0.0
      %2878 = vmatmul.mubr.f32.gmra.mxu0 %v2808
      %v2879 = vpop.f32.mrf.mxu0
      %v2880 = vadd.f32 0.0, %v2879
      %v2881 = vpop.f32.mrf.mxu0
      %2882 = vmatprep.mubr.f32.mxu0 0.0
      %2883 = vmatmul.mubr.f32.gmra.mxu0 %v2811
      %v2884 = vpop.f32.mrf.mxu0
      %v2885 = vadd.f32 0.0, %v2884
      %v2886 = vpop.f32.mrf.mxu0
      %2887 = vdwg.mxu0
      %2890 = vrot.lane.b32.xlu0 %v2706, 8
      %v2891 = vpop.permute.xlu0 %2890
      %2892 = vrot.lane.b32.xlu0 %v2711, 8
      %v2893 = vpop.permute.xlu0 %2892
      %2898 = vrot.lane.b32.xlu0 %v2793, 16
      %v2899 = vpop.permute.xlu0 %2898
      %2900 = vrot.lane.b32.xlu0 %v2798, 16
      %v2901 = vpop.permute.xlu0 %2900
      %2906 = vrot.lane.b32.xlu0 %v2880, 24
      %v2907 = vpop.permute.xlu0 %2906
      %2908 = vrot.lane.b32.xlu0 %v2885, 24
      %v2909 = vpop.permute.xlu0 %2908
      %v2912 = vsel %vm755, %v2619, %v2891
      %v2913 = vsel %vm755, %v2624, %v2893
      %v2914 = vsel %vm1100, %v2912, %v2899
      %v2915 = vsel %vm1100, %v2913, %v2901
      %v2916 = vsel %vm1565, %v2914, %v2907
      %v2917 = vsel %vm1565, %v2915, %v2909
      %s2918 = scalar_lea.vmem %s5, 32
      %v2919 = vld [vmem:[%s2918] sm:$0xff]
      %v2920 = vld [vmem:[%s2918 + $0x8] sm:$0xff]
      %v2921 = vld [vmem:[%s2918 + $0x10] sm:$0xff]
      %v2922 = vld [vmem:[%s2918 + $0x18] sm:$0xff]
      %s2923 = scalar_lea.vmem %s6, 1
      %v2924 = vld [vmem:[%s2923] sm:$0x1]
      %v2926 = vlaneseq
      %v2927 = vshrl.u32 %v2926, 7
      %v2928 = vsub.s32 0, %v2927
      %v2929 = vrot.slane %v2924, %v2928
      %v2932 = vsel %vm655, %v2916, 0
      %v2935 = vsel %vm655, %v2917, 0
      %2937 = vmatprep.subr.mxu0 0.0
      %2938 = vmatpush1.msra.mxu0 0.0
      %2939 = vmatprep.subr.mxu0 0.0
      %2940 = vmatpush1.msra.mxu0 0.0
      %2941 = vmatprep.subr.mxu0 0.0
      %2942 = vmatpush1.msra.mxu0 0.0
      %2943 = vmatprep.subr.mxu0 0.0
      %2944 = vmatpush1.msra.mxu0 0.0
      %2945 = vmatprep.subr.mxu0 0.0
      %2946 = vmatpush1.msra.mxu0 0.0
      %2947 = vmatprep.subr.mxu0 0.0
      %2948 = vmatpush1.msra.mxu0 0.0
      %2949 = vmatprep.subr.mxu0 0.0
      %2950 = vmatpush1.msra.mxu0 0.0
      %2951 = vmatprep.subr.mxu0 0.0
      %2952 = vmatpush1.msra.mxu0 0.0
      %2953 = vmatprep.subr.mxu0 0.0
      %2954 = vmatpush1.msra.mxu0 0.0
      %2955 = vmatprep.subr.mxu0 0.0
      %2956 = vmatpush1.msra.mxu0 0.0
      %2957 = vmatprep.subr.mxu0 0.0
      %2958 = vmatpush1.msra.mxu0 0.0
      %2959 = vmatprep.subr.mxu0 0.0
      %2960 = vmatpush1.msra.mxu0 0.0
      %2961 = vmatprep.subr.mxu0 0.0
      %2962 = vmatpush1.msra.mxu0 %v2922
      %2963 = vmatprep.subr.mxu0 0.0
      %2964 = vmatpush1.msra.mxu0 %v2921
      %2965 = vmatprep.subr.mxu0 0.0
      %2966 = vmatpush1.msra.mxu0 %v2920
      %2967 = vmatprep.subr.mxu0 0.0
      %2968 = vmatpush1.msra.mxu0 %v2919
      %2969 = vmatprep.subr.mxu0 0.0
      %2970 = vmatpush2.msra.mxu0 0.0
      %2971 = vmatprep.subr.mxu0 0.0
      %2972 = vmatpush2.msra.mxu0 0.0
      %2973 = vmatprep.subr.mxu0 0.0
      %2974 = vmatpush2.msra.mxu0 0.0
      %2975 = vmatprep.subr.mxu0 0.0
      %2976 = vmatpush2.msra.mxu0 0.0
      %2977 = vmatprep.subr.mxu0 0.0
      %2978 = vmatpush2.msra.mxu0 0.0
      %2979 = vmatprep.subr.mxu0 0.0
      %2980 = vmatpush2.msra.mxu0 0.0
      %2981 = vmatprep.subr.mxu0 0.0
      %2982 = vmatpush2.msra.mxu0 0.0
      %2983 = vmatprep.subr.mxu0 0.0
      %2984 = vmatpush2.msra.mxu0 0.0
      %2985 = vmatprep.subr.mxu0 0.0
      %2986 = vmatpush2.msra.mxu0 0.0
      %2987 = vmatprep.subr.mxu0 0.0
      %2988 = vmatpush2.msra.mxu0 0.0
      %2989 = vmatprep.subr.mxu0 0.0
      %2990 = vmatpush2.msra.mxu0 0.0
      %2991 = vmatprep.subr.mxu0 0.0
      %2992 = vmatpush2.msra.mxu0 0.0
      %2993 = vmatprep.subr.mxu0 0.0
      %2994 = vmatpush2.msra.mxu0 0.0
      %2995 = vmatprep.subr.mxu0 0.0
      %2996 = vmatpush2.msra.mxu0 0.0
      %2997 = vmatprep.subr.mxu0 0.0
      %2998 = vmatpush2.msra.mxu0 0.0
      %2999 = vmatprep.subr.mxu0 0.0
      %3000 = vmatpush2.msra.mxu0 0.0
      %3001 = vmatprep.mubr.f32.mxu0 0.0
      %3002 = vmatmul.mubr.f32.gmra.mxu0 %v2932
      %v3003 = vpop.f32.mrf.mxu0
      %v3004 = vadd.f32 %v2929, %v3003
      %v3005 = vpop.f32.mrf.mxu0
      %3006 = vmatprep.mubr.f32.mxu0 0.0
      %3007 = vmatmul.mubr.f32.gmra.mxu0 %v2935
      %v3008 = vpop.f32.mrf.mxu0
      %v3009 = vadd.f32 %v2929, %v3008
      %v3010 = vpop.f32.mrf.mxu0
      %3011 = vdwg.mxu0
      %v3012 = vadd.f32 %v1994, %v3004
      %v3013 = vadd.f32 %v1995, %v3009
      %s3014 = scalar_lea.vmem %s7, 1
      %v3015 = vld [vmem:[%s3014] sm:$0x1]
      %s3016 = scalar_lea.vmem %s8, 1
      %v3017 = vld [vmem:[%s3016] sm:$0x1]
      %v3018 = vsel %vm655, %v3012, 0.0
      %3019 = vadd.xlane.f32.xlu0 %v3018
      %v3020 = vpop.xlane.xlu0 %3019
      %v3021 = vsel %vm655, %v3013, 0.0
      %3022 = vadd.xlane.f32.xlu0 %v3021
      %v3023 = vpop.xlane.xlu0 %3022
      %v3024 = vmul.f32 %v3020, %v1670
      %v3025 = vmul.f32 %v3023, %v1670
      %v3026 = vsub.f32 %v3012, %v3024
      %v3027 = vsub.f32 %v3013, %v3025
      %v3028 = vmul.f32 %v3026, %v3026
      %v3029 = vmul.f32 %v3027, %v3027
      %v3030 = vsel %vm655, %v3028, 0.0
      %3031 = vadd.xlane.f32.xlu0 %v3030
      %v3032 = vpop.xlane.xlu0 %3031
      %v3033 = vsel %vm655, %v3029, 0.0
      %3034 = vadd.xlane.f32.xlu0 %v3033
      %v3035 = vpop.xlane.xlu0 %3034
      %v3036 = vmul.f32 %v3032, %v1670
      %v3037 = vmul.f32 %v3035, %v1670
      %v3038 = vadd.f32 %v3036, 1e-05
      %v3039 = vadd.f32 %v3037, 1e-05
      %v3040 = vrsqrt.pop %v3038
      %v3041 = vrsqrt.pop %v3039
      %v3042 = vmul.f32 %v3026, %v3040
      %v3043 = vmul.f32 %v3027, %v3041
      %v3045 = vlaneseq
      %v3046 = vshrl.u32 %v3045, 7
      %v3047 = vsub.s32 0, %v3046
      %v3048 = vrot.slane %v3015, %v3047
      %v3050 = vmul.f32 %v3042, %v3048
      %v3051 = vmul.f32 %v3043, %v3048
      %v3053 = vlaneseq
      %v3054 = vshrl.u32 %v3053, 7
      %v3055 = vsub.s32 0, %v3054
      %v3056 = vrot.slane %v3017, %v3055
      %v3058 = vadd.f32 %v3050, %v3056
      %v3059 = vadd.f32 %v3051, %v3056
      %s3060 = scalar_lea.vmem %s9, 32
      %v3061 = vld [vmem:[%s3060] sm:$0xff]
      %v3062 = vld [vmem:[%s3060 + $0x8] sm:$0xff]
      %v3063 = vld [vmem:[%s3060 + $0x10] sm:$0xff]
      %v3064 = vld [vmem:[%s3060 + $0x18] sm:$0xff]
      %s3065 = scalar_lea.vmem %s10, 1
      %v3066 = vld [vmem:[%s3065] sm:$0x1]
      %v3068 = vlaneseq
      %v3069 = vshrl.u32 %v3068, 7
      %v3070 = vsub.s32 0, %v3069
      %v3071 = vrot.slane %v3066, %v3070
      %v3074 = vsel %vm655, %v3058, 0
      %v3077 = vsel %vm655, %v3059, 0
      %3079 = vmatprep.subr.mxu0 0.0
      %3080 = vmatpush1.msra.mxu0 0.0
      %3081 = vmatprep.subr.mxu0 0.0
      %3082 = vmatpush1.msra.mxu0 0.0
      %3083 = vmatprep.subr.mxu0 0.0
      %3084 = vmatpush1.msra.mxu0 0.0
      %3085 = vmatprep.subr.mxu0 0.0
      %3086 = vmatpush1.msra.mxu0 0.0
      %3087 = vmatprep.subr.mxu0 0.0
      %3088 = vmatpush1.msra.mxu0 0.0
      %3089 = vmatprep.subr.mxu0 0.0
      %3090 = vmatpush1.msra.mxu0 0.0
      %3091 = vmatprep.subr.mxu0 0.0
      %3092 = vmatpush1.msra.mxu0 0.0
      %3093 = vmatprep.subr.mxu0 0.0
      %3094 = vmatpush1.msra.mxu0 0.0
      %3095 = vmatprep.subr.mxu0 0.0
      %3096 = vmatpush1.msra.mxu0 0.0
      %3097 = vmatprep.subr.mxu0 0.0
      %3098 = vmatpush1.msra.mxu0 0.0
      %3099 = vmatprep.subr.mxu0 0.0
      %3100 = vmatpush1.msra.mxu0 0.0
      %3101 = vmatprep.subr.mxu0 0.0
      %3102 = vmatpush1.msra.mxu0 0.0
      %3103 = vmatprep.subr.mxu0 0.0
      %3104 = vmatpush1.msra.mxu0 %v3064
      %3105 = vmatprep.subr.mxu0 0.0
      %3106 = vmatpush1.msra.mxu0 %v3063
      %3107 = vmatprep.subr.mxu0 0.0
      %3108 = vmatpush1.msra.mxu0 %v3062
      %3109 = vmatprep.subr.mxu0 0.0
      %3110 = vmatpush1.msra.mxu0 %v3061
      %3111 = vmatprep.subr.mxu0 0.0
      %3112 = vmatpush2.msra.mxu0 0.0
      %3113 = vmatprep.subr.mxu0 0.0
      %3114 = vmatpush2.msra.mxu0 0.0
      %3115 = vmatprep.subr.mxu0 0.0
      %3116 = vmatpush2.msra.mxu0 0.0
      %3117 = vmatprep.subr.mxu0 0.0
      %3118 = vmatpush2.msra.mxu0 0.0
      %3119 = vmatprep.subr.mxu0 0.0
      %3120 = vmatpush2.msra.mxu0 0.0
      %3121 = vmatprep.subr.mxu0 0.0
      %3122 = vmatpush2.msra.mxu0 0.0
      %3123 = vmatprep.subr.mxu0 0.0
      %3124 = vmatpush2.msra.mxu0 0.0
      %3125 = vmatprep.subr.mxu0 0.0
      %3126 = vmatpush2.msra.mxu0 0.0
      %3127 = vmatprep.subr.mxu0 0.0
      %3128 = vmatpush2.msra.mxu0 0.0
      %3129 = vmatprep.subr.mxu0 0.0
      %3130 = vmatpush2.msra.mxu0 0.0
      %3131 = vmatprep.subr.mxu0 0.0
      %3132 = vmatpush2.msra.mxu0 0.0
      %3133 = vmatprep.subr.mxu0 0.0
      %3134 = vmatpush2.msra.mxu0 0.0
      %3135 = vmatprep.subr.mxu0 0.0
      %3136 = vmatpush2.msra.mxu0 0.0
      %3137 = vmatprep.subr.mxu0 0.0
      %3138 = vmatpush2.msra.mxu0 0.0
      %3139 = vmatprep.subr.mxu0 0.0
      %3140 = vmatpush2.msra.mxu0 0.0
      %3141 = vmatprep.subr.mxu0 0.0
      %3142 = vmatpush2.msra.mxu0 0.0
      %3143 = vmatprep.mubr.f32.mxu0 0.0
      %3144 = vmatmul.mubr.f32.gmra.mxu0 %v3074
      %v3145 = vpop.f32.mrf.mxu0
      %v3146 = vadd.f32 %v3071, %v3145
      %v3147 = vpop.f32.mrf.mxu0
      %3148 = vmatprep.mubr.f32.mxu0 0.0
      %3149 = vmatmul.mubr.f32.gmra.mxu0 %v3077
      %v3150 = vpop.f32.mrf.mxu0
      %v3151 = vadd.f32 %v3071, %v3150
      %v3152 = vpop.f32.mrf.mxu0
      %3153 = vdwg.mxu0
      %v3154 = vmul.f32 %v3146, 0.5
      %v3155 = vmul.f32 %v3151, 0.5
      %v3156 = vmul.f32 %v3146, 0.70710677
      %v3157 = vmul.f32 %v3151, 0.70710677
      %vm3158 = vcmp.ge.f32.partialorder %v3156, 0.0
      %vm3159 = vcmp.ge.f32.partialorder %v3157, 0.0
      %v3160 = vsel %vm3158, 1.0, -1.0
      %v3161 = vsel %vm3159, 1.0, -1.0
      %v3162 = vand.u32 2147483647, %v3156
      %v3163 = vand.u32 2147483647, %v3157
      %v3164 = vmul.f32 %v3162, 0.3275911
      %v3165 = vmul.f32 %v3163, 0.3275911
      %v3166 = vadd.f32 %v3164, 1.0
      %v3167 = vadd.f32 %v3165, 1.0
      %v3168 = vrcp.pop %v3166
      %v3169 = vmul.f32 1.0, %v3168
      %v3170 = vrcp.pop %v3167
      %v3171 = vmul.f32 1.0, %v3170
      %v3172 = vmul.f32 %v3169, 1.0614054
      %v3173 = vmul.f32 %v3171, 1.0614054
      %v3174 = vadd.f32 %v3172, -1.4531521
      %v3175 = vadd.f32 %v3173, -1.4531521
      %v3176 = vmul.f32 %v3174, %v3169
      %v3177 = vmul.f32 %v3175, %v3171
      %v3178 = vadd.f32 %v3176, 1.4214138
      %v3179 = vadd.f32 %v3177, 1.4214138
      %v3180 = vmul.f32 %v3178, %v3169
      %v3181 = vmul.f32 %v3179, %v3171
      %v3182 = vadd.f32 %v3180, -0.28449672
      %v3183 = vadd.f32 %v3181, -0.28449672
      %v3184 = vmul.f32 %v3182, %v3169
      %v3185 = vmul.f32 %v3183, %v3171
      %v3186 = vadd.f32 %v3184, 0.2548296
      %v3187 = vadd.f32 %v3185, 0.2548296
      %v3188 = vmul.f32 %v3186, %v3169
      %v3189 = vmul.f32 %v3187, %v3171
      %v3190 = vsub.f32 0.0, %v3162
      %v3191 = vsub.f32 0.0, %v3163
      %v3192 = vmul.f32 %v3190, %v3162
      %v3193 = vmul.f32 %v3191, %v3163
      %v3194 = vmul.f32 %v3192, 1.442695
      %v3195 = vpow.pop %v3194
      %v3196 = vmul.f32 %v3193, 1.442695
      %v3197 = vpow.pop %v3196
      %v3198 = vmul.f32 %v3188, %v3195
      %v3199 = vmul.f32 %v3189, %v3197
      %v3200 = vsub.f32 1.0, %v3198
      %v3201 = vsub.f32 1.0, %v3199
      %v3202 = vmul.f32 %v3160, %v3200
      %v3203 = vmul.f32 %v3161, %v3201
      %v3204 = vadd.f32 %v3202, 1.0
      %v3205 = vadd.f32 %v3203, 1.0
      %v3206 = vmul.f32 %v3154, %v3204
      %v3207 = vmul.f32 %v3155, %v3205
      %s3208 = scalar_lea.vmem %s11, 64
      %v3209 = vld [vmem:[%s3208] sm:$0xff]
      %v3210 = vld [vmem:[%s3208 + $0x8] sm:$0xff]
      %v3211 = vld [vmem:[%s3208 + $0x10] sm:$0xff]
      %v3212 = vld [vmem:[%s3208 + $0x18] sm:$0xff]
      %v3213 = vld [vmem:[%s3208 + $0x20] sm:$0xff]
      %v3214 = vld [vmem:[%s3208 + $0x28] sm:$0xff]
      %v3215 = vld [vmem:[%s3208 + $0x30] sm:$0xff]
      %v3216 = vld [vmem:[%s3208 + $0x38] sm:$0xff]
      %s3217 = scalar_lea.vmem %s12, 1
      %v3218 = vld [vmem:[%s3217] sm:$0x1]
      %v3220 = vlaneseq
      %v3221 = vshrl.u32 %v3220, 7
      %v3222 = vsub.s32 0, %v3221
      %v3223 = vrot.slane %v3218, %v3222
      %v3226 = vsel %vm1868, %v3206, 0
      %v3229 = vsel %vm1868, %v3207, 0
      %3231 = vmatprep.subr.mxu0 0.0
      %3232 = vmatpush1.msra.mxu0 0.0
      %3233 = vmatprep.subr.mxu0 0.0
      %3234 = vmatpush1.msra.mxu0 0.0
      %3235 = vmatprep.subr.mxu0 0.0
      %3236 = vmatpush1.msra.mxu0 0.0
      %3237 = vmatprep.subr.mxu0 0.0
      %3238 = vmatpush1.msra.mxu0 0.0
      %3239 = vmatprep.subr.mxu0 0.0
      %3240 = vmatpush1.msra.mxu0 0.0
      %3241 = vmatprep.subr.mxu0 0.0
      %3242 = vmatpush1.msra.mxu0 0.0
      %3243 = vmatprep.subr.mxu0 0.0
      %3244 = vmatpush1.msra.mxu0 0.0
      %3245 = vmatprep.subr.mxu0 0.0
      %3246 = vmatpush1.msra.mxu0 0.0
      %3247 = vmatprep.subr.mxu0 0.0
      %3248 = vmatpush1.msra.mxu0 %v3216
      %3249 = vmatprep.subr.mxu0 0.0
      %3250 = vmatpush1.msra.mxu0 %v3215
      %3251 = vmatprep.subr.mxu0 0.0
      %3252 = vmatpush1.msra.mxu0 %v3214
      %3253 = vmatprep.subr.mxu0 0.0
      %3254 = vmatpush1.msra.mxu0 %v3213
      %3255 = vmatprep.subr.mxu0 0.0
      %3256 = vmatpush1.msra.mxu0 %v3212
      %3257 = vmatprep.subr.mxu0 0.0
      %3258 = vmatpush1.msra.mxu0 %v3211
      %3259 = vmatprep.subr.mxu0 0.0
      %3260 = vmatpush1.msra.mxu0 %v3210
      %3261 = vmatprep.subr.mxu0 0.0
      %3262 = vmatpush1.msra.mxu0 %v3209
      %3263 = vmatprep.subr.mxu0 0.0
      %3264 = vmatpush2.msra.mxu0 0.0
      %3265 = vmatprep.subr.mxu0 0.0
      %3266 = vmatpush2.msra.mxu0 0.0
      %3267 = vmatprep.subr.mxu0 0.0
      %3268 = vmatpush2.msra.mxu0 0.0
      %3269 = vmatprep.subr.mxu0 0.0
      %3270 = vmatpush2.msra.mxu0 0.0
      %3271 = vmatprep.subr.mxu0 0.0
      %3272 = vmatpush2.msra.mxu0 0.0
      %3273 = vmatprep.subr.mxu0 0.0
      %3274 = vmatpush2.msra.mxu0 0.0
      %3275 = vmatprep.subr.mxu0 0.0
      %3276 = vmatpush2.msra.mxu0 0.0
      %3277 = vmatprep.subr.mxu0 0.0
      %3278 = vmatpush2.msra.mxu0 0.0
      %3279 = vmatprep.subr.mxu0 0.0
      %3280 = vmatpush2.msra.mxu0 0.0
      %3281 = vmatprep.subr.mxu0 0.0
      %3282 = vmatpush2.msra.mxu0 0.0
      %3283 = vmatprep.subr.mxu0 0.0
      %3284 = vmatpush2.msra.mxu0 0.0
      %3285 = vmatprep.subr.mxu0 0.0
      %3286 = vmatpush2.msra.mxu0 0.0
      %3287 = vmatprep.subr.mxu0 0.0
      %3288 = vmatpush2.msra.mxu0 0.0
      %3289 = vmatprep.subr.mxu0 0.0
      %3290 = vmatpush2.msra.mxu0 0.0
      %3291 = vmatprep.subr.mxu0 0.0
      %3292 = vmatpush2.msra.mxu0 0.0
      %3293 = vmatprep.subr.mxu0 0.0
      %3294 = vmatpush2.msra.mxu0 0.0
      %3295 = vmatprep.mubr.f32.mxu0 0.0
      %3296 = vmatmul.mubr.f32.gmra.mxu0 %v3226
      %v3297 = vpop.f32.mrf.mxu0
      %v3298 = vadd.f32 %v3223, %v3297
      %v3299 = vpop.f32.mrf.mxu0
      %3300 = vmatprep.mubr.f32.mxu0 0.0
      %3301 = vmatmul.mubr.f32.gmra.mxu0 %v3229
      %v3302 = vpop.f32.mrf.mxu0
      %v3303 = vadd.f32 %v3223, %v3302
      %v3304 = vpop.f32.mrf.mxu0
      %3305 = vdwg.mxu0
      %v3306 = vadd.f32 %v3058, %v3298
      %v3307 = vadd.f32 %v3059, %v3303
      %s3308 = scalar_lea.vmem %s13, 1
      %v3309 = vld [vmem:[%s3308] sm:$0x1]
      %s3310 = scalar_lea.vmem %s14, 1
      %v3311 = vld [vmem:[%s3310] sm:$0x1]
      %v3312 = vsel %vm655, %v3306, 0.0
      %3313 = vadd.xlane.f32.xlu0 %v3312
      %v3314 = vpop.xlane.xlu0 %3313
      %v3315 = vsel %vm655, %v3307, 0.0
      %3316 = vadd.xlane.f32.xlu0 %v3315
      %v3317 = vpop.xlane.xlu0 %3316
      %v3318 = vmul.f32 %v3314, %v1670
      %v3319 = vmul.f32 %v3317, %v1670
      %v3320 = vsub.f32 %v3306, %v3318
      %v3321 = vsub.f32 %v3307, %v3319
      %v3322 = vmul.f32 %v3320, %v3320
      %v3323 = vmul.f32 %v3321, %v3321
      %v3324 = vsel %vm655, %v3322, 0.0
      %3325 = vadd.xlane.f32.xlu0 %v3324
      %v3326 = vpop.xlane.xlu0 %3325
      %v3327 = vsel %vm655, %v3323, 0.0
      %3328 = vadd.xlane.f32.xlu0 %v3327
      %v3329 = vpop.xlane.xlu0 %3328
      %v3330 = vmul.f32 %v3326, %v1670
      %v3331 = vmul.f32 %v3329, %v1670
      %v3332 = vadd.f32 %v3330, 1e-05
      %v3333 = vadd.f32 %v3331, 1e-05
      %v3334 = vrsqrt.pop %v3332
      %v3335 = vrsqrt.pop %v3333
      %v3336 = vmul.f32 %v3320, %v3334
      %v3337 = vmul.f32 %v3321, %v3335
      %v3339 = vlaneseq
      %v3340 = vshrl.u32 %v3339, 7
      %v3341 = vsub.s32 0, %v3340
      %v3342 = vrot.slane %v3309, %v3341
      %v3344 = vmul.f32 %v3336, %v3342
      %v3345 = vmul.f32 %v3337, %v3342
      %v3347 = vlaneseq
      %v3348 = vshrl.u32 %v3347, 7
      %v3349 = vsub.s32 0, %v3348
      %v3350 = vrot.slane %v3311, %v3349
      %v3352 = vadd.f32 %v3344, %v3350
      %v3353 = vadd.f32 %v3345, %v3350
      %s3354 = scalar_lea.vmem %s3, 64
      %v3355 = vld [vmem:[%s3354] sm:$0xff]
      %v3356 = vld [vmem:[%s3354 + $0x8] sm:$0xff]
      %v3357 = vld [vmem:[%s3354 + $0x10] sm:$0xff]
      %v3358 = vld [vmem:[%s3354 + $0x18] sm:$0xff]
      %s3359 = scalar_lea.vmem %s4, 2
      %v3360 = vld [vmem:[%s3359] sm:$0x1]
      %v3362 = vlaneseq
      %v3363 = vshrl.u32 %v3362, 7
      %v3364 = vsub.s32 0, %v3363
      %v3365 = vrot.slane %v3360, %v3364
      %v3368 = vsel %vm655, %v3352, 0
      %v3371 = vsel %vm655, %v3353, 0
      %3373 = vmatprep.subr.mxu0 0.0
      %3374 = vmatpush1.msra.mxu0 0.0
      %3375 = vmatprep.subr.mxu0 0.0
      %3376 = vmatpush1.msra.mxu0 0.0
      %3377 = vmatprep.subr.mxu0 0.0
      %3378 = vmatpush1.msra.mxu0 0.0
      %3379 = vmatprep.subr.mxu0 0.0
      %3380 = vmatpush1.msra.mxu0 0.0
      %3381 = vmatprep.subr.mxu0 0.0
      %3382 = vmatpush1.msra.mxu0 0.0
      %3383 = vmatprep.subr.mxu0 0.0
      %3384 = vmatpush1.msra.mxu0 0.0
      %3385 = vmatprep.subr.mxu0 0.0
      %3386 = vmatpush1.msra.mxu0 0.0
      %3387 = vmatprep.subr.mxu0 0.0
      %3388 = vmatpush1.msra.mxu0 0.0
      %3389 = vmatprep.subr.mxu0 0.0
      %3390 = vmatpush1.msra.mxu0 0.0
      %3391 = vmatprep.subr.mxu0 0.0
      %3392 = vmatpush1.msra.mxu0 0.0
      %3393 = vmatprep.subr.mxu0 0.0
      %3394 = vmatpush1.msra.mxu0 0.0
      %3395 = vmatprep.subr.mxu0 0.0
      %3396 = vmatpush1.msra.mxu0 0.0
      %3397 = vmatprep.subr.mxu0 0.0
      %3398 = vmatpush1.msra.mxu0 %v3358
      %3399 = vmatprep.subr.mxu0 0.0
      %3400 = vmatpush1.msra.mxu0 %v3357
      %3401 = vmatprep.subr.mxu0 0.0
      %3402 = vmatpush1.msra.mxu0 %v3356
      %3403 = vmatprep.subr.mxu0 0.0
      %3404 = vmatpush1.msra.mxu0 %v3355
      %3405 = vmatprep.subr.mxu0 0.0
      %3406 = vmatpush2.msra.mxu0 0.0
      %3407 = vmatprep.subr.mxu0 0.0
      %3408 = vmatpush2.msra.mxu0 0.0
      %3409 = vmatprep.subr.mxu0 0.0
      %3410 = vmatpush2.msra.mxu0 0.0
      %3411 = vmatprep.subr.mxu0 0.0
      %3412 = vmatpush2.msra.mxu0 0.0
      %3413 = vmatprep.subr.mxu0 0.0
      %3414 = vmatpush2.msra.mxu0 0.0
      %3415 = vmatprep.subr.mxu0 0.0
      %3416 = vmatpush2.msra.mxu0 0.0
      %3417 = vmatprep.subr.mxu0 0.0
      %3418 = vmatpush2.msra.mxu0 0.0
      %3419 = vmatprep.subr.mxu0 0.0
      %3420 = vmatpush2.msra.mxu0 0.0
      %3421 = vmatprep.subr.mxu0 0.0
      %3422 = vmatpush2.msra.mxu0 0.0
      %3423 = vmatprep.subr.mxu0 0.0
      %3424 = vmatpush2.msra.mxu0 0.0
      %3425 = vmatprep.subr.mxu0 0.0
      %3426 = vmatpush2.msra.mxu0 0.0
      %3427 = vmatprep.subr.mxu0 0.0
      %3428 = vmatpush2.msra.mxu0 0.0
      %3429 = vmatprep.subr.mxu0 0.0
      %3430 = vmatpush2.msra.mxu0 0.0
      %3431 = vmatprep.subr.mxu0 0.0
      %3432 = vmatpush2.msra.mxu0 0.0
      %3433 = vmatprep.subr.mxu0 0.0
      %3434 = vmatpush2.msra.mxu0 0.0
      %3435 = vmatprep.subr.mxu0 0.0
      %3436 = vmatpush2.msra.mxu0 0.0
      %3437 = vmatprep.mubr.f32.mxu0 0.0
      %3438 = vmatmul.mubr.f32.gmra.mxu0 %v3368
      %v3439 = vpop.f32.mrf.mxu0
      %v3440 = vadd.f32 %v3365, %v3439
      %v3441 = vpop.f32.mrf.mxu0
      %3442 = vmatprep.mubr.f32.mxu0 0.0
      %3443 = vmatmul.mubr.f32.gmra.mxu0 %v3371
      %v3444 = vpop.f32.mrf.mxu0
      %v3445 = vadd.f32 %v3365, %v3444
      %v3446 = vpop.f32.mrf.mxu0
      %3447 = vdwg.mxu0
      %3450 = vrot.lane.b32.xlu0 %v3440, 120
      %v3451 = vpop.permute.xlu0 %3450
      %3452 = vrot.lane.b32.xlu0 %v3445, 120
      %v3453 = vpop.permute.xlu0 %3452
      %3454 = vrot.lane.b32.xlu0 %v3440, 112
      %v3455 = vpop.permute.xlu0 %3454
      %3456 = vrot.lane.b32.xlu0 %v3445, 112
      %v3457 = vpop.permute.xlu0 %3456
      %3458 = vrot.lane.b32.xlu0 %v3440, 104
      %v3459 = vpop.permute.xlu0 %3458
      %3460 = vrot.lane.b32.xlu0 %v3445, 104
      %v3461 = vpop.permute.xlu0 %3460
      %3462 = vrot.lane.b32.xlu0 %v3440, 96
      %v3463 = vpop.permute.xlu0 %3462
      %3464 = vrot.lane.b32.xlu0 %v3445, 96
      %v3465 = vpop.permute.xlu0 %3464
      %v3466 = vsel %vm755, %v3440, 0
      %v3468 = vsel %vm755, %v3445, 0
      %v3470 = vsel %vm755, %v3463, 0
      %v3472 = vsel %vm755, %v3465, 0
      %3474 = vmatprep.subr.mxu0 0.0
      %3475 = vmatpush1.xpose.msra.mxu0 0.0
      %3476 = vmatprep.subr.mxu0 0.0
      %3477 = vmatpush1.xpose.msra.mxu0 0.0
      %3478 = vmatprep.subr.mxu0 0.0
      %3479 = vmatpush1.xpose.msra.mxu0 0.0
      %3480 = vmatprep.subr.mxu0 0.0
      %3481 = vmatpush1.xpose.msra.mxu0 0.0
      %3482 = vmatprep.subr.mxu0 0.0
      %3483 = vmatpush1.xpose.msra.mxu0 0.0
      %3484 = vmatprep.subr.mxu0 0.0
      %3485 = vmatpush1.xpose.msra.mxu0 0.0
      %3486 = vmatprep.subr.mxu0 0.0
      %3487 = vmatpush1.xpose.msra.mxu0 0.0
      %3488 = vmatprep.subr.mxu0 0.0
      %3489 = vmatpush1.xpose.msra.mxu0 0.0
      %3490 = vmatprep.subr.mxu0 0.0
      %3491 = vmatpush1.xpose.msra.mxu0 0.0
      %3492 = vmatprep.subr.mxu0 0.0
      %3493 = vmatpush1.xpose.msra.mxu0 0.0
      %3494 = vmatprep.subr.mxu0 0.0
      %3495 = vmatpush1.xpose.msra.mxu0 0.0
      %3496 = vmatprep.subr.mxu0 0.0
      %3497 = vmatpush1.xpose.msra.mxu0 0.0
      %3498 = vmatprep.subr.mxu0 0.0
      %3499 = vmatpush1.xpose.msra.mxu0 0.0
      %3500 = vmatprep.subr.mxu0 0.0
      %3501 = vmatpush1.xpose.msra.mxu0 0.0
      %3502 = vmatprep.subr.mxu0 0.0
      %3503 = vmatpush1.xpose.msra.mxu0 %v3472
      %3504 = vmatprep.subr.mxu0 0.0
      %3505 = vmatpush1.xpose.msra.mxu0 %v3470
      %3506 = vmatprep.subr.mxu0 0.0
      %3507 = vmatpush2.xpose.msra.mxu0 0.0
      %3508 = vmatprep.subr.mxu0 0.0
      %3509 = vmatpush2.xpose.msra.mxu0 0.0
      %3510 = vmatprep.subr.mxu0 0.0
      %3511 = vmatpush2.xpose.msra.mxu0 0.0
      %3512 = vmatprep.subr.mxu0 0.0
      %3513 = vmatpush2.xpose.msra.mxu0 0.0
      %3514 = vmatprep.subr.mxu0 0.0
      %3515 = vmatpush2.xpose.msra.mxu0 0.0
      %3516 = vmatprep.subr.mxu0 0.0
      %3517 = vmatpush2.xpose.msra.mxu0 0.0
      %3518 = vmatprep.subr.mxu0 0.0
      %3519 = vmatpush2.xpose.msra.mxu0 0.0
      %3520 = vmatprep.subr.mxu0 0.0
      %3521 = vmatpush2.xpose.msra.mxu0 0.0
      %3522 = vmatprep.subr.mxu0 0.0
      %3523 = vmatpush2.xpose.msra.mxu0 0.0
      %3524 = vmatprep.subr.mxu0 0.0
      %3525 = vmatpush2.xpose.msra.mxu0 0.0
      %3526 = vmatprep.subr.mxu0 0.0
      %3527 = vmatpush2.xpose.msra.mxu0 0.0
      %3528 = vmatprep.subr.mxu0 0.0
      %3529 = vmatpush2.xpose.msra.mxu0 0.0
      %3530 = vmatprep.subr.mxu0 0.0
      %3531 = vmatpush2.xpose.msra.mxu0 0.0
      %3532 = vmatprep.subr.mxu0 0.0
      %3533 = vmatpush2.xpose.msra.mxu0 0.0
      %3534 = vmatprep.subr.mxu0 0.0
      %3535 = vmatpush2.xpose.msra.mxu0 0.0
      %3536 = vmatprep.subr.mxu0 0.0
      %3537 = vmatpush2.xpose.msra.mxu0 0.0
      %3538 = vmatprep.mubr.f32.mxu0 0.0
      %3539 = vmatmul.mubr.f32.gmra.mxu0 %v3466
      %v3540 = vpop.f32.mrf.mxu0
      %v3541 = vadd.f32 0.0, %v3540
      %v3542 = vpop.f32.mrf.mxu0
      %3543 = vmatprep.mubr.f32.mxu0 0.0
      %3544 = vmatmul.mubr.f32.gmra.mxu0 %v3468
      %v3545 = vpop.f32.mrf.mxu0
      %v3546 = vadd.f32 0.0, %v3545
      %v3547 = vpop.f32.mrf.mxu0
      %3548 = vdwg.mxu0
      %3549 = vrot.lane.b32.xlu0 %v3451, 96
      %v3550 = vpop.permute.xlu0 %3549
      %3551 = vrot.lane.b32.xlu0 %v3453, 96
      %v3552 = vpop.permute.xlu0 %3551
      %v3553 = vsel %vm755, %v3451, 0
      %v3555 = vsel %vm755, %v3453, 0
      %v3557 = vsel %vm755, %v3550, 0
      %v3559 = vsel %vm755, %v3552, 0
      %3561 = vmatprep.subr.mxu0 0.0
      %3562 = vmatpush1.xpose.msra.mxu0 0.0
      %3563 = vmatprep.subr.mxu0 0.0
      %3564 = vmatpush1.xpose.msra.mxu0 0.0
      %3565 = vmatprep.subr.mxu0 0.0
      %3566 = vmatpush1.xpose.msra.mxu0 0.0
      %3567 = vmatprep.subr.mxu0 0.0
      %3568 = vmatpush1.xpose.msra.mxu0 0.0
      %3569 = vmatprep.subr.mxu0 0.0
      %3570 = vmatpush1.xpose.msra.mxu0 0.0
      %3571 = vmatprep.subr.mxu0 0.0
      %3572 = vmatpush1.xpose.msra.mxu0 0.0
      %3573 = vmatprep.subr.mxu0 0.0
      %3574 = vmatpush1.xpose.msra.mxu0 0.0
      %3575 = vmatprep.subr.mxu0 0.0
      %3576 = vmatpush1.xpose.msra.mxu0 0.0
      %3577 = vmatprep.subr.mxu0 0.0
      %3578 = vmatpush1.xpose.msra.mxu0 0.0
      %3579 = vmatprep.subr.mxu0 0.0
      %3580 = vmatpush1.xpose.msra.mxu0 0.0
      %3581 = vmatprep.subr.mxu0 0.0
      %3582 = vmatpush1.xpose.msra.mxu0 0.0
      %3583 = vmatprep.subr.mxu0 0.0
      %3584 = vmatpush1.xpose.msra.mxu0 0.0
      %3585 = vmatprep.subr.mxu0 0.0
      %3586 = vmatpush1.xpose.msra.mxu0 0.0
      %3587 = vmatprep.subr.mxu0 0.0
      %3588 = vmatpush1.xpose.msra.mxu0 0.0
      %3589 = vmatprep.subr.mxu0 0.0
      %3590 = vmatpush1.xpose.msra.mxu0 %v3559
      %3591 = vmatprep.subr.mxu0 0.0
      %3592 = vmatpush1.xpose.msra.mxu0 %v3557
      %3593 = vmatprep.subr.mxu0 0.0
      %3594 = vmatpush2.xpose.msra.mxu0 0.0
      %3595 = vmatprep.subr.mxu0 0.0
      %3596 = vmatpush2.xpose.msra.mxu0 0.0
      %3597 = vmatprep.subr.mxu0 0.0
      %3598 = vmatpush2.xpose.msra.mxu0 0.0
      %3599 = vmatprep.subr.mxu0 0.0
      %3600 = vmatpush2.xpose.msra.mxu0 0.0
      %3601 = vmatprep.subr.mxu0 0.0
      %3602 = vmatpush2.xpose.msra.mxu0 0.0
      %3603 = vmatprep.subr.mxu0 0.0
      %3604 = vmatpush2.xpose.msra.mxu0 0.0
      %3605 = vmatprep.subr.mxu0 0.0
      %3606 = vmatpush2.xpose.msra.mxu0 0.0
      %3607 = vmatprep.subr.mxu0 0.0
      %3608 = vmatpush2.xpose.msra.mxu0 0.0
      %3609 = vmatprep.subr.mxu0 0.0
      %3610 = vmatpush2.xpose.msra.mxu0 0.0
      %3611 = vmatprep.subr.mxu0 0.0
      %3612 = vmatpush2.xpose.msra.mxu0 0.0
      %3613 = vmatprep.subr.mxu0 0.0
      %3614 = vmatpush2.xpose.msra.mxu0 0.0
      %3615 = vmatprep.subr.mxu0 0.0
      %3616 = vmatpush2.xpose.msra.mxu0 0.0
      %3617 = vmatprep.subr.mxu0 0.0
      %3618 = vmatpush2.xpose.msra.mxu0 0.0
      %3619 = vmatprep.subr.mxu0 0.0
      %3620 = vmatpush2.xpose.msra.mxu0 0.0
      %3621 = vmatprep.subr.mxu0 0.0
      %3622 = vmatpush2.xpose.msra.mxu0 0.0
      %3623 = vmatprep.subr.mxu0 0.0
      %3624 = vmatpush2.xpose.msra.mxu0 0.0
      %3625 = vmatprep.mubr.f32.mxu0 0.0
      %3626 = vmatmul.mubr.f32.gmra.mxu0 %v3553
      %v3627 = vpop.f32.mrf.mxu0
      %v3628 = vadd.f32 0.0, %v3627
      %v3629 = vpop.f32.mrf.mxu0
      %3630 = vmatprep.mubr.f32.mxu0 0.0
      %3631 = vmatmul.mubr.f32.gmra.mxu0 %v3555
      %v3632 = vpop.f32.mrf.mxu0
      %v3633 = vadd.f32 0.0, %v3632
      %v3634 = vpop.f32.mrf.mxu0
      %3635 = vdwg.mxu0
      %3636 = vrot.lane.b32.xlu0 %v3455, 96
      %v3637 = vpop.permute.xlu0 %3636
      %3638 = vrot.lane.b32.xlu0 %v3457, 96
      %v3639 = vpop.permute.xlu0 %3638
      %v3640 = vsel %vm755, %v3455, 0
      %v3642 = vsel %vm755, %v3457, 0
      %v3644 = vsel %vm755, %v3637, 0
      %v3646 = vsel %vm755, %v3639, 0
      %3648 = vmatprep.subr.mxu0 0.0
      %3649 = vmatpush1.xpose.msra.mxu0 0.0
      %3650 = vmatprep.subr.mxu0 0.0
      %3651 = vmatpush1.xpose.msra.mxu0 0.0
      %3652 = vmatprep.subr.mxu0 0.0
      %3653 = vmatpush1.xpose.msra.mxu0 0.0
      %3654 = vmatprep.subr.mxu0 0.0
      %3655 = vmatpush1.xpose.msra.mxu0 0.0
      %3656 = vmatprep.subr.mxu0 0.0
      %3657 = vmatpush1.xpose.msra.mxu0 0.0
      %3658 = vmatprep.subr.mxu0 0.0
      %3659 = vmatpush1.xpose.msra.mxu0 0.0
      %3660 = vmatprep.subr.mxu0 0.0
      %3661 = vmatpush1.xpose.msra.mxu0 0.0
      %3662 = vmatprep.subr.mxu0 0.0
      %3663 = vmatpush1.xpose.msra.mxu0 0.0
      %3664 = vmatprep.subr.mxu0 0.0
      %3665 = vmatpush1.xpose.msra.mxu0 0.0
      %3666 = vmatprep.subr.mxu0 0.0
      %3667 = vmatpush1.xpose.msra.mxu0 0.0
      %3668 = vmatprep.subr.mxu0 0.0
      %3669 = vmatpush1.xpose.msra.mxu0 0.0
      %3670 = vmatprep.subr.mxu0 0.0
      %3671 = vmatpush1.xpose.msra.mxu0 0.0
      %3672 = vmatprep.subr.mxu0 0.0
      %3673 = vmatpush1.xpose.msra.mxu0 0.0
      %3674 = vmatprep.subr.mxu0 0.0
      %3675 = vmatpush1.xpose.msra.mxu0 0.0
      %3676 = vmatprep.subr.mxu0 0.0
      %3677 = vmatpush1.xpose.msra.mxu0 %v3646
      %3678 = vmatprep.subr.mxu0 0.0
      %3679 = vmatpush1.xpose.msra.mxu0 %v3644
      %3680 = vmatprep.subr.mxu0 0.0
      %3681 = vmatpush2.xpose.msra.mxu0 0.0
      %3682 = vmatprep.subr.mxu0 0.0
      %3683 = vmatpush2.xpose.msra.mxu0 0.0
      %3684 = vmatprep.subr.mxu0 0.0
      %3685 = vmatpush2.xpose.msra.mxu0 0.0
      %3686 = vmatprep.subr.mxu0 0.0
      %3687 = vmatpush2.xpose.msra.mxu0 0.0
      %3688 = vmatprep.subr.mxu0 0.0
      %3689 = vmatpush2.xpose.msra.mxu0 0.0
      %3690 = vmatprep.subr.mxu0 0.0
      %3691 = vmatpush2.xpose.msra.mxu0 0.0
      %3692 = vmatprep.subr.mxu0 0.0
      %3693 = vmatpush2.xpose.msra.mxu0 0.0
      %3694 = vmatprep.subr.mxu0 0.0
      %3695 = vmatpush2.xpose.msra.mxu0 0.0
      %3696 = vmatprep.subr.mxu0 0.0
      %3697 = vmatpush2.xpose.msra.mxu0 0.0
      %3698 = vmatprep.subr.mxu0 0.0
      %3699 = vmatpush2.xpose.msra.mxu0 0.0
      %3700 = vmatprep.subr.mxu0 0.0
      %3701 = vmatpush2.xpose.msra.mxu0 0.0
      %3702 = vmatprep.subr.mxu0 0.0
      %3703 = vmatpush2.xpose.msra.mxu0 0.0
      %3704 = vmatprep.subr.mxu0 0.0
      %3705 = vmatpush2.xpose.msra.mxu0 0.0
      %3706 = vmatprep.subr.mxu0 0.0
      %3707 = vmatpush2.xpose.msra.mxu0 0.0
      %3708 = vmatprep.subr.mxu0 0.0
      %3709 = vmatpush2.xpose.msra.mxu0 0.0
      %3710 = vmatprep.subr.mxu0 0.0
      %3711 = vmatpush2.xpose.msra.mxu0 0.0
      %3712 = vmatprep.mubr.f32.mxu0 0.0
      %3713 = vmatmul.mubr.f32.gmra.mxu0 %v3640
      %v3714 = vpop.f32.mrf.mxu0
      %v3715 = vadd.f32 0.0, %v3714
      %v3716 = vpop.f32.mrf.mxu0
      %3717 = vmatprep.mubr.f32.mxu0 0.0
      %3718 = vmatmul.mubr.f32.gmra.mxu0 %v3642
      %v3719 = vpop.f32.mrf.mxu0
      %v3720 = vadd.f32 0.0, %v3719
      %v3721 = vpop.f32.mrf.mxu0
      %3722 = vdwg.mxu0
      %3723 = vrot.lane.b32.xlu0 %v3459, 96
      %v3724 = vpop.permute.xlu0 %3723
      %3725 = vrot.lane.b32.xlu0 %v3461, 96
      %v3726 = vpop.permute.xlu0 %3725
      %v3727 = vsel %vm755, %v3459, 0
      %v3729 = vsel %vm755, %v3461, 0
      %v3731 = vsel %vm755, %v3724, 0
      %v3733 = vsel %vm755, %v3726, 0
      %3735 = vmatprep.subr.mxu0 0.0
      %3736 = vmatpush1.xpose.msra.mxu0 0.0
      %3737 = vmatprep.subr.mxu0 0.0
      %3738 = vmatpush1.xpose.msra.mxu0 0.0
      %3739 = vmatprep.subr.mxu0 0.0
      %3740 = vmatpush1.xpose.msra.mxu0 0.0
      %3741 = vmatprep.subr.mxu0 0.0
      %3742 = vmatpush1.xpose.msra.mxu0 0.0
      %3743 = vmatprep.subr.mxu0 0.0
      %3744 = vmatpush1.xpose.msra.mxu0 0.0
      %3745 = vmatprep.subr.mxu0 0.0
      %3746 = vmatpush1.xpose.msra.mxu0 0.0
      %3747 = vmatprep.subr.mxu0 0.0
      %3748 = vmatpush1.xpose.msra.mxu0 0.0
      %3749 = vmatprep.subr.mxu0 0.0
      %3750 = vmatpush1.xpose.msra.mxu0 0.0
      %3751 = vmatprep.subr.mxu0 0.0
      %3752 = vmatpush1.xpose.msra.mxu0 0.0
      %3753 = vmatprep.subr.mxu0 0.0
      %3754 = vmatpush1.xpose.msra.mxu0 0.0
      %3755 = vmatprep.subr.mxu0 0.0
      %3756 = vmatpush1.xpose.msra.mxu0 0.0
      %3757 = vmatprep.subr.mxu0 0.0
      %3758 = vmatpush1.xpose.msra.mxu0 0.0
      %3759 = vmatprep.subr.mxu0 0.0
      %3760 = vmatpush1.xpose.msra.mxu0 0.0
      %3761 = vmatprep.subr.mxu0 0.0
      %3762 = vmatpush1.xpose.msra.mxu0 0.0
      %3763 = vmatprep.subr.mxu0 0.0
      %3764 = vmatpush1.xpose.msra.mxu0 %v3733
      %3765 = vmatprep.subr.mxu0 0.0
      %3766 = vmatpush1.xpose.msra.mxu0 %v3731
      %3767 = vmatprep.subr.mxu0 0.0
      %3768 = vmatpush2.xpose.msra.mxu0 0.0
      %3769 = vmatprep.subr.mxu0 0.0
      %3770 = vmatpush2.xpose.msra.mxu0 0.0
      %3771 = vmatprep.subr.mxu0 0.0
      %3772 = vmatpush2.xpose.msra.mxu0 0.0
      %3773 = vmatprep.subr.mxu0 0.0
      %3774 = vmatpush2.xpose.msra.mxu0 0.0
      %3775 = vmatprep.subr.mxu0 0.0
      %3776 = vmatpush2.xpose.msra.mxu0 0.0
      %3777 = vmatprep.subr.mxu0 0.0
      %3778 = vmatpush2.xpose.msra.mxu0 0.0
      %3779 = vmatprep.subr.mxu0 0.0
      %3780 = vmatpush2.xpose.msra.mxu0 0.0
      %3781 = vmatprep.subr.mxu0 0.0
      %3782 = vmatpush2.xpose.msra.mxu0 0.0
      %3783 = vmatprep.subr.mxu0 0.0
      %3784 = vmatpush2.xpose.msra.mxu0 0.0
      %3785 = vmatprep.subr.mxu0 0.0
      %3786 = vmatpush2.xpose.msra.mxu0 0.0
      %3787 = vmatprep.subr.mxu0 0.0
      %3788 = vmatpush2.xpose.msra.mxu0 0.0
      %3789 = vmatprep.subr.mxu0 0.0
      %3790 = vmatpush2.xpose.msra.mxu0 0.0
      %3791 = vmatprep.subr.mxu0 0.0
      %3792 = vmatpush2.xpose.msra.mxu0 0.0
      %3793 = vmatprep.subr.mxu0 0.0
      %3794 = vmatpush2.xpose.msra.mxu0 0.0
      %3795 = vmatprep.subr.mxu0 0.0
      %3796 = vmatpush2.xpose.msra.mxu0 0.0
      %3797 = vmatprep.subr.mxu0 0.0
      %3798 = vmatpush2.xpose.msra.mxu0 0.0
      %3799 = vmatprep.mubr.f32.mxu0 0.0
      %3800 = vmatmul.mubr.f32.gmra.mxu0 %v3727
      %v3801 = vpop.f32.mrf.mxu0
      %v3802 = vadd.f32 0.0, %v3801
      %v3803 = vpop.f32.mrf.mxu0
      %3804 = vmatprep.mubr.f32.mxu0 0.0
      %3805 = vmatmul.mubr.f32.gmra.mxu0 %v3729
      %v3806 = vpop.f32.mrf.mxu0
      %v3807 = vadd.f32 0.0, %v3806
      %v3808 = vpop.f32.mrf.mxu0
      %3809 = vdwg.mxu0
      %v3810 = vsel %vm1100, %v3541, -inf
      %3811 = vmax.xlane.f32.xlu0 %v3810
      %v3812 = vpop.xlane.xlu0 %3811
      %v3813 = vsel %vm1100, %v3546, -inf
      %3814 = vmax.xlane.f32.xlu0 %v3813
      %v3815 = vpop.xlane.xlu0 %3814
      %v3816 = vsel %vm1100, %v3628, -inf
      %3817 = vmax.xlane.f32.xlu0 %v3816
      %v3818 = vpop.xlane.xlu0 %3817
      %v3819 = vsel %vm1100, %v3633, -inf
      %3820 = vmax.xlane.f32.xlu0 %v3819
      %v3821 = vpop.xlane.xlu0 %3820
      %v3822 = vsel %vm1100, %v3715, -inf
      %3823 = vmax.xlane.f32.xlu0 %v3822
      %v3824 = vpop.xlane.xlu0 %3823
      %v3825 = vsel %vm1100, %v3720, -inf
      %3826 = vmax.xlane.f32.xlu0 %v3825
      %v3827 = vpop.xlane.xlu0 %3826
      %v3828 = vsel %vm1100, %v3802, -inf
      %3829 = vmax.xlane.f32.xlu0 %v3828
      %v3830 = vpop.xlane.xlu0 %3829
      %v3831 = vsel %vm1100, %v3807, -inf
      %3832 = vmax.xlane.f32.xlu0 %v3831
      %v3833 = vpop.xlane.xlu0 %3832
      %v3834 = vsub.f32 %v3541, %v3812
      %v3835 = vsub.f32 %v3546, %v3815
      %v3836 = vsub.f32 %v3628, %v3818
      %v3837 = vsub.f32 %v3633, %v3821
      %v3838 = vsub.f32 %v3715, %v3824
      %v3839 = vsub.f32 %v3720, %v3827
      %v3840 = vsub.f32 %v3802, %v3830
      %v3841 = vsub.f32 %v3807, %v3833
      %v3842 = vmul.f32 %v3834, 1.442695
      %v3843 = vpow.pop %v3842
      %v3844 = vmul.f32 %v3835, 1.442695
      %v3845 = vpow.pop %v3844
      %v3846 = vmul.f32 %v3836, 1.442695
      %v3847 = vpow.pop %v3846
      %v3848 = vmul.f32 %v3837, 1.442695
      %v3849 = vpow.pop %v3848
      %v3850 = vmul.f32 %v3838, 1.442695
      %v3851 = vpow.pop %v3850
      %v3852 = vmul.f32 %v3839, 1.442695
      %v3853 = vpow.pop %v3852
      %v3854 = vmul.f32 %v3840, 1.442695
      %v3855 = vpow.pop %v3854
      %v3856 = vmul.f32 %v3841, 1.442695
      %v3857 = vpow.pop %v3856
      %v3858 = vsel %vm1100, %v3843, 0.0
      %3859 = vadd.xlane.f32.xlu0 %v3858
      %v3860 = vpop.xlane.xlu0 %3859
      %v3861 = vsel %vm1100, %v3845, 0.0
      %3862 = vadd.xlane.f32.xlu0 %v3861
      %v3863 = vpop.xlane.xlu0 %3862
      %v3864 = vsel %vm1100, %v3847, 0.0
      %3865 = vadd.xlane.f32.xlu0 %v3864
      %v3866 = vpop.xlane.xlu0 %3865
      %v3867 = vsel %vm1100, %v3849, 0.0
      %3868 = vadd.xlane.f32.xlu0 %v3867
      %v3869 = vpop.xlane.xlu0 %3868
      %v3870 = vsel %vm1100, %v3851, 0.0
      %3871 = vadd.xlane.f32.xlu0 %v3870
      %v3872 = vpop.xlane.xlu0 %3871
      %v3873 = vsel %vm1100, %v3853, 0.0
      %3874 = vadd.xlane.f32.xlu0 %v3873
      %v3875 = vpop.xlane.xlu0 %3874
      %v3876 = vsel %vm1100, %v3855, 0.0
      %3877 = vadd.xlane.f32.xlu0 %v3876
      %v3878 = vpop.xlane.xlu0 %3877
      %v3879 = vsel %vm1100, %v3857, 0.0
      %3880 = vadd.xlane.f32.xlu0 %v3879
      %v3881 = vpop.xlane.xlu0 %3880
      %v3882 = vrcp.pop %v3860
      %v3883 = vmul.f32 %v3843, %v3882
      %v3884 = vrcp.pop %v3863
      %v3885 = vmul.f32 %v3845, %v3884
      %v3886 = vrcp.pop %v3866
      %v3887 = vmul.f32 %v3847, %v3886
      %v3888 = vrcp.pop %v3869
      %v3889 = vmul.f32 %v3849, %v3888
      %v3890 = vrcp.pop %v3872
      %v3891 = vmul.f32 %v3851, %v3890
      %v3892 = vrcp.pop %v3875
      %v3893 = vmul.f32 %v3853, %v3892
      %v3894 = vrcp.pop %v3878
      %v3895 = vmul.f32 %v3855, %v3894
      %v3896 = vrcp.pop %v3881
      %v3897 = vmul.f32 %v3857, %v3896
      %3898 = vrot.lane.b32.xlu0 %v3440, 64
      %v3899 = vpop.permute.xlu0 %3898
      %3900 = vrot.lane.b32.xlu0 %v3445, 64
      %v3901 = vpop.permute.xlu0 %3900
      %v3905 = vsel %vm1100, %v3883, 0
      %v3908 = vsel %vm1100, %v3885, 0
      %3910 = vmatprep.subr.mxu0 0.0
      %3911 = vmatpush1.msra.mxu0 0.0
      %3912 = vmatprep.subr.mxu0 0.0
      %3913 = vmatpush1.msra.mxu0 0.0
      %3914 = vmatprep.subr.mxu0 0.0
      %3915 = vmatpush1.msra.mxu0 0.0
      %3916 = vmatprep.subr.mxu0 0.0
      %3917 = vmatpush1.msra.mxu0 0.0
      %3918 = vmatprep.subr.mxu0 0.0
      %3919 = vmatpush1.msra.mxu0 0.0
      %3920 = vmatprep.subr.mxu0 0.0
      %3921 = vmatpush1.msra.mxu0 0.0
      %3922 = vmatprep.subr.mxu0 0.0
      %3923 = vmatpush1.msra.mxu0 0.0
      %3924 = vmatprep.subr.mxu0 0.0
      %3925 = vmatpush1.msra.mxu0 0.0
      %3926 = vmatprep.subr.mxu0 0.0
      %3927 = vmatpush1.msra.mxu0 0.0
      %3928 = vmatprep.subr.mxu0 0.0
      %3929 = vmatpush1.msra.mxu0 0.0
      %3930 = vmatprep.subr.mxu0 0.0
      %3931 = vmatpush1.msra.mxu0 0.0
      %3932 = vmatprep.subr.mxu0 0.0
      %3933 = vmatpush1.msra.mxu0 0.0
      %3934 = vmatprep.subr.mxu0 0.0
      %3935 = vmatpush1.msra.mxu0 0.0
      %3936 = vmatprep.subr.mxu0 0.0
      %3937 = vmatpush1.msra.mxu0 0.0
      %3938 = vmatprep.subr.mxu0 0.0
      %3939 = vmatpush1.msra.mxu0 %v3901
      %3940 = vmatprep.subr.mxu0 0.0
      %3941 = vmatpush1.msra.mxu0 %v3899
      %3942 = vmatprep.subr.mxu0 0.0
      %3943 = vmatpush2.msra.mxu0 0.0
      %3944 = vmatprep.subr.mxu0 0.0
      %3945 = vmatpush2.msra.mxu0 0.0
      %3946 = vmatprep.subr.mxu0 0.0
      %3947 = vmatpush2.msra.mxu0 0.0
      %3948 = vmatprep.subr.mxu0 0.0
      %3949 = vmatpush2.msra.mxu0 0.0
      %3950 = vmatprep.subr.mxu0 0.0
      %3951 = vmatpush2.msra.mxu0 0.0
      %3952 = vmatprep.subr.mxu0 0.0
      %3953 = vmatpush2.msra.mxu0 0.0
      %3954 = vmatprep.subr.mxu0 0.0
      %3955 = vmatpush2.msra.mxu0 0.0
      %3956 = vmatprep.subr.mxu0 0.0
      %3957 = vmatpush2.msra.mxu0 0.0
      %3958 = vmatprep.subr.mxu0 0.0
      %3959 = vmatpush2.msra.mxu0 0.0
      %3960 = vmatprep.subr.mxu0 0.0
      %3961 = vmatpush2.msra.mxu0 0.0
      %3962 = vmatprep.subr.mxu0 0.0
      %3963 = vmatpush2.msra.mxu0 0.0
      %3964 = vmatprep.subr.mxu0 0.0
      %3965 = vmatpush2.msra.mxu0 0.0
      %3966 = vmatprep.subr.mxu0 0.0
      %3967 = vmatpush2.msra.mxu0 0.0
      %3968 = vmatprep.subr.mxu0 0.0
      %3969 = vmatpush2.msra.mxu0 0.0
      %3970 = vmatprep.subr.mxu0 0.0
      %3971 = vmatpush2.msra.mxu0 0.0
      %3972 = vmatprep.subr.mxu0 0.0
      %3973 = vmatpush2.msra.mxu0 0.0
      %3974 = vmatprep.mubr.f32.mxu0 0.0
      %3975 = vmatmul.mubr.f32.gmra.mxu0 %v3905
      %v3976 = vpop.f32.mrf.mxu0
      %v3977 = vadd.f32 0.0, %v3976
      %v3978 = vpop.f32.mrf.mxu0
      %3979 = vmatprep.mubr.f32.mxu0 0.0
      %3980 = vmatmul.mubr.f32.gmra.mxu0 %v3908
      %v3981 = vpop.f32.mrf.mxu0
      %v3982 = vadd.f32 0.0, %v3981
      %v3983 = vpop.f32.mrf.mxu0
      %3984 = vdwg.mxu0
      %3985 = vrot.lane.b32.xlu0 %v3451, 64
      %v3986 = vpop.permute.xlu0 %3985
      %3987 = vrot.lane.b32.xlu0 %v3453, 64
      %v3988 = vpop.permute.xlu0 %3987
      %v3992 = vsel %vm1100, %v3887, 0
      %v3995 = vsel %vm1100, %v3889, 0
      %3997 = vmatprep.subr.mxu0 0.0
      %3998 = vmatpush1.msra.mxu0 0.0
      %3999 = vmatprep.subr.mxu0 0.0
      %4000 = vmatpush1.msra.mxu0 0.0
      %4001 = vmatprep.subr.mxu0 0.0
      %4002 = vmatpush1.msra.mxu0 0.0
      %4003 = vmatprep.subr.mxu0 0.0
      %4004 = vmatpush1.msra.mxu0 0.0
      %4005 = vmatprep.subr.mxu0 0.0
      %4006 = vmatpush1.msra.mxu0 0.0
      %4007 = vmatprep.subr.mxu0 0.0
      %4008 = vmatpush1.msra.mxu0 0.0
      %4009 = vmatprep.subr.mxu0 0.0
      %4010 = vmatpush1.msra.mxu0 0.0
      %4011 = vmatprep.subr.mxu0 0.0
      %4012 = vmatpush1.msra.mxu0 0.0
      %4013 = vmatprep.subr.mxu0 0.0
      %4014 = vmatpush1.msra.mxu0 0.0
      %4015 = vmatprep.subr.mxu0 0.0
      %4016 = vmatpush1.msra.mxu0 0.0
      %4017 = vmatprep.subr.mxu0 0.0
      %4018 = vmatpush1.msra.mxu0 0.0
      %4019 = vmatprep.subr.mxu0 0.0
      %4020 = vmatpush1.msra.mxu0 0.0
      %4021 = vmatprep.subr.mxu0 0.0
      %4022 = vmatpush1.msra.mxu0 0.0
      %4023 = vmatprep.subr.mxu0 0.0
      %4024 = vmatpush1.msra.mxu0 0.0
      %4025 = vmatprep.subr.mxu0 0.0
      %4026 = vmatpush1.msra.mxu0 %v3988
      %4027 = vmatprep.subr.mxu0 0.0
      %4028 = vmatpush1.msra.mxu0 %v3986
      %4029 = vmatprep.subr.mxu0 0.0
      %4030 = vmatpush2.msra.mxu0 0.0
      %4031 = vmatprep.subr.mxu0 0.0
      %4032 = vmatpush2.msra.mxu0 0.0
      %4033 = vmatprep.subr.mxu0 0.0
      %4034 = vmatpush2.msra.mxu0 0.0
      %4035 = vmatprep.subr.mxu0 0.0
      %4036 = vmatpush2.msra.mxu0 0.0
      %4037 = vmatprep.subr.mxu0 0.0
      %4038 = vmatpush2.msra.mxu0 0.0
      %4039 = vmatprep.subr.mxu0 0.0
      %4040 = vmatpush2.msra.mxu0 0.0
      %4041 = vmatprep.subr.mxu0 0.0
      %4042 = vmatpush2.msra.mxu0 0.0
      %4043 = vmatprep.subr.mxu0 0.0
      %4044 = vmatpush2.msra.mxu0 0.0
      %4045 = vmatprep.subr.mxu0 0.0
      %4046 = vmatpush2.msra.mxu0 0.0
      %4047 = vmatprep.subr.mxu0 0.0
      %4048 = vmatpush2.msra.mxu0 0.0
      %4049 = vmatprep.subr.mxu0 0.0
      %4050 = vmatpush2.msra.mxu0 0.0
      %4051 = vmatprep.subr.mxu0 0.0
      %4052 = vmatpush2.msra.mxu0 0.0
      %4053 = vmatprep.subr.mxu0 0.0
      %4054 = vmatpush2.msra.mxu0 0.0
      %4055 = vmatprep.subr.mxu0 0.0
      %4056 = vmatpush2.msra.mxu0 0.0
      %4057 = vmatprep.subr.mxu0 0.0
      %4058 = vmatpush2.msra.mxu0 0.0
      %4059 = vmatprep.subr.mxu0 0.0
      %4060 = vmatpush2.msra.mxu0 0.0
      %4061 = vmatprep.mubr.f32.mxu0 0.0
      %4062 = vmatmul.mubr.f32.gmra.mxu0 %v3992
      %v4063 = vpop.f32.mrf.mxu0
      %v4064 = vadd.f32 0.0, %v4063
      %v4065 = vpop.f32.mrf.mxu0
      %4066 = vmatprep.mubr.f32.mxu0 0.0
      %4067 = vmatmul.mubr.f32.gmra.mxu0 %v3995
      %v4068 = vpop.f32.mrf.mxu0
      %v4069 = vadd.f32 0.0, %v4068
      %v4070 = vpop.f32.mrf.mxu0
      %4071 = vdwg.mxu0
      %4072 = vrot.lane.b32.xlu0 %v3455, 64
      %v4073 = vpop.permute.xlu0 %4072
      %4074 = vrot.lane.b32.xlu0 %v3457, 64
      %v4075 = vpop.permute.xlu0 %4074
      %v4079 = vsel %vm1100, %v3891, 0
      %v4082 = vsel %vm1100, %v3893, 0
      %4084 = vmatprep.subr.mxu0 0.0
      %4085 = vmatpush1.msra.mxu0 0.0
      %4086 = vmatprep.subr.mxu0 0.0
      %4087 = vmatpush1.msra.mxu0 0.0
      %4088 = vmatprep.subr.mxu0 0.0
      %4089 = vmatpush1.msra.mxu0 0.0
      %4090 = vmatprep.subr.mxu0 0.0
      %4091 = vmatpush1.msra.mxu0 0.0
      %4092 = vmatprep.subr.mxu0 0.0
      %4093 = vmatpush1.msra.mxu0 0.0
      %4094 = vmatprep.subr.mxu0 0.0
      %4095 = vmatpush1.msra.mxu0 0.0
      %4096 = vmatprep.subr.mxu0 0.0
      %4097 = vmatpush1.msra.mxu0 0.0
      %4098 = vmatprep.subr.mxu0 0.0
      %4099 = vmatpush1.msra.mxu0 0.0
      %4100 = vmatprep.subr.mxu0 0.0
      %4101 = vmatpush1.msra.mxu0 0.0
      %4102 = vmatprep.subr.mxu0 0.0
      %4103 = vmatpush1.msra.mxu0 0.0
      %4104 = vmatprep.subr.mxu0 0.0
      %4105 = vmatpush1.msra.mxu0 0.0
      %4106 = vmatprep.subr.mxu0 0.0
      %4107 = vmatpush1.msra.mxu0 0.0
      %4108 = vmatprep.subr.mxu0 0.0
      %4109 = vmatpush1.msra.mxu0 0.0
      %4110 = vmatprep.subr.mxu0 0.0
      %4111 = vmatpush1.msra.mxu0 0.0
      %4112 = vmatprep.subr.mxu0 0.0
      %4113 = vmatpush1.msra.mxu0 %v4075
      %4114 = vmatprep.subr.mxu0 0.0
      %4115 = vmatpush1.msra.mxu0 %v4073
      %4116 = vmatprep.subr.mxu0 0.0
      %4117 = vmatpush2.msra.mxu0 0.0
      %4118 = vmatprep.subr.mxu0 0.0
      %4119 = vmatpush2.msra.mxu0 0.0
      %4120 = vmatprep.subr.mxu0 0.0
      %4121 = vmatpush2.msra.mxu0 0.0
      %4122 = vmatprep.subr.mxu0 0.0
      %4123 = vmatpush2.msra.mxu0 0.0
      %4124 = vmatprep.subr.mxu0 0.0
      %4125 = vmatpush2.msra.mxu0 0.0
      %4126 = vmatprep.subr.mxu0 0.0
      %4127 = vmatpush2.msra.mxu0 0.0
      %4128 = vmatprep.subr.mxu0 0.0
      %4129 = vmatpush2.msra.mxu0 0.0
      %4130 = vmatprep.subr.mxu0 0.0
      %4131 = vmatpush2.msra.mxu0 0.0
      %4132 = vmatprep.subr.mxu0 0.0
      %4133 = vmatpush2.msra.mxu0 0.0
      %4134 = vmatprep.subr.mxu0 0.0
      %4135 = vmatpush2.msra.mxu0 0.0
      %4136 = vmatprep.subr.mxu0 0.0
      %4137 = vmatpush2.msra.mxu0 0.0
      %4138 = vmatprep.subr.mxu0 0.0
      %4139 = vmatpush2.msra.mxu0 0.0
      %4140 = vmatprep.subr.mxu0 0.0
      %4141 = vmatpush2.msra.mxu0 0.0
      %4142 = vmatprep.subr.mxu0 0.0
      %4143 = vmatpush2.msra.mxu0 0.0
      %4144 = vmatprep.subr.mxu0 0.0
      %4145 = vmatpush2.msra.mxu0 0.0
      %4146 = vmatprep.subr.mxu0 0.0
      %4147 = vmatpush2.msra.mxu0 0.0
      %4148 = vmatprep.mubr.f32.mxu0 0.0
      %4149 = vmatmul.mubr.f32.gmra.mxu0 %v4079
      %v4150 = vpop.f32.mrf.mxu0
      %v4151 = vadd.f32 0.0, %v4150
      %v4152 = vpop.f32.mrf.mxu0
      %4153 = vmatprep.mubr.f32.mxu0 0.0
      %4154 = vmatmul.mubr.f32.gmra.mxu0 %v4082
      %v4155 = vpop.f32.mrf.mxu0
      %v4156 = vadd.f32 0.0, %v4155
      %v4157 = vpop.f32.mrf.mxu0
      %4158 = vdwg.mxu0
      %4159 = vrot.lane.b32.xlu0 %v3459, 64
      %v4160 = vpop.permute.xlu0 %4159
      %4161 = vrot.lane.b32.xlu0 %v3461, 64
      %v4162 = vpop.permute.xlu0 %4161
      %v4166 = vsel %vm1100, %v3895, 0
      %v4169 = vsel %vm1100, %v3897, 0
      %4171 = vmatprep.subr.mxu0 0.0
      %4172 = vmatpush1.msra.mxu0 0.0
      %4173 = vmatprep.subr.mxu0 0.0
      %4174 = vmatpush1.msra.mxu0 0.0
      %4175 = vmatprep.subr.mxu0 0.0
      %4176 = vmatpush1.msra.mxu0 0.0
      %4177 = vmatprep.subr.mxu0 0.0
      %4178 = vmatpush1.msra.mxu0 0.0
      %4179 = vmatprep.subr.mxu0 0.0
      %4180 = vmatpush1.msra.mxu0 0.0
      %4181 = vmatprep.subr.mxu0 0.0
      %4182 = vmatpush1.msra.mxu0 0.0
      %4183 = vmatprep.subr.mxu0 0.0
      %4184 = vmatpush1.msra.mxu0 0.0
      %4185 = vmatprep.subr.mxu0 0.0
      %4186 = vmatpush1.msra.mxu0 0.0
      %4187 = vmatprep.subr.mxu0 0.0
      %4188 = vmatpush1.msra.mxu0 0.0
      %4189 = vmatprep.subr.mxu0 0.0
      %4190 = vmatpush1.msra.mxu0 0.0
      %4191 = vmatprep.subr.mxu0 0.0
      %4192 = vmatpush1.msra.mxu0 0.0
      %4193 = vmatprep.subr.mxu0 0.0
      %4194 = vmatpush1.msra.mxu0 0.0
      %4195 = vmatprep.subr.mxu0 0.0
      %4196 = vmatpush1.msra.mxu0 0.0
      %4197 = vmatprep.subr.mxu0 0.0
      %4198 = vmatpush1.msra.mxu0 0.0
      %4199 = vmatprep.subr.mxu0 0.0
      %4200 = vmatpush1.msra.mxu0 %v4162
      %4201 = vmatprep.subr.mxu0 0.0
      %4202 = vmatpush1.msra.mxu0 %v4160
      %4203 = vmatprep.subr.mxu0 0.0
      %4204 = vmatpush2.msra.mxu0 0.0
      %4205 = vmatprep.subr.mxu0 0.0
      %4206 = vmatpush2.msra.mxu0 0.0
      %4207 = vmatprep.subr.mxu0 0.0
      %4208 = vmatpush2.msra.mxu0 0.0
      %4209 = vmatprep.subr.mxu0 0.0
      %4210 = vmatpush2.msra.mxu0 0.0
      %4211 = vmatprep.subr.mxu0 0.0
      %4212 = vmatpush2.msra.mxu0 0.0
      %4213 = vmatprep.subr.mxu0 0.0
      %4214 = vmatpush2.msra.mxu0 0.0
      %4215 = vmatprep.subr.mxu0 0.0
      %4216 = vmatpush2.msra.mxu0 0.0
      %4217 = vmatprep.subr.mxu0 0.0
      %4218 = vmatpush2.msra.mxu0 0.0
      %4219 = vmatprep.subr.mxu0 0.0
      %4220 = vmatpush2.msra.mxu0 0.0
      %4221 = vmatprep.subr.mxu0 0.0
      %4222 = vmatpush2.msra.mxu0 0.0
      %4223 = vmatprep.subr.mxu0 0.0
      %4224 = vmatpush2.msra.mxu0 0.0
      %4225 = vmatprep.subr.mxu0 0.0
      %4226 = vmatpush2.msra.mxu0 0.0
      %4227 = vmatprep.subr.mxu0 0.0
      %4228 = vmatpush2.msra.mxu0 0.0
      %4229 = vmatprep.subr.mxu0 0.0
      %4230 = vmatpush2.msra.mxu0 0.0
      %4231 = vmatprep.subr.mxu0 0.0
      %4232 = vmatpush2.msra.mxu0 0.0
      %4233 = vmatprep.subr.mxu0 0.0
      %4234 = vmatpush2.msra.mxu0 0.0
      %4235 = vmatprep.mubr.f32.mxu0 0.0
      %4236 = vmatmul.mubr.f32.gmra.mxu0 %v4166
      %v4237 = vpop.f32.mrf.mxu0
      %v4238 = vadd.f32 0.0, %v4237
      %v4239 = vpop.f32.mrf.mxu0
      %4240 = vmatprep.mubr.f32.mxu0 0.0
      %4241 = vmatmul.mubr.f32.gmra.mxu0 %v4169
      %v4242 = vpop.f32.mrf.mxu0
      %v4243 = vadd.f32 0.0, %v4242
      %v4244 = vpop.f32.mrf.mxu0
      %4245 = vdwg.mxu0
      %4248 = vrot.lane.b32.xlu0 %v4064, 8
      %v4249 = vpop.permute.xlu0 %4248
      %4250 = vrot.lane.b32.xlu0 %v4069, 8
      %v4251 = vpop.permute.xlu0 %4250
      %4256 = vrot.lane.b32.xlu0 %v4151, 16
      %v4257 = vpop.permute.xlu0 %4256
      %4258 = vrot.lane.b32.xlu0 %v4156, 16
      %v4259 = vpop.permute.xlu0 %4258
      %4264 = vrot.lane.b32.xlu0 %v4238, 24
      %v4265 = vpop.permute.xlu0 %4264
      %4266 = vrot.lane.b32.xlu0 %v4243, 24
      %v4267 = vpop.permute.xlu0 %4266
      %v4270 = vsel %vm755, %v3977, %v4249
      %v4271 = vsel %vm755, %v3982, %v4251
      %v4272 = vsel %vm1100, %v4270, %v4257
      %v4273 = vsel %vm1100, %v4271, %v4259
      %v4274 = vsel %vm1565, %v4272, %v4265
      %v4275 = vsel %vm1565, %v4273, %v4267
      %s4276 = scalar_lea.vmem %s5, 64
      %v4277 = vld [vmem:[%s4276] sm:$0xff]
      %v4278 = vld [vmem:[%s4276 + $0x8] sm:$0xff]
      %v4279 = vld [vmem:[%s4276 + $0x10] sm:$0xff]
      %v4280 = vld [vmem:[%s4276 + $0x18] sm:$0xff]
      %s4281 = scalar_lea.vmem %s6, 2
      %v4282 = vld [vmem:[%s4281] sm:$0x1]
      %v4284 = vlaneseq
      %v4285 = vshrl.u32 %v4284, 7
      %v4286 = vsub.s32 0, %v4285
      %v4287 = vrot.slane %v4282, %v4286
      %v4290 = vsel %vm655, %v4274, 0
      %v4293 = vsel %vm655, %v4275, 0
      %4295 = vmatprep.subr.mxu0 0.0
      %4296 = vmatpush1.msra.mxu0 0.0
      %4297 = vmatprep.subr.mxu0 0.0
      %4298 = vmatpush1.msra.mxu0 0.0
      %4299 = vmatprep.subr.mxu0 0.0
      %4300 = vmatpush1.msra.mxu0 0.0
      %4301 = vmatprep.subr.mxu0 0.0
      %4302 = vmatpush1.msra.mxu0 0.0
      %4303 = vmatprep.subr.mxu0 0.0
      %4304 = vmatpush1.msra.mxu0 0.0
      %4305 = vmatprep.subr.mxu0 0.0
      %4306 = vmatpush1.msra.mxu0 0.0
      %4307 = vmatprep.subr.mxu0 0.0
      %4308 = vmatpush1.msra.mxu0 0.0
      %4309 = vmatprep.subr.mxu0 0.0
      %4310 = vmatpush1.msra.mxu0 0.0
      %4311 = vmatprep.subr.mxu0 0.0
      %4312 = vmatpush1.msra.mxu0 0.0
      %4313 = vmatprep.subr.mxu0 0.0
      %4314 = vmatpush1.msra.mxu0 0.0
      %4315 = vmatprep.subr.mxu0 0.0
      %4316 = vmatpush1.msra.mxu0 0.0
      %4317 = vmatprep.subr.mxu0 0.0
      %4318 = vmatpush1.msra.mxu0 0.0
      %4319 = vmatprep.subr.mxu0 0.0
      %4320 = vmatpush1.msra.mxu0 %v4280
      %4321 = vmatprep.subr.mxu0 0.0
      %4322 = vmatpush1.msra.mxu0 %v4279
      %4323 = vmatprep.subr.mxu0 0.0
      %4324 = vmatpush1.msra.mxu0 %v4278
      %4325 = vmatprep.subr.mxu0 0.0
      %4326 = vmatpush1.msra.mxu0 %v4277
      %4327 = vmatprep.subr.mxu0 0.0
      %4328 = vmatpush2.msra.mxu0 0.0
      %4329 = vmatprep.subr.mxu0 0.0
      %4330 = vmatpush2.msra.mxu0 0.0
      %4331 = vmatprep.subr.mxu0 0.0
      %4332 = vmatpush2.msra.mxu0 0.0
      %4333 = vmatprep.subr.mxu0 0.0
      %4334 = vmatpush2.msra.mxu0 0.0
      %4335 = vmatprep.subr.mxu0 0.0
      %4336 = vmatpush2.msra.mxu0 0.0
      %4337 = vmatprep.subr.mxu0 0.0
      %4338 = vmatpush2.msra.mxu0 0.0
      %4339 = vmatprep.subr.mxu0 0.0
      %4340 = vmatpush2.msra.mxu0 0.0
      %4341 = vmatprep.subr.mxu0 0.0
      %4342 = vmatpush2.msra.mxu0 0.0
      %4343 = vmatprep.subr.mxu0 0.0
      %4344 = vmatpush2.msra.mxu0 0.0
      %4345 = vmatprep.subr.mxu0 0.0
      %4346 = vmatpush2.msra.mxu0 0.0
      %4347 = vmatprep.subr.mxu0 0.0
      %4348 = vmatpush2.msra.mxu0 0.0
      %4349 = vmatprep.subr.mxu0 0.0
      %4350 = vmatpush2.msra.mxu0 0.0
      %4351 = vmatprep.subr.mxu0 0.0
      %4352 = vmatpush2.msra.mxu0 0.0
      %4353 = vmatprep.subr.mxu0 0.0
      %4354 = vmatpush2.msra.mxu0 0.0
      %4355 = vmatprep.subr.mxu0 0.0
      %4356 = vmatpush2.msra.mxu0 0.0
      %4357 = vmatprep.subr.mxu0 0.0
      %4358 = vmatpush2.msra.mxu0 0.0
      %4359 = vmatprep.mubr.f32.mxu0 0.0
      %4360 = vmatmul.mubr.f32.gmra.mxu0 %v4290
      %v4361 = vpop.f32.mrf.mxu0
      %v4362 = vadd.f32 %v4287, %v4361
      %v4363 = vpop.f32.mrf.mxu0
      %4364 = vmatprep.mubr.f32.mxu0 0.0
      %4365 = vmatmul.mubr.f32.gmra.mxu0 %v4293
      %v4366 = vpop.f32.mrf.mxu0
      %v4367 = vadd.f32 %v4287, %v4366
      %v4368 = vpop.f32.mrf.mxu0
      %4369 = vdwg.mxu0
      %v4370 = vadd.f32 %v3352, %v4362
      %v4371 = vadd.f32 %v3353, %v4367
      %s4372 = scalar_lea.vmem %s7, 2
      %v4373 = vld [vmem:[%s4372] sm:$0x1]
      %s4374 = scalar_lea.vmem %s8, 2
      %v4375 = vld [vmem:[%s4374] sm:$0x1]
      %v4376 = vsel %vm655, %v4370, 0.0
      %4377 = vadd.xlane.f32.xlu0 %v4376
      %v4378 = vpop.xlane.xlu0 %4377
      %v4379 = vsel %vm655, %v4371, 0.0
      %4380 = vadd.xlane.f32.xlu0 %v4379
      %v4381 = vpop.xlane.xlu0 %4380
      %v4382 = vmul.f32 %v4378, %v1670
      %v4383 = vmul.f32 %v4381, %v1670
      %v4384 = vsub.f32 %v4370, %v4382
      %v4385 = vsub.f32 %v4371, %v4383
      %v4386 = vmul.f32 %v4384, %v4384
      %v4387 = vmul.f32 %v4385, %v4385
      %v4388 = vsel %vm655, %v4386, 0.0
      %4389 = vadd.xlane.f32.xlu0 %v4388
      %v4390 = vpop.xlane.xlu0 %4389
      %v4391 = vsel %vm655, %v4387, 0.0
      %4392 = vadd.xlane.f32.xlu0 %v4391
      %v4393 = vpop.xlane.xlu0 %4392
      %v4394 = vmul.f32 %v4390, %v1670
      %v4395 = vmul.f32 %v4393, %v1670
      %v4396 = vadd.f32 %v4394, 1e-05
      %v4397 = vadd.f32 %v4395, 1e-05
      %v4398 = vrsqrt.pop %v4396
      %v4399 = vrsqrt.pop %v4397
      %v4400 = vmul.f32 %v4384, %v4398
      %v4401 = vmul.f32 %v4385, %v4399
      %v4403 = vlaneseq
      %v4404 = vshrl.u32 %v4403, 7
      %v4405 = vsub.s32 0, %v4404
      %v4406 = vrot.slane %v4373, %v4405
      %v4408 = vmul.f32 %v4400, %v4406
      %v4409 = vmul.f32 %v4401, %v4406
      %v4411 = vlaneseq
      %v4412 = vshrl.u32 %v4411, 7
      %v4413 = vsub.s32 0, %v4412
      %v4414 = vrot.slane %v4375, %v4413
      %v4416 = vadd.f32 %v4408, %v4414
      %v4417 = vadd.f32 %v4409, %v4414
      %s4418 = scalar_lea.vmem %s9, 64
      %v4419 = vld [vmem:[%s4418] sm:$0xff]
      %v4420 = vld [vmem:[%s4418 + $0x8] sm:$0xff]
      %v4421 = vld [vmem:[%s4418 + $0x10] sm:$0xff]
      %v4422 = vld [vmem:[%s4418 + $0x18] sm:$0xff]
      %s4423 = scalar_lea.vmem %s10, 2
      %v4424 = vld [vmem:[%s4423] sm:$0x1]
      %v4426 = vlaneseq
      %v4427 = vshrl.u32 %v4426, 7
      %v4428 = vsub.s32 0, %v4427
      %v4429 = vrot.slane %v4424, %v4428
      %v4432 = vsel %vm655, %v4416, 0
      %v4435 = vsel %vm655, %v4417, 0
      %4437 = vmatprep.subr.mxu0 0.0
      %4438 = vmatpush1.msra.mxu0 0.0
      %4439 = vmatprep.subr.mxu0 0.0
      %4440 = vmatpush1.msra.mxu0 0.0
      %4441 = vmatprep.subr.mxu0 0.0
      %4442 = vmatpush1.msra.mxu0 0.0
      %4443 = vmatprep.subr.mxu0 0.0
      %4444 = vmatpush1.msra.mxu0 0.0
      %4445 = vmatprep.subr.mxu0 0.0
      %4446 = vmatpush1.msra.mxu0 0.0
      %4447 = vmatprep.subr.mxu0 0.0
      %4448 = vmatpush1.msra.mxu0 0.0
      %4449 = vmatprep.subr.mxu0 0.0
      %4450 = vmatpush1.msra.mxu0 0.0
      %4451 = vmatprep.subr.mxu0 0.0
      %4452 = vmatpush1.msra.mxu0 0.0
      %4453 = vmatprep.subr.mxu0 0.0
      %4454 = vmatpush1.msra.mxu0 0.0
      %4455 = vmatprep.subr.mxu0 0.0
      %4456 = vmatpush1.msra.mxu0 0.0
      %4457 = vmatprep.subr.mxu0 0.0
      %4458 = vmatpush1.msra.mxu0 0.0
      %4459 = vmatprep.subr.mxu0 0.0
      %4460 = vmatpush1.msra.mxu0 0.0
      %4461 = vmatprep.subr.mxu0 0.0
      %4462 = vmatpush1.msra.mxu0 %v4422
      %4463 = vmatprep.subr.mxu0 0.0
      %4464 = vmatpush1.msra.mxu0 %v4421
      %4465 = vmatprep.subr.mxu0 0.0
      %4466 = vmatpush1.msra.mxu0 %v4420
      %4467 = vmatprep.subr.mxu0 0.0
      %4468 = vmatpush1.msra.mxu0 %v4419
      %4469 = vmatprep.subr.mxu0 0.0
      %4470 = vmatpush2.msra.mxu0 0.0
      %4471 = vmatprep.subr.mxu0 0.0
      %4472 = vmatpush2.msra.mxu0 0.0
      %4473 = vmatprep.subr.mxu0 0.0
      %4474 = vmatpush2.msra.mxu0 0.0
      %4475 = vmatprep.subr.mxu0 0.0
      %4476 = vmatpush2.msra.mxu0 0.0
      %4477 = vmatprep.subr.mxu0 0.0
      %4478 = vmatpush2.msra.mxu0 0.0
      %4479 = vmatprep.subr.mxu0 0.0
      %4480 = vmatpush2.msra.mxu0 0.0
      %4481 = vmatprep.subr.mxu0 0.0
      %4482 = vmatpush2.msra.mxu0 0.0
      %4483 = vmatprep.subr.mxu0 0.0
      %4484 = vmatpush2.msra.mxu0 0.0
      %4485 = vmatprep.subr.mxu0 0.0
      %4486 = vmatpush2.msra.mxu0 0.0
      %4487 = vmatprep.subr.mxu0 0.0
      %4488 = vmatpush2.msra.mxu0 0.0
      %4489 = vmatprep.subr.mxu0 0.0
      %4490 = vmatpush2.msra.mxu0 0.0
      %4491 = vmatprep.subr.mxu0 0.0
      %4492 = vmatpush2.msra.mxu0 0.0
      %4493 = vmatprep.subr.mxu0 0.0
      %4494 = vmatpush2.msra.mxu0 0.0
      %4495 = vmatprep.subr.mxu0 0.0
      %4496 = vmatpush2.msra.mxu0 0.0
      %4497 = vmatprep.subr.mxu0 0.0
      %4498 = vmatpush2.msra.mxu0 0.0
      %4499 = vmatprep.subr.mxu0 0.0
      %4500 = vmatpush2.msra.mxu0 0.0
      %4501 = vmatprep.mubr.f32.mxu0 0.0
      %4502 = vmatmul.mubr.f32.gmra.mxu0 %v4432
      %v4503 = vpop.f32.mrf.mxu0
      %v4504 = vadd.f32 %v4429, %v4503
      %v4505 = vpop.f32.mrf.mxu0
      %4506 = vmatprep.mubr.f32.mxu0 0.0
      %4507 = vmatmul.mubr.f32.gmra.mxu0 %v4435
      %v4508 = vpop.f32.mrf.mxu0
      %v4509 = vadd.f32 %v4429, %v4508
      %v4510 = vpop.f32.mrf.mxu0
      %4511 = vdwg.mxu0
      %v4512 = vmul.f32 %v4504, 0.5
      %v4513 = vmul.f32 %v4509, 0.5
      %v4514 = vmul.f32 %v4504, 0.70710677
      %v4515 = vmul.f32 %v4509, 0.70710677
      %vm4516 = vcmp.ge.f32.partialorder %v4514, 0.0
      %vm4517 = vcmp.ge.f32.partialorder %v4515, 0.0
      %v4518 = vsel %vm4516, 1.0, -1.0
      %v4519 = vsel %vm4517, 1.0, -1.0
      %v4520 = vand.u32 2147483647, %v4514
      %v4521 = vand.u32 2147483647, %v4515
      %v4522 = vmul.f32 %v4520, 0.3275911
      %v4523 = vmul.f32 %v4521, 0.3275911
      %v4524 = vadd.f32 %v4522, 1.0
      %v4525 = vadd.f32 %v4523, 1.0
      %v4526 = vrcp.pop %v4524
      %v4527 = vmul.f32 1.0, %v4526
      %v4528 = vrcp.pop %v4525
      %v4529 = vmul.f32 1.0, %v4528
      %v4530 = vmul.f32 %v4527, 1.0614054
      %v4531 = vmul.f32 %v4529, 1.0614054
      %v4532 = vadd.f32 %v4530, -1.4531521
      %v4533 = vadd.f32 %v4531, -1.4531521
      %v4534 = vmul.f32 %v4532, %v4527
      %v4535 = vmul.f32 %v4533, %v4529
      %v4536 = vadd.f32 %v4534, 1.4214138
      %v4537 = vadd.f32 %v4535, 1.4214138
      %v4538 = vmul.f32 %v4536, %v4527
      %v4539 = vmul.f32 %v4537, %v4529
      %v4540 = vadd.f32 %v4538, -0.28449672
      %v4541 = vadd.f32 %v4539, -0.28449672
      %v4542 = vmul.f32 %v4540, %v4527
      %v4543 = vmul.f32 %v4541, %v4529
      %v4544 = vadd.f32 %v4542, 0.2548296
      %v4545 = vadd.f32 %v4543, 0.2548296
      %v4546 = vmul.f32 %v4544, %v4527
      %v4547 = vmul.f32 %v4545, %v4529
      %v4548 = vsub.f32 0.0, %v4520
      %v4549 = vsub.f32 0.0, %v4521
      %v4550 = vmul.f32 %v4548, %v4520
      %v4551 = vmul.f32 %v4549, %v4521
      %v4552 = vmul.f32 %v4550, 1.442695
      %v4553 = vpow.pop %v4552
      %v4554 = vmul.f32 %v4551, 1.442695
      %v4555 = vpow.pop %v4554
      %v4556 = vmul.f32 %v4546, %v4553
      %v4557 = vmul.f32 %v4547, %v4555
      %v4558 = vsub.f32 1.0, %v4556
      %v4559 = vsub.f32 1.0, %v4557
      %v4560 = vmul.f32 %v4518, %v4558
      %v4561 = vmul.f32 %v4519, %v4559
      %v4562 = vadd.f32 %v4560, 1.0
      %v4563 = vadd.f32 %v4561, 1.0
      %v4564 = vmul.f32 %v4512, %v4562
      %v4565 = vmul.f32 %v4513, %v4563
      %s4566 = scalar_lea.vmem %s11, 128
      %v4567 = vld [vmem:[%s4566] sm:$0xff]
      %v4568 = vld [vmem:[%s4566 + $0x8] sm:$0xff]
      %v4569 = vld [vmem:[%s4566 + $0x10] sm:$0xff]
      %v4570 = vld [vmem:[%s4566 + $0x18] sm:$0xff]
      %v4571 = vld [vmem:[%s4566 + $0x20] sm:$0xff]
      %v4572 = vld [vmem:[%s4566 + $0x28] sm:$0xff]
      %v4573 = vld [vmem:[%s4566 + $0x30] sm:$0xff]
      %v4574 = vld [vmem:[%s4566 + $0x38] sm:$0xff]
      %s4575 = scalar_lea.vmem %s12, 2
      %v4576 = vld [vmem:[%s4575] sm:$0x1]
      %v4578 = vlaneseq
      %v4579 = vshrl.u32 %v4578, 7
      %v4580 = vsub.s32 0, %v4579
      %v4581 = vrot.slane %v4576, %v4580
      %v4584 = vsel %vm1868, %v4564, 0
      %v4587 = vsel %vm1868, %v4565, 0
      %4589 = vmatprep.subr.mxu0 0.0
      %4590 = vmatpush1.msra.mxu0 0.0
      %4591 = vmatprep.subr.mxu0 0.0
      %4592 = vmatpush1.msra.mxu0 0.0
      %4593 = vmatprep.subr.mxu0 0.0
      %4594 = vmatpush1.msra.mxu0 0.0
      %4595 = vmatprep.subr.mxu0 0.0
      %4596 = vmatpush1.msra.mxu0 0.0
      %4597 = vmatprep.subr.mxu0 0.0
      %4598 = vmatpush1.msra.mxu0 0.0
      %4599 = vmatprep.subr.mxu0 0.0
      %4600 = vmatpush1.msra.mxu0 0.0
      %4601 = vmatprep.subr.mxu0 0.0
      %4602 = vmatpush1.msra.mxu0 0.0
      %4603 = vmatprep.subr.mxu0 0.0
      %4604 = vmatpush1.msra.mxu0 0.0
      %4605 = vmatprep.subr.mxu0 0.0
      %4606 = vmatpush1.msra.mxu0 %v4574
      %4607 = vmatprep.subr.mxu0 0.0
      %4608 = vmatpush1.msra.mxu0 %v4573
      %4609 = vmatprep.subr.mxu0 0.0
      %4610 = vmatpush1.msra.mxu0 %v4572
      %4611 = vmatprep.subr.mxu0 0.0
      %4612 = vmatpush1.msra.mxu0 %v4571
      %4613 = vmatprep.subr.mxu0 0.0
      %4614 = vmatpush1.msra.mxu0 %v4570
      %4615 = vmatprep.subr.mxu0 0.0
      %4616 = vmatpush1.msra.mxu0 %v4569
      %4617 = vmatprep.subr.mxu0 0.0
      %4618 = vmatpush1.msra.mxu0 %v4568
      %4619 = vmatprep.subr.mxu0 0.0
      %4620 = vmatpush1.msra.mxu0 %v4567
      %4621 = vmatprep.subr.mxu0 0.0
      %4622 = vmatpush2.msra.mxu0 0.0
      %4623 = vmatprep.subr.mxu0 0.0
      %4624 = vmatpush2.msra.mxu0 0.0
      %4625 = vmatprep.subr.mxu0 0.0
      %4626 = vmatpush2.msra.mxu0 0.0
      %4627 = vmatprep.subr.mxu0 0.0
      %4628 = vmatpush2.msra.mxu0 0.0
      %4629 = vmatprep.subr.mxu0 0.0
      %4630 = vmatpush2.msra.mxu0 0.0
      %4631 = vmatprep.subr.mxu0 0.0
      %4632 = vmatpush2.msra.mxu0 0.0
      %4633 = vmatprep.subr.mxu0 0.0
      %4634 = vmatpush2.msra.mxu0 0.0
      %4635 = vmatprep.subr.mxu0 0.0
      %4636 = vmatpush2.msra.mxu0 0.0
      %4637 = vmatprep.subr.mxu0 0.0
      %4638 = vmatpush2.msra.mxu0 0.0
      %4639 = vmatprep.subr.mxu0 0.0
      %4640 = vmatpush2.msra.mxu0 0.0
      %4641 = vmatprep.subr.mxu0 0.0
      %4642 = vmatpush2.msra.mxu0 0.0
      %4643 = vmatprep.subr.mxu0 0.0
      %4644 = vmatpush2.msra.mxu0 0.0
      %4645 = vmatprep.subr.mxu0 0.0
      %4646 = vmatpush2.msra.mxu0 0.0
      %4647 = vmatprep.subr.mxu0 0.0
      %4648 = vmatpush2.msra.mxu0 0.0
      %4649 = vmatprep.subr.mxu0 0.0
      %4650 = vmatpush2.msra.mxu0 0.0
      %4651 = vmatprep.subr.mxu0 0.0
      %4652 = vmatpush2.msra.mxu0 0.0
      %4653 = vmatprep.mubr.f32.mxu0 0.0
      %4654 = vmatmul.mubr.f32.gmra.mxu0 %v4584
      %v4655 = vpop.f32.mrf.mxu0
      %v4656 = vadd.f32 %v4581, %v4655
      %v4657 = vpop.f32.mrf.mxu0
      %4658 = vmatprep.mubr.f32.mxu0 0.0
      %4659 = vmatmul.mubr.f32.gmra.mxu0 %v4587
      %v4660 = vpop.f32.mrf.mxu0
      %v4661 = vadd.f32 %v4581, %v4660
      %v4662 = vpop.f32.mrf.mxu0
      %4663 = vdwg.mxu0
      %v4664 = vadd.f32 %v4416, %v4656
      %v4665 = vadd.f32 %v4417, %v4661
      %s4666 = scalar_lea.vmem %s13, 2
      %v4667 = vld [vmem:[%s4666] sm:$0x1]
      %s4668 = scalar_lea.vmem %s14, 2
      %v4669 = vld [vmem:[%s4668] sm:$0x1]
      %v4670 = vsel %vm655, %v4664, 0.0
      %4671 = vadd.xlane.f32.xlu0 %v4670
      %v4672 = vpop.xlane.xlu0 %4671
      %v4673 = vsel %vm655, %v4665, 0.0
      %4674 = vadd.xlane.f32.xlu0 %v4673
      %v4675 = vpop.xlane.xlu0 %4674
      %v4676 = vmul.f32 %v4672, %v1670
      %v4677 = vmul.f32 %v4675, %v1670
      %v4678 = vsub.f32 %v4664, %v4676
      %v4679 = vsub.f32 %v4665, %v4677
      %v4680 = vmul.f32 %v4678, %v4678
      %v4681 = vmul.f32 %v4679, %v4679
      %v4682 = vsel %vm655, %v4680, 0.0
      %4683 = vadd.xlane.f32.xlu0 %v4682
      %v4684 = vpop.xlane.xlu0 %4683
      %v4685 = vsel %vm655, %v4681, 0.0
      %4686 = vadd.xlane.f32.xlu0 %v4685
      %v4687 = vpop.xlane.xlu0 %4686
      %v4688 = vmul.f32 %v4684, %v1670
      %v4689 = vmul.f32 %v4687, %v1670
      %v4690 = vadd.f32 %v4688, 1e-05
      %v4691 = vadd.f32 %v4689, 1e-05
      %v4692 = vrsqrt.pop %v4690
      %v4693 = vrsqrt.pop %v4691
      %v4694 = vmul.f32 %v4678, %v4692
      %v4695 = vmul.f32 %v4679, %v4693
      %v4697 = vlaneseq
      %v4698 = vshrl.u32 %v4697, 7
      %v4699 = vsub.s32 0, %v4698
      %v4700 = vrot.slane %v4667, %v4699
      %v4702 = vmul.f32 %v4694, %v4700
      %v4703 = vmul.f32 %v4695, %v4700
      %v4705 = vlaneseq
      %v4706 = vshrl.u32 %v4705, 7
      %v4707 = vsub.s32 0, %v4706
      %v4708 = vrot.slane %v4669, %v4707
      %v4710 = vadd.f32 %v4702, %v4708
      %v4711 = vadd.f32 %v4703, %v4708
      %s4712 = scalar_lea.vmem %s3, 96
      %v4713 = vld [vmem:[%s4712] sm:$0xff]
      %v4714 = vld [vmem:[%s4712 + $0x8] sm:$0xff]
      %v4715 = vld [vmem:[%s4712 + $0x10] sm:$0xff]
      %v4716 = vld [vmem:[%s4712 + $0x18] sm:$0xff]
      %s4717 = scalar_lea.vmem %s4, 3
      %v4718 = vld [vmem:[%s4717] sm:$0x1]
      %v4720 = vlaneseq
      %v4721 = vshrl.u32 %v4720, 7
      %v4722 = vsub.s32 0, %v4721
      %v4723 = vrot.slane %v4718, %v4722
      %v4726 = vsel %vm655, %v4710, 0
      %v4729 = vsel %vm655, %v4711, 0
      %4731 = vmatprep.subr.mxu0 0.0
      %4732 = vmatpush1.msra.mxu0 0.0
      %4733 = vmatprep.subr.mxu0 0.0
      %4734 = vmatpush1.msra.mxu0 0.0
      %4735 = vmatprep.subr.mxu0 0.0
      %4736 = vmatpush1.msra.mxu0 0.0
      %4737 = vmatprep.subr.mxu0 0.0
      %4738 = vmatpush1.msra.mxu0 0.0
      %4739 = vmatprep.subr.mxu0 0.0
      %4740 = vmatpush1.msra.mxu0 0.0
      %4741 = vmatprep.subr.mxu0 0.0
      %4742 = vmatpush1.msra.mxu0 0.0
      %4743 = vmatprep.subr.mxu0 0.0
      %4744 = vmatpush1.msra.mxu0 0.0
      %4745 = vmatprep.subr.mxu0 0.0
      %4746 = vmatpush1.msra.mxu0 0.0
      %4747 = vmatprep.subr.mxu0 0.0
      %4748 = vmatpush1.msra.mxu0 0.0
      %4749 = vmatprep.subr.mxu0 0.0
      %4750 = vmatpush1.msra.mxu0 0.0
      %4751 = vmatprep.subr.mxu0 0.0
      %4752 = vmatpush1.msra.mxu0 0.0
      %4753 = vmatprep.subr.mxu0 0.0
      %4754 = vmatpush1.msra.mxu0 0.0
      %4755 = vmatprep.subr.mxu0 0.0
      %4756 = vmatpush1.msra.mxu0 %v4716
      %4757 = vmatprep.subr.mxu0 0.0
      %4758 = vmatpush1.msra.mxu0 %v4715
      %4759 = vmatprep.subr.mxu0 0.0
      %4760 = vmatpush1.msra.mxu0 %v4714
      %4761 = vmatprep.subr.mxu0 0.0
      %4762 = vmatpush1.msra.mxu0 %v4713
      %4763 = vmatprep.subr.mxu0 0.0
      %4764 = vmatpush2.msra.mxu0 0.0
      %4765 = vmatprep.subr.mxu0 0.0
      %4766 = vmatpush2.msra.mxu0 0.0
      %4767 = vmatprep.subr.mxu0 0.0
      %4768 = vmatpush2.msra.mxu0 0.0
      %4769 = vmatprep.subr.mxu0 0.0
      %4770 = vmatpush2.msra.mxu0 0.0
      %4771 = vmatprep.subr.mxu0 0.0
      %4772 = vmatpush2.msra.mxu0 0.0
      %4773 = vmatprep.subr.mxu0 0.0
      %4774 = vmatpush2.msra.mxu0 0.0
      %4775 = vmatprep.subr.mxu0 0.0
      %4776 = vmatpush2.msra.mxu0 0.0
      %4777 = vmatprep.subr.mxu0 0.0
      %4778 = vmatpush2.msra.mxu0 0.0
      %4779 = vmatprep.subr.mxu0 0.0
      %4780 = vmatpush2.msra.mxu0 0.0
      %4781 = vmatprep.subr.mxu0 0.0
      %4782 = vmatpush2.msra.mxu0 0.0
      %4783 = vmatprep.subr.mxu0 0.0
      %4784 = vmatpush2.msra.mxu0 0.0
      %4785 = vmatprep.subr.mxu0 0.0
      %4786 = vmatpush2.msra.mxu0 0.0
      %4787 = vmatprep.subr.mxu0 0.0
      %4788 = vmatpush2.msra.mxu0 0.0
      %4789 = vmatprep.subr.mxu0 0.0
      %4790 = vmatpush2.msra.mxu0 0.0
      %4791 = vmatprep.subr.mxu0 0.0
      %4792 = vmatpush2.msra.mxu0 0.0
      %4793 = vmatprep.subr.mxu0 0.0
      %4794 = vmatpush2.msra.mxu0 0.0
      %4795 = vmatprep.mubr.f32.mxu0 0.0
      %4796 = vmatmul.mubr.f32.gmra.mxu0 %v4726
      %v4797 = vpop.f32.mrf.mxu0
      %v4798 = vadd.f32 %v4723, %v4797
      %v4799 = vpop.f32.mrf.mxu0
      %4800 = vmatprep.mubr.f32.mxu0 0.0
      %4801 = vmatmul.mubr.f32.gmra.mxu0 %v4729
      %v4802 = vpop.f32.mrf.mxu0
      %v4803 = vadd.f32 %v4723, %v4802
      %v4804 = vpop.f32.mrf.mxu0
      %4805 = vdwg.mxu0
      %4808 = vrot.lane.b32.xlu0 %v4798, 120
      %v4809 = vpop.permute.xlu0 %4808
      %4810 = vrot.lane.b32.xlu0 %v4803, 120
      %v4811 = vpop.permute.xlu0 %4810
      %4812 = vrot.lane.b32.xlu0 %v4798, 112
      %v4813 = vpop.permute.xlu0 %4812
      %4814 = vrot.lane.b32.xlu0 %v4803, 112
      %v4815 = vpop.permute.xlu0 %4814
      %4816 = vrot.lane.b32.xlu0 %v4798, 104
      %v4817 = vpop.permute.xlu0 %4816
      %4818 = vrot.lane.b32.xlu0 %v4803, 104
      %v4819 = vpop.permute.xlu0 %4818
      %4820 = vrot.lane.b32.xlu0 %v4798, 96
      %v4821 = vpop.permute.xlu0 %4820
      %4822 = vrot.lane.b32.xlu0 %v4803, 96
      %v4823 = vpop.permute.xlu0 %4822
      %v4824 = vsel %vm755, %v4798, 0
      %v4826 = vsel %vm755, %v4803, 0
      %v4828 = vsel %vm755, %v4821, 0
      %v4830 = vsel %vm755, %v4823, 0
      %4832 = vmatprep.subr.mxu0 0.0
      %4833 = vmatpush1.xpose.msra.mxu0 0.0
      %4834 = vmatprep.subr.mxu0 0.0
      %4835 = vmatpush1.xpose.msra.mxu0 0.0
      %4836 = vmatprep.subr.mxu0 0.0
      %4837 = vmatpush1.xpose.msra.mxu0 0.0
      %4838 = vmatprep.subr.mxu0 0.0
      %4839 = vmatpush1.xpose.msra.mxu0 0.0
      %4840 = vmatprep.subr.mxu0 0.0
      %4841 = vmatpush1.xpose.msra.mxu0 0.0
      %4842 = vmatprep.subr.mxu0 0.0
      %4843 = vmatpush1.xpose.msra.mxu0 0.0
      %4844 = vmatprep.subr.mxu0 0.0
      %4845 = vmatpush1.xpose.msra.mxu0 0.0
      %4846 = vmatprep.subr.mxu0 0.0
      %4847 = vmatpush1.xpose.msra.mxu0 0.0
      %4848 = vmatprep.subr.mxu0 0.0
      %4849 = vmatpush1.xpose.msra.mxu0 0.0
      %4850 = vmatprep.subr.mxu0 0.0
      %4851 = vmatpush1.xpose.msra.mxu0 0.0
      %4852 = vmatprep.subr.mxu0 0.0
      %4853 = vmatpush1.xpose.msra.mxu0 0.0
      %4854 = vmatprep.subr.mxu0 0.0
      %4855 = vmatpush1.xpose.msra.mxu0 0.0
      %4856 = vmatprep.subr.mxu0 0.0
      %4857 = vmatpush1.xpose.msra.mxu0 0.0
      %4858 = vmatprep.subr.mxu0 0.0
      %4859 = vmatpush1.xpose.msra.mxu0 0.0
      %4860 = vmatprep.subr.mxu0 0.0
      %4861 = vmatpush1.xpose.msra.mxu0 %v4830
      %4862 = vmatprep.subr.mxu0 0.0
      %4863 = vmatpush1.xpose.msra.mxu0 %v4828
      %4864 = vmatprep.subr.mxu0 0.0
      %4865 = vmatpush2.xpose.msra.mxu0 0.0
      %4866 = vmatprep.subr.mxu0 0.0
      %4867 = vmatpush2.xpose.msra.mxu0 0.0
      %4868 = vmatprep.subr.mxu0 0.0
      %4869 = vmatpush2.xpose.msra.mxu0 0.0
      %4870 = vmatprep.subr.mxu0 0.0
      %4871 = vmatpush2.xpose.msra.mxu0 0.0
      %4872 = vmatprep.subr.mxu0 0.0
      %4873 = vmatpush2.xpose.msra.mxu0 0.0
      %4874 = vmatprep.subr.mxu0 0.0
      %4875 = vmatpush2.xpose.msra.mxu0 0.0
      %4876 = vmatprep.subr.mxu0 0.0
      %4877 = vmatpush2.xpose.msra.mxu0 0.0
      %4878 = vmatprep.subr.mxu0 0.0
      %4879 = vmatpush2.xpose.msra.mxu0 0.0
      %4880 = vmatprep.subr.mxu0 0.0
      %4881 = vmatpush2.xpose.msra.mxu0 0.0
      %4882 = vmatprep.subr.mxu0 0.0
      %4883 = vmatpush2.xpose.msra.mxu0 0.0
      %4884 = vmatprep.subr.mxu0 0.0
      %4885 = vmatpush2.xpose.msra.mxu0 0.0
      %4886 = vmatprep.subr.mxu0 0.0
      %4887 = vmatpush2.xpose.msra.mxu0 0.0
      %4888 = vmatprep.subr.mxu0 0.0
      %4889 = vmatpush2.xpose.msra.mxu0 0.0
      %4890 = vmatprep.subr.mxu0 0.0
      %4891 = vmatpush2.xpose.msra.mxu0 0.0
      %4892 = vmatprep.subr.mxu0 0.0
      %4893 = vmatpush2.xpose.msra.mxu0 0.0
      %4894 = vmatprep.subr.mxu0 0.0
      %4895 = vmatpush2.xpose.msra.mxu0 0.0
      %4896 = vmatprep.mubr.f32.mxu0 0.0
      %4897 = vmatmul.mubr.f32.gmra.mxu0 %v4824
      %v4898 = vpop.f32.mrf.mxu0
      %v4899 = vadd.f32 0.0, %v4898
      %v4900 = vpop.f32.mrf.mxu0
      %4901 = vmatprep.mubr.f32.mxu0 0.0
      %4902 = vmatmul.mubr.f32.gmra.mxu0 %v4826
      %v4903 = vpop.f32.mrf.mxu0
      %v4904 = vadd.f32 0.0, %v4903
      %v4905 = vpop.f32.mrf.mxu0
      %4906 = vdwg.mxu0
      %4907 = vrot.lane.b32.xlu0 %v4809, 96
      %v4908 = vpop.permute.xlu0 %4907
      %4909 = vrot.lane.b32.xlu0 %v4811, 96
      %v4910 = vpop.permute.xlu0 %4909
      %v4911 = vsel %vm755, %v4809, 0
      %v4913 = vsel %vm755, %v4811, 0
      %v4915 = vsel %vm755, %v4908, 0
      %v4917 = vsel %vm755, %v4910, 0
      %4919 = vmatprep.subr.mxu0 0.0
      %4920 = vmatpush1.xpose.msra.mxu0 0.0
      %4921 = vmatprep.subr.mxu0 0.0
      %4922 = vmatpush1.xpose.msra.mxu0 0.0
      %4923 = vmatprep.subr.mxu0 0.0
      %4924 = vmatpush1.xpose.msra.mxu0 0.0
      %4925 = vmatprep.subr.mxu0 0.0
      %4926 = vmatpush1.xpose.msra.mxu0 0.0
      %4927 = vmatprep.subr.mxu0 0.0
      %4928 = vmatpush1.xpose.msra.mxu0 0.0
      %4929 = vmatprep.subr.mxu0 0.0
      %4930 = vmatpush1.xpose.msra.mxu0 0.0
      %4931 = vmatprep.subr.mxu0 0.0
      %4932 = vmatpush1.xpose.msra.mxu0 0.0
      %4933 = vmatprep.subr.mxu0 0.0
      %4934 = vmatpush1.xpose.msra.mxu0 0.0
      %4935 = vmatprep.subr.mxu0 0.0
      %4936 = vmatpush1.xpose.msra.mxu0 0.0
      %4937 = vmatprep.subr.mxu0 0.0
      %4938 = vmatpush1.xpose.msra.mxu0 0.0
      %4939 = vmatprep.subr.mxu0 0.0
      %4940 = vmatpush1.xpose.msra.mxu0 0.0
      %4941 = vmatprep.subr.mxu0 0.0
      %4942 = vmatpush1.xpose.msra.mxu0 0.0
      %4943 = vmatprep.subr.mxu0 0.0
      %4944 = vmatpush1.xpose.msra.mxu0 0.0
      %4945 = vmatprep.subr.mxu0 0.0
      %4946 = vmatpush1.xpose.msra.mxu0 0.0
      %4947 = vmatprep.subr.mxu0 0.0
      %4948 = vmatpush1.xpose.msra.mxu0 %v4917
      %4949 = vmatprep.subr.mxu0 0.0
      %4950 = vmatpush1.xpose.msra.mxu0 %v4915
      %4951 = vmatprep.subr.mxu0 0.0
      %4952 = vmatpush2.xpose.msra.mxu0 0.0
      %4953 = vmatprep.subr.mxu0 0.0
      %4954 = vmatpush2.xpose.msra.mxu0 0.0
      %4955 = vmatprep.subr.mxu0 0.0
      %4956 = vmatpush2.xpose.msra.mxu0 0.0
      %4957 = vmatprep.subr.mxu0 0.0
      %4958 = vmatpush2.xpose.msra.mxu0 0.0
      %4959 = vmatprep.subr.mxu0 0.0
      %4960 = vmatpush2.xpose.msra.mxu0 0.0
      %4961 = vmatprep.subr.mxu0 0.0
      %4962 = vmatpush2.xpose.msra.mxu0 0.0
      %4963 = vmatprep.subr.mxu0 0.0
      %4964 = vmatpush2.xpose.msra.mxu0 0.0
      %4965 = vmatprep.subr.mxu0 0.0
      %4966 = vmatpush2.xpose.msra.mxu0 0.0
      %4967 = vmatprep.subr.mxu0 0.0
      %4968 = vmatpush2.xpose.msra.mxu0 0.0
      %4969 = vmatprep.subr.mxu0 0.0
      %4970 = vmatpush2.xpose.msra.mxu0 0.0
      %4971 = vmatprep.subr.mxu0 0.0
      %4972 = vmatpush2.xpose.msra.mxu0 0.0
      %4973 = vmatprep.subr.mxu0 0.0
      %4974 = vmatpush2.xpose.msra.mxu0 0.0
      %4975 = vmatprep.subr.mxu0 0.0
      %4976 = vmatpush2.xpose.msra.mxu0 0.0
      %4977 = vmatprep.subr.mxu0 0.0
      %4978 = vmatpush2.xpose.msra.mxu0 0.0
      %4979 = vmatprep.subr.mxu0 0.0
      %4980 = vmatpush2.xpose.msra.mxu0 0.0
      %4981 = vmatprep.subr.mxu0 0.0
      %4982 = vmatpush2.xpose.msra.mxu0 0.0
      %4983 = vmatprep.mubr.f32.mxu0 0.0
      %4984 = vmatmul.mubr.f32.gmra.mxu0 %v4911
      %v4985 = vpop.f32.mrf.mxu0
      %v4986 = vadd.f32 0.0, %v4985
      %v4987 = vpop.f32.mrf.mxu0
      %4988 = vmatprep.mubr.f32.mxu0 0.0
      %4989 = vmatmul.mubr.f32.gmra.mxu0 %v4913
      %v4990 = vpop.f32.mrf.mxu0
      %v4991 = vadd.f32 0.0, %v4990
      %v4992 = vpop.f32.mrf.mxu0
      %4993 = vdwg.mxu0
      %4994 = vrot.lane.b32.xlu0 %v4813, 96
      %v4995 = vpop.permute.xlu0 %4994
      %4996 = vrot.lane.b32.xlu0 %v4815, 96
      %v4997 = vpop.permute.xlu0 %4996
      %v4998 = vsel %vm755, %v4813, 0
      %v5000 = vsel %vm755, %v4815, 0
      %v5002 = vsel %vm755, %v4995, 0
      %v5004 = vsel %vm755, %v4997, 0
      %5006 = vmatprep.subr.mxu0 0.0
      %5007 = vmatpush1.xpose.msra.mxu0 0.0
      %5008 = vmatprep.subr.mxu0 0.0
      %5009 = vmatpush1.xpose.msra.mxu0 0.0
      %5010 = vmatprep.subr.mxu0 0.0
      %5011 = vmatpush1.xpose.msra.mxu0 0.0
      %5012 = vmatprep.subr.mxu0 0.0
      %5013 = vmatpush1.xpose.msra.mxu0 0.0
      %5014 = vmatprep.subr.mxu0 0.0
      %5015 = vmatpush1.xpose.msra.mxu0 0.0
      %5016 = vmatprep.subr.mxu0 0.0
      %5017 = vmatpush1.xpose.msra.mxu0 0.0
      %5018 = vmatprep.subr.mxu0 0.0
      %5019 = vmatpush1.xpose.msra.mxu0 0.0
      %5020 = vmatprep.subr.mxu0 0.0
      %5021 = vmatpush1.xpose.msra.mxu0 0.0
      %5022 = vmatprep.subr.mxu0 0.0
      %5023 = vmatpush1.xpose.msra.mxu0 0.0
      %5024 = vmatprep.subr.mxu0 0.0
      %5025 = vmatpush1.xpose.msra.mxu0 0.0
      %5026 = vmatprep.subr.mxu0 0.0
      %5027 = vmatpush1.xpose.msra.mxu0 0.0
      %5028 = vmatprep.subr.mxu0 0.0
      %5029 = vmatpush1.xpose.msra.mxu0 0.0
      %5030 = vmatprep.subr.mxu0 0.0
      %5031 = vmatpush1.xpose.msra.mxu0 0.0
      %5032 = vmatprep.subr.mxu0 0.0
      %5033 = vmatpush1.xpose.msra.mxu0 0.0
      %5034 = vmatprep.subr.mxu0 0.0
      %5035 = vmatpush1.xpose.msra.mxu0 %v5004
      %5036 = vmatprep.subr.mxu0 0.0
      %5037 = vmatpush1.xpose.msra.mxu0 %v5002
      %5038 = vmatprep.subr.mxu0 0.0
      %5039 = vmatpush2.xpose.msra.mxu0 0.0
      %5040 = vmatprep.subr.mxu0 0.0
      %5041 = vmatpush2.xpose.msra.mxu0 0.0
      %5042 = vmatprep.subr.mxu0 0.0
      %5043 = vmatpush2.xpose.msra.mxu0 0.0
      %5044 = vmatprep.subr.mxu0 0.0
      %5045 = vmatpush2.xpose.msra.mxu0 0.0
      %5046 = vmatprep.subr.mxu0 0.0
      %5047 = vmatpush2.xpose.msra.mxu0 0.0
      %5048 = vmatprep.subr.mxu0 0.0
      %5049 = vmatpush2.xpose.msra.mxu0 0.0
      %5050 = vmatprep.subr.mxu0 0.0
      %5051 = vmatpush2.xpose.msra.mxu0 0.0
      %5052 = vmatprep.subr.mxu0 0.0
      %5053 = vmatpush2.xpose.msra.mxu0 0.0
      %5054 = vmatprep.subr.mxu0 0.0
      %5055 = vmatpush2.xpose.msra.mxu0 0.0
      %5056 = vmatprep.subr.mxu0 0.0
      %5057 = vmatpush2.xpose.msra.mxu0 0.0
      %5058 = vmatprep.subr.mxu0 0.0
      %5059 = vmatpush2.xpose.msra.mxu0 0.0
      %5060 = vmatprep.subr.mxu0 0.0
      %5061 = vmatpush2.xpose.msra.mxu0 0.0
      %5062 = vmatprep.subr.mxu0 0.0
      %5063 = vmatpush2.xpose.msra.mxu0 0.0
      %5064 = vmatprep.subr.mxu0 0.0
      %5065 = vmatpush2.xpose.msra.mxu0 0.0
      %5066 = vmatprep.subr.mxu0 0.0
      %5067 = vmatpush2.xpose.msra.mxu0 0.0
      %5068 = vmatprep.subr.mxu0 0.0
      %5069 = vmatpush2.xpose.msra.mxu0 0.0
      %5070 = vmatprep.mubr.f32.mxu0 0.0
      %5071 = vmatmul.mubr.f32.gmra.mxu0 %v4998
      %v5072 = vpop.f32.mrf.mxu0
      %v5073 = vadd.f32 0.0, %v5072
      %v5074 = vpop.f32.mrf.mxu0
      %5075 = vmatprep.mubr.f32.mxu0 0.0
      %5076 = vmatmul.mubr.f32.gmra.mxu0 %v5000
      %v5077 = vpop.f32.mrf.mxu0
      %v5078 = vadd.f32 0.0, %v5077
      %v5079 = vpop.f32.mrf.mxu0
      %5080 = vdwg.mxu0
      %5081 = vrot.lane.b32.xlu0 %v4817, 96
      %v5082 = vpop.permute.xlu0 %5081
      %5083 = vrot.lane.b32.xlu0 %v4819, 96
      %v5084 = vpop.permute.xlu0 %5083
      %v5085 = vsel %vm755, %v4817, 0
      %v5087 = vsel %vm755, %v4819, 0
      %v5089 = vsel %vm755, %v5082, 0
      %v5091 = vsel %vm755, %v5084, 0
      %5093 = vmatprep.subr.mxu0 0.0
      %5094 = vmatpush1.xpose.msra.mxu0 0.0
      %5095 = vmatprep.subr.mxu0 0.0
      %5096 = vmatpush1.xpose.msra.mxu0 0.0
      %5097 = vmatprep.subr.mxu0 0.0
      %5098 = vmatpush1.xpose.msra.mxu0 0.0
      %5099 = vmatprep.subr.mxu0 0.0
      %5100 = vmatpush1.xpose.msra.mxu0 0.0
      %5101 = vmatprep.subr.mxu0 0.0
      %5102 = vmatpush1.xpose.msra.mxu0 0.0
      %5103 = vmatprep.subr.mxu0 0.0
      %5104 = vmatpush1.xpose.msra.mxu0 0.0
      %5105 = vmatprep.subr.mxu0 0.0
      %5106 = vmatpush1.xpose.msra.mxu0 0.0
      %5107 = vmatprep.subr.mxu0 0.0
      %5108 = vmatpush1.xpose.msra.mxu0 0.0
      %5109 = vmatprep.subr.mxu0 0.0
      %5110 = vmatpush1.xpose.msra.mxu0 0.0
      %5111 = vmatprep.subr.mxu0 0.0
      %5112 = vmatpush1.xpose.msra.mxu0 0.0
      %5113 = vmatprep.subr.mxu0 0.0
      %5114 = vmatpush1.xpose.msra.mxu0 0.0
      %5115 = vmatprep.subr.mxu0 0.0
      %5116 = vmatpush1.xpose.msra.mxu0 0.0
      %5117 = vmatprep.subr.mxu0 0.0
      %5118 = vmatpush1.xpose.msra.mxu0 0.0
      %5119 = vmatprep.subr.mxu0 0.0
      %5120 = vmatpush1.xpose.msra.mxu0 0.0
      %5121 = vmatprep.subr.mxu0 0.0
      %5122 = vmatpush1.xpose.msra.mxu0 %v5091
      %5123 = vmatprep.subr.mxu0 0.0
      %5124 = vmatpush1.xpose.msra.mxu0 %v5089
      %5125 = vmatprep.subr.mxu0 0.0
      %5126 = vmatpush2.xpose.msra.mxu0 0.0
      %5127 = vmatprep.subr.mxu0 0.0
      %5128 = vmatpush2.xpose.msra.mxu0 0.0
      %5129 = vmatprep.subr.mxu0 0.0
      %5130 = vmatpush2.xpose.msra.mxu0 0.0
      %5131 = vmatprep.subr.mxu0 0.0
      %5132 = vmatpush2.xpose.msra.mxu0 0.0
      %5133 = vmatprep.subr.mxu0 0.0
      %5134 = vmatpush2.xpose.msra.mxu0 0.0
      %5135 = vmatprep.subr.mxu0 0.0
      %5136 = vmatpush2.xpose.msra.mxu0 0.0
      %5137 = vmatprep.subr.mxu0 0.0
      %5138 = vmatpush2.xpose.msra.mxu0 0.0
      %5139 = vmatprep.subr.mxu0 0.0
      %5140 = vmatpush2.xpose.msra.mxu0 0.0
      %5141 = vmatprep.subr.mxu0 0.0
      %5142 = vmatpush2.xpose.msra.mxu0 0.0
      %5143 = vmatprep.subr.mxu0 0.0
      %5144 = vmatpush2.xpose.msra.mxu0 0.0
      %5145 = vmatprep.subr.mxu0 0.0
      %5146 = vmatpush2.xpose.msra.mxu0 0.0
      %5147 = vmatprep.subr.mxu0 0.0
      %5148 = vmatpush2.xpose.msra.mxu0 0.0
      %5149 = vmatprep.subr.mxu0 0.0
      %5150 = vmatpush2.xpose.msra.mxu0 0.0
      %5151 = vmatprep.subr.mxu0 0.0
      %5152 = vmatpush2.xpose.msra.mxu0 0.0
      %5153 = vmatprep.subr.mxu0 0.0
      %5154 = vmatpush2.xpose.msra.mxu0 0.0
      %5155 = vmatprep.subr.mxu0 0.0
      %5156 = vmatpush2.xpose.msra.mxu0 0.0
      %5157 = vmatprep.mubr.f32.mxu0 0.0
      %5158 = vmatmul.mubr.f32.gmra.mxu0 %v5085
      %v5159 = vpop.f32.mrf.mxu0
      %v5160 = vadd.f32 0.0, %v5159
      %v5161 = vpop.f32.mrf.mxu0
      %5162 = vmatprep.mubr.f32.mxu0 0.0
      %5163 = vmatmul.mubr.f32.gmra.mxu0 %v5087
      %v5164 = vpop.f32.mrf.mxu0
      %v5165 = vadd.f32 0.0, %v5164
      %v5166 = vpop.f32.mrf.mxu0
      %5167 = vdwg.mxu0
      %v5168 = vsel %vm1100, %v4899, -inf
      %5169 = vmax.xlane.f32.xlu0 %v5168
      %v5170 = vpop.xlane.xlu0 %5169
      %v5171 = vsel %vm1100, %v4904, -inf
      %5172 = vmax.xlane.f32.xlu0 %v5171
      %v5173 = vpop.xlane.xlu0 %5172
      %v5174 = vsel %vm1100, %v4986, -inf
      %5175 = vmax.xlane.f32.xlu0 %v5174
      %v5176 = vpop.xlane.xlu0 %5175
      %v5177 = vsel %vm1100, %v4991, -inf
      %5178 = vmax.xlane.f32.xlu0 %v5177
      %v5179 = vpop.xlane.xlu0 %5178
      %v5180 = vsel %vm1100, %v5073, -inf
      %5181 = vmax.xlane.f32.xlu0 %v5180
      %v5182 = vpop.xlane.xlu0 %5181
      %v5183 = vsel %vm1100, %v5078, -inf
      %5184 = vmax.xlane.f32.xlu0 %v5183
      %v5185 = vpop.xlane.xlu0 %5184
      %v5186 = vsel %vm1100, %v5160, -inf
      %5187 = vmax.xlane.f32.xlu0 %v5186
      %v5188 = vpop.xlane.xlu0 %5187
      %v5189 = vsel %vm1100, %v5165, -inf
      %5190 = vmax.xlane.f32.xlu0 %v5189
      %v5191 = vpop.xlane.xlu0 %5190
      %v5192 = vsub.f32 %v4899, %v5170
      %v5193 = vsub.f32 %v4904, %v5173
      %v5194 = vsub.f32 %v4986, %v5176
      %v5195 = vsub.f32 %v4991, %v5179
      %v5196 = vsub.f32 %v5073, %v5182
      %v5197 = vsub.f32 %v5078, %v5185
      %v5198 = vsub.f32 %v5160, %v5188
      %v5199 = vsub.f32 %v5165, %v5191
      %v5200 = vmul.f32 %v5192, 1.442695
      %v5201 = vpow.pop %v5200
      %v5202 = vmul.f32 %v5193, 1.442695
      %v5203 = vpow.pop %v5202
      %v5204 = vmul.f32 %v5194, 1.442695
      %v5205 = vpow.pop %v5204
      %v5206 = vmul.f32 %v5195, 1.442695
      %v5207 = vpow.pop %v5206
      %v5208 = vmul.f32 %v5196, 1.442695
      %v5209 = vpow.pop %v5208
      %v5210 = vmul.f32 %v5197, 1.442695
      %v5211 = vpow.pop %v5210
      %v5212 = vmul.f32 %v5198, 1.442695
      %v5213 = vpow.pop %v5212
      %v5214 = vmul.f32 %v5199, 1.442695
      %v5215 = vpow.pop %v5214
      %v5216 = vsel %vm1100, %v5201, 0.0
      %5217 = vadd.xlane.f32.xlu0 %v5216
      %v5218 = vpop.xlane.xlu0 %5217
      %v5219 = vsel %vm1100, %v5203, 0.0
      %5220 = vadd.xlane.f32.xlu0 %v5219
      %v5221 = vpop.xlane.xlu0 %5220
      %v5222 = vsel %vm1100, %v5205, 0.0
      %5223 = vadd.xlane.f32.xlu0 %v5222
      %v5224 = vpop.xlane.xlu0 %5223
      %v5225 = vsel %vm1100, %v5207, 0.0
      %5226 = vadd.xlane.f32.xlu0 %v5225
      %v5227 = vpop.xlane.xlu0 %5226
      %v5228 = vsel %vm1100, %v5209, 0.0
      %5229 = vadd.xlane.f32.xlu0 %v5228
      %v5230 = vpop.xlane.xlu0 %5229
      %v5231 = vsel %vm1100, %v5211, 0.0
      %5232 = vadd.xlane.f32.xlu0 %v5231
      %v5233 = vpop.xlane.xlu0 %5232
      %v5234 = vsel %vm1100, %v5213, 0.0
      %5235 = vadd.xlane.f32.xlu0 %v5234
      %v5236 = vpop.xlane.xlu0 %5235
      %v5237 = vsel %vm1100, %v5215, 0.0
      %5238 = vadd.xlane.f32.xlu0 %v5237
      %v5239 = vpop.xlane.xlu0 %5238
      %v5240 = vrcp.pop %v5218
      %v5241 = vmul.f32 %v5201, %v5240
      %v5242 = vrcp.pop %v5221
      %v5243 = vmul.f32 %v5203, %v5242
      %v5244 = vrcp.pop %v5224
      %v5245 = vmul.f32 %v5205, %v5244
      %v5246 = vrcp.pop %v5227
      %v5247 = vmul.f32 %v5207, %v5246
      %v5248 = vrcp.pop %v5230
      %v5249 = vmul.f32 %v5209, %v5248
      %v5250 = vrcp.pop %v5233
      %v5251 = vmul.f32 %v5211, %v5250
      %v5252 = vrcp.pop %v5236
      %v5253 = vmul.f32 %v5213, %v5252
      %v5254 = vrcp.pop %v5239
      %v5255 = vmul.f32 %v5215, %v5254
      %5256 = vrot.lane.b32.xlu0 %v4798, 64
      %v5257 = vpop.permute.xlu0 %5256
      %5258 = vrot.lane.b32.xlu0 %v4803, 64
      %v5259 = vpop.permute.xlu0 %5258
      %v5263 = vsel %vm1100, %v5241, 0
      %v5266 = vsel %vm1100, %v5243, 0
      %5268 = vmatprep.subr.mxu0 0.0
      %5269 = vmatpush1.msra.mxu0 0.0
      %5270 = vmatprep.subr.mxu0 0.0
      %5271 = vmatpush1.msra.mxu0 0.0
      %5272 = vmatprep.subr.mxu0 0.0
      %5273 = vmatpush1.msra.mxu0 0.0
      %5274 = vmatprep.subr.mxu0 0.0
      %5275 = vmatpush1.msra.mxu0 0.0
      %5276 = vmatprep.subr.mxu0 0.0
      %5277 = vmatpush1.msra.mxu0 0.0
      %5278 = vmatprep.subr.mxu0 0.0
      %5279 = vmatpush1.msra.mxu0 0.0
      %5280 = vmatprep.subr.mxu0 0.0
      %5281 = vmatpush1.msra.mxu0 0.0
      %5282 = vmatprep.subr.mxu0 0.0
      %5283 = vmatpush1.msra.mxu0 0.0
      %5284 = vmatprep.subr.mxu0 0.0
      %5285 = vmatpush1.msra.mxu0 0.0
      %5286 = vmatprep.subr.mxu0 0.0
      %5287 = vmatpush1.msra.mxu0 0.0
      %5288 = vmatprep.subr.mxu0 0.0
      %5289 = vmatpush1.msra.mxu0 0.0
      %5290 = vmatprep.subr.mxu0 0.0
      %5291 = vmatpush1.msra.mxu0 0.0
      %5292 = vmatprep.subr.mxu0 0.0
      %5293 = vmatpush1.msra.mxu0 0.0
      %5294 = vmatprep.subr.mxu0 0.0
      %5295 = vmatpush1.msra.mxu0 0.0
      %5296 = vmatprep.subr.mxu0 0.0
      %5297 = vmatpush1.msra.mxu0 %v5259
      %5298 = vmatprep.subr.mxu0 0.0
      %5299 = vmatpush1.msra.mxu0 %v5257
      %5300 = vmatprep.subr.mxu0 0.0
      %5301 = vmatpush2.msra.mxu0 0.0
      %5302 = vmatprep.subr.mxu0 0.0
      %5303 = vmatpush2.msra.mxu0 0.0
      %5304 = vmatprep.subr.mxu0 0.0
      %5305 = vmatpush2.msra.mxu0 0.0
      %5306 = vmatprep.subr.mxu0 0.0
      %5307 = vmatpush2.msra.mxu0 0.0
      %5308 = vmatprep.subr.mxu0 0.0
      %5309 = vmatpush2.msra.mxu0 0.0
      %5310 = vmatprep.subr.mxu0 0.0
      %5311 = vmatpush2.msra.mxu0 0.0
      %5312 = vmatprep.subr.mxu0 0.0
      %5313 = vmatpush2.msra.mxu0 0.0
      %5314 = vmatprep.subr.mxu0 0.0
      %5315 = vmatpush2.msra.mxu0 0.0
      %5316 = vmatprep.subr.mxu0 0.0
      %5317 = vmatpush2.msra.mxu0 0.0
      %5318 = vmatprep.subr.mxu0 0.0
      %5319 = vmatpush2.msra.mxu0 0.0
      %5320 = vmatprep.subr.mxu0 0.0
      %5321 = vmatpush2.msra.mxu0 0.0
      %5322 = vmatprep.subr.mxu0 0.0
      %5323 = vmatpush2.msra.mxu0 0.0
      %5324 = vmatprep.subr.mxu0 0.0
      %5325 = vmatpush2.msra.mxu0 0.0
      %5326 = vmatprep.subr.mxu0 0.0
      %5327 = vmatpush2.msra.mxu0 0.0
      %5328 = vmatprep.subr.mxu0 0.0
      %5329 = vmatpush2.msra.mxu0 0.0
      %5330 = vmatprep.subr.mxu0 0.0
      %5331 = vmatpush2.msra.mxu0 0.0
      %5332 = vmatprep.mubr.f32.mxu0 0.0
      %5333 = vmatmul.mubr.f32.gmra.mxu0 %v5263
      %v5334 = vpop.f32.mrf.mxu0
      %v5335 = vadd.f32 0.0, %v5334
      %v5336 = vpop.f32.mrf.mxu0
      %5337 = vmatprep.mubr.f32.mxu0 0.0
      %5338 = vmatmul.mubr.f32.gmra.mxu0 %v5266
      %v5339 = vpop.f32.mrf.mxu0
      %v5340 = vadd.f32 0.0, %v5339
      %v5341 = vpop.f32.mrf.mxu0
      %5342 = vdwg.mxu0
      %5343 = vrot.lane.b32.xlu0 %v4809, 64
      %v5344 = vpop.permute.xlu0 %5343
      %5345 = vrot.lane.b32.xlu0 %v4811, 64
      %v5346 = vpop.permute.xlu0 %5345
      %v5350 = vsel %vm1100, %v5245, 0
      %v5353 = vsel %vm1100, %v5247, 0
      %5355 = vmatprep.subr.mxu0 0.0
      %5356 = vmatpush1.msra.mxu0 0.0
      %5357 = vmatprep.subr.mxu0 0.0
      %5358 = vmatpush1.msra.mxu0 0.0
      %5359 = vmatprep.subr.mxu0 0.0
      %5360 = vmatpush1.msra.mxu0 0.0
      %5361 = vmatprep.subr.mxu0 0.0
      %5362 = vmatpush1.msra.mxu0 0.0
      %5363 = vmatprep.subr.mxu0 0.0
      %5364 = vmatpush1.msra.mxu0 0.0
      %5365 = vmatprep.subr.mxu0 0.0
      %5366 = vmatpush1.msra.mxu0 0.0
      %5367 = vmatprep.subr.mxu0 0.0
      %5368 = vmatpush1.msra.mxu0 0.0
      %5369 = vmatprep.subr.mxu0 0.0
      %5370 = vmatpush1.msra.mxu0 0.0
      %5371 = vmatprep.subr.mxu0 0.0
      %5372 = vmatpush1.msra.mxu0 0.0
      %5373 = vmatprep.subr.mxu0 0.0
      %5374 = vmatpush1.msra.mxu0 0.0
      %5375 = vmatprep.subr.mxu0 0.0
      %5376 = vmatpush1.msra.mxu0 0.0
      %5377 = vmatprep.subr.mxu0 0.0
      %5378 = vmatpush1.msra.mxu0 0.0
      %5379 = vmatprep.subr.mxu0 0.0
      %5380 = vmatpush1.msra.mxu0 0.0
      %5381 = vmatprep.subr.mxu0 0.0
      %5382 = vmatpush1.msra.mxu0 0.0
      %5383 = vmatprep.subr.mxu0 0.0
      %5384 = vmatpush1.msra.mxu0 %v5346
      %5385 = vmatprep.subr.mxu0 0.0
      %5386 = vmatpush1.msra.mxu0 %v5344
      %5387 = vmatprep.subr.mxu0 0.0
      %5388 = vmatpush2.msra.mxu0 0.0
      %5389 = vmatprep.subr.mxu0 0.0
      %5390 = vmatpush2.msra.mxu0 0.0
      %5391 = vmatprep.subr.mxu0 0.0
      %5392 = vmatpush2.msra.mxu0 0.0
      %5393 = vmatprep.subr.mxu0 0.0
      %5394 = vmatpush2.msra.mxu0 0.0
      %5395 = vmatprep.subr.mxu0 0.0
      %5396 = vmatpush2.msra.mxu0 0.0
      %5397 = vmatprep.subr.mxu0 0.0
      %5398 = vmatpush2.msra.mxu0 0.0
      %5399 = vmatprep.subr.mxu0 0.0
      %5400 = vmatpush2.msra.mxu0 0.0
      %5401 = vmatprep.subr.mxu0 0.0
      %5402 = vmatpush2.msra.mxu0 0.0
      %5403 = vmatprep.subr.mxu0 0.0
      %5404 = vmatpush2.msra.mxu0 0.0
      %5405 = vmatprep.subr.mxu0 0.0
      %5406 = vmatpush2.msra.mxu0 0.0
      %5407 = vmatprep.subr.mxu0 0.0
      %5408 = vmatpush2.msra.mxu0 0.0
      %5409 = vmatprep.subr.mxu0 0.0
      %5410 = vmatpush2.msra.mxu0 0.0
      %5411 = vmatprep.subr.mxu0 0.0
      %5412 = vmatpush2.msra.mxu0 0.0
      %5413 = vmatprep.subr.mxu0 0.0
      %5414 = vmatpush2.msra.mxu0 0.0
      %5415 = vmatprep.subr.mxu0 0.0
      %5416 = vmatpush2.msra.mxu0 0.0
      %5417 = vmatprep.subr.mxu0 0.0
      %5418 = vmatpush2.msra.mxu0 0.0
      %5419 = vmatprep.mubr.f32.mxu0 0.0
      %5420 = vmatmul.mubr.f32.gmra.mxu0 %v5350
      %v5421 = vpop.f32.mrf.mxu0
      %v5422 = vadd.f32 0.0, %v5421
      %v5423 = vpop.f32.mrf.mxu0
      %5424 = vmatprep.mubr.f32.mxu0 0.0
      %5425 = vmatmul.mubr.f32.gmra.mxu0 %v5353
      %v5426 = vpop.f32.mrf.mxu0
      %v5427 = vadd.f32 0.0, %v5426
      %v5428 = vpop.f32.mrf.mxu0
      %5429 = vdwg.mxu0
      %5430 = vrot.lane.b32.xlu0 %v4813, 64
      %v5431 = vpop.permute.xlu0 %5430
      %5432 = vrot.lane.b32.xlu0 %v4815, 64
      %v5433 = vpop.permute.xlu0 %5432
      %v5437 = vsel %vm1100, %v5249, 0
      %v5440 = vsel %vm1100, %v5251, 0
      %5442 = vmatprep.subr.mxu0 0.0
      %5443 = vmatpush1.msra.mxu0 0.0
      %5444 = vmatprep.subr.mxu0 0.0
      %5445 = vmatpush1.msra.mxu0 0.0
      %5446 = vmatprep.subr.mxu0 0.0
      %5447 = vmatpush1.msra.mxu0 0.0
      %5448 = vmatprep.subr.mxu0 0.0
      %5449 = vmatpush1.msra.mxu0 0.0
      %5450 = vmatprep.subr.mxu0 0.0
      %5451 = vmatpush1.msra.mxu0 0.0
      %5452 = vmatprep.subr.mxu0 0.0
      %5453 = vmatpush1.msra.mxu0 0.0
      %5454 = vmatprep.subr.mxu0 0.0
      %5455 = vmatpush1.msra.mxu0 0.0
      %5456 = vmatprep.subr.mxu0 0.0
      %5457 = vmatpush1.msra.mxu0 0.0
      %5458 = vmatprep.subr.mxu0 0.0
      %5459 = vmatpush1.msra.mxu0 0.0
      %5460 = vmatprep.subr.mxu0 0.0
      %5461 = vmatpush1.msra.mxu0 0.0
      %5462 = vmatprep.subr.mxu0 0.0
      %5463 = vmatpush1.msra.mxu0 0.0
      %5464 = vmatprep.subr.mxu0 0.0
      %5465 = vmatpush1.msra.mxu0 0.0
      %5466 = vmatprep.subr.mxu0 0.0
      %5467 = vmatpush1.msra.mxu0 0.0
      %5468 = vmatprep.subr.mxu0 0.0
      %5469 = vmatpush1.msra.mxu0 0.0
      %5470 = vmatprep.subr.mxu0 0.0
      %5471 = vmatpush1.msra.mxu0 %v5433
      %5472 = vmatprep.subr.mxu0 0.0
      %5473 = vmatpush1.msra.mxu0 %v5431
      %5474 = vmatprep.subr.mxu0 0.0
      %5475 = vmatpush2.msra.mxu0 0.0
      %5476 = vmatprep.subr.mxu0 0.0
      %5477 = vmatpush2.msra.mxu0 0.0
      %5478 = vmatprep.subr.mxu0 0.0
      %5479 = vmatpush2.msra.mxu0 0.0
      %5480 = vmatprep.subr.mxu0 0.0
      %5481 = vmatpush2.msra.mxu0 0.0
      %5482 = vmatprep.subr.mxu0 0.0
      %5483 = vmatpush2.msra.mxu0 0.0
      %5484 = vmatprep.subr.mxu0 0.0
      %5485 = vmatpush2.msra.mxu0 0.0
      %5486 = vmatprep.subr.mxu0 0.0
      %5487 = vmatpush2.msra.mxu0 0.0
      %5488 = vmatprep.subr.mxu0 0.0
      %5489 = vmatpush2.msra.mxu0 0.0
      %5490 = vmatprep.subr.mxu0 0.0
      %5491 = vmatpush2.msra.mxu0 0.0
      %5492 = vmatprep.subr.mxu0 0.0
      %5493 = vmatpush2.msra.mxu0 0.0
      %5494 = vmatprep.subr.mxu0 0.0
      %5495 = vmatpush2.msra.mxu0 0.0
      %5496 = vmatprep.subr.mxu0 0.0
      %5497 = vmatpush2.msra.mxu0 0.0
      %5498 = vmatprep.subr.mxu0 0.0
      %5499 = vmatpush2.msra.mxu0 0.0
      %5500 = vmatprep.subr.mxu0 0.0
      %5501 = vmatpush2.msra.mxu0 0.0
      %5502 = vmatprep.subr.mxu0 0.0
      %5503 = vmatpush2.msra.mxu0 0.0
      %5504 = vmatprep.subr.mxu0 0.0
      %5505 = vmatpush2.msra.mxu0 0.0
      %5506 = vmatprep.mubr.f32.mxu0 0.0
      %5507 = vmatmul.mubr.f32.gmra.mxu0 %v5437
      %v5508 = vpop.f32.mrf.mxu0
      %v5509 = vadd.f32 0.0, %v5508
      %v5510 = vpop.f32.mrf.mxu0
      %5511 = vmatprep.mubr.f32.mxu0 0.0
      %5512 = vmatmul.mubr.f32.gmra.mxu0 %v5440
      %v5513 = vpop.f32.mrf.mxu0
      %v5514 = vadd.f32 0.0, %v5513
      %v5515 = vpop.f32.mrf.mxu0
      %5516 = vdwg.mxu0
      %5517 = vrot.lane.b32.xlu0 %v4817, 64
      %v5518 = vpop.permute.xlu0 %5517
      %5519 = vrot.lane.b32.xlu0 %v4819, 64
      %v5520 = vpop.permute.xlu0 %5519
      %v5524 = vsel %vm1100, %v5253, 0
      %v5527 = vsel %vm1100, %v5255, 0
      %5529 = vmatprep.subr.mxu0 0.0
      %5530 = vmatpush1.msra.mxu0 0.0
      %5531 = vmatprep.subr.mxu0 0.0
      %5532 = vmatpush1.msra.mxu0 0.0
      %5533 = vmatprep.subr.mxu0 0.0
      %5534 = vmatpush1.msra.mxu0 0.0
      %5535 = vmatprep.subr.mxu0 0.0
      %5536 = vmatpush1.msra.mxu0 0.0
      %5537 = vmatprep.subr.mxu0 0.0
      %5538 = vmatpush1.msra.mxu0 0.0
      %5539 = vmatprep.subr.mxu0 0.0
      %5540 = vmatpush1.msra.mxu0 0.0
      %5541 = vmatprep.subr.mxu0 0.0
      %5542 = vmatpush1.msra.mxu0 0.0
      %5543 = vmatprep.subr.mxu0 0.0
      %5544 = vmatpush1.msra.mxu0 0.0
      %5545 = vmatprep.subr.mxu0 0.0
      %5546 = vmatpush1.msra.mxu0 0.0
      %5547 = vmatprep.subr.mxu0 0.0
      %5548 = vmatpush1.msra.mxu0 0.0
      %5549 = vmatprep.subr.mxu0 0.0
      %5550 = vmatpush1.msra.mxu0 0.0
      %5551 = vmatprep.subr.mxu0 0.0
      %5552 = vmatpush1.msra.mxu0 0.0
      %5553 = vmatprep.subr.mxu0 0.0
      %5554 = vmatpush1.msra.mxu0 0.0
      %5555 = vmatprep.subr.mxu0 0.0
      %5556 = vmatpush1.msra.mxu0 0.0
      %5557 = vmatprep.subr.mxu0 0.0
      %5558 = vmatpush1.msra.mxu0 %v5520
      %5559 = vmatprep.subr.mxu0 0.0
      %5560 = vmatpush1.msra.mxu0 %v5518
      %5561 = vmatprep.subr.mxu0 0.0
      %5562 = vmatpush2.msra.mxu0 0.0
      %5563 = vmatprep.subr.mxu0 0.0
      %5564 = vmatpush2.msra.mxu0 0.0
      %5565 = vmatprep.subr.mxu0 0.0
      %5566 = vmatpush2.msra.mxu0 0.0
      %5567 = vmatprep.subr.mxu0 0.0
      %5568 = vmatpush2.msra.mxu0 0.0
      %5569 = vmatprep.subr.mxu0 0.0
      %5570 = vmatpush2.msra.mxu0 0.0
      %5571 = vmatprep.subr.mxu0 0.0
      %5572 = vmatpush2.msra.mxu0 0.0
      %5573 = vmatprep.subr.mxu0 0.0
      %5574 = vmatpush2.msra.mxu0 0.0
      %5575 = vmatprep.subr.mxu0 0.0
      %5576 = vmatpush2.msra.mxu0 0.0
      %5577 = vmatprep.subr.mxu0 0.0
      %5578 = vmatpush2.msra.mxu0 0.0
      %5579 = vmatprep.subr.mxu0 0.0
      %5580 = vmatpush2.msra.mxu0 0.0
      %5581 = vmatprep.subr.mxu0 0.0
      %5582 = vmatpush2.msra.mxu0 0.0
      %5583 = vmatprep.subr.mxu0 0.0
      %5584 = vmatpush2.msra.mxu0 0.0
      %5585 = vmatprep.subr.mxu0 0.0
      %5586 = vmatpush2.msra.mxu0 0.0
      %5587 = vmatprep.subr.mxu0 0.0
      %5588 = vmatpush2.msra.mxu0 0.0
      %5589 = vmatprep.subr.mxu0 0.0
      %5590 = vmatpush2.msra.mxu0 0.0
      %5591 = vmatprep.subr.mxu0 0.0
      %5592 = vmatpush2.msra.mxu0 0.0
      %5593 = vmatprep.mubr.f32.mxu0 0.0
      %5594 = vmatmul.mubr.f32.gmra.mxu0 %v5524
      %v5595 = vpop.f32.mrf.mxu0
      %v5596 = vadd.f32 0.0, %v5595
      %v5597 = vpop.f32.mrf.mxu0
      %5598 = vmatprep.mubr.f32.mxu0 0.0
      %5599 = vmatmul.mubr.f32.gmra.mxu0 %v5527
      %v5600 = vpop.f32.mrf.mxu0
      %v5601 = vadd.f32 0.0, %v5600
      %v5602 = vpop.f32.mrf.mxu0
      %5603 = vdwg.mxu0
      %5606 = vrot.lane.b32.xlu0 %v5422, 8
      %v5607 = vpop.permute.xlu0 %5606
      %5608 = vrot.lane.b32.xlu0 %v5427, 8
      %v5609 = vpop.permute.xlu0 %5608
      %5614 = vrot.lane.b32.xlu0 %v5509, 16
      %v5615 = vpop.permute.xlu0 %5614
      %5616 = vrot.lane.b32.xlu0 %v5514, 16
      %v5617 = vpop.permute.xlu0 %5616
      %5622 = vrot.lane.b32.xlu0 %v5596, 24
      %v5623 = vpop.permute.xlu0 %5622
      %5624 = vrot.lane.b32.xlu0 %v5601, 24
      %v5625 = vpop.permute.xlu0 %5624
      %v5628 = vsel %vm755, %v5335, %v5607
      %v5629 = vsel %vm755, %v5340, %v5609
      %v5630 = vsel %vm1100, %v5628, %v5615
      %v5631 = vsel %vm1100, %v5629, %v5617
      %v5632 = vsel %vm1565, %v5630, %v5623
      %v5633 = vsel %vm1565, %v5631, %v5625
      %s5634 = scalar_lea.vmem %s5, 96
      %v5635 = vld [vmem:[%s5634] sm:$0xff]
      %v5636 = vld [vmem:[%s5634 + $0x8] sm:$0xff]
      %v5637 = vld [vmem:[%s5634 + $0x10] sm:$0xff]
      %v5638 = vld [vmem:[%s5634 + $0x18] sm:$0xff]
      %s5639 = scalar_lea.vmem %s6, 3
      %v5640 = vld [vmem:[%s5639] sm:$0x1]
      %v5642 = vlaneseq
      %v5643 = vshrl.u32 %v5642, 7
      %v5644 = vsub.s32 0, %v5643
      %v5645 = vrot.slane %v5640, %v5644
      %v5648 = vsel %vm655, %v5632, 0
      %v5651 = vsel %vm655, %v5633, 0
      %5653 = vmatprep.subr.mxu0 0.0
      %5654 = vmatpush1.msra.mxu0 0.0
      %5655 = vmatprep.subr.mxu0 0.0
      %5656 = vmatpush1.msra.mxu0 0.0
      %5657 = vmatprep.subr.mxu0 0.0
      %5658 = vmatpush1.msra.mxu0 0.0
      %5659 = vmatprep.subr.mxu0 0.0
      %5660 = vmatpush1.msra.mxu0 0.0
      %5661 = vmatprep.subr.mxu0 0.0
      %5662 = vmatpush1.msra.mxu0 0.0
      %5663 = vmatprep.subr.mxu0 0.0
      %5664 = vmatpush1.msra.mxu0 0.0
      %5665 = vmatprep.subr.mxu0 0.0
      %5666 = vmatpush1.msra.mxu0 0.0
      %5667 = vmatprep.subr.mxu0 0.0
      %5668 = vmatpush1.msra.mxu0 0.0
      %5669 = vmatprep.subr.mxu0 0.0
      %5670 = vmatpush1.msra.mxu0 0.0
      %5671 = vmatprep.subr.mxu0 0.0
      %5672 = vmatpush1.msra.mxu0 0.0
      %5673 = vmatprep.subr.mxu0 0.0
      %5674 = vmatpush1.msra.mxu0 0.0
      %5675 = vmatprep.subr.mxu0 0.0
      %5676 = vmatpush1.msra.mxu0 0.0
      %5677 = vmatprep.subr.mxu0 0.0
      %5678 = vmatpush1.msra.mxu0 %v5638
      %5679 = vmatprep.subr.mxu0 0.0
      %5680 = vmatpush1.msra.mxu0 %v5637
      %5681 = vmatprep.subr.mxu0 0.0
      %5682 = vmatpush1.msra.mxu0 %v5636
      %5683 = vmatprep.subr.mxu0 0.0
      %5684 = vmatpush1.msra.mxu0 %v5635
      %5685 = vmatprep.subr.mxu0 0.0
      %5686 = vmatpush2.msra.mxu0 0.0
      %5687 = vmatprep.subr.mxu0 0.0
      %5688 = vmatpush2.msra.mxu0 0.0
      %5689 = vmatprep.subr.mxu0 0.0
      %5690 = vmatpush2.msra.mxu0 0.0
      %5691 = vmatprep.subr.mxu0 0.0
      %5692 = vmatpush2.msra.mxu0 0.0
      %5693 = vmatprep.subr.mxu0 0.0
      %5694 = vmatpush2.msra.mxu0 0.0
      %5695 = vmatprep.subr.mxu0 0.0
      %5696 = vmatpush2.msra.mxu0 0.0
      %5697 = vmatprep.subr.mxu0 0.0
      %5698 = vmatpush2.msra.mxu0 0.0
      %5699 = vmatprep.subr.mxu0 0.0
      %5700 = vmatpush2.msra.mxu0 0.0
      %5701 = vmatprep.subr.mxu0 0.0
      %5702 = vmatpush2.msra.mxu0 0.0
      %5703 = vmatprep.subr.mxu0 0.0
      %5704 = vmatpush2.msra.mxu0 0.0
      %5705 = vmatprep.subr.mxu0 0.0
      %5706 = vmatpush2.msra.mxu0 0.0
      %5707 = vmatprep.subr.mxu0 0.0
      %5708 = vmatpush2.msra.mxu0 0.0
      %5709 = vmatprep.subr.mxu0 0.0
      %5710 = vmatpush2.msra.mxu0 0.0
      %5711 = vmatprep.subr.mxu0 0.0
      %5712 = vmatpush2.msra.mxu0 0.0
      %5713 = vmatprep.subr.mxu0 0.0
      %5714 = vmatpush2.msra.mxu0 0.0
      %5715 = vmatprep.subr.mxu0 0.0
      %5716 = vmatpush2.msra.mxu0 0.0
      %5717 = vmatprep.mubr.f32.mxu0 0.0
      %5718 = vmatmul.mubr.f32.gmra.mxu0 %v5648
      %v5719 = vpop.f32.mrf.mxu0
      %v5720 = vadd.f32 %v5645, %v5719
      %v5721 = vpop.f32.mrf.mxu0
      %5722 = vmatprep.mubr.f32.mxu0 0.0
      %5723 = vmatmul.mubr.f32.gmra.mxu0 %v5651
      %v5724 = vpop.f32.mrf.mxu0
      %v5725 = vadd.f32 %v5645, %v5724
      %v5726 = vpop.f32.mrf.mxu0
      %5727 = vdwg.mxu0
      %v5728 = vadd.f32 %v4710, %v5720
      %v5729 = vadd.f32 %v4711, %v5725
      %s5730 = scalar_lea.vmem %s7, 3
      %v5731 = vld [vmem:[%s5730] sm:$0x1]
      %s5732 = scalar_lea.vmem %s8, 3
      %v5733 = vld [vmem:[%s5732] sm:$0x1]
      %v5734 = vsel %vm655, %v5728, 0.0
      %5735 = vadd.xlane.f32.xlu0 %v5734
      %v5736 = vpop.xlane.xlu0 %5735
      %v5737 = vsel %vm655, %v5729, 0.0
      %5738 = vadd.xlane.f32.xlu0 %v5737
      %v5739 = vpop.xlane.xlu0 %5738
      %v5740 = vmul.f32 %v5736, %v1670
      %v5741 = vmul.f32 %v5739, %v1670
      %v5742 = vsub.f32 %v5728, %v5740
      %v5743 = vsub.f32 %v5729, %v5741
      %v5744 = vmul.f32 %v5742, %v5742
      %v5745 = vmul.f32 %v5743, %v5743
      %v5746 = vsel %vm655, %v5744, 0.0
      %5747 = vadd.xlane.f32.xlu0 %v5746
      %v5748 = vpop.xlane.xlu0 %5747
      %v5749 = vsel %vm655, %v5745, 0.0
      %5750 = vadd.xlane.f32.xlu0 %v5749
      %v5751 = vpop.xlane.xlu0 %5750
      %v5752 = vmul.f32 %v5748, %v1670
      %v5753 = vmul.f32 %v5751, %v1670
      %v5754 = vadd.f32 %v5752, 1e-05
      %v5755 = vadd.f32 %v5753, 1e-05
      %v5756 = vrsqrt.pop %v5754
      %v5757 = vrsqrt.pop %v5755
      %v5758 = vmul.f32 %v5742, %v5756
      %v5759 = vmul.f32 %v5743, %v5757
      %v5761 = vlaneseq
      %v5762 = vshrl.u32 %v5761, 7
      %v5763 = vsub.s32 0, %v5762
      %v5764 = vrot.slane %v5731, %v5763
      %v5766 = vmul.f32 %v5758, %v5764
      %v5767 = vmul.f32 %v5759, %v5764
      %v5769 = vlaneseq
      %v5770 = vshrl.u32 %v5769, 7
      %v5771 = vsub.s32 0, %v5770
      %v5772 = vrot.slane %v5733, %v5771
      %v5774 = vadd.f32 %v5766, %v5772
      %v5775 = vadd.f32 %v5767, %v5772
      %s5776 = scalar_lea.vmem %s9, 96
      %v5777 = vld [vmem:[%s5776] sm:$0xff]
      %v5778 = vld [vmem:[%s5776 + $0x8] sm:$0xff]
      %v5779 = vld [vmem:[%s5776 + $0x10] sm:$0xff]
      %v5780 = vld [vmem:[%s5776 + $0x18] sm:$0xff]
      %s5781 = scalar_lea.vmem %s10, 3
      %v5782 = vld [vmem:[%s5781] sm:$0x1]
      %v5784 = vlaneseq
      %v5785 = vshrl.u32 %v5784, 7
      %v5786 = vsub.s32 0, %v5785
      %v5787 = vrot.slane %v5782, %v5786
      %v5790 = vsel %vm655, %v5774, 0
      %v5793 = vsel %vm655, %v5775, 0
      %5795 = vmatprep.subr.mxu0 0.0
      %5796 = vmatpush1.msra.mxu0 0.0
      %5797 = vmatprep.subr.mxu0 0.0
      %5798 = vmatpush1.msra.mxu0 0.0
      %5799 = vmatprep.subr.mxu0 0.0
      %5800 = vmatpush1.msra.mxu0 0.0
      %5801 = vmatprep.subr.mxu0 0.0
      %5802 = vmatpush1.msra.mxu0 0.0
      %5803 = vmatprep.subr.mxu0 0.0
      %5804 = vmatpush1.msra.mxu0 0.0
      %5805 = vmatprep.subr.mxu0 0.0
      %5806 = vmatpush1.msra.mxu0 0.0
      %5807 = vmatprep.subr.mxu0 0.0
      %5808 = vmatpush1.msra.mxu0 0.0
      %5809 = vmatprep.subr.mxu0 0.0
      %5810 = vmatpush1.msra.mxu0 0.0
      %5811 = vmatprep.subr.mxu0 0.0
      %5812 = vmatpush1.msra.mxu0 0.0
      %5813 = vmatprep.subr.mxu0 0.0
      %5814 = vmatpush1.msra.mxu0 0.0
      %5815 = vmatprep.subr.mxu0 0.0
      %5816 = vmatpush1.msra.mxu0 0.0
      %5817 = vmatprep.subr.mxu0 0.0
      %5818 = vmatpush1.msra.mxu0 0.0
      %5819 = vmatprep.subr.mxu0 0.0
      %5820 = vmatpush1.msra.mxu0 %v5780
      %5821 = vmatprep.subr.mxu0 0.0
      %5822 = vmatpush1.msra.mxu0 %v5779
      %5823 = vmatprep.subr.mxu0 0.0
      %5824 = vmatpush1.msra.mxu0 %v5778
      %5825 = vmatprep.subr.mxu0 0.0
      %5826 = vmatpush1.msra.mxu0 %v5777
      %5827 = vmatprep.subr.mxu0 0.0
      %5828 = vmatpush2.msra.mxu0 0.0
      %5829 = vmatprep.subr.mxu0 0.0
      %5830 = vmatpush2.msra.mxu0 0.0
      %5831 = vmatprep.subr.mxu0 0.0
      %5832 = vmatpush2.msra.mxu0 0.0
      %5833 = vmatprep.subr.mxu0 0.0
      %5834 = vmatpush2.msra.mxu0 0.0
      %5835 = vmatprep.subr.mxu0 0.0
      %5836 = vmatpush2.msra.mxu0 0.0
      %5837 = vmatprep.subr.mxu0 0.0
      %5838 = vmatpush2.msra.mxu0 0.0
      %5839 = vmatprep.subr.mxu0 0.0
      %5840 = vmatpush2.msra.mxu0 0.0
      %5841 = vmatprep.subr.mxu0 0.0
      %5842 = vmatpush2.msra.mxu0 0.0
      %5843 = vmatprep.subr.mxu0 0.0
      %5844 = vmatpush2.msra.mxu0 0.0
      %5845 = vmatprep.subr.mxu0 0.0
      %5846 = vmatpush2.msra.mxu0 0.0
      %5847 = vmatprep.subr.mxu0 0.0
      %5848 = vmatpush2.msra.mxu0 0.0
      %5849 = vmatprep.subr.mxu0 0.0
      %5850 = vmatpush2.msra.mxu0 0.0
      %5851 = vmatprep.subr.mxu0 0.0
      %5852 = vmatpush2.msra.mxu0 0.0
      %5853 = vmatprep.subr.mxu0 0.0
      %5854 = vmatpush2.msra.mxu0 0.0
      %5855 = vmatprep.subr.mxu0 0.0
      %5856 = vmatpush2.msra.mxu0 0.0
      %5857 = vmatprep.subr.mxu0 0.0
      %5858 = vmatpush2.msra.mxu0 0.0
      %5859 = vmatprep.mubr.f32.mxu0 0.0
      %5860 = vmatmul.mubr.f32.gmra.mxu0 %v5790
      %v5861 = vpop.f32.mrf.mxu0
      %v5862 = vadd.f32 %v5787, %v5861
      %v5863 = vpop.f32.mrf.mxu0
      %5864 = vmatprep.mubr.f32.mxu0 0.0
      %5865 = vmatmul.mubr.f32.gmra.mxu0 %v5793
      %v5866 = vpop.f32.mrf.mxu0
      %v5867 = vadd.f32 %v5787, %v5866
      %v5868 = vpop.f32.mrf.mxu0
      %5869 = vdwg.mxu0
      %v5870 = vmul.f32 %v5862, 0.5
      %v5871 = vmul.f32 %v5867, 0.5
      %v5872 = vmul.f32 %v5862, 0.70710677
      %v5873 = vmul.f32 %v5867, 0.70710677
      %vm5874 = vcmp.ge.f32.partialorder %v5872, 0.0
      %vm5875 = vcmp.ge.f32.partialorder %v5873, 0.0
      %v5876 = vsel %vm5874, 1.0, -1.0
      %v5877 = vsel %vm5875, 1.0, -1.0
      %v5878 = vand.u32 2147483647, %v5872
      %v5879 = vand.u32 2147483647, %v5873
      %v5880 = vmul.f32 %v5878, 0.3275911
      %v5881 = vmul.f32 %v5879, 0.3275911
      %v5882 = vadd.f32 %v5880, 1.0
      %v5883 = vadd.f32 %v5881, 1.0
      %v5884 = vrcp.pop %v5882
      %v5885 = vmul.f32 1.0, %v5884
      %v5886 = vrcp.pop %v5883
      %v5887 = vmul.f32 1.0, %v5886
      %v5888 = vmul.f32 %v5885, 1.0614054
      %v5889 = vmul.f32 %v5887, 1.0614054
      %v5890 = vadd.f32 %v5888, -1.4531521
      %v5891 = vadd.f32 %v5889, -1.4531521
      %v5892 = vmul.f32 %v5890, %v5885
      %v5893 = vmul.f32 %v5891, %v5887
      %v5894 = vadd.f32 %v5892, 1.4214138
      %v5895 = vadd.f32 %v5893, 1.4214138
      %v5896 = vmul.f32 %v5894, %v5885
      %v5897 = vmul.f32 %v5895, %v5887
      %v5898 = vadd.f32 %v5896, -0.28449672
      %v5899 = vadd.f32 %v5897, -0.28449672
      %v5900 = vmul.f32 %v5898, %v5885
      %v5901 = vmul.f32 %v5899, %v5887
      %v5902 = vadd.f32 %v5900, 0.2548296
      %v5903 = vadd.f32 %v5901, 0.2548296
      %v5904 = vmul.f32 %v5902, %v5885
      %v5905 = vmul.f32 %v5903, %v5887
      %v5906 = vsub.f32 0.0, %v5878
      %v5907 = vsub.f32 0.0, %v5879
      %v5908 = vmul.f32 %v5906, %v5878
      %v5909 = vmul.f32 %v5907, %v5879
      %v5910 = vmul.f32 %v5908, 1.442695
      %v5911 = vpow.pop %v5910
      %v5912 = vmul.f32 %v5909, 1.442695
      %v5913 = vpow.pop %v5912
      %v5914 = vmul.f32 %v5904, %v5911
      %v5915 = vmul.f32 %v5905, %v5913
      %v5916 = vsub.f32 1.0, %v5914
      %v5917 = vsub.f32 1.0, %v5915
      %v5918 = vmul.f32 %v5876, %v5916
      %v5919 = vmul.f32 %v5877, %v5917
      %v5920 = vadd.f32 %v5918, 1.0
      %v5921 = vadd.f32 %v5919, 1.0
      %v5922 = vmul.f32 %v5870, %v5920
      %v5923 = vmul.f32 %v5871, %v5921
      %s5924 = scalar_lea.vmem %s11, 192
      %v5925 = vld [vmem:[%s5924] sm:$0xff]
      %v5926 = vld [vmem:[%s5924 + $0x8] sm:$0xff]
      %v5927 = vld [vmem:[%s5924 + $0x10] sm:$0xff]
      %v5928 = vld [vmem:[%s5924 + $0x18] sm:$0xff]
      %v5929 = vld [vmem:[%s5924 + $0x20] sm:$0xff]
      %v5930 = vld [vmem:[%s5924 + $0x28] sm:$0xff]
      %v5931 = vld [vmem:[%s5924 + $0x30] sm:$0xff]
      %v5932 = vld [vmem:[%s5924 + $0x38] sm:$0xff]
      %s5933 = scalar_lea.vmem %s12, 3
      %v5934 = vld [vmem:[%s5933] sm:$0x1]
      %v5936 = vlaneseq
      %v5937 = vshrl.u32 %v5936, 7
      %v5938 = vsub.s32 0, %v5937
      %v5939 = vrot.slane %v5934, %v5938
      %v5942 = vsel %vm1868, %v5922, 0
      %v5945 = vsel %vm1868, %v5923, 0
      %5947 = vmatprep.subr.mxu0 0.0
      %5948 = vmatpush1.msra.mxu0 0.0
      %5949 = vmatprep.subr.mxu0 0.0
      %5950 = vmatpush1.msra.mxu0 0.0
      %5951 = vmatprep.subr.mxu0 0.0
      %5952 = vmatpush1.msra.mxu0 0.0
      %5953 = vmatprep.subr.mxu0 0.0
      %5954 = vmatpush1.msra.mxu0 0.0
      %5955 = vmatprep.subr.mxu0 0.0
      %5956 = vmatpush1.msra.mxu0 0.0
      %5957 = vmatprep.subr.mxu0 0.0
      %5958 = vmatpush1.msra.mxu0 0.0
      %5959 = vmatprep.subr.mxu0 0.0
      %5960 = vmatpush1.msra.mxu0 0.0
      %5961 = vmatprep.subr.mxu0 0.0
      %5962 = vmatpush1.msra.mxu0 0.0
      %5963 = vmatprep.subr.mxu0 0.0
      %5964 = vmatpush1.msra.mxu0 %v5932
      %5965 = vmatprep.subr.mxu0 0.0
      %5966 = vmatpush1.msra.mxu0 %v5931
      %5967 = vmatprep.subr.mxu0 0.0
      %5968 = vmatpush1.msra.mxu0 %v5930
      %5969 = vmatprep.subr.mxu0 0.0
      %5970 = vmatpush1.msra.mxu0 %v5929
      %5971 = vmatprep.subr.mxu0 0.0
      %5972 = vmatpush1.msra.mxu0 %v5928
      %5973 = vmatprep.subr.mxu0 0.0
      %5974 = vmatpush1.msra.mxu0 %v5927
      %5975 = vmatprep.subr.mxu0 0.0
      %5976 = vmatpush1.msra.mxu0 %v5926
      %5977 = vmatprep.subr.mxu0 0.0
      %5978 = vmatpush1.msra.mxu0 %v5925
      %5979 = vmatprep.subr.mxu0 0.0
      %5980 = vmatpush2.msra.mxu0 0.0
      %5981 = vmatprep.subr.mxu0 0.0
      %5982 = vmatpush2.msra.mxu0 0.0
      %5983 = vmatprep.subr.mxu0 0.0
      %5984 = vmatpush2.msra.mxu0 0.0
      %5985 = vmatprep.subr.mxu0 0.0
      %5986 = vmatpush2.msra.mxu0 0.0
      %5987 = vmatprep.subr.mxu0 0.0
      %5988 = vmatpush2.msra.mxu0 0.0
      %5989 = vmatprep.subr.mxu0 0.0
      %5990 = vmatpush2.msra.mxu0 0.0
      %5991 = vmatprep.subr.mxu0 0.0
      %5992 = vmatpush2.msra.mxu0 0.0
      %5993 = vmatprep.subr.mxu0 0.0
      %5994 = vmatpush2.msra.mxu0 0.0
      %5995 = vmatprep.subr.mxu0 0.0
      %5996 = vmatpush2.msra.mxu0 0.0
      %5997 = vmatprep.subr.mxu0 0.0
      %5998 = vmatpush2.msra.mxu0 0.0
      %5999 = vmatprep.subr.mxu0 0.0
      %6000 = vmatpush2.msra.mxu0 0.0
      %6001 = vmatprep.subr.mxu0 0.0
      %6002 = vmatpush2.msra.mxu0 0.0
      %6003 = vmatprep.subr.mxu0 0.0
      %6004 = vmatpush2.msra.mxu0 0.0
      %6005 = vmatprep.subr.mxu0 0.0
      %6006 = vmatpush2.msra.mxu0 0.0
      %6007 = vmatprep.subr.mxu0 0.0
      %6008 = vmatpush2.msra.mxu0 0.0
      %6009 = vmatprep.subr.mxu0 0.0
      %6010 = vmatpush2.msra.mxu0 0.0
      %6011 = vmatprep.mubr.f32.mxu0 0.0
      %6012 = vmatmul.mubr.f32.gmra.mxu0 %v5942
      %v6013 = vpop.f32.mrf.mxu0
      %v6014 = vadd.f32 %v5939, %v6013
      %v6015 = vpop.f32.mrf.mxu0
      %6016 = vmatprep.mubr.f32.mxu0 0.0
      %6017 = vmatmul.mubr.f32.gmra.mxu0 %v5945
      %v6018 = vpop.f32.mrf.mxu0
      %v6019 = vadd.f32 %v5939, %v6018
      %v6020 = vpop.f32.mrf.mxu0
      %6021 = vdwg.mxu0
      %v6022 = vadd.f32 %v5774, %v6014
      %v6023 = vadd.f32 %v5775, %v6019
      %s6024 = scalar_lea.vmem %s13, 3
      %v6025 = vld [vmem:[%s6024] sm:$0x1]
      %s6026 = scalar_lea.vmem %s14, 3
      %v6027 = vld [vmem:[%s6026] sm:$0x1]
      %v6028 = vsel %vm655, %v6022, 0.0
      %6029 = vadd.xlane.f32.xlu0 %v6028
      %v6030 = vpop.xlane.xlu0 %6029
      %v6031 = vsel %vm655, %v6023, 0.0
      %6032 = vadd.xlane.f32.xlu0 %v6031
      %v6033 = vpop.xlane.xlu0 %6032
      %v6034 = vmul.f32 %v6030, %v1670
      %v6035 = vmul.f32 %v6033, %v1670
      %v6036 = vsub.f32 %v6022, %v6034
      %v6037 = vsub.f32 %v6023, %v6035
      %v6038 = vmul.f32 %v6036, %v6036
      %v6039 = vmul.f32 %v6037, %v6037
      %v6040 = vsel %vm655, %v6038, 0.0
      %6041 = vadd.xlane.f32.xlu0 %v6040
      %v6042 = vpop.xlane.xlu0 %6041
      %v6043 = vsel %vm655, %v6039, 0.0
      %6044 = vadd.xlane.f32.xlu0 %v6043
      %v6045 = vpop.xlane.xlu0 %6044
      %v6046 = vmul.f32 %v6042, %v1670
      %v6047 = vmul.f32 %v6045, %v1670
      %v6048 = vadd.f32 %v6046, 1e-05
      %v6049 = vadd.f32 %v6047, 1e-05
      %v6050 = vrsqrt.pop %v6048
      %v6051 = vrsqrt.pop %v6049
      %v6052 = vmul.f32 %v6036, %v6050
      %v6053 = vmul.f32 %v6037, %v6051
      %v6055 = vlaneseq
      %v6056 = vshrl.u32 %v6055, 7
      %v6057 = vsub.s32 0, %v6056
      %v6058 = vrot.slane %v6025, %v6057
      %v6060 = vmul.f32 %v6052, %v6058
      %v6061 = vmul.f32 %v6053, %v6058
      %v6063 = vlaneseq
      %v6064 = vshrl.u32 %v6063, 7
      %v6065 = vsub.s32 0, %v6064
      %v6066 = vrot.slane %v6027, %v6065
      %v6068 = vadd.f32 %v6060, %v6066
      %v6069 = vadd.f32 %v6061, %v6066
      %v6070 = vld [vmem:[%s15] sm:$0xff]
      %v6071 = vld [vmem:[%s15 + $0x8] sm:$0xff]
      %v6072 = vld [vmem:[%s15 + $0x10] sm:$0xff]
      %v6073 = vld [vmem:[%s15 + $0x18] sm:$0xff]
      %v6074 = vld [vmem:[%s16] sm:$0x1]
      %v6076 = vlaneseq
      %v6077 = vshrl.u32 %v6076, 7
      %v6078 = vsub.s32 0, %v6077
      %v6079 = vrot.slane %v6074, %v6078
      %v6082 = vsel %vm655, %v6068, 0
      %v6085 = vsel %vm655, %v6069, 0
      %6087 = vmatprep.subr.mxu0 0.0
      %6088 = vmatpush1.msra.mxu0 0.0
      %6089 = vmatprep.subr.mxu0 0.0
      %6090 = vmatpush1.msra.mxu0 0.0
      %6091 = vmatprep.subr.mxu0 0.0
      %6092 = vmatpush1.msra.mxu0 0.0
      %6093 = vmatprep.subr.mxu0 0.0
      %6094 = vmatpush1.msra.mxu0 0.0
      %6095 = vmatprep.subr.mxu0 0.0
      %6096 = vmatpush1.msra.mxu0 0.0
      %6097 = vmatprep.subr.mxu0 0.0
      %6098 = vmatpush1.msra.mxu0 0.0
      %6099 = vmatprep.subr.mxu0 0.0
      %6100 = vmatpush1.msra.mxu0 0.0
      %6101 = vmatprep.subr.mxu0 0.0
      %6102 = vmatpush1.msra.mxu0 0.0
      %6103 = vmatprep.subr.mxu0 0.0
      %6104 = vmatpush1.msra.mxu0 0.0
      %6105 = vmatprep.subr.mxu0 0.0
      %6106 = vmatpush1.msra.mxu0 0.0
      %6107 = vmatprep.subr.mxu0 0.0
      %6108 = vmatpush1.msra.mxu0 0.0
      %6109 = vmatprep.subr.mxu0 0.0
      %6110 = vmatpush1.msra.mxu0 0.0
      %6111 = vmatprep.subr.mxu0 0.0
      %6112 = vmatpush1.msra.mxu0 %v6073
      %6113 = vmatprep.subr.mxu0 0.0
      %6114 = vmatpush1.msra.mxu0 %v6072
      %6115 = vmatprep.subr.mxu0 0.0
      %6116 = vmatpush1.msra.mxu0 %v6071
      %6117 = vmatprep.subr.mxu0 0.0
      %6118 = vmatpush1.msra.mxu0 %v6070
      %6119 = vmatprep.subr.mxu0 0.0
      %6120 = vmatpush2.msra.mxu0 0.0
      %6121 = vmatprep.subr.mxu0 0.0
      %6122 = vmatpush2.msra.mxu0 0.0
      %6123 = vmatprep.subr.mxu0 0.0
      %6124 = vmatpush2.msra.mxu0 0.0
      %6125 = vmatprep.subr.mxu0 0.0
      %6126 = vmatpush2.msra.mxu0 0.0
      %6127 = vmatprep.subr.mxu0 0.0
      %6128 = vmatpush2.msra.mxu0 0.0
      %6129 = vmatprep.subr.mxu0 0.0
      %6130 = vmatpush2.msra.mxu0 0.0
      %6131 = vmatprep.subr.mxu0 0.0
      %6132 = vmatpush2.msra.mxu0 0.0
      %6133 = vmatprep.subr.mxu0 0.0
      %6134 = vmatpush2.msra.mxu0 0.0
      %6135 = vmatprep.subr.mxu0 0.0
      %6136 = vmatpush2.msra.mxu0 0.0
      %6137 = vmatprep.subr.mxu0 0.0
      %6138 = vmatpush2.msra.mxu0 0.0
      %6139 = vmatprep.subr.mxu0 0.0
      %6140 = vmatpush2.msra.mxu0 0.0
      %6141 = vmatprep.subr.mxu0 0.0
      %6142 = vmatpush2.msra.mxu0 0.0
      %6143 = vmatprep.subr.mxu0 0.0
      %6144 = vmatpush2.msra.mxu0 0.0
      %6145 = vmatprep.subr.mxu0 0.0
      %6146 = vmatpush2.msra.mxu0 0.0
      %6147 = vmatprep.subr.mxu0 0.0
      %6148 = vmatpush2.msra.mxu0 0.0
      %6149 = vmatprep.subr.mxu0 0.0
      %6150 = vmatpush2.msra.mxu0 0.0
      %6151 = vmatprep.mubr.f32.mxu0 0.0
      %6152 = vmatmul.mubr.f32.gmra.mxu0 %v6082
      %v6153 = vpop.f32.mrf.mxu0
      %v6154 = vadd.f32 %v6079, %v6153
      %v6155 = vpop.f32.mrf.mxu0
      %6156 = vmatprep.mubr.f32.mxu0 0.0
      %6157 = vmatmul.mubr.f32.gmra.mxu0 %v6085
      %v6158 = vpop.f32.mrf.mxu0
      %v6159 = vadd.f32 %v6079, %v6158
      %v6160 = vpop.f32.mrf.mxu0
      %6161 = vdwg.mxu0
      %v6162 = vmax.f32 %v6154, 0.0
      %v6163 = vmax.f32 %v6159, 0.0
      %v6164 = vmin.f32 %v6162, 255.0
      %v6165 = vmin.f32 %v6163, 255.0
      %6166 = vst [vmem:[%s550] sm:$0xff] %v6164
      %6167 = vst [vmem:[%s550 + $0x8] sm:$0xff] %v6165
      %s6168 = smul.u32 2, %s28
      %p6169 = scmp.lt.s32.totalorder %s6168, 3
      %s6170 = scalar_select %p6169, %s6168, 3
      %s6171 = smul.addr %s6170, 8
      %s6172 = scalar_lea.vmem %s17, %s6171
      // Predicated region
      $region89: #{rect_vit_forward.1} parent=87 // pred_check
        %p6173 = pneg %p408
      $region90: #{rect_vit_forward.1} parent=87 // pred_check_branch
        %6175 = sbr.rel (%p6173) target = $region92
      $region91: #{rect_vit_forward.1} parent=87 // pred_region
        %s6176 = smul.u32 2, %s28
      $region92: #{rect_vit_forward.1} parent=87 // pred_fallthru
        _
    $region88: #{rect_vit_forward.1} parent=5 // pred_fallthru
      _
    %p6177 = scmp.le.s32.totalorder 2, %s23
    // Predicated region
    $region93: #{rect_vit_forward.1} parent=5 // pred_check
      %p6178 = pneg %p6177
    $region94: #{rect_vit_forward.1} parent=5 // pred_check_branch
      %6180 = sbr.rel (%p6178) target = $region96
    $region95: #{rect_vit_forward.1} parent=5 // pred_region
      %s6181 = ssub.s32 %s23, 2
      // Predicated region
      $region97: #{rect_vit_forward.1} parent=95 // pred_check
        %p6182 = pneg %p414
      $region98: #{rect_vit_forward.1} parent=95 // pred_check_branch
        %6184 = sbr.rel (%p6182) target = $region100
      $region99: #{rect_vit_forward.1} parent=95 // pred_region
        %s6185 = smul.u32 2, %s29
        %p6186 = scmp.lt.s32.totalorder %s6185, 3
        %s6187 = scalar_select %p6186, %s6185, 3
        %s6188 = smul.addr %s6187, 8
        %s6189 = scalar_lea.vmem %s17, %s6188
      $region100: #{rect_vit_forward.1} parent=95 // pred_fallthru
        _
    $region96: #{rect_vit_forward.1} parent=5 // pred_fallthru
      _
  $region6: #{rect_vit_forward.1} parent=0 // loop_footer
    %s27 = sadd.s32 1, %s23
  $region7: #{rect_vit_forward.1} parent=0 // loop_footer_branch
    %22 = sbr.rel target = $region3
  $region8: #{rect_vit_forward.1} parent=0 // loop_exit
    _

</llo_original>
